<compile_context>
chip_gen: v7x
topology: tpu7x:2x2x1
jax: 0.10.0
libtpu: 0.0.40
codegen_flags: <defaults>
</compile_context>

<pallas_src>
import functools

import numpy as np
import jax
import jax.numpy as jnp
from jax import lax
from jax.experimental import pallas as pl
from jax.experimental.pallas import tpu as pltpu

LANE = 128


def _round_up(v, m):
    return (v + m - 1) // m * m


def disc_block_kernel(x_ref, w1_ref, b1_ref, w2c_ref, bres_ref,
                      out_ref, xpad_ref, hpad_ref, pool_ref, *, H, W, Cin, Cout):
    """One batch element per grid step.  C* are lane-padded (multiples of 128).

      x_ref    : (1, H, W, Cin)            bf16
      w1_ref   : (9*Cin, Cout)             bf16  (flattened 3x3 conv1, HWIO order)
      b1_ref   : (1, Cout)                 f32
      w2c_ref  : (9*Cout + Cin, Cout)      bf16  (flattened 3x3 conv2 || 1x1 conv0)
      bres_ref : (1, Cout)                 f32   (b2 + b0, added post-pooling)
      out_ref  : (1, H//2, W//2, Cout)     f32
      xpad_ref : (H+2, W+2, Cin)           bf16 scratch (zero border, relu(x) interior)
      hpad_ref : (H+2, W+2, Cout)          bf16 scratch (zero border, relu(conv1) interior)
      pool_ref : (H//2 * W, Cout)          f32  scratch for the W-direction pooling
    """
    Hp, Wp = H // 2, W // 2
    f32 = jnp.float32

    # Re-zero only the 1-wide borders of the persistent pad scratches (interior is
    # fully overwritten below; scratch memory is reused across grid steps / cores,
    # so borders cannot rely on a program_id==0 one-time init under megacore).
    for ref, C in ((xpad_ref, Cin), (hpad_ref, Cout)):
        zrow = jnp.zeros((1, W + 2, C), ref.dtype)
        zcol = jnp.zeros((H + 2, 1, C), ref.dtype)
        ref[0:1, :, :] = zrow
        ref[H + 1:H + 2, :, :] = zrow
        ref[:, 0:1, :] = zcol
        ref[:, W + 1:W + 2, :] = zcol

    x = x_ref[0]                                             # (H, W, Cin) bf16
    x_flat = x.reshape(H * W, Cin)

    # ---- conv2d1: relu -> 3x3 conv, as one im2col matmul (K = 9*Cin) --------
    # (ReLU commutes with zero padding, so padding the ReLU'd tensor is exact.)
    xpad_ref[1:H + 1, 1:W + 1, :] = jnp.maximum(x, 0)
    p1 = jnp.concatenate(
        [xpad_ref[ky:ky + H, kx:kx + W, :].reshape(H * W, Cin)
         for ky in range(3) for kx in range(3)], axis=-1)    # (H*W, 9*Cin) bf16
    h = jnp.dot(p1, w1_ref[...], preferred_element_type=f32) + b1_ref[...]

    # ---- conv2d2 fused with the residual 1x1 conv into ONE matmul -----------
    #   [p2 | x] @ [[W2],[W0]]  =  conv2(relu(h)) + x @ W0     (biases deferred)
    h = jnp.maximum(h, 0.0)
    hpad_ref[1:H + 1, 1:W + 1, :] = h.reshape(H, W, Cout).astype(hpad_ref.dtype)
    p2x = jnp.concatenate(
        [hpad_ref[ky:ky + H, kx:kx + W, :].reshape(H * W, Cout)
         for ky in range(3) for kx in range(3)] + [x_flat],
        axis=-1)                                             # (H*W, 9*Cout+Cin) bf16
    z = jnp.dot(p2x, w2c_ref[...], preferred_element_type=f32)   # (H*W, Cout) f32

    # ---- fused 2x2 / stride-2 average pooling on the VPU ---------------------
    # H direction: rows are ordered h*W + w, so grouping 2W rows per pooled row
    # makes the H-pair partners two contiguous halves -> plain adds, no strides.
    z2 = z.reshape(Hp, 2 * W, Cout)
    rh = z2[:, :W, :] + z2[:, W:, :]                         # (Hp, W, Cout)
    # W direction: adjacent row pairs of the flattened (Hp*W, Cout) matrix,
    # selected with stride-2 loads from a small VMEM scratch.
    pool_ref[...] = rh.reshape(Hp * W, Cout)
    pooled = (pool_ref[pl.ds(0, Hp * Wp, stride=2), :]
              + pool_ref[pl.ds(1, Hp * Wp, stride=2), :]) * 0.25 + bres_ref[...]
    out_ref[0] = pooled.reshape(Hp, Wp, Cout).astype(out_ref.dtype)


def _vmem_limit_bytes(H, W, Cin, Cout):
    bf, f4 = 2, 4
    Hp, Wp = H // 2, W // 2
    x_blk = H * W * Cin * bf
    o_blk = Hp * Wp * Cout * f4
    wts = (9 * Cin + 9 * Cout + Cin) * Cout * bf + 2 * Cout * f4
    scratch = (H + 2) * (W + 2) * (Cin + Cout) * bf + Hp * W * Cout * f4
    live = H * W * (9 * max(Cin, Cout) + Cin) * bf + 3 * H * W * Cout * f4
    total = 2 * (x_blk + o_blk) + 2 * wts + scratch + live
    # Cap at 64 MiB (v7x physical VMEM), floor at the 32 MiB scoped default.
    return int(min(max(2 * total, 32 * 1024 * 1024), 64 * 1024 * 1024))


def disc_block_forward(x_nchw, w1, b1, w2, b2, w0, b0):
    """x_nchw: (N, Cin, H, W) f32.  w1: (3,3,Cin,Cout) HWIO, w2: (3,3,Cout,Cout),
    w0: (Cin, Cout), b*: (Cout,).  Returns (N, Cout, H//2, W//2) f32."""
    N, Cin, H, W = x_nchw.shape
    Cout = w1.shape[-1]
    assert H % 2 == 0 and W % 8 == 0, "kernel assumes even H and W % 8 == 0"
    Hp, Wp = H // 2, W // 2
    Cin_p, Cout_p = _round_up(Cin, LANE), _round_up(Cout, LANE)
    dci, dco = Cin_p - Cin, Cout_p - Cout

    # NCHW -> NHWC, zero-pad channels to lane multiples, bf16 for the MXU.
    x = jnp.transpose(x_nchw, (0, 2, 3, 1))
    x = jnp.pad(x, ((0, 0), (0, 0), (0, 0), (0, dci))).astype(jnp.bfloat16)

    w1f = jnp.pad(w1, ((0, 0), (0, 0), (0, dci), (0, dco))
                  ).reshape(9 * Cin_p, Cout_p).astype(jnp.bfloat16)
    w2f = jnp.pad(w2, ((0, 0), (0, 0), (0, dco), (0, dco))
                  ).reshape(9 * Cout_p, Cout_p).astype(jnp.bfloat16)
    w0f = jnp.pad(w0, ((0, dci), (0, dco))).astype(jnp.bfloat16)
    # Fused conv2 + residual weight: [[W2],[W0]] so one matmul covers both paths.
    w2c = jnp.concatenate([w2f, w0f], axis=0)                # (9*Cout_p+Cin_p, Cout_p)
    b1f = jnp.pad(b1, (0, dco)).reshape(1, Cout_p).astype(jnp.float32)
    bres = jnp.pad(b2 + b0, (0, dco)).reshape(1, Cout_p).astype(jnp.float32)

    kern = functools.partial(disc_block_kernel, H=H, W=W, Cin=Cin_p, Cout=Cout_p)

    out = pl.pallas_call(
        kern,
        out_shape=jax.ShapeDtypeStruct((N, Hp, Wp, Cout_p), jnp.float32),
        grid_spec=pltpu.PrefetchScalarGridSpec(
            num_scalar_prefetch=0,
            grid=(N,),
            in_specs=[
                pl.BlockSpec((1, H, W, Cin_p), lambda n: (n, 0, 0, 0)),
                # Constant-index weight/bias specs stay resident across the grid.
                pl.BlockSpec((9 * Cin_p, Cout_p), lambda n: (0, 0)),
                pl.BlockSpec((1, Cout_p), lambda n: (0, 0)),
                pl.BlockSpec((9 * Cout_p + Cin_p, Cout_p), lambda n: (0, 0)),
                pl.BlockSpec((1, Cout_p), lambda n: (0, 0)),
            ],
            out_specs=pl.BlockSpec((1, Hp, Wp, Cout_p), lambda n: (n, 0, 0, 0)),
            scratch_shapes=[
                pltpu.VMEM((H + 2, W + 2, Cin_p), jnp.bfloat16),
                pltpu.VMEM((H + 2, W + 2, Cout_p), jnp.bfloat16),
                pltpu.VMEM((Hp * W, Cout_p), jnp.float32),
            ],
        ),
        compiler_params=pltpu.CompilerParams(
            dimension_semantics=("parallel",),
            vmem_limit_bytes=_vmem_limit_bytes(H, W, Cin_p, Cout_p),
        ),
    )(x, w1f, b1f, w2c, bres)

    out = out[..., :Cout]                                  # drop channel padding
    return jnp.transpose(out, (0, 3, 1, 2))                # back to NCHW


# ----------------------- pure-JAX reference (for verification) ---------------
def _avgpool2(t):
    N, H, W, C = t.shape
    return t.reshape(N, H // 2, 2, W // 2, 2, C).mean(axis=(2, 4))


def disc_block_reference(x_nchw, w1, b1, w2, b2, w0, b0):
    dn = ('NHWC', 'HWIO', 'NHWC')
    x = jnp.transpose(x_nchw, (0, 2, 3, 1))
    h = jax.nn.relu(x)
    h = lax.conv_general_dilated(h, w1, (1, 1), 'SAME', dimension_numbers=dn) + b1
    h = jax.nn.relu(h)
    y = lax.conv_general_dilated(h, w2, (1, 1), 'SAME', dimension_numbers=dn) + b2
    y = _avgpool2(y)
    r = lax.conv_general_dilated(x, w0[None, None], (1, 1), 'SAME',
                                 dimension_numbers=dn) + b0
    r = _avgpool2(r)
    return jnp.transpose(y + r, (0, 3, 1, 2))


if __name__ == "__main__":
    key = jax.random.PRNGKey(0)
    N, Cin, Cout, H, W = 2, 4, 8, 16, 16
    ks = jax.random.split(key, 7)
    x = jax.random.normal(ks[0], (N, Cin, H, W), jnp.float32)
    w1 = jax.random.normal(ks[1], (3, 3, Cin, Cout), jnp.float32) * 0.1   # conv2d1
    b1 = jax.random.normal(ks[2], (Cout,), jnp.float32) * 0.1
    w2 = jax.random.normal(ks[3], (3, 3, Cout, Cout), jnp.float32) * 0.1  # conv2d2
    b2 = jax.random.normal(ks[4], (Cout,), jnp.float32) * 0.1
    w0 = jax.random.normal(ks[5], (Cin, Cout), jnp.float32) * 0.1         # conv2d0
    b0 = jax.random.normal(ks[6], (Cout,), jnp.float32) * 0.1

    # The kernel computes on bf16 inputs/weights (f32 accumulation); compare
    # against an f32 reference fed the same bf16-rounded values.
    rnd = lambda a: a.astype(jnp.bfloat16).astype(jnp.float32)
    x, w1, w2, w0 = rnd(x), rnd(w1), rnd(w2), rnd(w0)

    out = jax.jit(disc_block_forward)(x, w1, b1, w2, b2, w0, b0)
    out = jax.block_until_ready(out)

    ref = disc_block_reference(x, w1, b1, w2, b2, w0, b0)
    np.testing.assert_allclose(np.asarray(out), np.asarray(ref),
                               rtol=1e-2, atol=1e-2)
    print("KERNEL_OK")
</pallas_src>

<mosaic_0001>
module attributes {stable_mosaic.version = 11 : i64} {
  func.func @disc_block_kernel(%arg0: i32, %arg1: memref<1x16x16x128xbf16, #tpu.memory_space<vmem>>, %arg2: memref<1152x128xbf16, #tpu.memory_space<vmem>>, %arg3: memref<1x128xf32, #tpu.memory_space<vmem>>, %arg4: memref<1280x128xbf16, #tpu.memory_space<vmem>>, %arg5: memref<1x128xf32, #tpu.memory_space<vmem>>, %arg6: memref<1x8x8x128xf32, #tpu.memory_space<vmem>>, %arg7: memref<18x18x128xbf16, #tpu.memory_space<vmem>>, %arg8: memref<18x18x128xbf16, #tpu.memory_space<vmem>>, %arg9: memref<128x128xf32, #tpu.memory_space<vmem>>) attributes {dimension_semantics = [#tpu.dimension_semantics<parallel>], iteration_bounds = array<i64: 2>, scalar_prefetch = 0 : i64, scratch_operands = 3 : i64, tpu.core_type = #tpu.core_type<tc>, window_params = [{transform_indices = @transform_0, window_bounds = array<i64: 1, 16, 16, 128>}, {pipeline_mode = #tpu.pipeline_mode<synchronous>, transform_indices = @transform_1, window_bounds = array<i64: 1152, 128>}, {pipeline_mode = #tpu.pipeline_mode<synchronous>, transform_indices = @transform_2, window_bounds = array<i64: 1, 128>}, {pipeline_mode = #tpu.pipeline_mode<synchronous>, transform_indices = @transform_3, window_bounds = array<i64: 1280, 128>}, {pipeline_mode = #tpu.pipeline_mode<synchronous>, transform_indices = @transform_4, window_bounds = array<i64: 1, 128>}, {transform_indices = @transform_5, window_bounds = array<i64: 1, 8, 8, 128>}]} {
    %cst = arith.constant 0.000000e+00 : bf16
    %0 = vector.broadcast %cst : bf16 to vector<1x18x128xbf16>
    %cst_0 = arith.constant 0.000000e+00 : bf16
    %1 = vector.broadcast %cst_0 : bf16 to vector<18x1x128xbf16>
    %c0 = arith.constant 0 : index
    %c0_1 = arith.constant 0 : index
    %c0_2 = arith.constant 0 : index
    %2 = vector.load %arg7[%c0, %c0_1, %c0_2] : memref<18x18x128xbf16, #tpu.memory_space<vmem>>, vector<1x18x128xbf16>
    tpu.vector_store %arg7[%c0, %c0_1, %c0_2], %0 {strides = array<i32>} : memref<18x18x128xbf16, #tpu.memory_space<vmem>>, vector<1x18x128xbf16>,
    %c17 = arith.constant 17 : index
    %c0_3 = arith.constant 0 : index
    %c0_4 = arith.constant 0 : index
    %3 = vector.load %arg7[%c17, %c0_3, %c0_4] : memref<18x18x128xbf16, #tpu.memory_space<vmem>>, vector<1x18x128xbf16>
    tpu.vector_store %arg7[%c17, %c0_3, %c0_4], %0 {strides = array<i32>} : memref<18x18x128xbf16, #tpu.memory_space<vmem>>, vector<1x18x128xbf16>,
    %c0_5 = arith.constant 0 : index
    %c0_6 = arith.constant 0 : index
    %c0_7 = arith.constant 0 : index
    %4 = vector.load %arg7[%c0_5, %c0_6, %c0_7] : memref<18x18x128xbf16, #tpu.memory_space<vmem>>, vector<18x1x128xbf16>
    tpu.vector_store %arg7[%c0_5, %c0_6, %c0_7], %1 {strides = array<i32>} : memref<18x18x128xbf16, #tpu.memory_space<vmem>>, vector<18x1x128xbf16>,
    %c0_8 = arith.constant 0 : index
    %c17_9 = arith.constant 17 : index
    %c0_10 = arith.constant 0 : index
    %5 = vector.load %arg7[%c0_8, %c17_9, %c0_10] : memref<18x18x128xbf16, #tpu.memory_space<vmem>>, vector<18x1x128xbf16>
    tpu.vector_store %arg7[%c0_8, %c17_9, %c0_10], %1 {strides = array<i32>} : memref<18x18x128xbf16, #tpu.memory_space<vmem>>, vector<18x1x128xbf16>,
    %cst_11 = arith.constant 0.000000e+00 : bf16
    %6 = vector.broadcast %cst_11 : bf16 to vector<1x18x128xbf16>
    %cst_12 = arith.constant 0.000000e+00 : bf16
    %7 = vector.broadcast %cst_12 : bf16 to vector<18x1x128xbf16>
    %c0_13 = arith.constant 0 : index
    %c0_14 = arith.constant 0 : index
    %c0_15 = arith.constant 0 : index
    %8 = vector.load %arg8[%c0_13, %c0_14, %c0_15] : memref<18x18x128xbf16, #tpu.memory_space<vmem>>, vector<1x18x128xbf16>
    tpu.vector_store %arg8[%c0_13, %c0_14, %c0_15], %6 {strides = array<i32>} : memref<18x18x128xbf16, #tpu.memory_space<vmem>>, vector<1x18x128xbf16>,
    %c17_16 = arith.constant 17 : index
    %c0_17 = arith.constant 0 : index
    %c0_18 = arith.constant 0 : index
    %9 = vector.load %arg8[%c17_16, %c0_17, %c0_18] : memref<18x18x128xbf16, #tpu.memory_space<vmem>>, vector<1x18x128xbf16>
    tpu.vector_store %arg8[%c17_16, %c0_17, %c0_18], %6 {strides = array<i32>} : memref<18x18x128xbf16, #tpu.memory_space<vmem>>, vector<1x18x128xbf16>,
    %c0_19 = arith.constant 0 : index
    %c0_20 = arith.constant 0 : index
    %c0_21 = arith.constant 0 : index
    %10 = vector.load %arg8[%c0_19, %c0_20, %c0_21] : memref<18x18x128xbf16, #tpu.memory_space<vmem>>, vector<18x1x128xbf16>
    tpu.vector_store %arg8[%c0_19, %c0_20, %c0_21], %7 {strides = array<i32>} : memref<18x18x128xbf16, #tpu.memory_space<vmem>>, vector<18x1x128xbf16>,
    %c0_22 = arith.constant 0 : index
    %c17_23 = arith.constant 17 : index
    %c0_24 = arith.constant 0 : index
    %11 = vector.load %arg8[%c0_22, %c17_23, %c0_24] : memref<18x18x128xbf16, #tpu.memory_space<vmem>>, vector<18x1x128xbf16>
    tpu.vector_store %arg8[%c0_22, %c17_23, %c0_24], %7 {strides = array<i32>} : memref<18x18x128xbf16, #tpu.memory_space<vmem>>, vector<18x1x128xbf16>,
    %c0_25 = arith.constant 0 : index
    %c0_26 = arith.constant 0 : index
    %c0_27 = arith.constant 0 : index
    %c0_28 = arith.constant 0 : index
    %12 = vector.load %arg1[%c0_25, %c0_26, %c0_27, %c0_28] : memref<1x16x16x128xbf16, #tpu.memory_space<vmem>>, vector<1x16x16x128xbf16>
    %13 = vector.shape_cast %12 : vector<1x16x16x128xbf16> to vector<16x16x128xbf16>
    %14 = vector.shape_cast %13 : vector<16x16x128xbf16> to vector<256x128xbf16>
    %cst_29 = arith.constant 0.000000e+00 : bf16
    %15 = vector.broadcast %cst_29 : bf16 to vector<16x16x128xbf16>
    %16 = arith.maximumf %13, %15 : vector<16x16x128xbf16>
    %c1 = arith.constant 1 : index
    %c1_30 = arith.constant 1 : index
    %c0_31 = arith.constant 0 : index
    %17 = vector.load %arg7[%c1, %c1_30, %c0_31] : memref<18x18x128xbf16, #tpu.memory_space<vmem>>, vector<16x16x128xbf16>
    tpu.vector_store %arg7[%c1, %c1_30, %c0_31], %16 {strides = array<i32>} : memref<18x18x128xbf16, #tpu.memory_space<vmem>>, vector<16x16x128xbf16>,
    %c0_32 = arith.constant 0 : index
    %c0_33 = arith.constant 0 : index
    %c0_34 = arith.constant 0 : index
    %18 = vector.load %arg7[%c0_32, %c0_33, %c0_34] : memref<18x18x128xbf16, #tpu.memory_space<vmem>>, vector<16x16x128xbf16>
    %19 = vector.shape_cast %18 : vector<16x16x128xbf16> to vector<256x128xbf16>
    %c0_35 = arith.constant 0 : index
    %c1_36 = arith.constant 1 : index
    %c0_37 = arith.constant 0 : index
    %20 = vector.load %arg7[%c0_35, %c1_36, %c0_37] : memref<18x18x128xbf16, #tpu.memory_space<vmem>>, vector<16x16x128xbf16>
    %21 = vector.shape_cast %20 : vector<16x16x128xbf16> to vector<256x128xbf16>
    %c0_38 = arith.constant 0 : index
    %c2 = arith.constant 2 : index
    %c0_39 = arith.constant 0 : index
    %22 = vector.load %arg7[%c0_38, %c2, %c0_39] : memref<18x18x128xbf16, #tpu.memory_space<vmem>>, vector<16x16x128xbf16>
    %23 = vector.shape_cast %22 : vector<16x16x128xbf16> to vector<256x128xbf16>
    %c1_40 = arith.constant 1 : index
    %c0_41 = arith.constant 0 : index
    %c0_42 = arith.constant 0 : index
    %24 = vector.load %arg7[%c1_40, %c0_41, %c0_42] : memref<18x18x128xbf16, #tpu.memory_space<vmem>>, vector<16x16x128xbf16>
    %25 = vector.shape_cast %24 : vector<16x16x128xbf16> to vector<256x128xbf16>
    %c1_43 = arith.constant 1 : index
    %c1_44 = arith.constant 1 : index
    %c0_45 = arith.constant 0 : index
    %26 = vector.load %arg7[%c1_43, %c1_44, %c0_45] : memref<18x18x128xbf16, #tpu.memory_space<vmem>>, vector<16x16x128xbf16>
    %27 = vector.shape_cast %26 : vector<16x16x128xbf16> to vector<256x128xbf16>
    %c1_46 = arith.constant 1 : index
    %c2_47 = arith.constant 2 : index
    %c0_48 = arith.constant 0 : index
    %28 = vector.load %arg7[%c1_46, %c2_47, %c0_48] : memref<18x18x128xbf16, #tpu.memory_space<vmem>>, vector<16x16x128xbf16>
    %29 = vector.shape_cast %28 : vector<16x16x128xbf16> to vector<256x128xbf16>
    %c2_49 = arith.constant 2 : index
    %c0_50 = arith.constant 0 : index
    %c0_51 = arith.constant 0 : index
    %30 = vector.load %arg7[%c2_49, %c0_50, %c0_51] : memref<18x18x128xbf16, #tpu.memory_space<vmem>>, vector<16x16x128xbf16>
    %31 = vector.shape_cast %30 : vector<16x16x128xbf16> to vector<256x128xbf16>
    %c2_52 = arith.constant 2 : index
    %c1_53 = arith.constant 1 : index
    %c0_54 = arith.constant 0 : index
    %32 = vector.load %arg7[%c2_52, %c1_53, %c0_54] : memref<18x18x128xbf16, #tpu.memory_space<vmem>>, vector<16x16x128xbf16>
    %33 = vector.shape_cast %32 : vector<16x16x128xbf16> to vector<256x128xbf16>
    %c2_55 = arith.constant 2 : index
    %c2_56 = arith.constant 2 : index
    %c0_57 = arith.constant 0 : index
    %34 = vector.load %arg7[%c2_55, %c2_56, %c0_57] : memref<18x18x128xbf16, #tpu.memory_space<vmem>>, vector<16x16x128xbf16>
    %35 = vector.shape_cast %34 : vector<16x16x128xbf16> to vector<256x128xbf16>
    %36 = tpu.concatenate %19, %21, %23, %25, %27, %29, %31, %33, %35 in 1 : vector<256x128xbf16>, vector<256x128xbf16>, vector<256x128xbf16>, vector<256x128xbf16>, vector<256x128xbf16>, vector<256x128xbf16>, vector<256x128xbf16>, vector<256x128xbf16>, vector<256x128xbf16> -> vector<256x1152xbf16>
    %c0_58 = arith.constant 0 : index
    %c0_59 = arith.constant 0 : index
    %37 = vector.load %arg2[%c0_58, %c0_59] : memref<1152x128xbf16, #tpu.memory_space<vmem>>, vector<1152x128xbf16>
    %cst_60 = arith.constant dense<0.000000e+00> : vector<256x128xf32>
    %38 = tpu.matmul %36, %37, %cst_60 {dimension_numbers = #tpu.dot_dimension_numbers<[1], [0], [0], [1], [0, 0, 1, 1], [], []>} : vector<256x1152xbf16>, vector<1152x128xbf16>, vector<256x128xf32> -> vector<256x128xf32>
    %c0_61 = arith.constant 0 : index
    %c0_62 = arith.constant 0 : index
    %39 = vector.load %arg3[%c0_61, %c0_62] : memref<1x128xf32, #tpu.memory_space<vmem>>, vector<1x128xf32>
    %40 = vector.broadcast %39 : vector<1x128xf32> to vector<256x128xf32>
    %41 = arith.addf %38, %40 : vector<256x128xf32>
    %cst_63 = arith.constant 0.000000e+00 : f32
    %42 = vector.broadcast %cst_63 : f32 to vector<256x128xf32>
    %43 = arith.maximumf %41, %42 : vector<256x128xf32>
    %44 = vector.shape_cast %43 : vector<256x128xf32> to vector<16x16x128xf32>
    %45 = arith.truncf %44 : vector<16x16x128xf32> to vector<16x16x128xbf16>
    %c1_64 = arith.constant 1 : index
    %c1_65 = arith.constant 1 : index
    %c0_66 = arith.constant 0 : index
    %46 = vector.load %arg8[%c1_64, %c1_65, %c0_66] : memref<18x18x128xbf16, #tpu.memory_space<vmem>>, vector<16x16x128xbf16>
    tpu.vector_store %arg8[%c1_64, %c1_65, %c0_66], %45 {strides = array<i32>} : memref<18x18x128xbf16, #tpu.memory_space<vmem>>, vector<16x16x128xbf16>,
    %c0_67 = arith.constant 0 : index
    %c0_68 = arith.constant 0 : index
    %c0_69 = arith.constant 0 : index
    %47 = vector.load %arg8[%c0_67, %c0_68, %c0_69] : memref<18x18x128xbf16, #tpu.memory_space<vmem>>, vector<16x16x128xbf16>
    %48 = vector.shape_cast %47 : vector<16x16x128xbf16> to vector<256x128xbf16>
    %c0_70 = arith.constant 0 : index
    %c1_71 = arith.constant 1 : index
    %c0_72 = arith.constant 0 : index
    %49 = vector.load %arg8[%c0_70, %c1_71, %c0_72] : memref<18x18x128xbf16, #tpu.memory_space<vmem>>, vector<16x16x128xbf16>
    %50 = vector.shape_cast %49 : vector<16x16x128xbf16> to vector<256x128xbf16>
    %c0_73 = arith.constant 0 : index
    %c2_74 = arith.constant 2 : index
    %c0_75 = arith.constant 0 : index
    %51 = vector.load %arg8[%c0_73, %c2_74, %c0_75] : memref<18x18x128xbf16, #tpu.memory_space<vmem>>, vector<16x16x128xbf16>
    %52 = vector.shape_cast %51 : vector<16x16x128xbf16> to vector<256x128xbf16>
    %c1_76 = arith.constant 1 : index
    %c0_77 = arith.constant 0 : index
    %c0_78 = arith.constant 0 : index
    %53 = vector.load %arg8[%c1_76, %c0_77, %c0_78] : memref<18x18x128xbf16, #tpu.memory_space<vmem>>, vector<16x16x128xbf16>
    %54 = vector.shape_cast %53 : vector<16x16x128xbf16> to vector<256x128xbf16>
    %c1_79 = arith.constant 1 : index
    %c1_80 = arith.constant 1 : index
    %c0_81 = arith.constant 0 : index
    %55 = vector.load %arg8[%c1_79, %c1_80, %c0_81] : memref<18x18x128xbf16, #tpu.memory_space<vmem>>, vector<16x16x128xbf16>
    %56 = vector.shape_cast %55 : vector<16x16x128xbf16> to vector<256x128xbf16>
    %c1_82 = arith.constant 1 : index
    %c2_83 = arith.constant 2 : index
    %c0_84 = arith.constant 0 : index
    %57 = vector.load %arg8[%c1_82, %c2_83, %c0_84] : memref<18x18x128xbf16, #tpu.memory_space<vmem>>, vector<16x16x128xbf16>
    %58 = vector.shape_cast %57 : vector<16x16x128xbf16> to vector<256x128xbf16>
    %c2_85 = arith.constant 2 : index
    %c0_86 = arith.constant 0 : index
    %c0_87 = arith.constant 0 : index
    %59 = vector.load %arg8[%c2_85, %c0_86, %c0_87] : memref<18x18x128xbf16, #tpu.memory_space<vmem>>, vector<16x16x128xbf16>
    %60 = vector.shape_cast %59 : vector<16x16x128xbf16> to vector<256x128xbf16>
    %c2_88 = arith.constant 2 : index
    %c1_89 = arith.constant 1 : index
    %c0_90 = arith.constant 0 : index
    %61 = vector.load %arg8[%c2_88, %c1_89, %c0_90] : memref<18x18x128xbf16, #tpu.memory_space<vmem>>, vector<16x16x128xbf16>
    %62 = vector.shape_cast %61 : vector<16x16x128xbf16> to vector<256x128xbf16>
    %c2_91 = arith.constant 2 : index
    %c2_92 = arith.constant 2 : index
    %c0_93 = arith.constant 0 : index
    %63 = vector.load %arg8[%c2_91, %c2_92, %c0_93] : memref<18x18x128xbf16, #tpu.memory_space<vmem>>, vector<16x16x128xbf16>
    %64 = vector.shape_cast %63 : vector<16x16x128xbf16> to vector<256x128xbf16>
    %65 = tpu.concatenate %48, %50, %52, %54, %56, %58, %60, %62, %64, %14 in 1 : vector<256x128xbf16>, vector<256x128xbf16>, vector<256x128xbf16>, vector<256x128xbf16>, vector<256x128xbf16>, vector<256x128xbf16>, vector<256x128xbf16>, vector<256x128xbf16>, vector<256x128xbf16>, vector<256x128xbf16> -> vector<256x1280xbf16>
    %c0_94 = arith.constant 0 : index
    %c0_95 = arith.constant 0 : index
    %66 = vector.load %arg4[%c0_94, %c0_95] : memref<1280x128xbf16, #tpu.memory_space<vmem>>, vector<1280x128xbf16>
    %cst_96 = arith.constant dense<0.000000e+00> : vector<256x128xf32>
    %67 = tpu.matmul %65, %66, %cst_96 {dimension_numbers = #tpu.dot_dimension_numbers<[1], [0], [0], [1], [0, 0, 1, 1], [], []>} : vector<256x1280xbf16>, vector<1280x128xbf16>, vector<256x128xf32> -> vector<256x128xf32>
    %68 = vector.shape_cast %67 : vector<256x128xf32> to vector<8x32x128xf32>
    %69 = vector.extract_strided_slice %68 {offsets = [0, 0, 0], sizes = [8, 16, 128], strides = [1, 1, 1]} : vector<8x32x128xf32> to vector<8x16x128xf32>
    %70 = vector.extract_strided_slice %68 {offsets = [0, 16, 0], sizes = [8, 16, 128], strides = [1, 1, 1]} : vector<8x32x128xf32> to vector<8x16x128xf32>
    %71 = arith.addf %69, %70 : vector<8x16x128xf32>
    %72 = vector.shape_cast %71 : vector<8x16x128xf32> to vector<128x128xf32>
    %c0_97 = arith.constant 0 : index
    %c0_98 = arith.constant 0 : index
    %73 = vector.load %arg9[%c0_97, %c0_98] : memref<128x128xf32, #tpu.memory_space<vmem>>, vector<128x128xf32>
    tpu.vector_store %arg9[%c0_97, %c0_98], %72 {strides = array<i32>} : memref<128x128xf32, #tpu.memory_space<vmem>>, vector<128x128xf32>,
    %c0_99 = arith.constant 0 : index
    %c0_100 = arith.constant 0 : index
    %74 = tpu.strided_load %arg9[%c0_99, %c0_100] {strides = array<i32: 2, 1>} : memref<128x128xf32, #tpu.memory_space<vmem>>, vector<64x128xf32>
    %c1_101 = arith.constant 1 : index
    %c0_102 = arith.constant 0 : index
    %75 = tpu.strided_load %arg9[%c1_101, %c0_102] {strides = array<i32: 2, 1>} : memref<128x128xf32, #tpu.memory_space<vmem>>, vector<64x128xf32>
    %76 = arith.addf %74, %75 : vector<64x128xf32>
    %cst_103 = arith.constant 2.500000e-01 : f32
    %77 = vector.broadcast %cst_103 : f32 to vector<64x128xf32>
    %78 = arith.mulf %76, %77 : vector<64x128xf32>
    %c0_104 = arith.constant 0 : index
    %c0_105 = arith.constant 0 : index
    %79 = vector.load %arg5[%c0_104, %c0_105] : memref<1x128xf32, #tpu.memory_space<vmem>>, vector<1x128xf32>
    %80 = vector.broadcast %79 : vector<1x128xf32> to vector<64x128xf32>
    %81 = arith.addf %78, %80 : vector<64x128xf32>
    %82 = vector.shape_cast %81 : vector<64x128xf32> to vector<8x8x128xf32>
    %c0_106 = arith.constant 0 : index
    %c0_107 = arith.constant 0 : index
    %c0_108 = arith.constant 0 : index
    %c0_109 = arith.constant 0 : index
    %83 = vector.load %arg6[%c0_106, %c0_107, %c0_108, %c0_109] : memref<1x8x8x128xf32, #tpu.memory_space<vmem>>, vector<1x8x8x128xf32>
    %84 = vector.shape_cast %83 : vector<1x8x8x128xf32> to vector<8x8x128xf32>
    %85 = vector.shape_cast %82 : vector<8x8x128xf32> to vector<1x8x8x128xf32>
    tpu.vector_store %arg6[%c0_106, %c0_107, %c0_108, %c0_109], %85 {strides = array<i32>} : memref<1x8x8x128xf32, #tpu.memory_space<vmem>>, vector<1x8x8x128xf32>,
    return
  }
  func.func @transform_0(%arg0: i32) -> (i32, i32, i32, i32) {
    %c0_i32 = arith.constant 0 : i32
    %c0_i32_0 = arith.constant 0 : i32
    %c0_i32_1 = arith.constant 0 : i32
    %c0_i32_2 = arith.constant 0 : i32
    return %arg0, %c0_i32, %c0_i32_0, %c0_i32_1 : i32, i32, i32, i32
  }
  func.func @transform_1(%arg0: i32) -> (i32, i32) {
    %c0_i32 = arith.constant 0 : i32
    %c0_i32_0 = arith.constant 0 : i32
    %c0_i32_1 = arith.constant 0 : i32
    return %c0_i32, %c0_i32_0 : i32, i32
  }
  func.func @transform_2(%arg0: i32) -> (i32, i32) {
    %c0_i32 = arith.constant 0 : i32
    %c0_i32_0 = arith.constant 0 : i32
    %c0_i32_1 = arith.constant 0 : i32
    return %c0_i32, %c0_i32_0 : i32, i32
  }
  func.func @transform_3(%arg0: i32) -> (i32, i32) {
    %c0_i32 = arith.constant 0 : i32
    %c0_i32_0 = arith.constant 0 : i32
    %c0_i32_1 = arith.constant 0 : i32
    return %c0_i32, %c0_i32_0 : i32, i32
  }
  func.func @transform_4(%arg0: i32) -> (i32, i32) {
    %c0_i32 = arith.constant 0 : i32
    %c0_i32_0 = arith.constant 0 : i32
    %c0_i32_1 = arith.constant 0 : i32
    return %c0_i32, %c0_i32_0 : i32, i32
  }
  func.func @transform_5(%arg0: i32) -> (i32, i32, i32, i32) {
    %c0_i32 = arith.constant 0 : i32
    %c0_i32_0 = arith.constant 0 : i32
    %c0_i32_1 = arith.constant 0 : i32
    %c0_i32_2 = arith.constant 0 : i32
    return %arg0, %c0_i32, %c0_i32_0, %c0_i32_1 : i32, i32, i32, i32
  }
}

</mosaic_0001>

<llo_original>
// kernel: disc_block_forward.1
$region0: #{disc_block_forward.1}
  #allocation0 [shape = 'u32[]', space=smem, size = 0x4, offset = 0x4, fixed_abs, tag = 'smem constant byte address 0x4 - core index']
  #allocation1 [shape = 'u32[144,128]{1,0:T(1,128)}', space=vmem, size = 0x12000, scoped, tag = 'internal scratch']
  #allocation2 [shape = 'bf16[18,18,128]{2,1,0:T(8,128)(2,1)}', space=vmem, size = 0x1b000, scoped, tag = 'scratch operand']
  #allocation3 [shape = 'bf16[18,18,128]{2,1,0:T(8,128)(2,1)}', space=vmem, size = 0x1b000, scoped, tag = 'scratch operand']
  #allocation4 [shape = 'f32[128,128]{1,0:T(8,128)}', space=vmem, size = 0x10000, scoped, tag = 'scratch operand']
  %s0 = inlined_call_operand.vmem [shape: bf16[2,16,16,128], index: 0, kind: input, shape index: {}]
  %s1 = inlined_call_operand.vmem [shape: bf16[1152,128], index: 1, kind: input, shape index: {}]
  %s2 = inlined_call_operand.vmem [shape: f32[1,128], index: 2, kind: input, shape index: {}]
  %s3 = inlined_call_operand.vmem [shape: bf16[1280,128], index: 3, kind: input, shape index: {}]
  %s4 = inlined_call_operand.vmem [shape: f32[1,128], index: 4, kind: input, shape index: {}]
  %s5 = inlined_call_operand.vmem [shape: f32[2,8,8,128], index: 5, kind: output, shape index: {}]
  %s6 = sld [smem:[#allocation0]]
  $region53: #{disc_block_forward.1} parent=0
    _
  %s8 = ssub.s32 1, %s6
  %s9 = scalar_select 0, %s8, %s6
  loop: start=0, step=1, limit=4
  $region2: #{disc_block_forward.1} parent=0 // loop_pre_header
    _
  $region3: #{disc_block_forward.1} parent=0 // loop_header
    %s11 = sphi 0, %s15
    %p12 = scmp.ge.s32.totalorder %s11, 4
    %s21 = sphi 0, %s23
    %s24 = sphi 0, %s21
    %s25 = sphi 0, %s24
    %s41 = sphi 0, %s25
    %s45 = sphi 0, %s45
    %s47 = sphi 0, %s45
    %s48 = sphi 0, %s47
    %s62 = sphi 0, %s48
    %s66 = sphi 0, %s66
    %s68 = sphi 0, %s66
    %s69 = sphi 0, %s68
    %s83 = sphi 0, %s69
    %s87 = sphi 0, %s87
    %s89 = sphi 0, %s87
    %s90 = sphi 0, %s89
    %s104 = sphi 0, %s90
    %s108 = sphi 0, %s108
    %s110 = sphi 0, %s108
    %s111 = sphi 0, %s110
    %s125 = sphi 0, %s111
    %s131 = sphi 0, %s133
    %s134 = sphi 0, %s131
    %s135 = sphi 0, %s134
    %s151 = sphi 0, %s135
  $region4: #{disc_block_forward.1} parent=0 // loop_header_branch
    %14 = sbr.rel (%p12) target = $region8
  $region5: #{disc_block_forward.1} parent=0 // loop_body
    %s16 = ssub.s32 %s11, 1
    %s17 = ssub.s32 %s11, 2
    %s18 = sadd.s32 %s11, 1
    %s19 = ssub.s32 %s11, %s18
    %p20 = scmp.eq.s32.totalorder %s19, 0
    %s22 = sadd.s32 %s21, 1
    %s23 = scalar_select %p20, %s21, %s22
    %p26 = pneg %p20
    %p27 = scmp.eq.s32.totalorder %s11, 1
    %p28 = por %p26, %p27
    %p29 = scmp.ne.s32.totalorder %s21, %s24
    %p30 = scmp.eq.s32.totalorder %s11, 0
    %p31 = por %p29, %p30
    %p32 = scmp.ne.s32.totalorder %s21, %s24
    %p33 = scmp.eq.s32.totalorder %s16, 1
    %p34 = por %p32, %p33
    %p35 = scmp.ne.s32.totalorder %s24, %s25
    %p36 = scmp.eq.s32.totalorder %s16, 0
    %p37 = por %p35, %p36
    %p38 = scmp.ne.s32.totalorder %s24, %s25
    %p39 = scmp.eq.s32.totalorder %s17, 1
    %p40 = por %p38, %p39
    %p42 = scmp.ne.s32.totalorder %s25, %s41
    %p43 = scmp.eq.s32.totalorder %s17, 0
    %p44 = por %p42, %p43
    %s46 = sadd.s32 %s45, 1
    %p49 = scmp.eq.s32.totalorder %s11, 1
    %p50 = scmp.ne.s32.totalorder %s45, %s47
    %p51 = scmp.eq.s32.totalorder %s11, 0
    %p52 = por %p50, %p51
    %p53 = scmp.ne.s32.totalorder %s45, %s47
    %p54 = scmp.eq.s32.totalorder %s16, 1
    %p55 = por %p53, %p54
    %p56 = scmp.ne.s32.totalorder %s47, %s48
    %p57 = scmp.eq.s32.totalorder %s16, 0
    %p58 = por %p56, %p57
    %p59 = scmp.ne.s32.totalorder %s47, %s48
    %p60 = scmp.eq.s32.totalorder %s17, 1
    %p61 = por %p59, %p60
    %p63 = scmp.ne.s32.totalorder %s48, %s62
    %p64 = scmp.eq.s32.totalorder %s17, 0
    %p65 = por %p63, %p64
    %s67 = sadd.s32 %s66, 1
    %p70 = scmp.eq.s32.totalorder %s11, 1
    %p71 = scmp.ne.s32.totalorder %s66, %s68
    %p72 = scmp.eq.s32.totalorder %s11, 0
    %p73 = por %p71, %p72
    %p74 = scmp.ne.s32.totalorder %s66, %s68
    %p75 = scmp.eq.s32.totalorder %s16, 1
    %p76 = por %p74, %p75
    %p77 = scmp.ne.s32.totalorder %s68, %s69
    %p78 = scmp.eq.s32.totalorder %s16, 0
    %p79 = por %p77, %p78
    %p80 = scmp.ne.s32.totalorder %s68, %s69
    %p81 = scmp.eq.s32.totalorder %s17, 1
    %p82 = por %p80, %p81
    %p84 = scmp.ne.s32.totalorder %s69, %s83
    %p85 = scmp.eq.s32.totalorder %s17, 0
    %p86 = por %p84, %p85
    %s88 = sadd.s32 %s87, 1
    %p91 = scmp.eq.s32.totalorder %s11, 1
    %p92 = scmp.ne.s32.totalorder %s87, %s89
    %p93 = scmp.eq.s32.totalorder %s11, 0
    %p94 = por %p92, %p93
    %p95 = scmp.ne.s32.totalorder %s87, %s89
    %p96 = scmp.eq.s32.totalorder %s16, 1
    %p97 = por %p95, %p96
    %p98 = scmp.ne.s32.totalorder %s89, %s90
    %p99 = scmp.eq.s32.totalorder %s16, 0
    %p100 = por %p98, %p99
    %p101 = scmp.ne.s32.totalorder %s89, %s90
    %p102 = scmp.eq.s32.totalorder %s17, 1
    %p103 = por %p101, %p102
    %p105 = scmp.ne.s32.totalorder %s90, %s104
    %p106 = scmp.eq.s32.totalorder %s17, 0
    %p107 = por %p105, %p106
    %s109 = sadd.s32 %s108, 1
    %p112 = scmp.eq.s32.totalorder %s11, 1
    %p113 = scmp.ne.s32.totalorder %s108, %s110
    %p114 = scmp.eq.s32.totalorder %s11, 0
    %p115 = por %p113, %p114
    %p116 = scmp.ne.s32.totalorder %s108, %s110
    %p117 = scmp.eq.s32.totalorder %s16, 1
    %p118 = por %p116, %p117
    %p119 = scmp.ne.s32.totalorder %s110, %s111
    %p120 = scmp.eq.s32.totalorder %s16, 0
    %p121 = por %p119, %p120
    %p122 = scmp.ne.s32.totalorder %s110, %s111
    %p123 = scmp.eq.s32.totalorder %s17, 1
    %p124 = por %p122, %p123
    %p126 = scmp.ne.s32.totalorder %s111, %s125
    %p127 = scmp.eq.s32.totalorder %s17, 0
    %p128 = por %p126, %p127
    %s129 = ssub.s32 %s11, %s18
    %p130 = scmp.eq.s32.totalorder %s129, 0
    %s132 = sadd.s32 %s131, 1
    %s133 = scalar_select %p130, %s131, %s132
    %p136 = pneg %p130
    %p137 = scmp.eq.s32.totalorder %s11, 1
    %p138 = por %p136, %p137
    %p139 = scmp.ne.s32.totalorder %s131, %s134
    %p140 = scmp.eq.s32.totalorder %s11, 0
    %p141 = por %p139, %p140
    %p142 = scmp.ne.s32.totalorder %s131, %s134
    %p143 = scmp.eq.s32.totalorder %s16, 1
    %p144 = por %p142, %p143
    %p145 = scmp.ne.s32.totalorder %s134, %s135
    %p146 = scmp.eq.s32.totalorder %s16, 0
    %p147 = por %p145, %p146
    %p148 = scmp.ne.s32.totalorder %s134, %s135
    %p149 = scmp.eq.s32.totalorder %s17, 1
    %p150 = por %p148, %p149
    %p152 = scmp.ne.s32.totalorder %s135, %s151
    %p153 = scmp.eq.s32.totalorder %s17, 0
    %p154 = por %p152, %p153
    %p155 = scmp.le.s32.totalorder 1, %s11
    %p156 = scmp.lt.s32.totalorder %s11, 3
    %p157 = pnand %p155, %p156
    %p158 = pneg %p157
    // Predicated region
    $region9: #{disc_block_forward.1} parent=5 // pred_check
      _
    $region10: #{disc_block_forward.1} parent=5 // pred_check_branch
      %160 = sbr.rel (%p157) target = $region12
    $region11: #{disc_block_forward.1} parent=5 // pred_region
      %s161 = ssub.s32 %s11, 1
      // Predicated region
      $region13: #{disc_block_forward.1} parent=11 // pred_check
        %p162 = pneg %p58
      $region14: #{disc_block_forward.1} parent=11 // pred_check_branch
        %164 = sbr.rel (%p162) target = $region16
      $region15: #{disc_block_forward.1} parent=11 // pred_region
        _
      $region16: #{disc_block_forward.1} parent=11 // pred_fallthru
        _
      // Predicated region
      $region17: #{disc_block_forward.1} parent=11 // pred_check
        %p165 = pneg %p79
      $region18: #{disc_block_forward.1} parent=11 // pred_check_branch
        %167 = sbr.rel (%p165) target = $region20
      $region19: #{disc_block_forward.1} parent=11 // pred_region
        _
      $region20: #{disc_block_forward.1} parent=11 // pred_fallthru
        _
      // Predicated region
      $region21: #{disc_block_forward.1} parent=11 // pred_check
        %p168 = pneg %p100
      $region22: #{disc_block_forward.1} parent=11 // pred_check_branch
        %170 = sbr.rel (%p168) target = $region24
      $region23: #{disc_block_forward.1} parent=11 // pred_region
        _
      $region24: #{disc_block_forward.1} parent=11 // pred_fallthru
        _
      // Predicated region
      $region25: #{disc_block_forward.1} parent=11 // pred_check
        %p171 = pneg %p121
      $region26: #{disc_block_forward.1} parent=11 // pred_check_branch
        %173 = sbr.rel (%p171) target = $region28
      $region27: #{disc_block_forward.1} parent=11 // pred_region
        _
      $region28: #{disc_block_forward.1} parent=11 // pred_fallthru
        _
    $region12: #{disc_block_forward.1} parent=5 // pred_fallthru
      _
    %p174 = scmp.lt.s32.totalorder %s11, 2
    // Predicated region
    $region29: #{disc_block_forward.1} parent=5 // pred_check
      %p175 = pneg %p174
    $region30: #{disc_block_forward.1} parent=5 // pred_check_branch
      %177 = sbr.rel (%p175) target = $region32
    $region31: #{disc_block_forward.1} parent=5 // pred_region
      // Predicated region
      $region33: #{disc_block_forward.1} parent=31 // pred_check
        %p178 = pneg %p31
      $region34: #{disc_block_forward.1} parent=31 // pred_check_branch
        %180 = sbr.rel (%p178) target = $region36
      $region35: #{disc_block_forward.1} parent=31 // pred_region
        %p181 = scmp.lt.s32.totalorder %s11, 1
        %s182 = scalar_select %p181, %s11, 1
        %s183 = smul.addr %s182, 32
        %s184 = smul.addr %s183, 4
        %s185 = scalar_lea.vmem %s0, %s184
      $region36: #{disc_block_forward.1} parent=31 // pred_fallthru
        _
    $region32: #{disc_block_forward.1} parent=5 // pred_fallthru
      _
    %p186 = scmp.le.s32.totalorder 1, %s11
    %p187 = scmp.lt.s32.totalorder %s11, 3
    %p188 = pnand %p186, %p187
    %p189 = pneg %p188
    // Predicated region
    $region37: #{disc_block_forward.1} parent=5 // pred_check
      _
    $region38: #{disc_block_forward.1} parent=5 // pred_check_branch
      %191 = sbr.rel (%p188) target = $region40
    $region39: #{disc_block_forward.1} parent=5 // pred_region
      %s192 = ssub.s32 %s11, 1
      %p193 = scmp.lt.s32.totalorder %s16, 1
      %s194 = scalar_select %p193, %s16, 1
      %s195 = smul.addr %s194, 32
      %s196 = smul.addr %s195, 4
      %s197 = scalar_lea.vmem %s0, %s196
      %p198 = pneg %p37
      %p199 = pneg %p34
      %p200 = pneg %p58
      %p201 = pneg %p55
      %p202 = pneg %p79
      %p203 = pneg %p76
      %p204 = pneg %p100
      %p205 = pneg %p97
      %p206 = pneg %p121
      %p207 = pneg %p118
      %p208 = pneg %p147
      %p209 = pneg %p144
      %p210 = scmp.lt.s32.totalorder %s16, 1
      %s211 = scalar_select %p210, %s16, 1
      %s212 = smul.addr %s211, 8
      %s213 = smul.addr %s212, 8
      %s214 = scalar_lea.vmem %s5, %s213
      %p215 = scmp.lt.s32.totalorder %s16, 1
      %s216 = scalar_select %p215, %s16, 1
      %s217 = smul.addr %s216, 32
      %s218 = smul.addr %s217, 4
      %s219 = scalar_lea.vmem %s0, %s218
      %p220 = scmp.lt.s32.totalorder %s16, 1
      %s221 = scalar_select %p220, %s16, 1
      %s222 = smul.addr %s221, 8
      %s223 = smul.addr %s222, 8
      %s224 = scalar_lea.vmem %s5, %s223
      %226 = vst [vmem:[#allocation2] sm:$0xf] 0
      %227 = vst [vmem:[#allocation2 + $0x4] sm:$0xf] 0
      %228 = vst [vmem:[#allocation2 + $0x8] sm:$0x1] 0
      %s229 = scalar_lea.vmem [#allocation2], 204
      %230 = vst [vmem:[%s229] sm:$0xf] 0
      %231 = vst [vmem:[%s229 + $0x4] sm:$0xf] 0
      %232 = vst [vmem:[%s229 + $0x8] sm:$0x1] 0
      %vm233 = vcmask 1040384
      %vm234 = vsmask.f32 256
      %vm235 = vmand %vm233, %vm234
      %v236 = vld [vmem:[#allocation2] sm:$0x1]
      %v237 = vsel %vm235, 0, %v236
      %238 = vst [vmem:[#allocation2] sm:$0x1] %v237
      %v239 = vld [vmem:[#allocation2 + $0xc] sm:$0x1]
      %v240 = vsel %vm235, 0, %v239
      %241 = vst [vmem:[#allocation2 + $0xc] sm:$0x1] %v240
      %v242 = vld [vmem:[#allocation2 + $0x18] sm:$0x1]
      %v243 = vsel %vm235, 0, %v242
      %244 = vst [vmem:[#allocation2 + $0x18] sm:$0x1] %v243
      %v245 = vld [vmem:[#allocation2 + $0x24] sm:$0x1]
      %v246 = vsel %vm235, 0, %v245
      %247 = vst [vmem:[#allocation2 + $0x24] sm:$0x1] %v246
      %v248 = vld [vmem:[#allocation2 + $0x30] sm:$0x1]
      %v249 = vsel %vm235, 0, %v248
      %250 = vst [vmem:[#allocation2 + $0x30] sm:$0x1] %v249
      %v251 = vld [vmem:[#allocation2 + $0x3c] sm:$0x1]
      %v252 = vsel %vm235, 0, %v251
      %253 = vst [vmem:[#allocation2 + $0x3c] sm:$0x1] %v252
      %v254 = vld [vmem:[#allocation2 + $0x48] sm:$0x1]
      %v255 = vsel %vm235, 0, %v254
      %256 = vst [vmem:[#allocation2 + $0x48] sm:$0x1] %v255
      %v257 = vld [vmem:[#allocation2 + $0x54] sm:$0x1]
      %v258 = vsel %vm235, 0, %v257
      %259 = vst [vmem:[#allocation2 + $0x54] sm:$0x1] %v258
      %v260 = vld [vmem:[#allocation2 + $0x60] sm:$0x1]
      %v261 = vsel %vm235, 0, %v260
      %262 = vst [vmem:[#allocation2 + $0x60] sm:$0x1] %v261
      %v263 = vld [vmem:[#allocation2 + $0x6c] sm:$0x1]
      %v264 = vsel %vm235, 0, %v263
      %265 = vst [vmem:[#allocation2 + $0x6c] sm:$0x1] %v264
      %v266 = vld [vmem:[#allocation2 + $0x78] sm:$0x1]
      %v267 = vsel %vm235, 0, %v266
      %268 = vst [vmem:[#allocation2 + $0x78] sm:$0x1] %v267
      %v269 = vld [vmem:[#allocation2 + $0x84] sm:$0x1]
      %v270 = vsel %vm235, 0, %v269
      %271 = vst [vmem:[#allocation2 + $0x84] sm:$0x1] %v270
      %v272 = vld [vmem:[#allocation2 + $0x90] sm:$0x1]
      %v273 = vsel %vm235, 0, %v272
      %274 = vst [vmem:[#allocation2 + $0x90] sm:$0x1] %v273
      %v275 = vld [vmem:[#allocation2 + $0x9c] sm:$0x1]
      %v276 = vsel %vm235, 0, %v275
      %277 = vst [vmem:[#allocation2 + $0x9c] sm:$0x1] %v276
      %v278 = vld [vmem:[#allocation2 + $0xa8] sm:$0x1]
      %v279 = vsel %vm235, 0, %v278
      %280 = vst [vmem:[#allocation2 + $0xa8] sm:$0x1] %v279
      %v281 = vld [vmem:[#allocation2 + $0xb4] sm:$0x1]
      %v282 = vsel %vm235, 0, %v281
      %283 = vst [vmem:[#allocation2 + $0xb4] sm:$0x1] %v282
      %v284 = vld [vmem:[#allocation2 + $0xc0] sm:$0x1]
      %v285 = vsel %vm235, 0, %v284
      %286 = vst [vmem:[#allocation2 + $0xc0] sm:$0x1] %v285
      %v287 = vld [vmem:[#allocation2 + $0xcc] sm:$0x1]
      %v288 = vsel %vm235, 0, %v287
      %289 = vst [vmem:[#allocation2 + $0xcc] sm:$0x1] %v288
      %vm290 = vsmask.f32 7938
      %vm291 = vmand %vm233, %vm290
      %v292 = vld [vmem:[#allocation2 + $0x8] sm:$0x1]
      %v293 = vsel %vm291, 0, %v292
      %294 = vst [vmem:[#allocation2 + $0x8] sm:$0x1] %v293
      %v295 = vld [vmem:[#allocation2 + $0x14] sm:$0x1]
      %v296 = vsel %vm291, 0, %v295
      %297 = vst [vmem:[#allocation2 + $0x14] sm:$0x1] %v296
      %v298 = vld [vmem:[#allocation2 + $0x20] sm:$0x1]
      %v299 = vsel %vm291, 0, %v298
      %300 = vst [vmem:[#allocation2 + $0x20] sm:$0x1] %v299
      %v301 = vld [vmem:[#allocation2 + $0x2c] sm:$0x1]
      %v302 = vsel %vm291, 0, %v301
      %303 = vst [vmem:[#allocation2 + $0x2c] sm:$0x1] %v302
      %v304 = vld [vmem:[#allocation2 + $0x38] sm:$0x1]
      %v305 = vsel %vm291, 0, %v304
      %306 = vst [vmem:[#allocation2 + $0x38] sm:$0x1] %v305
      %v307 = vld [vmem:[#allocation2 + $0x44] sm:$0x1]
      %v308 = vsel %vm291, 0, %v307
      %309 = vst [vmem:[#allocation2 + $0x44] sm:$0x1] %v308
      %v310 = vld [vmem:[#allocation2 + $0x50] sm:$0x1]
      %v311 = vsel %vm291, 0, %v310
      %312 = vst [vmem:[#allocation2 + $0x50] sm:$0x1] %v311
      %v313 = vld [vmem:[#allocation2 + $0x5c] sm:$0x1]
      %v314 = vsel %vm291, 0, %v313
      %315 = vst [vmem:[#allocation2 + $0x5c] sm:$0x1] %v314
      %v316 = vld [vmem:[#allocation2 + $0x68] sm:$0x1]
      %v317 = vsel %vm291, 0, %v316
      %318 = vst [vmem:[#allocation2 + $0x68] sm:$0x1] %v317
      %v319 = vld [vmem:[#allocation2 + $0x74] sm:$0x1]
      %v320 = vsel %vm291, 0, %v319
      %321 = vst [vmem:[#allocation2 + $0x74] sm:$0x1] %v320
      %v322 = vld [vmem:[#allocation2 + $0x80] sm:$0x1]
      %v323 = vsel %vm291, 0, %v322
      %324 = vst [vmem:[#allocation2 + $0x80] sm:$0x1] %v323
      %v325 = vld [vmem:[#allocation2 + $0x8c] sm:$0x1]
      %v326 = vsel %vm291, 0, %v325
      %327 = vst [vmem:[#allocation2 + $0x8c] sm:$0x1] %v326
      %v328 = vld [vmem:[#allocation2 + $0x98] sm:$0x1]
      %v329 = vsel %vm291, 0, %v328
      %330 = vst [vmem:[#allocation2 + $0x98] sm:$0x1] %v329
      %v331 = vld [vmem:[#allocation2 + $0xa4] sm:$0x1]
      %v332 = vsel %vm291, 0, %v331
      %333 = vst [vmem:[#allocation2 + $0xa4] sm:$0x1] %v332
      %v334 = vld [vmem:[#allocation2 + $0xb0] sm:$0x1]
      %v335 = vsel %vm291, 0, %v334
      %336 = vst [vmem:[#allocation2 + $0xb0] sm:$0x1] %v335
      %v337 = vld [vmem:[#allocation2 + $0xbc] sm:$0x1]
      %v338 = vsel %vm291, 0, %v337
      %339 = vst [vmem:[#allocation2 + $0xbc] sm:$0x1] %v338
      %v340 = vld [vmem:[#allocation2 + $0xc8] sm:$0x1]
      %v341 = vsel %vm291, 0, %v340
      %342 = vst [vmem:[#allocation2 + $0xc8] sm:$0x1] %v341
      %v343 = vld [vmem:[#allocation2 + $0xd4] sm:$0x1]
      %v344 = vsel %vm291, 0, %v343
      %345 = vst [vmem:[#allocation2 + $0xd4] sm:$0x1] %v344
      %346 = vst [vmem:[#allocation3] sm:$0xf] 0
      %347 = vst [vmem:[#allocation3 + $0x4] sm:$0xf] 0
      %348 = vst [vmem:[#allocation3 + $0x8] sm:$0x1] 0
      %s349 = scalar_lea.vmem [#allocation3], 204
      %350 = vst [vmem:[%s349] sm:$0xf] 0
      %351 = vst [vmem:[%s349 + $0x4] sm:$0xf] 0
      %352 = vst [vmem:[%s349 + $0x8] sm:$0x1] 0
      %v353 = vld [vmem:[#allocation3] sm:$0x1]
      %v354 = vsel %vm235, 0, %v353
      %355 = vst [vmem:[#allocation3] sm:$0x1] %v354
      %v356 = vld [vmem:[#allocation3 + $0xc] sm:$0x1]
      %v357 = vsel %vm235, 0, %v356
      %358 = vst [vmem:[#allocation3 + $0xc] sm:$0x1] %v357
      %v359 = vld [vmem:[#allocation3 + $0x18] sm:$0x1]
      %v360 = vsel %vm235, 0, %v359
      %361 = vst [vmem:[#allocation3 + $0x18] sm:$0x1] %v360
      %v362 = vld [vmem:[#allocation3 + $0x24] sm:$0x1]
      %v363 = vsel %vm235, 0, %v362
      %364 = vst [vmem:[#allocation3 + $0x24] sm:$0x1] %v363
      %v365 = vld [vmem:[#allocation3 + $0x30] sm:$0x1]
      %v366 = vsel %vm235, 0, %v365
      %367 = vst [vmem:[#allocation3 + $0x30] sm:$0x1] %v366
      %v368 = vld [vmem:[#allocation3 + $0x3c] sm:$0x1]
      %v369 = vsel %vm235, 0, %v368
      %370 = vst [vmem:[#allocation3 + $0x3c] sm:$0x1] %v369
      %v371 = vld [vmem:[#allocation3 + $0x48] sm:$0x1]
      %v372 = vsel %vm235, 0, %v371
      %373 = vst [vmem:[#allocation3 + $0x48] sm:$0x1] %v372
      %v374 = vld [vmem:[#allocation3 + $0x54] sm:$0x1]
      %v375 = vsel %vm235, 0, %v374
      %376 = vst [vmem:[#allocation3 + $0x54] sm:$0x1] %v375
      %v377 = vld [vmem:[#allocation3 + $0x60] sm:$0x1]
      %v378 = vsel %vm235, 0, %v377
      %379 = vst [vmem:[#allocation3 + $0x60] sm:$0x1] %v378
      %v380 = vld [vmem:[#allocation3 + $0x6c] sm:$0x1]
      %v381 = vsel %vm235, 0, %v380
      %382 = vst [vmem:[#allocation3 + $0x6c] sm:$0x1] %v381
      %v383 = vld [vmem:[#allocation3 + $0x78] sm:$0x1]
      %v384 = vsel %vm235, 0, %v383
      %385 = vst [vmem:[#allocation3 + $0x78] sm:$0x1] %v384
      %v386 = vld [vmem:[#allocation3 + $0x84] sm:$0x1]
      %v387 = vsel %vm235, 0, %v386
      %388 = vst [vmem:[#allocation3 + $0x84] sm:$0x1] %v387
      %v389 = vld [vmem:[#allocation3 + $0x90] sm:$0x1]
      %v390 = vsel %vm235, 0, %v389
      %391 = vst [vmem:[#allocation3 + $0x90] sm:$0x1] %v390
      %v392 = vld [vmem:[#allocation3 + $0x9c] sm:$0x1]
      %v393 = vsel %vm235, 0, %v392
      %394 = vst [vmem:[#allocation3 + $0x9c] sm:$0x1] %v393
      %v395 = vld [vmem:[#allocation3 + $0xa8] sm:$0x1]
      %v396 = vsel %vm235, 0, %v395
      %397 = vst [vmem:[#allocation3 + $0xa8] sm:$0x1] %v396
      %v398 = vld [vmem:[#allocation3 + $0xb4] sm:$0x1]
      %v399 = vsel %vm235, 0, %v398
      %400 = vst [vmem:[#allocation3 + $0xb4] sm:$0x1] %v399
      %v401 = vld [vmem:[#allocation3 + $0xc0] sm:$0x1]
      %v402 = vsel %vm235, 0, %v401
      %403 = vst [vmem:[#allocation3 + $0xc0] sm:$0x1] %v402
      %v404 = vld [vmem:[#allocation3 + $0xcc] sm:$0x1]
      %v405 = vsel %vm235, 0, %v404
      %406 = vst [vmem:[#allocation3 + $0xcc] sm:$0x1] %v405
      %v407 = vld [vmem:[#allocation3 + $0x8] sm:$0x1]
      %v408 = vsel %vm291, 0, %v407
      %409 = vst [vmem:[#allocation3 + $0x8] sm:$0x1] %v408
      %v410 = vld [vmem:[#allocation3 + $0x14] sm:$0x1]
      %v411 = vsel %vm291, 0, %v410
      %412 = vst [vmem:[#allocation3 + $0x14] sm:$0x1] %v411
      %v413 = vld [vmem:[#allocation3 + $0x20] sm:$0x1]
      %v414 = vsel %vm291, 0, %v413
      %415 = vst [vmem:[#allocation3 + $0x20] sm:$0x1] %v414
      %v416 = vld [vmem:[#allocation3 + $0x2c] sm:$0x1]
      %v417 = vsel %vm291, 0, %v416
      %418 = vst [vmem:[#allocation3 + $0x2c] sm:$0x1] %v417
      %v419 = vld [vmem:[#allocation3 + $0x38] sm:$0x1]
      %v420 = vsel %vm291, 0, %v419
      %421 = vst [vmem:[#allocation3 + $0x38] sm:$0x1] %v420
      %v422 = vld [vmem:[#allocation3 + $0x44] sm:$0x1]
      %v423 = vsel %vm291, 0, %v422
      %424 = vst [vmem:[#allocation3 + $0x44] sm:$0x1] %v423
      %v425 = vld [vmem:[#allocation3 + $0x50] sm:$0x1]
      %v426 = vsel %vm291, 0, %v425
      %427 = vst [vmem:[#allocation3 + $0x50] sm:$0x1] %v426
      %v428 = vld [vmem:[#allocation3 + $0x5c] sm:$0x1]
      %v429 = vsel %vm291, 0, %v428
      %430 = vst [vmem:[#allocation3 + $0x5c] sm:$0x1] %v429
      %v431 = vld [vmem:[#allocation3 + $0x68] sm:$0x1]
      %v432 = vsel %vm291, 0, %v431
      %433 = vst [vmem:[#allocation3 + $0x68] sm:$0x1] %v432
      %v434 = vld [vmem:[#allocation3 + $0x74] sm:$0x1]
      %v435 = vsel %vm291, 0, %v434
      %436 = vst [vmem:[#allocation3 + $0x74] sm:$0x1] %v435
      %v437 = vld [vmem:[#allocation3 + $0x80] sm:$0x1]
      %v438 = vsel %vm291, 0, %v437
      %439 = vst [vmem:[#allocation3 + $0x80] sm:$0x1] %v438
      %v440 = vld [vmem:[#allocation3 + $0x8c] sm:$0x1]
      %v441 = vsel %vm291, 0, %v440
      %442 = vst [vmem:[#allocation3 + $0x8c] sm:$0x1] %v441
      %v443 = vld [vmem:[#allocation3 + $0x98] sm:$0x1]
      %v444 = vsel %vm291, 0, %v443
      %445 = vst [vmem:[#allocation3 + $0x98] sm:$0x1] %v444
      %v446 = vld [vmem:[#allocation3 + $0xa4] sm:$0x1]
      %v447 = vsel %vm291, 0, %v446
      %448 = vst [vmem:[#allocation3 + $0xa4] sm:$0x1] %v447
      %v449 = vld [vmem:[#allocation3 + $0xb0] sm:$0x1]
      %v450 = vsel %vm291, 0, %v449
      %451 = vst [vmem:[#allocation3 + $0xb0] sm:$0x1] %v450
      %v452 = vld [vmem:[#allocation3 + $0xbc] sm:$0x1]
      %v453 = vsel %vm291, 0, %v452
      %454 = vst [vmem:[#allocation3 + $0xbc] sm:$0x1] %v453
      %v455 = vld [vmem:[#allocation3 + $0xc8] sm:$0x1]
      %v456 = vsel %vm291, 0, %v455
      %457 = vst [vmem:[#allocation3 + $0xc8] sm:$0x1] %v456
      %v458 = vld [vmem:[#allocation3 + $0xd4] sm:$0x1]
      %v459 = vsel %vm291, 0, %v458
      %460 = vst [vmem:[#allocation3 + $0xd4] sm:$0x1] %v459
      %v461 = vld [vmem:[%s219] sm:$0xf]
      %v462 = vld [vmem:[%s219 + $0x4] sm:$0xf]
      %v463 = vld [vmem:[%s219 + $0x8] sm:$0xf]
      %v464 = vld [vmem:[%s219 + $0xc] sm:$0xf]
      %v465 = vld [vmem:[%s219 + $0x10] sm:$0xf]
      %v466 = vld [vmem:[%s219 + $0x14] sm:$0xf]
      %v467 = vld [vmem:[%s219 + $0x18] sm:$0xf]
      %v468 = vld [vmem:[%s219 + $0x1c] sm:$0xf]
      %v469 = vld [vmem:[%s219 + $0x20] sm:$0xf]
      %v470 = vld [vmem:[%s219 + $0x24] sm:$0xf]
      %v471 = vld [vmem:[%s219 + $0x28] sm:$0xf]
      %v472 = vld [vmem:[%s219 + $0x2c] sm:$0xf]
      %v473 = vld [vmem:[%s219 + $0x30] sm:$0xf]
      %v474 = vld [vmem:[%s219 + $0x34] sm:$0xf]
      %v475 = vld [vmem:[%s219 + $0x38] sm:$0xf]
      %v476 = vld [vmem:[%s219 + $0x3c] sm:$0xf]
      %v477 = vld [vmem:[%s219 + $0x40] sm:$0xf]
      %v478 = vld [vmem:[%s219 + $0x44] sm:$0xf]
      %v479 = vld [vmem:[%s219 + $0x48] sm:$0xf]
      %v480 = vld [vmem:[%s219 + $0x4c] sm:$0xf]
      %v481 = vld [vmem:[%s219 + $0x50] sm:$0xf]
      %v482 = vld [vmem:[%s219 + $0x54] sm:$0xf]
      %v483 = vld [vmem:[%s219 + $0x58] sm:$0xf]
      %v484 = vld [vmem:[%s219 + $0x5c] sm:$0xf]
      %v485 = vld [vmem:[%s219 + $0x60] sm:$0xf]
      %v486 = vld [vmem:[%s219 + $0x64] sm:$0xf]
      %v487 = vld [vmem:[%s219 + $0x68] sm:$0xf]
      %v488 = vld [vmem:[%s219 + $0x6c] sm:$0xf]
      %v489 = vld [vmem:[%s219 + $0x70] sm:$0xf]
      %v490 = vld [vmem:[%s219 + $0x74] sm:$0xf]
      %v491 = vld [vmem:[%s219 + $0x78] sm:$0xf]
      %v492 = vld [vmem:[%s219 + $0x7c] sm:$0xf]
      %v493 = vmax.bf16 %v461, 0
      %v494 = vmax.bf16 %v462, 0
      %v495 = vmax.bf16 %v463, 0
      %v496 = vmax.bf16 %v464, 0
      %v497 = vmax.bf16 %v465, 0
      %v498 = vmax.bf16 %v466, 0
      %v499 = vmax.bf16 %v467, 0
      %v500 = vmax.bf16 %v468, 0
      %v501 = vmax.bf16 %v469, 0
      %v502 = vmax.bf16 %v470, 0
      %v503 = vmax.bf16 %v471, 0
      %v504 = vmax.bf16 %v472, 0
      %v505 = vmax.bf16 %v473, 0
      %v506 = vmax.bf16 %v474, 0
      %v507 = vmax.bf16 %v475, 0
      %v508 = vmax.bf16 %v476, 0
      %v509 = vmax.bf16 %v477, 0
      %v510 = vmax.bf16 %v478, 0
      %v511 = vmax.bf16 %v479, 0
      %v512 = vmax.bf16 %v480, 0
      %v513 = vmax.bf16 %v481, 0
      %v514 = vmax.bf16 %v482, 0
      %v515 = vmax.bf16 %v483, 0
      %v516 = vmax.bf16 %v484, 0
      %v517 = vmax.bf16 %v485, 0
      %v518 = vmax.bf16 %v486, 0
      %v519 = vmax.bf16 %v487, 0
      %v520 = vmax.bf16 %v488, 0
      %v521 = vmax.bf16 %v489, 0
      %v522 = vmax.bf16 %v490, 0
      %v523 = vmax.bf16 %v491, 0
      %v524 = vmax.bf16 %v492, 0
      %vm525 = vsmask.f32 4368
      %vm526 = vmor %vm234, %vm525
      %v528 = vshrl.u32 %v493, 16
      %v530 = vrot.slane %v528, 7
      %v531 = vshll.u32 %v493, 16
      %v533 = vor.u32 %v530, %v531
      %v534 = vrot.slane %v530, 4
      %v536 = vshrl.u32 %v494, 16
      %v538 = vrot.slane %v536, 7
      %v539 = vshll.u32 %v494, 16
      %v541 = vor.u32 %v538, %v539
      %v542 = vsel %vm526, %v534, %v541
      %v543 = vrot.slane %v538, 4
      %v545 = vshrl.u32 %v495, 16
      %v547 = vrot.slane %v545, 7
      %v548 = vshll.u32 %v495, 16
      %v550 = vor.u32 %v547, %v548
      %v551 = vrot.slane %v547, 4
      %v553 = vshrl.u32 %v496, 16
      %v555 = vrot.slane %v553, 7
      %v556 = vshll.u32 %v496, 16
      %v558 = vor.u32 %v555, %v556
      %v559 = vsel %vm526, %v551, %v558
      %v560 = vrot.slane %v555, 4
      %v562 = vshrl.u32 %v497, 16
      %v564 = vrot.slane %v562, 7
      %v565 = vshll.u32 %v497, 16
      %v567 = vor.u32 %v564, %v565
      %v568 = vrot.slane %v564, 4
      %v570 = vshrl.u32 %v498, 16
      %v572 = vrot.slane %v570, 7
      %v573 = vshll.u32 %v498, 16
      %v575 = vor.u32 %v572, %v573
      %v576 = vsel %vm526, %v568, %v575
      %v577 = vrot.slane %v572, 4
      %v579 = vshrl.u32 %v499, 16
      %v581 = vrot.slane %v579, 7
      %v582 = vshll.u32 %v499, 16
      %v584 = vor.u32 %v581, %v582
      %v585 = vrot.slane %v581, 4
      %v587 = vshrl.u32 %v500, 16
      %v589 = vrot.slane %v587, 7
      %v590 = vshll.u32 %v500, 16
      %v592 = vor.u32 %v589, %v590
      %v593 = vsel %vm526, %v585, %v592
      %v594 = vrot.slane %v589, 4
      %v596 = vshrl.u32 %v501, 16
      %v598 = vrot.slane %v596, 7
      %v599 = vshll.u32 %v501, 16
      %v601 = vor.u32 %v598, %v599
      %v602 = vrot.slane %v598, 4
      %v604 = vshrl.u32 %v502, 16
      %v606 = vrot.slane %v604, 7
      %v607 = vshll.u32 %v502, 16
      %v609 = vor.u32 %v606, %v607
      %v610 = vsel %vm526, %v602, %v609
      %v611 = vrot.slane %v606, 4
      %v613 = vshrl.u32 %v503, 16
      %v615 = vrot.slane %v613, 7
      %v616 = vshll.u32 %v503, 16
      %v618 = vor.u32 %v615, %v616
      %v619 = vrot.slane %v615, 4
      %v621 = vshrl.u32 %v504, 16
      %v623 = vrot.slane %v621, 7
      %v624 = vshll.u32 %v504, 16
      %v626 = vor.u32 %v623, %v624
      %v627 = vsel %vm526, %v619, %v626
      %v628 = vrot.slane %v623, 4
      %v630 = vshrl.u32 %v505, 16
      %v632 = vrot.slane %v630, 7
      %v633 = vshll.u32 %v505, 16
      %v635 = vor.u32 %v632, %v633
      %v636 = vrot.slane %v632, 4
      %v638 = vshrl.u32 %v506, 16
      %v640 = vrot.slane %v638, 7
      %v641 = vshll.u32 %v506, 16
      %v643 = vor.u32 %v640, %v641
      %v644 = vsel %vm526, %v636, %v643
      %v645 = vrot.slane %v640, 4
      %v647 = vshrl.u32 %v507, 16
      %v649 = vrot.slane %v647, 7
      %v650 = vshll.u32 %v507, 16
      %v652 = vor.u32 %v649, %v650
      %v653 = vrot.slane %v649, 4
      %v655 = vshrl.u32 %v508, 16
      %v657 = vrot.slane %v655, 7
      %v658 = vshll.u32 %v508, 16
      %v660 = vor.u32 %v657, %v658
      %v661 = vsel %vm526, %v653, %v660
      %v662 = vrot.slane %v657, 4
      %v664 = vshrl.u32 %v509, 16
      %v666 = vrot.slane %v664, 7
      %v667 = vshll.u32 %v509, 16
      %v669 = vor.u32 %v666, %v667
      %v670 = vrot.slane %v666, 4
      %v672 = vshrl.u32 %v510, 16
      %v674 = vrot.slane %v672, 7
      %v675 = vshll.u32 %v510, 16
      %v677 = vor.u32 %v674, %v675
      %v678 = vsel %vm526, %v670, %v677
      %v679 = vrot.slane %v674, 4
      %v681 = vshrl.u32 %v511, 16
      %v683 = vrot.slane %v681, 7
      %v684 = vshll.u32 %v511, 16
      %v686 = vor.u32 %v683, %v684
      %v687 = vrot.slane %v683, 4
      %v689 = vshrl.u32 %v512, 16
      %v691 = vrot.slane %v689, 7
      %v692 = vshll.u32 %v512, 16
      %v694 = vor.u32 %v691, %v692
      %v695 = vsel %vm526, %v687, %v694
      %v696 = vrot.slane %v691, 4
      %v698 = vshrl.u32 %v513, 16
      %v700 = vrot.slane %v698, 7
      %v701 = vshll.u32 %v513, 16
      %v703 = vor.u32 %v700, %v701
      %v704 = vrot.slane %v700, 4
      %v706 = vshrl.u32 %v514, 16
      %v708 = vrot.slane %v706, 7
      %v709 = vshll.u32 %v514, 16
      %v711 = vor.u32 %v708, %v709
      %v712 = vsel %vm526, %v704, %v711
      %v713 = vrot.slane %v708, 4
      %v715 = vshrl.u32 %v515, 16
      %v717 = vrot.slane %v715, 7
      %v718 = vshll.u32 %v515, 16
      %v720 = vor.u32 %v717, %v718
      %v721 = vrot.slane %v717, 4
      %v723 = vshrl.u32 %v516, 16
      %v725 = vrot.slane %v723, 7
      %v726 = vshll.u32 %v516, 16
      %v728 = vor.u32 %v725, %v726
      %v729 = vsel %vm526, %v721, %v728
      %v730 = vrot.slane %v725, 4
      %v732 = vshrl.u32 %v517, 16
      %v734 = vrot.slane %v732, 7
      %v735 = vshll.u32 %v517, 16
      %v737 = vor.u32 %v734, %v735
      %v738 = vrot.slane %v734, 4
      %v740 = vshrl.u32 %v518, 16
      %v742 = vrot.slane %v740, 7
      %v743 = vshll.u32 %v518, 16
      %v745 = vor.u32 %v742, %v743
      %v746 = vsel %vm526, %v738, %v745
      %v747 = vrot.slane %v742, 4
      %v749 = vshrl.u32 %v519, 16
      %v751 = vrot.slane %v749, 7
      %v752 = vshll.u32 %v519, 16
      %v754 = vor.u32 %v751, %v752
      %v755 = vrot.slane %v751, 4
      %v757 = vshrl.u32 %v520, 16
      %v759 = vrot.slane %v757, 7
      %v760 = vshll.u32 %v520, 16
      %v762 = vor.u32 %v759, %v760
      %v763 = vsel %vm526, %v755, %v762
      %v764 = vrot.slane %v759, 4
      %v766 = vshrl.u32 %v521, 16
      %v768 = vrot.slane %v766, 7
      %v769 = vshll.u32 %v521, 16
      %v771 = vor.u32 %v768, %v769
      %v772 = vrot.slane %v768, 4
      %v774 = vshrl.u32 %v522, 16
      %v776 = vrot.slane %v774, 7
      %v777 = vshll.u32 %v522, 16
      %v779 = vor.u32 %v776, %v777
      %v780 = vsel %vm526, %v772, %v779
      %v781 = vrot.slane %v776, 4
      %v783 = vshrl.u32 %v523, 16
      %v785 = vrot.slane %v783, 7
      %v786 = vshll.u32 %v523, 16
      %v788 = vor.u32 %v785, %v786
      %v789 = vrot.slane %v785, 4
      %v791 = vshrl.u32 %v524, 16
      %v793 = vrot.slane %v791, 7
      %v794 = vshll.u32 %v524, 16
      %v796 = vor.u32 %v793, %v794
      %v797 = vsel %vm526, %v789, %v796
      %v798 = vrot.slane %v793, 4
      %s847 = scalar_lea.vmem [#allocation2], 12
      %vm848 = vcmask 1043456
      %vm849 = vmand %vm848, %vm290
      %v850 = vld [vmem:[%s847] sm:$0xf]
      %v851 = vsel %vm849, %v533, %v850
      %852 = vst [vmem:[%s847] sm:$0xf] %v851
      %853 = vst [vmem:[%s847 + $0x4] sm:$0xf] %v542
      %v854 = vld [vmem:[%s847 + $0x8] sm:$0x1]
      %v855 = vsel %vm235, %v543, %v854
      %856 = vst [vmem:[%s847 + $0x8] sm:$0x1] %v855
      %v857 = vld [vmem:[%s847 + $0xc] sm:$0xf]
      %v858 = vsel %vm849, %v550, %v857
      %859 = vst [vmem:[%s847 + $0xc] sm:$0xf] %v858
      %860 = vst [vmem:[%s847 + $0x10] sm:$0xf] %v559
      %v861 = vld [vmem:[%s847 + $0x14] sm:$0x1]
      %v862 = vsel %vm235, %v560, %v861
      %863 = vst [vmem:[%s847 + $0x14] sm:$0x1] %v862
      %v864 = vld [vmem:[%s847 + $0x18] sm:$0xf]
      %v865 = vsel %vm849, %v567, %v864
      %866 = vst [vmem:[%s847 + $0x18] sm:$0xf] %v865
      %867 = vst [vmem:[%s847 + $0x1c] sm:$0xf] %v576
      %v868 = vld [vmem:[%s847 + $0x20] sm:$0x1]
      %v869 = vsel %vm235, %v577, %v868
      %870 = vst [vmem:[%s847 + $0x20] sm:$0x1] %v869
      %v871 = vld [vmem:[%s847 + $0x24] sm:$0xf]
      %v872 = vsel %vm849, %v584, %v871
      %873 = vst [vmem:[%s847 + $0x24] sm:$0xf] %v872
      %874 = vst [vmem:[%s847 + $0x28] sm:$0xf] %v593
      %v875 = vld [vmem:[%s847 + $0x2c] sm:$0x1]
      %v876 = vsel %vm235, %v594, %v875
      %877 = vst [vmem:[%s847 + $0x2c] sm:$0x1] %v876
      %v878 = vld [vmem:[%s847 + $0x30] sm:$0xf]
      %v879 = vsel %vm849, %v601, %v878
      %880 = vst [vmem:[%s847 + $0x30] sm:$0xf] %v879
      %881 = vst [vmem:[%s847 + $0x34] sm:$0xf] %v610
      %v882 = vld [vmem:[%s847 + $0x38] sm:$0x1]
      %v883 = vsel %vm235, %v611, %v882
      %884 = vst [vmem:[%s847 + $0x38] sm:$0x1] %v883
      %v885 = vld [vmem:[%s847 + $0x3c] sm:$0xf]
      %v886 = vsel %vm849, %v618, %v885
      %887 = vst [vmem:[%s847 + $0x3c] sm:$0xf] %v886
      %888 = vst [vmem:[%s847 + $0x40] sm:$0xf] %v627
      %v889 = vld [vmem:[%s847 + $0x44] sm:$0x1]
      %v890 = vsel %vm235, %v628, %v889
      %891 = vst [vmem:[%s847 + $0x44] sm:$0x1] %v890
      %v892 = vld [vmem:[%s847 + $0x48] sm:$0xf]
      %v893 = vsel %vm849, %v635, %v892
      %894 = vst [vmem:[%s847 + $0x48] sm:$0xf] %v893
      %895 = vst [vmem:[%s847 + $0x4c] sm:$0xf] %v644
      %v896 = vld [vmem:[%s847 + $0x50] sm:$0x1]
      %v897 = vsel %vm235, %v645, %v896
      %898 = vst [vmem:[%s847 + $0x50] sm:$0x1] %v897
      %v899 = vld [vmem:[%s847 + $0x54] sm:$0xf]
      %v900 = vsel %vm849, %v652, %v899
      %901 = vst [vmem:[%s847 + $0x54] sm:$0xf] %v900
      %902 = vst [vmem:[%s847 + $0x58] sm:$0xf] %v661
      %v903 = vld [vmem:[%s847 + $0x5c] sm:$0x1]
      %v904 = vsel %vm235, %v662, %v903
      %905 = vst [vmem:[%s847 + $0x5c] sm:$0x1] %v904
      %v906 = vld [vmem:[%s847 + $0x60] sm:$0xf]
      %v907 = vsel %vm849, %v669, %v906
      %908 = vst [vmem:[%s847 + $0x60] sm:$0xf] %v907
      %909 = vst [vmem:[%s847 + $0x64] sm:$0xf] %v678
      %v910 = vld [vmem:[%s847 + $0x68] sm:$0x1]
      %v911 = vsel %vm235, %v679, %v910
      %912 = vst [vmem:[%s847 + $0x68] sm:$0x1] %v911
      %v913 = vld [vmem:[%s847 + $0x6c] sm:$0xf]
      %v914 = vsel %vm849, %v686, %v913
      %915 = vst [vmem:[%s847 + $0x6c] sm:$0xf] %v914
      %916 = vst [vmem:[%s847 + $0x70] sm:$0xf] %v695
      %v917 = vld [vmem:[%s847 + $0x74] sm:$0x1]
      %v918 = vsel %vm235, %v696, %v917
      %919 = vst [vmem:[%s847 + $0x74] sm:$0x1] %v918
      %v920 = vld [vmem:[%s847 + $0x78] sm:$0xf]
      %v921 = vsel %vm849, %v703, %v920
      %922 = vst [vmem:[%s847 + $0x78] sm:$0xf] %v921
      %923 = vst [vmem:[%s847 + $0x7c] sm:$0xf] %v712
      %v924 = vld [vmem:[%s847 + $0x80] sm:$0x1]
      %v925 = vsel %vm235, %v713, %v924
      %926 = vst [vmem:[%s847 + $0x80] sm:$0x1] %v925
      %v927 = vld [vmem:[%s847 + $0x84] sm:$0xf]
      %v928 = vsel %vm849, %v720, %v927
      %929 = vst [vmem:[%s847 + $0x84] sm:$0xf] %v928
      %930 = vst [vmem:[%s847 + $0x88] sm:$0xf] %v729
      %v931 = vld [vmem:[%s847 + $0x8c] sm:$0x1]
      %v932 = vsel %vm235, %v730, %v931
      %933 = vst [vmem:[%s847 + $0x8c] sm:$0x1] %v932
      %v934 = vld [vmem:[%s847 + $0x90] sm:$0xf]
      %v935 = vsel %vm849, %v737, %v934
      %936 = vst [vmem:[%s847 + $0x90] sm:$0xf] %v935
      %937 = vst [vmem:[%s847 + $0x94] sm:$0xf] %v746
      %v938 = vld [vmem:[%s847 + $0x98] sm:$0x1]
      %v939 = vsel %vm235, %v747, %v938
      %940 = vst [vmem:[%s847 + $0x98] sm:$0x1] %v939
      %v941 = vld [vmem:[%s847 + $0x9c] sm:$0xf]
      %v942 = vsel %vm849, %v754, %v941
      %943 = vst [vmem:[%s847 + $0x9c] sm:$0xf] %v942
      %944 = vst [vmem:[%s847 + $0xa0] sm:$0xf] %v763
      %v945 = vld [vmem:[%s847 + $0xa4] sm:$0x1]
      %v946 = vsel %vm235, %v764, %v945
      %947 = vst [vmem:[%s847 + $0xa4] sm:$0x1] %v946
      %v948 = vld [vmem:[%s847 + $0xa8] sm:$0xf]
      %v949 = vsel %vm849, %v771, %v948
      %950 = vst [vmem:[%s847 + $0xa8] sm:$0xf] %v949
      %951 = vst [vmem:[%s847 + $0xac] sm:$0xf] %v780
      %v952 = vld [vmem:[%s847 + $0xb0] sm:$0x1]
      %v953 = vsel %vm235, %v781, %v952
      %954 = vst [vmem:[%s847 + $0xb0] sm:$0x1] %v953
      %v955 = vld [vmem:[%s847 + $0xb4] sm:$0xf]
      %v956 = vsel %vm849, %v788, %v955
      %957 = vst [vmem:[%s847 + $0xb4] sm:$0xf] %v956
      %958 = vst [vmem:[%s847 + $0xb8] sm:$0xf] %v797
      %v959 = vld [vmem:[%s847 + $0xbc] sm:$0x1]
      %v960 = vsel %vm235, %v798, %v959
      %961 = vst [vmem:[%s847 + $0xbc] sm:$0x1] %v960
      %v962 = vld [vmem:[#allocation2] sm:$0xf]
      %v963 = vld [vmem:[#allocation2 + $0x4] sm:$0xf]
      %v964 = vld [vmem:[#allocation2 + $0xc] sm:$0xf]
      %v965 = vld [vmem:[#allocation2 + $0x10] sm:$0xf]
      %v966 = vld [vmem:[#allocation2 + $0x18] sm:$0xf]
      %v967 = vld [vmem:[#allocation2 + $0x1c] sm:$0xf]
      %v968 = vld [vmem:[#allocation2 + $0x24] sm:$0xf]
      %v969 = vld [vmem:[#allocation2 + $0x28] sm:$0xf]
      %v970 = vld [vmem:[#allocation2 + $0x30] sm:$0xf]
      %v971 = vld [vmem:[#allocation2 + $0x34] sm:$0xf]
      %v972 = vld [vmem:[#allocation2 + $0x3c] sm:$0xf]
      %v973 = vld [vmem:[#allocation2 + $0x40] sm:$0xf]
      %v974 = vld [vmem:[#allocation2 + $0x48] sm:$0xf]
      %v975 = vld [vmem:[#allocation2 + $0x4c] sm:$0xf]
      %v976 = vld [vmem:[#allocation2 + $0x54] sm:$0xf]
      %v977 = vld [vmem:[#allocation2 + $0x58] sm:$0xf]
      %v978 = vld [vmem:[#allocation2 + $0x60] sm:$0xf]
      %v979 = vld [vmem:[#allocation2 + $0x64] sm:$0xf]
      %v980 = vld [vmem:[#allocation2 + $0x6c] sm:$0xf]
      %v981 = vld [vmem:[#allocation2 + $0x70] sm:$0xf]
      %v982 = vld [vmem:[#allocation2 + $0x78] sm:$0xf]
      %v983 = vld [vmem:[#allocation2 + $0x7c] sm:$0xf]
      %v984 = vld [vmem:[#allocation2 + $0x84] sm:$0xf]
      %v985 = vld [vmem:[#allocation2 + $0x88] sm:$0xf]
      %v986 = vld [vmem:[#allocation2 + $0x90] sm:$0xf]
      %v987 = vld [vmem:[#allocation2 + $0x94] sm:$0xf]
      %v988 = vld [vmem:[#allocation2 + $0x9c] sm:$0xf]
      %v989 = vld [vmem:[#allocation2 + $0xa0] sm:$0xf]
      %v990 = vld [vmem:[#allocation2 + $0xa8] sm:$0xf]
      %v991 = vld [vmem:[#allocation2 + $0xac] sm:$0xf]
      %v992 = vld [vmem:[#allocation2 + $0xb4] sm:$0xf]
      %v993 = vld [vmem:[#allocation2 + $0xb8] sm:$0xf]
      %v994 = vld [vmem:[#allocation2 + $0x8] sm:$0x1]
      %v995 = vld [vmem:[#allocation2 + $0x14] sm:$0x1]
      %v996 = vld [vmem:[#allocation2 + $0x20] sm:$0x1]
      %v997 = vld [vmem:[#allocation2 + $0x2c] sm:$0x1]
      %v998 = vld [vmem:[#allocation2 + $0x38] sm:$0x1]
      %v999 = vld [vmem:[#allocation2 + $0x44] sm:$0x1]
      %v1000 = vld [vmem:[#allocation2 + $0x50] sm:$0x1]
      %v1001 = vld [vmem:[#allocation2 + $0x5c] sm:$0x1]
      %v1002 = vld [vmem:[#allocation2 + $0x68] sm:$0x1]
      %v1003 = vld [vmem:[#allocation2 + $0x74] sm:$0x1]
      %v1004 = vld [vmem:[#allocation2 + $0x80] sm:$0x1]
      %v1005 = vld [vmem:[#allocation2 + $0x8c] sm:$0x1]
      %v1006 = vld [vmem:[#allocation2 + $0x98] sm:$0x1]
      %v1007 = vld [vmem:[#allocation2 + $0xa4] sm:$0x1]
      %v1008 = vld [vmem:[#allocation2 + $0xb0] sm:$0x1]
      %v1009 = vld [vmem:[#allocation2 + $0xbc] sm:$0x1]
      %vm1010 = vsmask.f32 3328
      %vm1011 = vsmask.f32 7440
      %vm1012 = vmor %vm1010, %vm1011
      %v1014 = vshrl.u32 %v962, 16
      %v1016 = vrot.slane %v1014, 4
      %v1017 = vshll.u32 %v962, 16
      %v1019 = vrot.slane %v1017, 5
      %v1020 = vor.u32 %v1016, %v1019
      %v1021 = vrot.slane %v1020, 4
      %v1023 = vshll.u32 %v963, 16
      %v1025 = vrot.slane %v1023, 5
      %v1026 = vsel %vm1012, %v1021, %v1025
      %v1027 = vshrl.u32 %v963, 16
      %v1029 = vrot.slane %v1027, 4
      %v1030 = vor.u32 %v1029, %v1025
      %v1031 = vrot.slane %v1030, 4
      %v1033 = vshll.u32 %v994, 16
      %v1035 = vrot.slane %v1033, 5
      %v1036 = vsel %vm1012, %v1031, %v1035
      %v1038 = vshrl.u32 %v964, 16
      %v1040 = vrot.slane %v1038, 4
      %v1041 = vshll.u32 %v964, 16
      %v1043 = vrot.slane %v1041, 5
      %v1044 = vor.u32 %v1040, %v1043
      %v1045 = vrot.slane %v1044, 4
      %v1047 = vshll.u32 %v965, 16
      %v1049 = vrot.slane %v1047, 5
      %v1050 = vsel %vm1012, %v1045, %v1049
      %v1051 = vshrl.u32 %v965, 16
      %v1053 = vrot.slane %v1051, 4
      %v1054 = vor.u32 %v1053, %v1049
      %v1055 = vrot.slane %v1054, 4
      %v1057 = vshll.u32 %v995, 16
      %v1059 = vrot.slane %v1057, 5
      %v1060 = vsel %vm1012, %v1055, %v1059
      %v1062 = vshrl.u32 %v966, 16
      %v1064 = vrot.slane %v1062, 4
      %v1065 = vshll.u32 %v966, 16
      %v1067 = vrot.slane %v1065, 5
      %v1068 = vor.u32 %v1064, %v1067
      %v1069 = vrot.slane %v1068, 4
      %v1071 = vshll.u32 %v967, 16
      %v1073 = vrot.slane %v1071, 5
      %v1074 = vsel %vm1012, %v1069, %v1073
      %v1075 = vshrl.u32 %v967, 16
      %v1077 = vrot.slane %v1075, 4
      %v1078 = vor.u32 %v1077, %v1073
      %v1079 = vrot.slane %v1078, 4
      %v1081 = vshll.u32 %v996, 16
      %v1083 = vrot.slane %v1081, 5
      %v1084 = vsel %vm1012, %v1079, %v1083
      %v1086 = vshrl.u32 %v968, 16
      %v1088 = vrot.slane %v1086, 4
      %v1089 = vshll.u32 %v968, 16
      %v1091 = vrot.slane %v1089, 5
      %v1092 = vor.u32 %v1088, %v1091
      %v1093 = vrot.slane %v1092, 4
      %v1095 = vshll.u32 %v969, 16
      %v1097 = vrot.slane %v1095, 5
      %v1098 = vsel %vm1012, %v1093, %v1097
      %v1099 = vshrl.u32 %v969, 16
      %v1101 = vrot.slane %v1099, 4
      %v1102 = vor.u32 %v1101, %v1097
      %v1103 = vrot.slane %v1102, 4
      %v1105 = vshll.u32 %v997, 16
      %v1107 = vrot.slane %v1105, 5
      %v1108 = vsel %vm1012, %v1103, %v1107
      %v1110 = vshrl.u32 %v970, 16
      %v1112 = vrot.slane %v1110, 4
      %v1113 = vshll.u32 %v970, 16
      %v1115 = vrot.slane %v1113, 5
      %v1116 = vor.u32 %v1112, %v1115
      %v1117 = vrot.slane %v1116, 4
      %v1119 = vshll.u32 %v971, 16
      %v1121 = vrot.slane %v1119, 5
      %v1122 = vsel %vm1012, %v1117, %v1121
      %v1123 = vshrl.u32 %v971, 16
      %v1125 = vrot.slane %v1123, 4
      %v1126 = vor.u32 %v1125, %v1121
      %v1127 = vrot.slane %v1126, 4
      %v1129 = vshll.u32 %v998, 16
      %v1131 = vrot.slane %v1129, 5
      %v1132 = vsel %vm1012, %v1127, %v1131
      %v1134 = vshrl.u32 %v972, 16
      %v1136 = vrot.slane %v1134, 4
      %v1137 = vshll.u32 %v972, 16
      %v1139 = vrot.slane %v1137, 5
      %v1140 = vor.u32 %v1136, %v1139
      %v1141 = vrot.slane %v1140, 4
      %v1143 = vshll.u32 %v973, 16
      %v1145 = vrot.slane %v1143, 5
      %v1146 = vsel %vm1012, %v1141, %v1145
      %v1147 = vshrl.u32 %v973, 16
      %v1149 = vrot.slane %v1147, 4
      %v1150 = vor.u32 %v1149, %v1145
      %v1151 = vrot.slane %v1150, 4
      %v1153 = vshll.u32 %v999, 16
      %v1155 = vrot.slane %v1153, 5
      %v1156 = vsel %vm1012, %v1151, %v1155
      %v1158 = vshrl.u32 %v974, 16
      %v1160 = vrot.slane %v1158, 4
      %v1161 = vshll.u32 %v974, 16
      %v1163 = vrot.slane %v1161, 5
      %v1164 = vor.u32 %v1160, %v1163
      %v1165 = vrot.slane %v1164, 4
      %v1167 = vshll.u32 %v975, 16
      %v1169 = vrot.slane %v1167, 5
      %v1170 = vsel %vm1012, %v1165, %v1169
      %v1171 = vshrl.u32 %v975, 16
      %v1173 = vrot.slane %v1171, 4
      %v1174 = vor.u32 %v1173, %v1169
      %v1175 = vrot.slane %v1174, 4
      %v1177 = vshll.u32 %v1000, 16
      %v1179 = vrot.slane %v1177, 5
      %v1180 = vsel %vm1012, %v1175, %v1179
      %v1182 = vshrl.u32 %v976, 16
      %v1184 = vrot.slane %v1182, 4
      %v1185 = vshll.u32 %v976, 16
      %v1187 = vrot.slane %v1185, 5
      %v1188 = vor.u32 %v1184, %v1187
      %v1189 = vrot.slane %v1188, 4
      %v1191 = vshll.u32 %v977, 16
      %v1193 = vrot.slane %v1191, 5
      %v1194 = vsel %vm1012, %v1189, %v1193
      %v1195 = vshrl.u32 %v977, 16
      %v1197 = vrot.slane %v1195, 4
      %v1198 = vor.u32 %v1197, %v1193
      %v1199 = vrot.slane %v1198, 4
      %v1201 = vshll.u32 %v1001, 16
      %v1203 = vrot.slane %v1201, 5
      %v1204 = vsel %vm1012, %v1199, %v1203
      %v1206 = vshrl.u32 %v978, 16
      %v1208 = vrot.slane %v1206, 4
      %v1209 = vshll.u32 %v978, 16
      %v1211 = vrot.slane %v1209, 5
      %v1212 = vor.u32 %v1208, %v1211
      %v1213 = vrot.slane %v1212, 4
      %v1215 = vshll.u32 %v979, 16
      %v1217 = vrot.slane %v1215, 5
      %v1218 = vsel %vm1012, %v1213, %v1217
      %v1219 = vshrl.u32 %v979, 16
      %v1221 = vrot.slane %v1219, 4
      %v1222 = vor.u32 %v1221, %v1217
      %v1223 = vrot.slane %v1222, 4
      %v1225 = vshll.u32 %v1002, 16
      %v1227 = vrot.slane %v1225, 5
      %v1228 = vsel %vm1012, %v1223, %v1227
      %v1230 = vshrl.u32 %v980, 16
      %v1232 = vrot.slane %v1230, 4
      %v1233 = vshll.u32 %v980, 16
      %v1235 = vrot.slane %v1233, 5
      %v1236 = vor.u32 %v1232, %v1235
      %v1237 = vrot.slane %v1236, 4
      %v1239 = vshll.u32 %v981, 16
      %v1241 = vrot.slane %v1239, 5
      %v1242 = vsel %vm1012, %v1237, %v1241
      %v1243 = vshrl.u32 %v981, 16
      %v1245 = vrot.slane %v1243, 4
      %v1246 = vor.u32 %v1245, %v1241
      %v1247 = vrot.slane %v1246, 4
      %v1249 = vshll.u32 %v1003, 16
      %v1251 = vrot.slane %v1249, 5
      %v1252 = vsel %vm1012, %v1247, %v1251
      %v1254 = vshrl.u32 %v982, 16
      %v1256 = vrot.slane %v1254, 4
      %v1257 = vshll.u32 %v982, 16
      %v1259 = vrot.slane %v1257, 5
      %v1260 = vor.u32 %v1256, %v1259
      %v1261 = vrot.slane %v1260, 4
      %v1263 = vshll.u32 %v983, 16
      %v1265 = vrot.slane %v1263, 5
      %v1266 = vsel %vm1012, %v1261, %v1265
      %v1267 = vshrl.u32 %v983, 16
      %v1269 = vrot.slane %v1267, 4
      %v1270 = vor.u32 %v1269, %v1265
      %v1271 = vrot.slane %v1270, 4
      %v1273 = vshll.u32 %v1004, 16
      %v1275 = vrot.slane %v1273, 5
      %v1276 = vsel %vm1012, %v1271, %v1275
      %v1278 = vshrl.u32 %v984, 16
      %v1280 = vrot.slane %v1278, 4
      %v1281 = vshll.u32 %v984, 16
      %v1283 = vrot.slane %v1281, 5
      %v1284 = vor.u32 %v1280, %v1283
      %v1285 = vrot.slane %v1284, 4
      %v1287 = vshll.u32 %v985, 16
      %v1289 = vrot.slane %v1287, 5
      %v1290 = vsel %vm1012, %v1285, %v1289
      %v1291 = vshrl.u32 %v985, 16
      %v1293 = vrot.slane %v1291, 4
      %v1294 = vor.u32 %v1293, %v1289
      %v1295 = vrot.slane %v1294, 4
      %v1297 = vshll.u32 %v1005, 16
      %v1299 = vrot.slane %v1297, 5
      %v1300 = vsel %vm1012, %v1295, %v1299
      %v1302 = vshrl.u32 %v986, 16
      %v1304 = vrot.slane %v1302, 4
      %v1305 = vshll.u32 %v986, 16
      %v1307 = vrot.slane %v1305, 5
      %v1308 = vor.u32 %v1304, %v1307
      %v1309 = vrot.slane %v1308, 4
      %v1311 = vshll.u32 %v987, 16
      %v1313 = vrot.slane %v1311, 5
      %v1314 = vsel %vm1012, %v1309, %v1313
      %v1315 = vshrl.u32 %v987, 16
      %v1317 = vrot.slane %v1315, 4
      %v1318 = vor.u32 %v1317, %v1313
      %v1319 = vrot.slane %v1318, 4
      %v1321 = vshll.u32 %v1006, 16
      %v1323 = vrot.slane %v1321, 5
      %v1324 = vsel %vm1012, %v1319, %v1323
      %v1326 = vshrl.u32 %v988, 16
      %v1328 = vrot.slane %v1326, 4
      %v1329 = vshll.u32 %v988, 16
      %v1331 = vrot.slane %v1329, 5
      %v1332 = vor.u32 %v1328, %v1331
      %v1333 = vrot.slane %v1332, 4
      %v1335 = vshll.u32 %v989, 16
      %v1337 = vrot.slane %v1335, 5
      %v1338 = vsel %vm1012, %v1333, %v1337
      %v1339 = vshrl.u32 %v989, 16
      %v1341 = vrot.slane %v1339, 4
      %v1342 = vor.u32 %v1341, %v1337
      %v1343 = vrot.slane %v1342, 4
      %v1345 = vshll.u32 %v1007, 16
      %v1347 = vrot.slane %v1345, 5
      %v1348 = vsel %vm1012, %v1343, %v1347
      %v1350 = vshrl.u32 %v990, 16
      %v1352 = vrot.slane %v1350, 4
      %v1353 = vshll.u32 %v990, 16
      %v1355 = vrot.slane %v1353, 5
      %v1356 = vor.u32 %v1352, %v1355
      %v1357 = vrot.slane %v1356, 4
      %v1359 = vshll.u32 %v991, 16
      %v1361 = vrot.slane %v1359, 5
      %v1362 = vsel %vm1012, %v1357, %v1361
      %v1363 = vshrl.u32 %v991, 16
      %v1365 = vrot.slane %v1363, 4
      %v1366 = vor.u32 %v1365, %v1361
      %v1367 = vrot.slane %v1366, 4
      %v1369 = vshll.u32 %v1008, 16
      %v1371 = vrot.slane %v1369, 5
      %v1372 = vsel %vm1012, %v1367, %v1371
      %v1374 = vshrl.u32 %v992, 16
      %v1376 = vrot.slane %v1374, 4
      %v1377 = vshll.u32 %v992, 16
      %v1379 = vrot.slane %v1377, 5
      %v1380 = vor.u32 %v1376, %v1379
      %v1381 = vrot.slane %v1380, 4
      %v1383 = vshll.u32 %v993, 16
      %v1385 = vrot.slane %v1383, 5
      %v1386 = vsel %vm1012, %v1381, %v1385
      %v1387 = vshrl.u32 %v993, 16
      %v1389 = vrot.slane %v1387, 4
      %v1390 = vor.u32 %v1389, %v1385
      %v1391 = vrot.slane %v1390, 4
      %v1393 = vshll.u32 %v1009, 16
      %v1395 = vrot.slane %v1393, 5
      %v1396 = vsel %vm1012, %v1391, %v1395
      %v1397 = vld [vmem:[#allocation2] sm:$0xe]
      %v1398 = vld [vmem:[#allocation2 + $0xc] sm:$0xe]
      %v1399 = vld [vmem:[#allocation2 + $0x18] sm:$0xe]
      %v1400 = vld [vmem:[#allocation2 + $0x24] sm:$0xe]
      %v1401 = vld [vmem:[#allocation2 + $0x30] sm:$0xe]
      %v1402 = vld [vmem:[#allocation2 + $0x3c] sm:$0xe]
      %v1403 = vld [vmem:[#allocation2 + $0x48] sm:$0xe]
      %v1404 = vld [vmem:[#allocation2 + $0x54] sm:$0xe]
      %v1405 = vld [vmem:[#allocation2 + $0x60] sm:$0xe]
      %v1406 = vld [vmem:[#allocation2 + $0x6c] sm:$0xe]
      %v1407 = vld [vmem:[#allocation2 + $0x78] sm:$0xe]
      %v1408 = vld [vmem:[#allocation2 + $0x84] sm:$0xe]
      %v1409 = vld [vmem:[#allocation2 + $0x90] sm:$0xe]
      %v1410 = vld [vmem:[#allocation2 + $0x9c] sm:$0xe]
      %v1411 = vld [vmem:[#allocation2 + $0xa8] sm:$0xe]
      %v1412 = vld [vmem:[#allocation2 + $0xb4] sm:$0xe]
      %vm1461 = vcmask 1042432
      %vm1462 = vcmask 1046532
      %vm1463 = vmor %vm1461, %vm1462
      %v1464 = vrot.slane %v1397, 5
      %v1465 = vrot.slane %v1464, 4
      %v1466 = vrot.slane %v963, 5
      %v1467 = vsel %vm1463, %v1465, %v1466
      %v1468 = vrot.slane %v1466, 4
      %v1469 = vrot.slane %v994, 5
      %v1470 = vsel %vm1463, %v1468, %v1469
      %v1471 = vrot.slane %v1398, 5
      %v1472 = vrot.slane %v1471, 4
      %v1473 = vrot.slane %v965, 5
      %v1474 = vsel %vm1463, %v1472, %v1473
      %v1475 = vrot.slane %v1473, 4
      %v1476 = vrot.slane %v995, 5
      %v1477 = vsel %vm1463, %v1475, %v1476
      %v1478 = vrot.slane %v1399, 5
      %v1479 = vrot.slane %v1478, 4
      %v1480 = vrot.slane %v967, 5
      %v1481 = vsel %vm1463, %v1479, %v1480
      %v1482 = vrot.slane %v1480, 4
      %v1483 = vrot.slane %v996, 5
      %v1484 = vsel %vm1463, %v1482, %v1483
      %v1485 = vrot.slane %v1400, 5
      %v1486 = vrot.slane %v1485, 4
      %v1487 = vrot.slane %v969, 5
      %v1488 = vsel %vm1463, %v1486, %v1487
      %v1489 = vrot.slane %v1487, 4
      %v1490 = vrot.slane %v997, 5
      %v1491 = vsel %vm1463, %v1489, %v1490
      %v1492 = vrot.slane %v1401, 5
      %v1493 = vrot.slane %v1492, 4
      %v1494 = vrot.slane %v971, 5
      %v1495 = vsel %vm1463, %v1493, %v1494
      %v1496 = vrot.slane %v1494, 4
      %v1497 = vrot.slane %v998, 5
      %v1498 = vsel %vm1463, %v1496, %v1497
      %v1499 = vrot.slane %v1402, 5
      %v1500 = vrot.slane %v1499, 4
      %v1501 = vrot.slane %v973, 5
      %v1502 = vsel %vm1463, %v1500, %v1501
      %v1503 = vrot.slane %v1501, 4
      %v1504 = vrot.slane %v999, 5
      %v1505 = vsel %vm1463, %v1503, %v1504
      %v1506 = vrot.slane %v1403, 5
      %v1507 = vrot.slane %v1506, 4
      %v1508 = vrot.slane %v975, 5
      %v1509 = vsel %vm1463, %v1507, %v1508
      %v1510 = vrot.slane %v1508, 4
      %v1511 = vrot.slane %v1000, 5
      %v1512 = vsel %vm1463, %v1510, %v1511
      %v1513 = vrot.slane %v1404, 5
      %v1514 = vrot.slane %v1513, 4
      %v1515 = vrot.slane %v977, 5
      %v1516 = vsel %vm1463, %v1514, %v1515
      %v1517 = vrot.slane %v1515, 4
      %v1518 = vrot.slane %v1001, 5
      %v1519 = vsel %vm1463, %v1517, %v1518
      %v1520 = vrot.slane %v1405, 5
      %v1521 = vrot.slane %v1520, 4
      %v1522 = vrot.slane %v979, 5
      %v1523 = vsel %vm1463, %v1521, %v1522
      %v1524 = vrot.slane %v1522, 4
      %v1525 = vrot.slane %v1002, 5
      %v1526 = vsel %vm1463, %v1524, %v1525
      %v1527 = vrot.slane %v1406, 5
      %v1528 = vrot.slane %v1527, 4
      %v1529 = vrot.slane %v981, 5
      %v1530 = vsel %vm1463, %v1528, %v1529
      %v1531 = vrot.slane %v1529, 4
      %v1532 = vrot.slane %v1003, 5
      %v1533 = vsel %vm1463, %v1531, %v1532
      %v1534 = vrot.slane %v1407, 5
      %v1535 = vrot.slane %v1534, 4
      %v1536 = vrot.slane %v983, 5
      %v1537 = vsel %vm1463, %v1535, %v1536
      %v1538 = vrot.slane %v1536, 4
      %v1539 = vrot.slane %v1004, 5
      %v1540 = vsel %vm1463, %v1538, %v1539
      %v1541 = vrot.slane %v1408, 5
      %v1542 = vrot.slane %v1541, 4
      %v1543 = vrot.slane %v985, 5
      %v1544 = vsel %vm1463, %v1542, %v1543
      %v1545 = vrot.slane %v1543, 4
      %v1546 = vrot.slane %v1005, 5
      %v1547 = vsel %vm1463, %v1545, %v1546
      %v1548 = vrot.slane %v1409, 5
      %v1549 = vrot.slane %v1548, 4
      %v1550 = vrot.slane %v987, 5
      %v1551 = vsel %vm1463, %v1549, %v1550
      %v1552 = vrot.slane %v1550, 4
      %v1553 = vrot.slane %v1006, 5
      %v1554 = vsel %vm1463, %v1552, %v1553
      %v1555 = vrot.slane %v1410, 5
      %v1556 = vrot.slane %v1555, 4
      %v1557 = vrot.slane %v989, 5
      %v1558 = vsel %vm1463, %v1556, %v1557
      %v1559 = vrot.slane %v1557, 4
      %v1560 = vrot.slane %v1007, 5
      %v1561 = vsel %vm1463, %v1559, %v1560
      %v1562 = vrot.slane %v1411, 5
      %v1563 = vrot.slane %v1562, 4
      %v1564 = vrot.slane %v991, 5
      %v1565 = vsel %vm1463, %v1563, %v1564
      %v1566 = vrot.slane %v1564, 4
      %v1567 = vrot.slane %v1008, 5
      %v1568 = vsel %vm1463, %v1566, %v1567
      %v1569 = vrot.slane %v1412, 5
      %v1570 = vrot.slane %v1569, 4
      %v1571 = vrot.slane %v993, 5
      %v1572 = vsel %vm1463, %v1570, %v1571
      %v1573 = vrot.slane %v1571, 4
      %v1574 = vrot.slane %v1009, 5
      %v1575 = vsel %vm1463, %v1573, %v1574
      %v1576 = vld [vmem:[%s847] sm:$0xf]
      %v1577 = vld [vmem:[%s847 + $0x4] sm:$0xf]
      %v1578 = vld [vmem:[%s847 + $0xc] sm:$0xf]
      %v1579 = vld [vmem:[%s847 + $0x10] sm:$0xf]
      %v1580 = vld [vmem:[%s847 + $0x18] sm:$0xf]
      %v1581 = vld [vmem:[%s847 + $0x1c] sm:$0xf]
      %v1582 = vld [vmem:[%s847 + $0x24] sm:$0xf]
      %v1583 = vld [vmem:[%s847 + $0x28] sm:$0xf]
      %v1584 = vld [vmem:[%s847 + $0x30] sm:$0xf]
      %v1585 = vld [vmem:[%s847 + $0x34] sm:$0xf]
      %v1586 = vld [vmem:[%s847 + $0x3c] sm:$0xf]
      %v1587 = vld [vmem:[%s847 + $0x40] sm:$0xf]
      %v1588 = vld [vmem:[%s847 + $0x48] sm:$0xf]
      %v1589 = vld [vmem:[%s847 + $0x4c] sm:$0xf]
      %v1590 = vld [vmem:[%s847 + $0x54] sm:$0xf]
      %v1591 = vld [vmem:[%s847 + $0x58] sm:$0xf]
      %v1592 = vld [vmem:[%s847 + $0x60] sm:$0xf]
      %v1593 = vld [vmem:[%s847 + $0x64] sm:$0xf]
      %v1594 = vld [vmem:[%s847 + $0x6c] sm:$0xf]
      %v1595 = vld [vmem:[%s847 + $0x70] sm:$0xf]
      %v1596 = vld [vmem:[%s847 + $0x78] sm:$0xf]
      %v1597 = vld [vmem:[%s847 + $0x7c] sm:$0xf]
      %v1598 = vld [vmem:[%s847 + $0x84] sm:$0xf]
      %v1599 = vld [vmem:[%s847 + $0x88] sm:$0xf]
      %v1600 = vld [vmem:[%s847 + $0x90] sm:$0xf]
      %v1601 = vld [vmem:[%s847 + $0x94] sm:$0xf]
      %v1602 = vld [vmem:[%s847 + $0x9c] sm:$0xf]
      %v1603 = vld [vmem:[%s847 + $0xa0] sm:$0xf]
      %v1604 = vld [vmem:[%s847 + $0xa8] sm:$0xf]
      %v1605 = vld [vmem:[%s847 + $0xac] sm:$0xf]
      %v1606 = vld [vmem:[%s847 + $0xb4] sm:$0xf]
      %v1607 = vld [vmem:[%s847 + $0xb8] sm:$0xf]
      %v1608 = vld [vmem:[%s847 + $0x8] sm:$0x1]
      %v1609 = vld [vmem:[%s847 + $0x14] sm:$0x1]
      %v1610 = vld [vmem:[%s847 + $0x20] sm:$0x1]
      %v1611 = vld [vmem:[%s847 + $0x2c] sm:$0x1]
      %v1612 = vld [vmem:[%s847 + $0x38] sm:$0x1]
      %v1613 = vld [vmem:[%s847 + $0x44] sm:$0x1]
      %v1614 = vld [vmem:[%s847 + $0x50] sm:$0x1]
      %v1615 = vld [vmem:[%s847 + $0x5c] sm:$0x1]
      %v1616 = vld [vmem:[%s847 + $0x68] sm:$0x1]
      %v1617 = vld [vmem:[%s847 + $0x74] sm:$0x1]
      %v1618 = vld [vmem:[%s847 + $0x80] sm:$0x1]
      %v1619 = vld [vmem:[%s847 + $0x8c] sm:$0x1]
      %v1620 = vld [vmem:[%s847 + $0x98] sm:$0x1]
      %v1621 = vld [vmem:[%s847 + $0xa4] sm:$0x1]
      %v1622 = vld [vmem:[%s847 + $0xb0] sm:$0x1]
      %v1623 = vld [vmem:[%s847 + $0xbc] sm:$0x1]
      %v1625 = vshrl.u32 %v1576, 16
      %v1627 = vrot.slane %v1625, 4
      %v1628 = vshll.u32 %v1576, 16
      %v1630 = vrot.slane %v1628, 5
      %v1631 = vor.u32 %v1627, %v1630
      %v1632 = vrot.slane %v1631, 4
      %v1634 = vshll.u32 %v1577, 16
      %v1636 = vrot.slane %v1634, 5
      %v1637 = vsel %vm1012, %v1632, %v1636
      %v1638 = vshrl.u32 %v1577, 16
      %v1640 = vrot.slane %v1638, 4
      %v1641 = vor.u32 %v1640, %v1636
      %v1642 = vrot.slane %v1641, 4
      %v1644 = vshll.u32 %v1608, 16
      %v1646 = vrot.slane %v1644, 5
      %v1647 = vsel %vm1012, %v1642, %v1646
      %v1649 = vshrl.u32 %v1578, 16
      %v1651 = vrot.slane %v1649, 4
      %v1652 = vshll.u32 %v1578, 16
      %v1654 = vrot.slane %v1652, 5
      %v1655 = vor.u32 %v1651, %v1654
      %v1656 = vrot.slane %v1655, 4
      %v1658 = vshll.u32 %v1579, 16
      %v1660 = vrot.slane %v1658, 5
      %v1661 = vsel %vm1012, %v1656, %v1660
      %v1662 = vshrl.u32 %v1579, 16
      %v1664 = vrot.slane %v1662, 4
      %v1665 = vor.u32 %v1664, %v1660
      %v1666 = vrot.slane %v1665, 4
      %v1668 = vshll.u32 %v1609, 16
      %v1670 = vrot.slane %v1668, 5
      %v1671 = vsel %vm1012, %v1666, %v1670
      %v1673 = vshrl.u32 %v1580, 16
      %v1675 = vrot.slane %v1673, 4
      %v1676 = vshll.u32 %v1580, 16
      %v1678 = vrot.slane %v1676, 5
      %v1679 = vor.u32 %v1675, %v1678
      %v1680 = vrot.slane %v1679, 4
      %v1682 = vshll.u32 %v1581, 16
      %v1684 = vrot.slane %v1682, 5
      %v1685 = vsel %vm1012, %v1680, %v1684
      %v1686 = vshrl.u32 %v1581, 16
      %v1688 = vrot.slane %v1686, 4
      %v1689 = vor.u32 %v1688, %v1684
      %v1690 = vrot.slane %v1689, 4
      %v1692 = vshll.u32 %v1610, 16
      %v1694 = vrot.slane %v1692, 5
      %v1695 = vsel %vm1012, %v1690, %v1694
      %v1697 = vshrl.u32 %v1582, 16
      %v1699 = vrot.slane %v1697, 4
      %v1700 = vshll.u32 %v1582, 16
      %v1702 = vrot.slane %v1700, 5
      %v1703 = vor.u32 %v1699, %v1702
      %v1704 = vrot.slane %v1703, 4
      %v1706 = vshll.u32 %v1583, 16
      %v1708 = vrot.slane %v1706, 5
      %v1709 = vsel %vm1012, %v1704, %v1708
      %v1710 = vshrl.u32 %v1583, 16
      %v1712 = vrot.slane %v1710, 4
      %v1713 = vor.u32 %v1712, %v1708
      %v1714 = vrot.slane %v1713, 4
      %v1716 = vshll.u32 %v1611, 16
      %v1718 = vrot.slane %v1716, 5
      %v1719 = vsel %vm1012, %v1714, %v1718
      %v1721 = vshrl.u32 %v1584, 16
      %v1723 = vrot.slane %v1721, 4
      %v1724 = vshll.u32 %v1584, 16
      %v1726 = vrot.slane %v1724, 5
      %v1727 = vor.u32 %v1723, %v1726
      %v1728 = vrot.slane %v1727, 4
      %v1730 = vshll.u32 %v1585, 16
      %v1732 = vrot.slane %v1730, 5
      %v1733 = vsel %vm1012, %v1728, %v1732
      %v1734 = vshrl.u32 %v1585, 16
      %v1736 = vrot.slane %v1734, 4
      %v1737 = vor.u32 %v1736, %v1732
      %v1738 = vrot.slane %v1737, 4
      %v1740 = vshll.u32 %v1612, 16
      %v1742 = vrot.slane %v1740, 5
      %v1743 = vsel %vm1012, %v1738, %v1742
      %v1745 = vshrl.u32 %v1586, 16
      %v1747 = vrot.slane %v1745, 4
      %v1748 = vshll.u32 %v1586, 16
      %v1750 = vrot.slane %v1748, 5
      %v1751 = vor.u32 %v1747, %v1750
      %v1752 = vrot.slane %v1751, 4
      %v1754 = vshll.u32 %v1587, 16
      %v1756 = vrot.slane %v1754, 5
      %v1757 = vsel %vm1012, %v1752, %v1756
      %v1758 = vshrl.u32 %v1587, 16
      %v1760 = vrot.slane %v1758, 4
      %v1761 = vor.u32 %v1760, %v1756
      %v1762 = vrot.slane %v1761, 4
      %v1764 = vshll.u32 %v1613, 16
      %v1766 = vrot.slane %v1764, 5
      %v1767 = vsel %vm1012, %v1762, %v1766
      %v1769 = vshrl.u32 %v1588, 16
      %v1771 = vrot.slane %v1769, 4
      %v1772 = vshll.u32 %v1588, 16
      %v1774 = vrot.slane %v1772, 5
      %v1775 = vor.u32 %v1771, %v1774
      %v1776 = vrot.slane %v1775, 4
      %v1778 = vshll.u32 %v1589, 16
      %v1780 = vrot.slane %v1778, 5
      %v1781 = vsel %vm1012, %v1776, %v1780
      %v1782 = vshrl.u32 %v1589, 16
      %v1784 = vrot.slane %v1782, 4
      %v1785 = vor.u32 %v1784, %v1780
      %v1786 = vrot.slane %v1785, 4
      %v1788 = vshll.u32 %v1614, 16
      %v1790 = vrot.slane %v1788, 5
      %v1791 = vsel %vm1012, %v1786, %v1790
      %v1793 = vshrl.u32 %v1590, 16
      %v1795 = vrot.slane %v1793, 4
      %v1796 = vshll.u32 %v1590, 16
      %v1798 = vrot.slane %v1796, 5
      %v1799 = vor.u32 %v1795, %v1798
      %v1800 = vrot.slane %v1799, 4
      %v1802 = vshll.u32 %v1591, 16
      %v1804 = vrot.slane %v1802, 5
      %v1805 = vsel %vm1012, %v1800, %v1804
      %v1806 = vshrl.u32 %v1591, 16
      %v1808 = vrot.slane %v1806, 4
      %v1809 = vor.u32 %v1808, %v1804
      %v1810 = vrot.slane %v1809, 4
      %v1812 = vshll.u32 %v1615, 16
      %v1814 = vrot.slane %v1812, 5
      %v1815 = vsel %vm1012, %v1810, %v1814
      %v1817 = vshrl.u32 %v1592, 16
      %v1819 = vrot.slane %v1817, 4
      %v1820 = vshll.u32 %v1592, 16
      %v1822 = vrot.slane %v1820, 5
      %v1823 = vor.u32 %v1819, %v1822
      %v1824 = vrot.slane %v1823, 4
      %v1826 = vshll.u32 %v1593, 16
      %v1828 = vrot.slane %v1826, 5
      %v1829 = vsel %vm1012, %v1824, %v1828
      %v1830 = vshrl.u32 %v1593, 16
      %v1832 = vrot.slane %v1830, 4
      %v1833 = vor.u32 %v1832, %v1828
      %v1834 = vrot.slane %v1833, 4
      %v1836 = vshll.u32 %v1616, 16
      %v1838 = vrot.slane %v1836, 5
      %v1839 = vsel %vm1012, %v1834, %v1838
      %v1841 = vshrl.u32 %v1594, 16
      %v1843 = vrot.slane %v1841, 4
      %v1844 = vshll.u32 %v1594, 16
      %v1846 = vrot.slane %v1844, 5
      %v1847 = vor.u32 %v1843, %v1846
      %v1848 = vrot.slane %v1847, 4
      %v1850 = vshll.u32 %v1595, 16
      %v1852 = vrot.slane %v1850, 5
      %v1853 = vsel %vm1012, %v1848, %v1852
      %v1854 = vshrl.u32 %v1595, 16
      %v1856 = vrot.slane %v1854, 4
      %v1857 = vor.u32 %v1856, %v1852
      %v1858 = vrot.slane %v1857, 4
      %v1860 = vshll.u32 %v1617, 16
      %v1862 = vrot.slane %v1860, 5
      %v1863 = vsel %vm1012, %v1858, %v1862
      %v1865 = vshrl.u32 %v1596, 16
      %v1867 = vrot.slane %v1865, 4
      %v1868 = vshll.u32 %v1596, 16
      %v1870 = vrot.slane %v1868, 5
      %v1871 = vor.u32 %v1867, %v1870
      %v1872 = vrot.slane %v1871, 4
      %v1874 = vshll.u32 %v1597, 16
      %v1876 = vrot.slane %v1874, 5
      %v1877 = vsel %vm1012, %v1872, %v1876
      %v1878 = vshrl.u32 %v1597, 16
      %v1880 = vrot.slane %v1878, 4
      %v1881 = vor.u32 %v1880, %v1876
      %v1882 = vrot.slane %v1881, 4
      %v1884 = vshll.u32 %v1618, 16
      %v1886 = vrot.slane %v1884, 5
      %v1887 = vsel %vm1012, %v1882, %v1886
      %v1889 = vshrl.u32 %v1598, 16
      %v1891 = vrot.slane %v1889, 4
      %v1892 = vshll.u32 %v1598, 16
      %v1894 = vrot.slane %v1892, 5
      %v1895 = vor.u32 %v1891, %v1894
      %v1896 = vrot.slane %v1895, 4
      %v1898 = vshll.u32 %v1599, 16
      %v1900 = vrot.slane %v1898, 5
      %v1901 = vsel %vm1012, %v1896, %v1900
      %v1902 = vshrl.u32 %v1599, 16
      %v1904 = vrot.slane %v1902, 4
      %v1905 = vor.u32 %v1904, %v1900
      %v1906 = vrot.slane %v1905, 4
      %v1908 = vshll.u32 %v1619, 16
      %v1910 = vrot.slane %v1908, 5
      %v1911 = vsel %vm1012, %v1906, %v1910
      %v1913 = vshrl.u32 %v1600, 16
      %v1915 = vrot.slane %v1913, 4
      %v1916 = vshll.u32 %v1600, 16
      %v1918 = vrot.slane %v1916, 5
      %v1919 = vor.u32 %v1915, %v1918
      %v1920 = vrot.slane %v1919, 4
      %v1922 = vshll.u32 %v1601, 16
      %v1924 = vrot.slane %v1922, 5
      %v1925 = vsel %vm1012, %v1920, %v1924
      %v1926 = vshrl.u32 %v1601, 16
      %v1928 = vrot.slane %v1926, 4
      %v1929 = vor.u32 %v1928, %v1924
      %v1930 = vrot.slane %v1929, 4
      %v1932 = vshll.u32 %v1620, 16
      %v1934 = vrot.slane %v1932, 5
      %v1935 = vsel %vm1012, %v1930, %v1934
      %v1937 = vshrl.u32 %v1602, 16
      %v1939 = vrot.slane %v1937, 4
      %v1940 = vshll.u32 %v1602, 16
      %v1942 = vrot.slane %v1940, 5
      %v1943 = vor.u32 %v1939, %v1942
      %v1944 = vrot.slane %v1943, 4
      %v1946 = vshll.u32 %v1603, 16
      %v1948 = vrot.slane %v1946, 5
      %v1949 = vsel %vm1012, %v1944, %v1948
      %v1950 = vshrl.u32 %v1603, 16
      %v1952 = vrot.slane %v1950, 4
      %v1953 = vor.u32 %v1952, %v1948
      %v1954 = vrot.slane %v1953, 4
      %v1956 = vshll.u32 %v1621, 16
      %v1958 = vrot.slane %v1956, 5
      %v1959 = vsel %vm1012, %v1954, %v1958
      %v1961 = vshrl.u32 %v1604, 16
      %v1963 = vrot.slane %v1961, 4
      %v1964 = vshll.u32 %v1604, 16
      %v1966 = vrot.slane %v1964, 5
      %v1967 = vor.u32 %v1963, %v1966
      %v1968 = vrot.slane %v1967, 4
      %v1970 = vshll.u32 %v1605, 16
      %v1972 = vrot.slane %v1970, 5
      %v1973 = vsel %vm1012, %v1968, %v1972
      %v1974 = vshrl.u32 %v1605, 16
      %v1976 = vrot.slane %v1974, 4
      %v1977 = vor.u32 %v1976, %v1972
      %v1978 = vrot.slane %v1977, 4
      %v1980 = vshll.u32 %v1622, 16
      %v1982 = vrot.slane %v1980, 5
      %v1983 = vsel %vm1012, %v1978, %v1982
      %v1985 = vshrl.u32 %v1606, 16
      %v1987 = vrot.slane %v1985, 4
      %v1988 = vshll.u32 %v1606, 16
      %v1990 = vrot.slane %v1988, 5
      %v1991 = vor.u32 %v1987, %v1990
      %v1992 = vrot.slane %v1991, 4
      %v1994 = vshll.u32 %v1607, 16
      %v1996 = vrot.slane %v1994, 5
      %v1997 = vsel %vm1012, %v1992, %v1996
      %v1998 = vshrl.u32 %v1607, 16
      %v2000 = vrot.slane %v1998, 4
      %v2001 = vor.u32 %v2000, %v1996
      %v2002 = vrot.slane %v2001, 4
      %v2004 = vshll.u32 %v1623, 16
      %v2006 = vrot.slane %v2004, 5
      %v2007 = vsel %vm1012, %v2002, %v2006
      %v2008 = vld [vmem:[%s847] sm:$0xe]
      %v2009 = vld [vmem:[%s847 + $0xc] sm:$0xe]
      %v2010 = vld [vmem:[%s847 + $0x18] sm:$0xe]
      %v2011 = vld [vmem:[%s847 + $0x24] sm:$0xe]
      %v2012 = vld [vmem:[%s847 + $0x30] sm:$0xe]
      %v2013 = vld [vmem:[%s847 + $0x3c] sm:$0xe]
      %v2014 = vld [vmem:[%s847 + $0x48] sm:$0xe]
      %v2015 = vld [vmem:[%s847 + $0x54] sm:$0xe]
      %v2016 = vld [vmem:[%s847 + $0x60] sm:$0xe]
      %v2017 = vld [vmem:[%s847 + $0x6c] sm:$0xe]
      %v2018 = vld [vmem:[%s847 + $0x78] sm:$0xe]
      %v2019 = vld [vmem:[%s847 + $0x84] sm:$0xe]
      %v2020 = vld [vmem:[%s847 + $0x90] sm:$0xe]
      %v2021 = vld [vmem:[%s847 + $0x9c] sm:$0xe]
      %v2022 = vld [vmem:[%s847 + $0xa8] sm:$0xe]
      %v2023 = vld [vmem:[%s847 + $0xb4] sm:$0xe]
      %v2072 = vrot.slane %v2008, 5
      %v2073 = vrot.slane %v2072, 4
      %v2074 = vrot.slane %v1577, 5
      %v2075 = vsel %vm1463, %v2073, %v2074
      %v2076 = vrot.slane %v2074, 4
      %v2077 = vrot.slane %v1608, 5
      %v2078 = vsel %vm1463, %v2076, %v2077
      %v2079 = vrot.slane %v2009, 5
      %v2080 = vrot.slane %v2079, 4
      %v2081 = vrot.slane %v1579, 5
      %v2082 = vsel %vm1463, %v2080, %v2081
      %v2083 = vrot.slane %v2081, 4
      %v2084 = vrot.slane %v1609, 5
      %v2085 = vsel %vm1463, %v2083, %v2084
      %v2086 = vrot.slane %v2010, 5
      %v2087 = vrot.slane %v2086, 4
      %v2088 = vrot.slane %v1581, 5
      %v2089 = vsel %vm1463, %v2087, %v2088
      %v2090 = vrot.slane %v2088, 4
      %v2091 = vrot.slane %v1610, 5
      %v2092 = vsel %vm1463, %v2090, %v2091
      %v2093 = vrot.slane %v2011, 5
      %v2094 = vrot.slane %v2093, 4
      %v2095 = vrot.slane %v1583, 5
      %v2096 = vsel %vm1463, %v2094, %v2095
      %v2097 = vrot.slane %v2095, 4
      %v2098 = vrot.slane %v1611, 5
      %v2099 = vsel %vm1463, %v2097, %v2098
      %v2100 = vrot.slane %v2012, 5
      %v2101 = vrot.slane %v2100, 4
      %v2102 = vrot.slane %v1585, 5
      %v2103 = vsel %vm1463, %v2101, %v2102
      %v2104 = vrot.slane %v2102, 4
      %v2105 = vrot.slane %v1612, 5
      %v2106 = vsel %vm1463, %v2104, %v2105
      %v2107 = vrot.slane %v2013, 5
      %v2108 = vrot.slane %v2107, 4
      %v2109 = vrot.slane %v1587, 5
      %v2110 = vsel %vm1463, %v2108, %v2109
      %v2111 = vrot.slane %v2109, 4
      %v2112 = vrot.slane %v1613, 5
      %v2113 = vsel %vm1463, %v2111, %v2112
      %v2114 = vrot.slane %v2014, 5
      %v2115 = vrot.slane %v2114, 4
      %v2116 = vrot.slane %v1589, 5
      %v2117 = vsel %vm1463, %v2115, %v2116
      %v2118 = vrot.slane %v2116, 4
      %v2119 = vrot.slane %v1614, 5
      %v2120 = vsel %vm1463, %v2118, %v2119
      %v2121 = vrot.slane %v2015, 5
      %v2122 = vrot.slane %v2121, 4
      %v2123 = vrot.slane %v1591, 5
      %v2124 = vsel %vm1463, %v2122, %v2123
      %v2125 = vrot.slane %v2123, 4
      %v2126 = vrot.slane %v1615, 5
      %v2127 = vsel %vm1463, %v2125, %v2126
      %v2128 = vrot.slane %v2016, 5
      %v2129 = vrot.slane %v2128, 4
      %v2130 = vrot.slane %v1593, 5
      %v2131 = vsel %vm1463, %v2129, %v2130
      %v2132 = vrot.slane %v2130, 4
      %v2133 = vrot.slane %v1616, 5
      %v2134 = vsel %vm1463, %v2132, %v2133
      %v2135 = vrot.slane %v2017, 5
      %v2136 = vrot.slane %v2135, 4
      %v2137 = vrot.slane %v1595, 5
      %v2138 = vsel %vm1463, %v2136, %v2137
      %v2139 = vrot.slane %v2137, 4
      %v2140 = vrot.slane %v1617, 5
      %v2141 = vsel %vm1463, %v2139, %v2140
      %v2142 = vrot.slane %v2018, 5
      %v2143 = vrot.slane %v2142, 4
      %v2144 = vrot.slane %v1597, 5
      %v2145 = vsel %vm1463, %v2143, %v2144
      %v2146 = vrot.slane %v2144, 4
      %v2147 = vrot.slane %v1618, 5
      %v2148 = vsel %vm1463, %v2146, %v2147
      %v2149 = vrot.slane %v2019, 5
      %v2150 = vrot.slane %v2149, 4
      %v2151 = vrot.slane %v1599, 5
      %v2152 = vsel %vm1463, %v2150, %v2151
      %v2153 = vrot.slane %v2151, 4
      %v2154 = vrot.slane %v1619, 5
      %v2155 = vsel %vm1463, %v2153, %v2154
      %v2156 = vrot.slane %v2020, 5
      %v2157 = vrot.slane %v2156, 4
      %v2158 = vrot.slane %v1601, 5
      %v2159 = vsel %vm1463, %v2157, %v2158
      %v2160 = vrot.slane %v2158, 4
      %v2161 = vrot.slane %v1620, 5
      %v2162 = vsel %vm1463, %v2160, %v2161
      %v2163 = vrot.slane %v2021, 5
      %v2164 = vrot.slane %v2163, 4
      %v2165 = vrot.slane %v1603, 5
      %v2166 = vsel %vm1463, %v2164, %v2165
      %v2167 = vrot.slane %v2165, 4
      %v2168 = vrot.slane %v1621, 5
      %v2169 = vsel %vm1463, %v2167, %v2168
      %v2170 = vrot.slane %v2022, 5
      %v2171 = vrot.slane %v2170, 4
      %v2172 = vrot.slane %v1605, 5
      %v2173 = vsel %vm1463, %v2171, %v2172
      %v2174 = vrot.slane %v2172, 4
      %v2175 = vrot.slane %v1622, 5
      %v2176 = vsel %vm1463, %v2174, %v2175
      %v2177 = vrot.slane %v2023, 5
      %v2178 = vrot.slane %v2177, 4
      %v2179 = vrot.slane %v1607, 5
      %v2180 = vsel %vm1463, %v2178, %v2179
      %v2181 = vrot.slane %v2179, 4
      %v2182 = vrot.slane %v1623, 5
      %v2183 = vsel %vm1463, %v2181, %v2182
      %s2184 = scalar_lea.vmem [#allocation2], 24
      %v2185 = vld [vmem:[%s2184] sm:$0xf]
      %v2186 = vld [vmem:[%s2184 + $0x4] sm:$0xf]
      %v2187 = vld [vmem:[%s2184 + $0xc] sm:$0xf]
      %v2188 = vld [vmem:[%s2184 + $0x10] sm:$0xf]
      %v2189 = vld [vmem:[%s2184 + $0x18] sm:$0xf]
      %v2190 = vld [vmem:[%s2184 + $0x1c] sm:$0xf]
      %v2191 = vld [vmem:[%s2184 + $0x24] sm:$0xf]
      %v2192 = vld [vmem:[%s2184 + $0x28] sm:$0xf]
      %v2193 = vld [vmem:[%s2184 + $0x30] sm:$0xf]
      %v2194 = vld [vmem:[%s2184 + $0x34] sm:$0xf]
      %v2195 = vld [vmem:[%s2184 + $0x3c] sm:$0xf]
      %v2196 = vld [vmem:[%s2184 + $0x40] sm:$0xf]
      %v2197 = vld [vmem:[%s2184 + $0x48] sm:$0xf]
      %v2198 = vld [vmem:[%s2184 + $0x4c] sm:$0xf]
      %v2199 = vld [vmem:[%s2184 + $0x54] sm:$0xf]
      %v2200 = vld [vmem:[%s2184 + $0x58] sm:$0xf]
      %v2201 = vld [vmem:[%s2184 + $0x60] sm:$0xf]
      %v2202 = vld [vmem:[%s2184 + $0x64] sm:$0xf]
      %v2203 = vld [vmem:[%s2184 + $0x6c] sm:$0xf]
      %v2204 = vld [vmem:[%s2184 + $0x70] sm:$0xf]
      %v2205 = vld [vmem:[%s2184 + $0x78] sm:$0xf]
      %v2206 = vld [vmem:[%s2184 + $0x7c] sm:$0xf]
      %v2207 = vld [vmem:[%s2184 + $0x84] sm:$0xf]
      %v2208 = vld [vmem:[%s2184 + $0x88] sm:$0xf]
      %v2209 = vld [vmem:[%s2184 + $0x90] sm:$0xf]
      %v2210 = vld [vmem:[%s2184 + $0x94] sm:$0xf]
      %v2211 = vld [vmem:[%s2184 + $0x9c] sm:$0xf]
      %v2212 = vld [vmem:[%s2184 + $0xa0] sm:$0xf]
      %v2213 = vld [vmem:[%s2184 + $0xa8] sm:$0xf]
      %v2214 = vld [vmem:[%s2184 + $0xac] sm:$0xf]
      %v2215 = vld [vmem:[%s2184 + $0xb4] sm:$0xf]
      %v2216 = vld [vmem:[%s2184 + $0xb8] sm:$0xf]
      %v2217 = vld [vmem:[%s2184 + $0x8] sm:$0x1]
      %v2218 = vld [vmem:[%s2184 + $0x14] sm:$0x1]
      %v2219 = vld [vmem:[%s2184 + $0x20] sm:$0x1]
      %v2220 = vld [vmem:[%s2184 + $0x2c] sm:$0x1]
      %v2221 = vld [vmem:[%s2184 + $0x38] sm:$0x1]
      %v2222 = vld [vmem:[%s2184 + $0x44] sm:$0x1]
      %v2223 = vld [vmem:[%s2184 + $0x50] sm:$0x1]
      %v2224 = vld [vmem:[%s2184 + $0x5c] sm:$0x1]
      %v2225 = vld [vmem:[%s2184 + $0x68] sm:$0x1]
      %v2226 = vld [vmem:[%s2184 + $0x74] sm:$0x1]
      %v2227 = vld [vmem:[%s2184 + $0x80] sm:$0x1]
      %v2228 = vld [vmem:[%s2184 + $0x8c] sm:$0x1]
      %v2229 = vld [vmem:[%s2184 + $0x98] sm:$0x1]
      %v2230 = vld [vmem:[%s2184 + $0xa4] sm:$0x1]
      %v2231 = vld [vmem:[%s2184 + $0xb0] sm:$0x1]
      %v2232 = vld [vmem:[%s2184 + $0xbc] sm:$0x1]
      %v2234 = vshrl.u32 %v2185, 16
      %v2236 = vrot.slane %v2234, 4
      %v2237 = vshll.u32 %v2185, 16
      %v2239 = vrot.slane %v2237, 5
      %v2240 = vor.u32 %v2236, %v2239
      %v2241 = vrot.slane %v2240, 4
      %v2243 = vshll.u32 %v2186, 16
      %v2245 = vrot.slane %v2243, 5
      %v2246 = vsel %vm1012, %v2241, %v2245
      %v2247 = vshrl.u32 %v2186, 16
      %v2249 = vrot.slane %v2247, 4
      %v2250 = vor.u32 %v2249, %v2245
      %v2251 = vrot.slane %v2250, 4
      %v2253 = vshll.u32 %v2217, 16
      %v2255 = vrot.slane %v2253, 5
      %v2256 = vsel %vm1012, %v2251, %v2255
      %v2258 = vshrl.u32 %v2187, 16
      %v2260 = vrot.slane %v2258, 4
      %v2261 = vshll.u32 %v2187, 16
      %v2263 = vrot.slane %v2261, 5
      %v2264 = vor.u32 %v2260, %v2263
      %v2265 = vrot.slane %v2264, 4
      %v2267 = vshll.u32 %v2188, 16
      %v2269 = vrot.slane %v2267, 5
      %v2270 = vsel %vm1012, %v2265, %v2269
      %v2271 = vshrl.u32 %v2188, 16
      %v2273 = vrot.slane %v2271, 4
      %v2274 = vor.u32 %v2273, %v2269
      %v2275 = vrot.slane %v2274, 4
      %v2277 = vshll.u32 %v2218, 16
      %v2279 = vrot.slane %v2277, 5
      %v2280 = vsel %vm1012, %v2275, %v2279
      %v2282 = vshrl.u32 %v2189, 16
      %v2284 = vrot.slane %v2282, 4
      %v2285 = vshll.u32 %v2189, 16
      %v2287 = vrot.slane %v2285, 5
      %v2288 = vor.u32 %v2284, %v2287
      %v2289 = vrot.slane %v2288, 4
      %v2291 = vshll.u32 %v2190, 16
      %v2293 = vrot.slane %v2291, 5
      %v2294 = vsel %vm1012, %v2289, %v2293
      %v2295 = vshrl.u32 %v2190, 16
      %v2297 = vrot.slane %v2295, 4
      %v2298 = vor.u32 %v2297, %v2293
      %v2299 = vrot.slane %v2298, 4
      %v2301 = vshll.u32 %v2219, 16
      %v2303 = vrot.slane %v2301, 5
      %v2304 = vsel %vm1012, %v2299, %v2303
      %v2306 = vshrl.u32 %v2191, 16
      %v2308 = vrot.slane %v2306, 4
      %v2309 = vshll.u32 %v2191, 16
      %v2311 = vrot.slane %v2309, 5
      %v2312 = vor.u32 %v2308, %v2311
      %v2313 = vrot.slane %v2312, 4
      %v2315 = vshll.u32 %v2192, 16
      %v2317 = vrot.slane %v2315, 5
      %v2318 = vsel %vm1012, %v2313, %v2317
      %v2319 = vshrl.u32 %v2192, 16
      %v2321 = vrot.slane %v2319, 4
      %v2322 = vor.u32 %v2321, %v2317
      %v2323 = vrot.slane %v2322, 4
      %v2325 = vshll.u32 %v2220, 16
      %v2327 = vrot.slane %v2325, 5
      %v2328 = vsel %vm1012, %v2323, %v2327
      %v2330 = vshrl.u32 %v2193, 16
      %v2332 = vrot.slane %v2330, 4
      %v2333 = vshll.u32 %v2193, 16
      %v2335 = vrot.slane %v2333, 5
      %v2336 = vor.u32 %v2332, %v2335
      %v2337 = vrot.slane %v2336, 4
      %v2339 = vshll.u32 %v2194, 16
      %v2341 = vrot.slane %v2339, 5
      %v2342 = vsel %vm1012, %v2337, %v2341
      %v2343 = vshrl.u32 %v2194, 16
      %v2345 = vrot.slane %v2343, 4
      %v2346 = vor.u32 %v2345, %v2341
      %v2347 = vrot.slane %v2346, 4
      %v2349 = vshll.u32 %v2221, 16
      %v2351 = vrot.slane %v2349, 5
      %v2352 = vsel %vm1012, %v2347, %v2351
      %v2354 = vshrl.u32 %v2195, 16
      %v2356 = vrot.slane %v2354, 4
      %v2357 = vshll.u32 %v2195, 16
      %v2359 = vrot.slane %v2357, 5
      %v2360 = vor.u32 %v2356, %v2359
      %v2361 = vrot.slane %v2360, 4
      %v2363 = vshll.u32 %v2196, 16
      %v2365 = vrot.slane %v2363, 5
      %v2366 = vsel %vm1012, %v2361, %v2365
      %v2367 = vshrl.u32 %v2196, 16
      %v2369 = vrot.slane %v2367, 4
      %v2370 = vor.u32 %v2369, %v2365
      %v2371 = vrot.slane %v2370, 4
      %v2373 = vshll.u32 %v2222, 16
      %v2375 = vrot.slane %v2373, 5
      %v2376 = vsel %vm1012, %v2371, %v2375
      %v2378 = vshrl.u32 %v2197, 16
      %v2380 = vrot.slane %v2378, 4
      %v2381 = vshll.u32 %v2197, 16
      %v2383 = vrot.slane %v2381, 5
      %v2384 = vor.u32 %v2380, %v2383
      %v2385 = vrot.slane %v2384, 4
      %v2387 = vshll.u32 %v2198, 16
      %v2389 = vrot.slane %v2387, 5
      %v2390 = vsel %vm1012, %v2385, %v2389
      %v2391 = vshrl.u32 %v2198, 16
      %v2393 = vrot.slane %v2391, 4
      %v2394 = vor.u32 %v2393, %v2389
      %v2395 = vrot.slane %v2394, 4
      %v2397 = vshll.u32 %v2223, 16
      %v2399 = vrot.slane %v2397, 5
      %v2400 = vsel %vm1012, %v2395, %v2399
      %v2402 = vshrl.u32 %v2199, 16
      %v2404 = vrot.slane %v2402, 4
      %v2405 = vshll.u32 %v2199, 16
      %v2407 = vrot.slane %v2405, 5
      %v2408 = vor.u32 %v2404, %v2407
      %v2409 = vrot.slane %v2408, 4
      %v2411 = vshll.u32 %v2200, 16
      %v2413 = vrot.slane %v2411, 5
      %v2414 = vsel %vm1012, %v2409, %v2413
      %v2415 = vshrl.u32 %v2200, 16
      %v2417 = vrot.slane %v2415, 4
      %v2418 = vor.u32 %v2417, %v2413
      %v2419 = vrot.slane %v2418, 4
      %v2421 = vshll.u32 %v2224, 16
      %v2423 = vrot.slane %v2421, 5
      %v2424 = vsel %vm1012, %v2419, %v2423
      %v2426 = vshrl.u32 %v2201, 16
      %v2428 = vrot.slane %v2426, 4
      %v2429 = vshll.u32 %v2201, 16
      %v2431 = vrot.slane %v2429, 5
      %v2432 = vor.u32 %v2428, %v2431
      %v2433 = vrot.slane %v2432, 4
      %v2435 = vshll.u32 %v2202, 16
      %v2437 = vrot.slane %v2435, 5
      %v2438 = vsel %vm1012, %v2433, %v2437
      %v2439 = vshrl.u32 %v2202, 16
      %v2441 = vrot.slane %v2439, 4
      %v2442 = vor.u32 %v2441, %v2437
      %v2443 = vrot.slane %v2442, 4
      %v2445 = vshll.u32 %v2225, 16
      %v2447 = vrot.slane %v2445, 5
      %v2448 = vsel %vm1012, %v2443, %v2447
      %v2450 = vshrl.u32 %v2203, 16
      %v2452 = vrot.slane %v2450, 4
      %v2453 = vshll.u32 %v2203, 16
      %v2455 = vrot.slane %v2453, 5
      %v2456 = vor.u32 %v2452, %v2455
      %v2457 = vrot.slane %v2456, 4
      %v2459 = vshll.u32 %v2204, 16
      %v2461 = vrot.slane %v2459, 5
      %v2462 = vsel %vm1012, %v2457, %v2461
      %v2463 = vshrl.u32 %v2204, 16
      %v2465 = vrot.slane %v2463, 4
      %v2466 = vor.u32 %v2465, %v2461
      %v2467 = vrot.slane %v2466, 4
      %v2469 = vshll.u32 %v2226, 16
      %v2471 = vrot.slane %v2469, 5
      %v2472 = vsel %vm1012, %v2467, %v2471
      %v2474 = vshrl.u32 %v2205, 16
      %v2476 = vrot.slane %v2474, 4
      %v2477 = vshll.u32 %v2205, 16
      %v2479 = vrot.slane %v2477, 5
      %v2480 = vor.u32 %v2476, %v2479
      %v2481 = vrot.slane %v2480, 4
      %v2483 = vshll.u32 %v2206, 16
      %v2485 = vrot.slane %v2483, 5
      %v2486 = vsel %vm1012, %v2481, %v2485
      %v2487 = vshrl.u32 %v2206, 16
      %v2489 = vrot.slane %v2487, 4
      %v2490 = vor.u32 %v2489, %v2485
      %v2491 = vrot.slane %v2490, 4
      %v2493 = vshll.u32 %v2227, 16
      %v2495 = vrot.slane %v2493, 5
      %v2496 = vsel %vm1012, %v2491, %v2495
      %v2498 = vshrl.u32 %v2207, 16
      %v2500 = vrot.slane %v2498, 4
      %v2501 = vshll.u32 %v2207, 16
      %v2503 = vrot.slane %v2501, 5
      %v2504 = vor.u32 %v2500, %v2503
      %v2505 = vrot.slane %v2504, 4
      %v2507 = vshll.u32 %v2208, 16
      %v2509 = vrot.slane %v2507, 5
      %v2510 = vsel %vm1012, %v2505, %v2509
      %v2511 = vshrl.u32 %v2208, 16
      %v2513 = vrot.slane %v2511, 4
      %v2514 = vor.u32 %v2513, %v2509
      %v2515 = vrot.slane %v2514, 4
      %v2517 = vshll.u32 %v2228, 16
      %v2519 = vrot.slane %v2517, 5
      %v2520 = vsel %vm1012, %v2515, %v2519
      %v2522 = vshrl.u32 %v2209, 16
      %v2524 = vrot.slane %v2522, 4
      %v2525 = vshll.u32 %v2209, 16
      %v2527 = vrot.slane %v2525, 5
      %v2528 = vor.u32 %v2524, %v2527
      %v2529 = vrot.slane %v2528, 4
      %v2531 = vshll.u32 %v2210, 16
      %v2533 = vrot.slane %v2531, 5
      %v2534 = vsel %vm1012, %v2529, %v2533
      %v2535 = vshrl.u32 %v2210, 16
      %v2537 = vrot.slane %v2535, 4
      %v2538 = vor.u32 %v2537, %v2533
      %v2539 = vrot.slane %v2538, 4
      %v2541 = vshll.u32 %v2229, 16
      %v2543 = vrot.slane %v2541, 5
      %v2544 = vsel %vm1012, %v2539, %v2543
      %v2546 = vshrl.u32 %v2211, 16
      %v2548 = vrot.slane %v2546, 4
      %v2549 = vshll.u32 %v2211, 16
      %v2551 = vrot.slane %v2549, 5
      %v2552 = vor.u32 %v2548, %v2551
      %v2553 = vrot.slane %v2552, 4
      %v2555 = vshll.u32 %v2212, 16
      %v2557 = vrot.slane %v2555, 5
      %v2558 = vsel %vm1012, %v2553, %v2557
      %v2559 = vshrl.u32 %v2212, 16
      %v2561 = vrot.slane %v2559, 4
      %v2562 = vor.u32 %v2561, %v2557
      %v2563 = vrot.slane %v2562, 4
      %v2565 = vshll.u32 %v2230, 16
      %v2567 = vrot.slane %v2565, 5
      %v2568 = vsel %vm1012, %v2563, %v2567
      %v2570 = vshrl.u32 %v2213, 16
      %v2572 = vrot.slane %v2570, 4
      %v2573 = vshll.u32 %v2213, 16
      %v2575 = vrot.slane %v2573, 5
      %v2576 = vor.u32 %v2572, %v2575
      %v2577 = vrot.slane %v2576, 4
      %v2579 = vshll.u32 %v2214, 16
      %v2581 = vrot.slane %v2579, 5
      %v2582 = vsel %vm1012, %v2577, %v2581
      %v2583 = vshrl.u32 %v2214, 16
      %v2585 = vrot.slane %v2583, 4
      %v2586 = vor.u32 %v2585, %v2581
      %v2587 = vrot.slane %v2586, 4
      %v2589 = vshll.u32 %v2231, 16
      %v2591 = vrot.slane %v2589, 5
      %v2592 = vsel %vm1012, %v2587, %v2591
      %v2594 = vshrl.u32 %v2215, 16
      %v2596 = vrot.slane %v2594, 4
      %v2597 = vshll.u32 %v2215, 16
      %v2599 = vrot.slane %v2597, 5
      %v2600 = vor.u32 %v2596, %v2599
      %v2601 = vrot.slane %v2600, 4
      %v2603 = vshll.u32 %v2216, 16
      %v2605 = vrot.slane %v2603, 5
      %v2606 = vsel %vm1012, %v2601, %v2605
      %v2607 = vshrl.u32 %v2216, 16
      %v2609 = vrot.slane %v2607, 4
      %v2610 = vor.u32 %v2609, %v2605
      %v2611 = vrot.slane %v2610, 4
      %v2613 = vshll.u32 %v2232, 16
      %v2615 = vrot.slane %v2613, 5
      %v2616 = vsel %vm1012, %v2611, %v2615
      %v2617 = vld [vmem:[%s2184] sm:$0xe]
      %v2618 = vld [vmem:[%s2184 + $0xc] sm:$0xe]
      %v2619 = vld [vmem:[%s2184 + $0x18] sm:$0xe]
      %v2620 = vld [vmem:[%s2184 + $0x24] sm:$0xe]
      %v2621 = vld [vmem:[%s2184 + $0x30] sm:$0xe]
      %v2622 = vld [vmem:[%s2184 + $0x3c] sm:$0xe]
      %v2623 = vld [vmem:[%s2184 + $0x48] sm:$0xe]
      %v2624 = vld [vmem:[%s2184 + $0x54] sm:$0xe]
      %v2625 = vld [vmem:[%s2184 + $0x60] sm:$0xe]
      %v2626 = vld [vmem:[%s2184 + $0x6c] sm:$0xe]
      %v2627 = vld [vmem:[%s2184 + $0x78] sm:$0xe]
      %v2628 = vld [vmem:[%s2184 + $0x84] sm:$0xe]
      %v2629 = vld [vmem:[%s2184 + $0x90] sm:$0xe]
      %v2630 = vld [vmem:[%s2184 + $0x9c] sm:$0xe]
      %v2631 = vld [vmem:[%s2184 + $0xa8] sm:$0xe]
      %v2632 = vld [vmem:[%s2184 + $0xb4] sm:$0xe]
      %v2681 = vrot.slane %v2617, 5
      %v2682 = vrot.slane %v2681, 4
      %v2683 = vrot.slane %v2186, 5
      %v2684 = vsel %vm1463, %v2682, %v2683
      %v2685 = vrot.slane %v2683, 4
      %v2686 = vrot.slane %v2217, 5
      %v2687 = vsel %vm1463, %v2685, %v2686
      %v2688 = vrot.slane %v2618, 5
      %v2689 = vrot.slane %v2688, 4
      %v2690 = vrot.slane %v2188, 5
      %v2691 = vsel %vm1463, %v2689, %v2690
      %v2692 = vrot.slane %v2690, 4
      %v2693 = vrot.slane %v2218, 5
      %v2694 = vsel %vm1463, %v2692, %v2693
      %v2695 = vrot.slane %v2619, 5
      %v2696 = vrot.slane %v2695, 4
      %v2697 = vrot.slane %v2190, 5
      %v2698 = vsel %vm1463, %v2696, %v2697
      %v2699 = vrot.slane %v2697, 4
      %v2700 = vrot.slane %v2219, 5
      %v2701 = vsel %vm1463, %v2699, %v2700
      %v2702 = vrot.slane %v2620, 5
      %v2703 = vrot.slane %v2702, 4
      %v2704 = vrot.slane %v2192, 5
      %v2705 = vsel %vm1463, %v2703, %v2704
      %v2706 = vrot.slane %v2704, 4
      %v2707 = vrot.slane %v2220, 5
      %v2708 = vsel %vm1463, %v2706, %v2707
      %v2709 = vrot.slane %v2621, 5
      %v2710 = vrot.slane %v2709, 4
      %v2711 = vrot.slane %v2194, 5
      %v2712 = vsel %vm1463, %v2710, %v2711
      %v2713 = vrot.slane %v2711, 4
      %v2714 = vrot.slane %v2221, 5
      %v2715 = vsel %vm1463, %v2713, %v2714
      %v2716 = vrot.slane %v2622, 5
      %v2717 = vrot.slane %v2716, 4
      %v2718 = vrot.slane %v2196, 5
      %v2719 = vsel %vm1463, %v2717, %v2718
      %v2720 = vrot.slane %v2718, 4
      %v2721 = vrot.slane %v2222, 5
      %v2722 = vsel %vm1463, %v2720, %v2721
      %v2723 = vrot.slane %v2623, 5
      %v2724 = vrot.slane %v2723, 4
      %v2725 = vrot.slane %v2198, 5
      %v2726 = vsel %vm1463, %v2724, %v2725
      %v2727 = vrot.slane %v2725, 4
      %v2728 = vrot.slane %v2223, 5
      %v2729 = vsel %vm1463, %v2727, %v2728
      %v2730 = vrot.slane %v2624, 5
      %v2731 = vrot.slane %v2730, 4
      %v2732 = vrot.slane %v2200, 5
      %v2733 = vsel %vm1463, %v2731, %v2732
      %v2734 = vrot.slane %v2732, 4
      %v2735 = vrot.slane %v2224, 5
      %v2736 = vsel %vm1463, %v2734, %v2735
      %v2737 = vrot.slane %v2625, 5
      %v2738 = vrot.slane %v2737, 4
      %v2739 = vrot.slane %v2202, 5
      %v2740 = vsel %vm1463, %v2738, %v2739
      %v2741 = vrot.slane %v2739, 4
      %v2742 = vrot.slane %v2225, 5
      %v2743 = vsel %vm1463, %v2741, %v2742
      %v2744 = vrot.slane %v2626, 5
      %v2745 = vrot.slane %v2744, 4
      %v2746 = vrot.slane %v2204, 5
      %v2747 = vsel %vm1463, %v2745, %v2746
      %v2748 = vrot.slane %v2746, 4
      %v2749 = vrot.slane %v2226, 5
      %v2750 = vsel %vm1463, %v2748, %v2749
      %v2751 = vrot.slane %v2627, 5
      %v2752 = vrot.slane %v2751, 4
      %v2753 = vrot.slane %v2206, 5
      %v2754 = vsel %vm1463, %v2752, %v2753
      %v2755 = vrot.slane %v2753, 4
      %v2756 = vrot.slane %v2227, 5
      %v2757 = vsel %vm1463, %v2755, %v2756
      %v2758 = vrot.slane %v2628, 5
      %v2759 = vrot.slane %v2758, 4
      %v2760 = vrot.slane %v2208, 5
      %v2761 = vsel %vm1463, %v2759, %v2760
      %v2762 = vrot.slane %v2760, 4
      %v2763 = vrot.slane %v2228, 5
      %v2764 = vsel %vm1463, %v2762, %v2763
      %v2765 = vrot.slane %v2629, 5
      %v2766 = vrot.slane %v2765, 4
      %v2767 = vrot.slane %v2210, 5
      %v2768 = vsel %vm1463, %v2766, %v2767
      %v2769 = vrot.slane %v2767, 4
      %v2770 = vrot.slane %v2229, 5
      %v2771 = vsel %vm1463, %v2769, %v2770
      %v2772 = vrot.slane %v2630, 5
      %v2773 = vrot.slane %v2772, 4
      %v2774 = vrot.slane %v2212, 5
      %v2775 = vsel %vm1463, %v2773, %v2774
      %v2776 = vrot.slane %v2774, 4
      %v2777 = vrot.slane %v2230, 5
      %v2778 = vsel %vm1463, %v2776, %v2777
      %v2779 = vrot.slane %v2631, 5
      %v2780 = vrot.slane %v2779, 4
      %v2781 = vrot.slane %v2214, 5
      %v2782 = vsel %vm1463, %v2780, %v2781
      %v2783 = vrot.slane %v2781, 4
      %v2784 = vrot.slane %v2231, 5
      %v2785 = vsel %vm1463, %v2783, %v2784
      %v2786 = vrot.slane %v2632, 5
      %v2787 = vrot.slane %v2786, 4
      %v2788 = vrot.slane %v2216, 5
      %v2789 = vsel %vm1463, %v2787, %v2788
      %v2790 = vrot.slane %v2788, 4
      %v2791 = vrot.slane %v2232, 5
      %v2792 = vsel %vm1463, %v2790, %v2791
      %v2809 = vunpack.c.l.b16 %v962
      %v2810 = vunpack.c.l.b16 %v963
      %v2811 = vunpack.c.l.b16 %v964
      %v2812 = vunpack.c.l.b16 %v965
      %v2813 = vunpack.c.l.b16 %v966
      %v2814 = vunpack.c.l.b16 %v967
      %v2815 = vunpack.c.l.b16 %v968
      %v2816 = vunpack.c.l.b16 %v969
      %v2817 = vunpack.c.l.b16 %v970
      %v2818 = vunpack.c.l.b16 %v971
      %v2819 = vunpack.c.l.b16 %v972
      %v2820 = vunpack.c.l.b16 %v973
      %v2821 = vunpack.c.l.b16 %v974
      %v2822 = vunpack.c.l.b16 %v975
      %v2823 = vunpack.c.l.b16 %v976
      %v2824 = vunpack.c.l.b16 %v977
      %v2825 = vunpack.c.l.b16 %v978
      %v2826 = vunpack.c.l.b16 %v979
      %v2827 = vunpack.c.l.b16 %v980
      %v2828 = vunpack.c.l.b16 %v981
      %v2829 = vunpack.c.l.b16 %v982
      %v2830 = vunpack.c.l.b16 %v983
      %v2831 = vunpack.c.l.b16 %v984
      %v2832 = vunpack.c.l.b16 %v985
      %v2833 = vunpack.c.l.b16 %v986
      %v2834 = vunpack.c.l.b16 %v987
      %v2835 = vunpack.c.l.b16 %v988
      %v2836 = vunpack.c.l.b16 %v989
      %v2837 = vunpack.c.l.b16 %v990
      %v2838 = vunpack.c.l.b16 %v991
      %v2839 = vunpack.c.l.b16 %v992
      %v2840 = vunpack.c.l.b16 %v993
      %v2841 = vpack.c.b16 %v2810, %v2809
      %v2842 = vpack.c.b16 %v2812, %v2811
      %v2843 = vpack.c.b16 %v2814, %v2813
      %v2844 = vpack.c.b16 %v2816, %v2815
      %v2845 = vpack.c.b16 %v2818, %v2817
      %v2846 = vpack.c.b16 %v2820, %v2819
      %v2847 = vpack.c.b16 %v2822, %v2821
      %v2848 = vpack.c.b16 %v2824, %v2823
      %v2849 = vpack.c.b16 %v2826, %v2825
      %v2850 = vpack.c.b16 %v2828, %v2827
      %v2851 = vpack.c.b16 %v2830, %v2829
      %v2852 = vpack.c.b16 %v2832, %v2831
      %v2853 = vpack.c.b16 %v2834, %v2833
      %v2854 = vpack.c.b16 %v2836, %v2835
      %v2855 = vpack.c.b16 %v2838, %v2837
      %v2856 = vpack.c.b16 %v2840, %v2839
      %v2873 = vunpack.c.l.b16 %v1026
      %v2874 = vunpack.c.l.b16 %v1036
      %v2875 = vunpack.c.l.b16 %v1050
      %v2876 = vunpack.c.l.b16 %v1060
      %v2877 = vunpack.c.l.b16 %v1074
      %v2878 = vunpack.c.l.b16 %v1084
      %v2879 = vunpack.c.l.b16 %v1098
      %v2880 = vunpack.c.l.b16 %v1108
      %v2881 = vunpack.c.l.b16 %v1122
      %v2882 = vunpack.c.l.b16 %v1132
      %v2883 = vunpack.c.l.b16 %v1146
      %v2884 = vunpack.c.l.b16 %v1156
      %v2885 = vunpack.c.l.b16 %v1170
      %v2886 = vunpack.c.l.b16 %v1180
      %v2887 = vunpack.c.l.b16 %v1194
      %v2888 = vunpack.c.l.b16 %v1204
      %v2889 = vunpack.c.l.b16 %v1218
      %v2890 = vunpack.c.l.b16 %v1228
      %v2891 = vunpack.c.l.b16 %v1242
      %v2892 = vunpack.c.l.b16 %v1252
      %v2893 = vunpack.c.l.b16 %v1266
      %v2894 = vunpack.c.l.b16 %v1276
      %v2895 = vunpack.c.l.b16 %v1290
      %v2896 = vunpack.c.l.b16 %v1300
      %v2897 = vunpack.c.l.b16 %v1314
      %v2898 = vunpack.c.l.b16 %v1324
      %v2899 = vunpack.c.l.b16 %v1338
      %v2900 = vunpack.c.l.b16 %v1348
      %v2901 = vunpack.c.l.b16 %v1362
      %v2902 = vunpack.c.l.b16 %v1372
      %v2903 = vunpack.c.l.b16 %v1386
      %v2904 = vunpack.c.l.b16 %v1396
      %v2905 = vpack.c.b16 %v2874, %v2873
      %v2906 = vpack.c.b16 %v2876, %v2875
      %v2907 = vpack.c.b16 %v2878, %v2877
      %v2908 = vpack.c.b16 %v2880, %v2879
      %v2909 = vpack.c.b16 %v2882, %v2881
      %v2910 = vpack.c.b16 %v2884, %v2883
      %v2911 = vpack.c.b16 %v2886, %v2885
      %v2912 = vpack.c.b16 %v2888, %v2887
      %v2913 = vpack.c.b16 %v2890, %v2889
      %v2914 = vpack.c.b16 %v2892, %v2891
      %v2915 = vpack.c.b16 %v2894, %v2893
      %v2916 = vpack.c.b16 %v2896, %v2895
      %v2917 = vpack.c.b16 %v2898, %v2897
      %v2918 = vpack.c.b16 %v2900, %v2899
      %v2919 = vpack.c.b16 %v2902, %v2901
      %v2920 = vpack.c.b16 %v2904, %v2903
      %v2937 = vunpack.c.l.b16 %v1467
      %v2938 = vunpack.c.l.b16 %v1470
      %v2939 = vunpack.c.l.b16 %v1474
      %v2940 = vunpack.c.l.b16 %v1477
      %v2941 = vunpack.c.l.b16 %v1481
      %v2942 = vunpack.c.l.b16 %v1484
      %v2943 = vunpack.c.l.b16 %v1488
      %v2944 = vunpack.c.l.b16 %v1491
      %v2945 = vunpack.c.l.b16 %v1495
      %v2946 = vunpack.c.l.b16 %v1498
      %v2947 = vunpack.c.l.b16 %v1502
      %v2948 = vunpack.c.l.b16 %v1505
      %v2949 = vunpack.c.l.b16 %v1509
      %v2950 = vunpack.c.l.b16 %v1512
      %v2951 = vunpack.c.l.b16 %v1516
      %v2952 = vunpack.c.l.b16 %v1519
      %v2953 = vunpack.c.l.b16 %v1523
      %v2954 = vunpack.c.l.b16 %v1526
      %v2955 = vunpack.c.l.b16 %v1530
      %v2956 = vunpack.c.l.b16 %v1533
      %v2957 = vunpack.c.l.b16 %v1537
      %v2958 = vunpack.c.l.b16 %v1540
      %v2959 = vunpack.c.l.b16 %v1544
      %v2960 = vunpack.c.l.b16 %v1547
      %v2961 = vunpack.c.l.b16 %v1551
      %v2962 = vunpack.c.l.b16 %v1554
      %v2963 = vunpack.c.l.b16 %v1558
      %v2964 = vunpack.c.l.b16 %v1561
      %v2965 = vunpack.c.l.b16 %v1565
      %v2966 = vunpack.c.l.b16 %v1568
      %v2967 = vunpack.c.l.b16 %v1572
      %v2968 = vunpack.c.l.b16 %v1575
      %v2969 = vpack.c.b16 %v2938, %v2937
      %v2970 = vpack.c.b16 %v2940, %v2939
      %v2971 = vpack.c.b16 %v2942, %v2941
      %v2972 = vpack.c.b16 %v2944, %v2943
      %v2973 = vpack.c.b16 %v2946, %v2945
      %v2974 = vpack.c.b16 %v2948, %v2947
      %v2975 = vpack.c.b16 %v2950, %v2949
      %v2976 = vpack.c.b16 %v2952, %v2951
      %v2977 = vpack.c.b16 %v2954, %v2953
      %v2978 = vpack.c.b16 %v2956, %v2955
      %v2979 = vpack.c.b16 %v2958, %v2957
      %v2980 = vpack.c.b16 %v2960, %v2959
      %v2981 = vpack.c.b16 %v2962, %v2961
      %v2982 = vpack.c.b16 %v2964, %v2963
      %v2983 = vpack.c.b16 %v2966, %v2965
      %v2984 = vpack.c.b16 %v2968, %v2967
      %v3017 = vunpack.c.l.b16 %v1576
      %v3018 = vunpack.c.l.b16 %v1577
      %v3019 = vunpack.c.l.b16 %v1578
      %v3020 = vunpack.c.l.b16 %v1579
      %v3021 = vunpack.c.l.b16 %v1580
      %v3022 = vunpack.c.l.b16 %v1581
      %v3023 = vunpack.c.l.b16 %v1582
      %v3024 = vunpack.c.l.b16 %v1583
      %v3025 = vunpack.c.l.b16 %v1584
      %v3026 = vunpack.c.l.b16 %v1585
      %v3027 = vunpack.c.l.b16 %v1586
      %v3028 = vunpack.c.l.b16 %v1587
      %v3029 = vunpack.c.l.b16 %v1588
      %v3030 = vunpack.c.l.b16 %v1589
      %v3031 = vunpack.c.l.b16 %v1590
      %v3032 = vunpack.c.l.b16 %v1591
      %v3033 = vunpack.c.l.b16 %v1592
      %v3034 = vunpack.c.l.b16 %v1593
      %v3035 = vunpack.c.l.b16 %v1594
      %v3036 = vunpack.c.l.b16 %v1595
      %v3037 = vunpack.c.l.b16 %v1596
      %v3038 = vunpack.c.l.b16 %v1597
      %v3039 = vunpack.c.l.b16 %v1598
      %v3040 = vunpack.c.l.b16 %v1599
      %v3041 = vunpack.c.l.b16 %v1600
      %v3042 = vunpack.c.l.b16 %v1601
      %v3043 = vunpack.c.l.b16 %v1602
      %v3044 = vunpack.c.l.b16 %v1603
      %v3045 = vunpack.c.l.b16 %v1604
      %v3046 = vunpack.c.l.b16 %v1605
      %v3047 = vunpack.c.l.b16 %v1606
      %v3048 = vunpack.c.l.b16 %v1607
      %v3049 = vpack.c.b16 %v3018, %v3017
      %v3050 = vpack.c.b16 %v3020, %v3019
      %v3051 = vpack.c.b16 %v3022, %v3021
      %v3052 = vpack.c.b16 %v3024, %v3023
      %v3053 = vpack.c.b16 %v3026, %v3025
      %v3054 = vpack.c.b16 %v3028, %v3027
      %v3055 = vpack.c.b16 %v3030, %v3029
      %v3056 = vpack.c.b16 %v3032, %v3031
      %v3057 = vpack.c.b16 %v3034, %v3033
      %v3058 = vpack.c.b16 %v3036, %v3035
      %v3059 = vpack.c.b16 %v3038, %v3037
      %v3060 = vpack.c.b16 %v3040, %v3039
      %v3061 = vpack.c.b16 %v3042, %v3041
      %v3062 = vpack.c.b16 %v3044, %v3043
      %v3063 = vpack.c.b16 %v3046, %v3045
      %v3064 = vpack.c.b16 %v3048, %v3047
      %v3081 = vunpack.c.l.b16 %v1637
      %v3082 = vunpack.c.l.b16 %v1647
      %v3083 = vunpack.c.l.b16 %v1661
      %v3084 = vunpack.c.l.b16 %v1671
      %v3085 = vunpack.c.l.b16 %v1685
      %v3086 = vunpack.c.l.b16 %v1695
      %v3087 = vunpack.c.l.b16 %v1709
      %v3088 = vunpack.c.l.b16 %v1719
      %v3089 = vunpack.c.l.b16 %v1733
      %v3090 = vunpack.c.l.b16 %v1743
      %v3091 = vunpack.c.l.b16 %v1757
      %v3092 = vunpack.c.l.b16 %v1767
      %v3093 = vunpack.c.l.b16 %v1781
      %v3094 = vunpack.c.l.b16 %v1791
      %v3095 = vunpack.c.l.b16 %v1805
      %v3096 = vunpack.c.l.b16 %v1815
      %v3097 = vunpack.c.l.b16 %v1829
      %v3098 = vunpack.c.l.b16 %v1839
      %v3099 = vunpack.c.l.b16 %v1853
      %v3100 = vunpack.c.l.b16 %v1863
      %v3101 = vunpack.c.l.b16 %v1877
      %v3102 = vunpack.c.l.b16 %v1887
      %v3103 = vunpack.c.l.b16 %v1901
      %v3104 = vunpack.c.l.b16 %v1911
      %v3105 = vunpack.c.l.b16 %v1925
      %v3106 = vunpack.c.l.b16 %v1935
      %v3107 = vunpack.c.l.b16 %v1949
      %v3108 = vunpack.c.l.b16 %v1959
      %v3109 = vunpack.c.l.b16 %v1973
      %v3110 = vunpack.c.l.b16 %v1983
      %v3111 = vunpack.c.l.b16 %v1997
      %v3112 = vunpack.c.l.b16 %v2007
      %v3113 = vpack.c.b16 %v3082, %v3081
      %v3114 = vpack.c.b16 %v3084, %v3083
      %v3115 = vpack.c.b16 %v3086, %v3085
      %v3116 = vpack.c.b16 %v3088, %v3087
      %v3117 = vpack.c.b16 %v3090, %v3089
      %v3118 = vpack.c.b16 %v3092, %v3091
      %v3119 = vpack.c.b16 %v3094, %v3093
      %v3120 = vpack.c.b16 %v3096, %v3095
      %v3121 = vpack.c.b16 %v3098, %v3097
      %v3122 = vpack.c.b16 %v3100, %v3099
      %v3123 = vpack.c.b16 %v3102, %v3101
      %v3124 = vpack.c.b16 %v3104, %v3103
      %v3125 = vpack.c.b16 %v3106, %v3105
      %v3126 = vpack.c.b16 %v3108, %v3107
      %v3127 = vpack.c.b16 %v3110, %v3109
      %v3128 = vpack.c.b16 %v3112, %v3111
      %v3145 = vunpack.c.l.b16 %v2075
      %v3146 = vunpack.c.l.b16 %v2078
      %v3147 = vunpack.c.l.b16 %v2082
      %v3148 = vunpack.c.l.b16 %v2085
      %v3149 = vunpack.c.l.b16 %v2089
      %v3150 = vunpack.c.l.b16 %v2092
      %v3151 = vunpack.c.l.b16 %v2096
      %v3152 = vunpack.c.l.b16 %v2099
      %v3153 = vunpack.c.l.b16 %v2103
      %v3154 = vunpack.c.l.b16 %v2106
      %v3155 = vunpack.c.l.b16 %v2110
      %v3156 = vunpack.c.l.b16 %v2113
      %v3157 = vunpack.c.l.b16 %v2117
      %v3158 = vunpack.c.l.b16 %v2120
      %v3159 = vunpack.c.l.b16 %v2124
      %v3160 = vunpack.c.l.b16 %v2127
      %v3161 = vunpack.c.l.b16 %v2131
      %v3162 = vunpack.c.l.b16 %v2134
      %v3163 = vunpack.c.l.b16 %v2138
      %v3164 = vunpack.c.l.b16 %v2141
      %v3165 = vunpack.c.l.b16 %v2145
      %v3166 = vunpack.c.l.b16 %v2148
      %v3167 = vunpack.c.l.b16 %v2152
      %v3168 = vunpack.c.l.b16 %v2155
      %v3169 = vunpack.c.l.b16 %v2159
      %v3170 = vunpack.c.l.b16 %v2162
      %v3171 = vunpack.c.l.b16 %v2166
      %v3172 = vunpack.c.l.b16 %v2169
      %v3173 = vunpack.c.l.b16 %v2173
      %v3174 = vunpack.c.l.b16 %v2176
      %v3175 = vunpack.c.l.b16 %v2180
      %v3176 = vunpack.c.l.b16 %v2183
      %v3177 = vpack.c.b16 %v3146, %v3145
      %v3178 = vpack.c.b16 %v3148, %v3147
      %v3179 = vpack.c.b16 %v3150, %v3149
      %v3180 = vpack.c.b16 %v3152, %v3151
      %v3181 = vpack.c.b16 %v3154, %v3153
      %v3182 = vpack.c.b16 %v3156, %v3155
      %v3183 = vpack.c.b16 %v3158, %v3157
      %v3184 = vpack.c.b16 %v3160, %v3159
      %v3185 = vpack.c.b16 %v3162, %v3161
      %v3186 = vpack.c.b16 %v3164, %v3163
      %v3187 = vpack.c.b16 %v3166, %v3165
      %v3188 = vpack.c.b16 %v3168, %v3167
      %v3189 = vpack.c.b16 %v3170, %v3169
      %v3190 = vpack.c.b16 %v3172, %v3171
      %v3191 = vpack.c.b16 %v3174, %v3173
      %v3192 = vpack.c.b16 %v3176, %v3175
      %v3225 = vunpack.c.l.b16 %v2185
      %v3226 = vunpack.c.l.b16 %v2186
      %v3227 = vunpack.c.l.b16 %v2187
      %v3228 = vunpack.c.l.b16 %v2188
      %v3229 = vunpack.c.l.b16 %v2189
      %v3230 = vunpack.c.l.b16 %v2190
      %v3231 = vunpack.c.l.b16 %v2191
      %v3232 = vunpack.c.l.b16 %v2192
      %v3233 = vunpack.c.l.b16 %v2193
      %v3234 = vunpack.c.l.b16 %v2194
      %v3235 = vunpack.c.l.b16 %v2195
      %v3236 = vunpack.c.l.b16 %v2196
      %v3237 = vunpack.c.l.b16 %v2197
      %v3238 = vunpack.c.l.b16 %v2198
      %v3239 = vunpack.c.l.b16 %v2199
      %v3240 = vunpack.c.l.b16 %v2200
      %v3241 = vunpack.c.l.b16 %v2201
      %v3242 = vunpack.c.l.b16 %v2202
      %v3243 = vunpack.c.l.b16 %v2203
      %v3244 = vunpack.c.l.b16 %v2204
      %v3245 = vunpack.c.l.b16 %v2205
      %v3246 = vunpack.c.l.b16 %v2206
      %v3247 = vunpack.c.l.b16 %v2207
      %v3248 = vunpack.c.l.b16 %v2208
      %v3249 = vunpack.c.l.b16 %v2209
      %v3250 = vunpack.c.l.b16 %v2210
      %v3251 = vunpack.c.l.b16 %v2211
      %v3252 = vunpack.c.l.b16 %v2212
      %v3253 = vunpack.c.l.b16 %v2213
      %v3254 = vunpack.c.l.b16 %v2214
      %v3255 = vunpack.c.l.b16 %v2215
      %v3256 = vunpack.c.l.b16 %v2216
      %v3257 = vpack.c.b16 %v3226, %v3225
      %v3258 = vpack.c.b16 %v3228, %v3227
      %v3259 = vpack.c.b16 %v3230, %v3229
      %v3260 = vpack.c.b16 %v3232, %v3231
      %v3261 = vpack.c.b16 %v3234, %v3233
      %v3262 = vpack.c.b16 %v3236, %v3235
      %v3263 = vpack.c.b16 %v3238, %v3237
      %v3264 = vpack.c.b16 %v3240, %v3239
      %v3265 = vpack.c.b16 %v3242, %v3241
      %v3266 = vpack.c.b16 %v3244, %v3243
      %v3267 = vpack.c.b16 %v3246, %v3245
      %v3268 = vpack.c.b16 %v3248, %v3247
      %v3269 = vpack.c.b16 %v3250, %v3249
      %v3270 = vpack.c.b16 %v3252, %v3251
      %v3271 = vpack.c.b16 %v3254, %v3253
      %v3272 = vpack.c.b16 %v3256, %v3255
      %v3289 = vunpack.c.l.b16 %v2246
      %v3290 = vunpack.c.l.b16 %v2256
      %v3291 = vunpack.c.l.b16 %v2270
      %v3292 = vunpack.c.l.b16 %v2280
      %v3293 = vunpack.c.l.b16 %v2294
      %v3294 = vunpack.c.l.b16 %v2304
      %v3295 = vunpack.c.l.b16 %v2318
      %v3296 = vunpack.c.l.b16 %v2328
      %v3297 = vunpack.c.l.b16 %v2342
      %v3298 = vunpack.c.l.b16 %v2352
      %v3299 = vunpack.c.l.b16 %v2366
      %v3300 = vunpack.c.l.b16 %v2376
      %v3301 = vunpack.c.l.b16 %v2390
      %v3302 = vunpack.c.l.b16 %v2400
      %v3303 = vunpack.c.l.b16 %v2414
      %v3304 = vunpack.c.l.b16 %v2424
      %v3305 = vunpack.c.l.b16 %v2438
      %v3306 = vunpack.c.l.b16 %v2448
      %v3307 = vunpack.c.l.b16 %v2462
      %v3308 = vunpack.c.l.b16 %v2472
      %v3309 = vunpack.c.l.b16 %v2486
      %v3310 = vunpack.c.l.b16 %v2496
      %v3311 = vunpack.c.l.b16 %v2510
      %v3312 = vunpack.c.l.b16 %v2520
      %v3313 = vunpack.c.l.b16 %v2534
      %v3314 = vunpack.c.l.b16 %v2544
      %v3315 = vunpack.c.l.b16 %v2558
      %v3316 = vunpack.c.l.b16 %v2568
      %v3317 = vunpack.c.l.b16 %v2582
      %v3318 = vunpack.c.l.b16 %v2592
      %v3319 = vunpack.c.l.b16 %v2606
      %v3320 = vunpack.c.l.b16 %v2616
      %v3321 = vpack.c.b16 %v3290, %v3289
      %v3322 = vpack.c.b16 %v3292, %v3291
      %v3323 = vpack.c.b16 %v3294, %v3293
      %v3324 = vpack.c.b16 %v3296, %v3295
      %v3325 = vpack.c.b16 %v3298, %v3297
      %v3326 = vpack.c.b16 %v3300, %v3299
      %v3327 = vpack.c.b16 %v3302, %v3301
      %v3328 = vpack.c.b16 %v3304, %v3303
      %v3329 = vpack.c.b16 %v3306, %v3305
      %v3330 = vpack.c.b16 %v3308, %v3307
      %v3331 = vpack.c.b16 %v3310, %v3309
      %v3332 = vpack.c.b16 %v3312, %v3311
      %v3333 = vpack.c.b16 %v3314, %v3313
      %v3334 = vpack.c.b16 %v3316, %v3315
      %v3335 = vpack.c.b16 %v3318, %v3317
      %v3336 = vpack.c.b16 %v3320, %v3319
      %v3353 = vunpack.c.l.b16 %v2684
      %v3354 = vunpack.c.l.b16 %v2687
      %v3355 = vunpack.c.l.b16 %v2691
      %v3356 = vunpack.c.l.b16 %v2694
      %v3357 = vunpack.c.l.b16 %v2698
      %v3358 = vunpack.c.l.b16 %v2701
      %v3359 = vunpack.c.l.b16 %v2705
      %v3360 = vunpack.c.l.b16 %v2708
      %v3361 = vunpack.c.l.b16 %v2712
      %v3362 = vunpack.c.l.b16 %v2715
      %v3363 = vunpack.c.l.b16 %v2719
      %v3364 = vunpack.c.l.b16 %v2722
      %v3365 = vunpack.c.l.b16 %v2726
      %v3366 = vunpack.c.l.b16 %v2729
      %v3367 = vunpack.c.l.b16 %v2733
      %v3368 = vunpack.c.l.b16 %v2736
      %v3369 = vunpack.c.l.b16 %v2740
      %v3370 = vunpack.c.l.b16 %v2743
      %v3371 = vunpack.c.l.b16 %v2747
      %v3372 = vunpack.c.l.b16 %v2750
      %v3373 = vunpack.c.l.b16 %v2754
      %v3374 = vunpack.c.l.b16 %v2757
      %v3375 = vunpack.c.l.b16 %v2761
      %v3376 = vunpack.c.l.b16 %v2764
      %v3377 = vunpack.c.l.b16 %v2768
      %v3378 = vunpack.c.l.b16 %v2771
      %v3379 = vunpack.c.l.b16 %v2775
      %v3380 = vunpack.c.l.b16 %v2778
      %v3381 = vunpack.c.l.b16 %v2782
      %v3382 = vunpack.c.l.b16 %v2785
      %v3383 = vunpack.c.l.b16 %v2789
      %v3384 = vunpack.c.l.b16 %v2792
      %v3385 = vpack.c.b16 %v3354, %v3353
      %v3386 = vpack.c.b16 %v3356, %v3355
      %v3387 = vpack.c.b16 %v3358, %v3357
      %v3388 = vpack.c.b16 %v3360, %v3359
      %v3389 = vpack.c.b16 %v3362, %v3361
      %v3390 = vpack.c.b16 %v3364, %v3363
      %v3391 = vpack.c.b16 %v3366, %v3365
      %v3392 = vpack.c.b16 %v3368, %v3367
      %v3393 = vpack.c.b16 %v3370, %v3369
      %v3394 = vpack.c.b16 %v3372, %v3371
      %v3395 = vpack.c.b16 %v3374, %v3373
      %v3396 = vpack.c.b16 %v3376, %v3375
      %v3397 = vpack.c.b16 %v3378, %v3377
      %v3398 = vpack.c.b16 %v3380, %v3379
      %v3399 = vpack.c.b16 %v3382, %v3381
      %v3400 = vpack.c.b16 %v3384, %v3383
      %v3417 = vld [vmem:[%s1] sm:$0xf]
      %v3418 = vld [vmem:[%s1 + $0x4] sm:$0xf]
      %v3419 = vld [vmem:[%s1 + $0x8] sm:$0xf]
      %v3420 = vld [vmem:[%s1 + $0xc] sm:$0xf]
      %v3421 = vld [vmem:[%s1 + $0x10] sm:$0xf]
      %v3422 = vld [vmem:[%s1 + $0x14] sm:$0xf]
      %v3423 = vld [vmem:[%s1 + $0x18] sm:$0xf]
      %v3424 = vld [vmem:[%s1 + $0x1c] sm:$0xf]
      %v3425 = vld [vmem:[%s1 + $0x20] sm:$0xf]
      %v3426 = vld [vmem:[%s1 + $0x24] sm:$0xf]
      %v3427 = vld [vmem:[%s1 + $0x28] sm:$0xf]
      %v3428 = vld [vmem:[%s1 + $0x2c] sm:$0xf]
      %v3429 = vld [vmem:[%s1 + $0x30] sm:$0xf]
      %v3430 = vld [vmem:[%s1 + $0x34] sm:$0xf]
      %v3431 = vld [vmem:[%s1 + $0x38] sm:$0xf]
      %v3432 = vld [vmem:[%s1 + $0x3c] sm:$0xf]
      %v3433 = vld [vmem:[%s1 + $0x40] sm:$0xf]
      %v3434 = vld [vmem:[%s1 + $0x44] sm:$0xf]
      %v3435 = vld [vmem:[%s1 + $0x48] sm:$0xf]
      %v3436 = vld [vmem:[%s1 + $0x4c] sm:$0xf]
      %v3437 = vld [vmem:[%s1 + $0x50] sm:$0xf]
      %v3438 = vld [vmem:[%s1 + $0x54] sm:$0xf]
      %v3439 = vld [vmem:[%s1 + $0x58] sm:$0xf]
      %v3440 = vld [vmem:[%s1 + $0x5c] sm:$0xf]
      %v3441 = vld [vmem:[%s1 + $0x60] sm:$0xf]
      %v3442 = vld [vmem:[%s1 + $0x64] sm:$0xf]
      %v3443 = vld [vmem:[%s1 + $0x68] sm:$0xf]
      %v3444 = vld [vmem:[%s1 + $0x6c] sm:$0xf]
      %v3445 = vld [vmem:[%s1 + $0x70] sm:$0xf]
      %v3446 = vld [vmem:[%s1 + $0x74] sm:$0xf]
      %v3447 = vld [vmem:[%s1 + $0x78] sm:$0xf]
      %v3448 = vld [vmem:[%s1 + $0x7c] sm:$0xf]
      %v3449 = vld [vmem:[%s1 + $0x80] sm:$0xf]
      %v3450 = vld [vmem:[%s1 + $0x84] sm:$0xf]
      %v3451 = vld [vmem:[%s1 + $0x88] sm:$0xf]
      %v3452 = vld [vmem:[%s1 + $0x8c] sm:$0xf]
      %v3453 = vld [vmem:[%s1 + $0x90] sm:$0xf]
      %v3454 = vld [vmem:[%s1 + $0x94] sm:$0xf]
      %v3455 = vld [vmem:[%s1 + $0x98] sm:$0xf]
      %v3456 = vld [vmem:[%s1 + $0x9c] sm:$0xf]
      %v3457 = vld [vmem:[%s1 + $0xa0] sm:$0xf]
      %v3458 = vld [vmem:[%s1 + $0xa4] sm:$0xf]
      %v3459 = vld [vmem:[%s1 + $0xa8] sm:$0xf]
      %v3460 = vld [vmem:[%s1 + $0xac] sm:$0xf]
      %v3461 = vld [vmem:[%s1 + $0xb0] sm:$0xf]
      %v3462 = vld [vmem:[%s1 + $0xb4] sm:$0xf]
      %v3463 = vld [vmem:[%s1 + $0xb8] sm:$0xf]
      %v3464 = vld [vmem:[%s1 + $0xbc] sm:$0xf]
      %v3465 = vld [vmem:[%s1 + $0xc0] sm:$0xf]
      %v3466 = vld [vmem:[%s1 + $0xc4] sm:$0xf]
      %v3467 = vld [vmem:[%s1 + $0xc8] sm:$0xf]
      %v3468 = vld [vmem:[%s1 + $0xcc] sm:$0xf]
      %v3469 = vld [vmem:[%s1 + $0xd0] sm:$0xf]
      %v3470 = vld [vmem:[%s1 + $0xd4] sm:$0xf]
      %v3471 = vld [vmem:[%s1 + $0xd8] sm:$0xf]
      %v3472 = vld [vmem:[%s1 + $0xdc] sm:$0xf]
      %v3473 = vld [vmem:[%s1 + $0xe0] sm:$0xf]
      %v3474 = vld [vmem:[%s1 + $0xe4] sm:$0xf]
      %v3475 = vld [vmem:[%s1 + $0xe8] sm:$0xf]
      %v3476 = vld [vmem:[%s1 + $0xec] sm:$0xf]
      %v3477 = vld [vmem:[%s1 + $0xf0] sm:$0xf]
      %v3478 = vld [vmem:[%s1 + $0xf4] sm:$0xf]
      %v3479 = vld [vmem:[%s1 + $0xf8] sm:$0xf]
      %v3480 = vld [vmem:[%s1 + $0xfc] sm:$0xf]
      %v3481 = vld [vmem:[%s1 + $0x100] sm:$0xf]
      %v3482 = vld [vmem:[%s1 + $0x104] sm:$0xf]
      %v3483 = vld [vmem:[%s1 + $0x108] sm:$0xf]
      %v3484 = vld [vmem:[%s1 + $0x10c] sm:$0xf]
      %v3485 = vld [vmem:[%s1 + $0x110] sm:$0xf]
      %v3486 = vld [vmem:[%s1 + $0x114] sm:$0xf]
      %v3487 = vld [vmem:[%s1 + $0x118] sm:$0xf]
      %v3488 = vld [vmem:[%s1 + $0x11c] sm:$0xf]
      %v3489 = vld [vmem:[%s1 + $0x120] sm:$0xf]
      %v3490 = vld [vmem:[%s1 + $0x124] sm:$0xf]
      %v3491 = vld [vmem:[%s1 + $0x128] sm:$0xf]
      %v3492 = vld [vmem:[%s1 + $0x12c] sm:$0xf]
      %v3493 = vld [vmem:[%s1 + $0x130] sm:$0xf]
      %v3494 = vld [vmem:[%s1 + $0x134] sm:$0xf]
      %v3495 = vld [vmem:[%s1 + $0x138] sm:$0xf]
      %v3496 = vld [vmem:[%s1 + $0x13c] sm:$0xf]
      %v3497 = vld [vmem:[%s1 + $0x140] sm:$0xf]
      %v3498 = vld [vmem:[%s1 + $0x144] sm:$0xf]
      %v3499 = vld [vmem:[%s1 + $0x148] sm:$0xf]
      %v3500 = vld [vmem:[%s1 + $0x14c] sm:$0xf]
      %v3501 = vld [vmem:[%s1 + $0x150] sm:$0xf]
      %v3502 = vld [vmem:[%s1 + $0x154] sm:$0xf]
      %v3503 = vld [vmem:[%s1 + $0x158] sm:$0xf]
      %v3504 = vld [vmem:[%s1 + $0x15c] sm:$0xf]
      %v3505 = vld [vmem:[%s1 + $0x160] sm:$0xf]
      %v3506 = vld [vmem:[%s1 + $0x164] sm:$0xf]
      %v3507 = vld [vmem:[%s1 + $0x168] sm:$0xf]
      %v3508 = vld [vmem:[%s1 + $0x16c] sm:$0xf]
      %v3509 = vld [vmem:[%s1 + $0x170] sm:$0xf]
      %v3510 = vld [vmem:[%s1 + $0x174] sm:$0xf]
      %v3511 = vld [vmem:[%s1 + $0x178] sm:$0xf]
      %v3512 = vld [vmem:[%s1 + $0x17c] sm:$0xf]
      %v3513 = vld [vmem:[%s1 + $0x180] sm:$0xf]
      %v3514 = vld [vmem:[%s1 + $0x184] sm:$0xf]
      %v3515 = vld [vmem:[%s1 + $0x188] sm:$0xf]
      %v3516 = vld [vmem:[%s1 + $0x18c] sm:$0xf]
      %v3517 = vld [vmem:[%s1 + $0x190] sm:$0xf]
      %v3518 = vld [vmem:[%s1 + $0x194] sm:$0xf]
      %v3519 = vld [vmem:[%s1 + $0x198] sm:$0xf]
      %v3520 = vld [vmem:[%s1 + $0x19c] sm:$0xf]
      %v3521 = vld [vmem:[%s1 + $0x1a0] sm:$0xf]
      %v3522 = vld [vmem:[%s1 + $0x1a4] sm:$0xf]
      %v3523 = vld [vmem:[%s1 + $0x1a8] sm:$0xf]
      %v3524 = vld [vmem:[%s1 + $0x1ac] sm:$0xf]
      %v3525 = vld [vmem:[%s1 + $0x1b0] sm:$0xf]
      %v3526 = vld [vmem:[%s1 + $0x1b4] sm:$0xf]
      %v3527 = vld [vmem:[%s1 + $0x1b8] sm:$0xf]
      %v3528 = vld [vmem:[%s1 + $0x1bc] sm:$0xf]
      %v3529 = vld [vmem:[%s1 + $0x1c0] sm:$0xf]
      %v3530 = vld [vmem:[%s1 + $0x1c4] sm:$0xf]
      %v3531 = vld [vmem:[%s1 + $0x1c8] sm:$0xf]
      %v3532 = vld [vmem:[%s1 + $0x1cc] sm:$0xf]
      %v3533 = vld [vmem:[%s1 + $0x1d0] sm:$0xf]
      %v3534 = vld [vmem:[%s1 + $0x1d4] sm:$0xf]
      %v3535 = vld [vmem:[%s1 + $0x1d8] sm:$0xf]
      %v3536 = vld [vmem:[%s1 + $0x1dc] sm:$0xf]
      %v3537 = vld [vmem:[%s1 + $0x1e0] sm:$0xf]
      %v3538 = vld [vmem:[%s1 + $0x1e4] sm:$0xf]
      %v3539 = vld [vmem:[%s1 + $0x1e8] sm:$0xf]
      %v3540 = vld [vmem:[%s1 + $0x1ec] sm:$0xf]
      %v3541 = vld [vmem:[%s1 + $0x1f0] sm:$0xf]
      %v3542 = vld [vmem:[%s1 + $0x1f4] sm:$0xf]
      %v3543 = vld [vmem:[%s1 + $0x1f8] sm:$0xf]
      %v3544 = vld [vmem:[%s1 + $0x1fc] sm:$0xf]
      %v3545 = vld [vmem:[%s1 + $0x200] sm:$0xf]
      %v3546 = vld [vmem:[%s1 + $0x204] sm:$0xf]
      %v3547 = vld [vmem:[%s1 + $0x208] sm:$0xf]
      %v3548 = vld [vmem:[%s1 + $0x20c] sm:$0xf]
      %v3549 = vld [vmem:[%s1 + $0x210] sm:$0xf]
      %v3550 = vld [vmem:[%s1 + $0x214] sm:$0xf]
      %v3551 = vld [vmem:[%s1 + $0x218] sm:$0xf]
      %v3552 = vld [vmem:[%s1 + $0x21c] sm:$0xf]
      %v3553 = vld [vmem:[%s1 + $0x220] sm:$0xf]
      %v3554 = vld [vmem:[%s1 + $0x224] sm:$0xf]
      %v3555 = vld [vmem:[%s1 + $0x228] sm:$0xf]
      %v3556 = vld [vmem:[%s1 + $0x22c] sm:$0xf]
      %v3557 = vld [vmem:[%s1 + $0x230] sm:$0xf]
      %v3558 = vld [vmem:[%s1 + $0x234] sm:$0xf]
      %v3559 = vld [vmem:[%s1 + $0x238] sm:$0xf]
      %v3560 = vld [vmem:[%s1 + $0x23c] sm:$0xf]
      %v3561 = vld [vmem:[%s2] sm:$0x1]
      %v3563 = vlaneseq
      %v3564 = vshrl.u32 %v3563, 7
      %v3565 = vsub.s32 0, %v3564
      %v3566 = vrot.slane %v3561, %v3565
      %v3712 = vunpack.c.l.b16 %v3417
      %v3713 = vunpack.c.l.b16 %v3418
      %v3714 = vunpack.c.l.b16 %v3419
      %v3715 = vunpack.c.l.b16 %v3420
      %v3716 = vunpack.c.l.b16 %v3421
      %v3717 = vunpack.c.l.b16 %v3422
      %v3718 = vunpack.c.l.b16 %v3423
      %v3719 = vunpack.c.l.b16 %v3424
      %v3720 = vunpack.c.l.b16 %v3425
      %v3721 = vunpack.c.l.b16 %v3426
      %v3722 = vunpack.c.l.b16 %v3427
      %v3723 = vunpack.c.l.b16 %v3428
      %v3724 = vunpack.c.l.b16 %v3429
      %v3725 = vunpack.c.l.b16 %v3430
      %v3726 = vunpack.c.l.b16 %v3431
      %v3727 = vunpack.c.l.b16 %v3432
      %v3728 = vunpack.c.l.b16 %v3433
      %v3729 = vunpack.c.l.b16 %v3434
      %v3730 = vunpack.c.l.b16 %v3435
      %v3731 = vunpack.c.l.b16 %v3436
      %v3732 = vunpack.c.l.b16 %v3437
      %v3733 = vunpack.c.l.b16 %v3438
      %v3734 = vunpack.c.l.b16 %v3439
      %v3735 = vunpack.c.l.b16 %v3440
      %v3736 = vunpack.c.l.b16 %v3441
      %v3737 = vunpack.c.l.b16 %v3442
      %v3738 = vunpack.c.l.b16 %v3443
      %v3739 = vunpack.c.l.b16 %v3444
      %v3740 = vunpack.c.l.b16 %v3445
      %v3741 = vunpack.c.l.b16 %v3446
      %v3742 = vunpack.c.l.b16 %v3447
      %v3743 = vunpack.c.l.b16 %v3448
      %v3744 = vunpack.c.l.b16 %v3449
      %v3745 = vunpack.c.l.b16 %v3450
      %v3746 = vunpack.c.l.b16 %v3451
      %v3747 = vunpack.c.l.b16 %v3452
      %v3748 = vunpack.c.l.b16 %v3453
      %v3749 = vunpack.c.l.b16 %v3454
      %v3750 = vunpack.c.l.b16 %v3455
      %v3751 = vunpack.c.l.b16 %v3456
      %v3752 = vunpack.c.l.b16 %v3457
      %v3753 = vunpack.c.l.b16 %v3458
      %v3754 = vunpack.c.l.b16 %v3459
      %v3755 = vunpack.c.l.b16 %v3460
      %v3756 = vunpack.c.l.b16 %v3461
      %v3757 = vunpack.c.l.b16 %v3462
      %v3758 = vunpack.c.l.b16 %v3463
      %v3759 = vunpack.c.l.b16 %v3464
      %v3760 = vunpack.c.l.b16 %v3465
      %v3761 = vunpack.c.l.b16 %v3466
      %v3762 = vunpack.c.l.b16 %v3467
      %v3763 = vunpack.c.l.b16 %v3468
      %v3764 = vunpack.c.l.b16 %v3469
      %v3765 = vunpack.c.l.b16 %v3470
      %v3766 = vunpack.c.l.b16 %v3471
      %v3767 = vunpack.c.l.b16 %v3472
      %v3768 = vunpack.c.l.b16 %v3473
      %v3769 = vunpack.c.l.b16 %v3474
      %v3770 = vunpack.c.l.b16 %v3475
      %v3771 = vunpack.c.l.b16 %v3476
      %v3772 = vunpack.c.l.b16 %v3477
      %v3773 = vunpack.c.l.b16 %v3478
      %v3774 = vunpack.c.l.b16 %v3479
      %v3775 = vunpack.c.l.b16 %v3480
      %v3776 = vunpack.c.l.b16 %v3481
      %v3777 = vunpack.c.l.b16 %v3482
      %v3778 = vunpack.c.l.b16 %v3483
      %v3779 = vunpack.c.l.b16 %v3484
      %v3780 = vunpack.c.l.b16 %v3485
      %v3781 = vunpack.c.l.b16 %v3486
      %v3782 = vunpack.c.l.b16 %v3487
      %v3783 = vunpack.c.l.b16 %v3488
      %v3784 = vunpack.c.l.b16 %v3489
      %v3785 = vunpack.c.l.b16 %v3490
      %v3786 = vunpack.c.l.b16 %v3491
      %v3787 = vunpack.c.l.b16 %v3492
      %v3788 = vunpack.c.l.b16 %v3493
      %v3789 = vunpack.c.l.b16 %v3494
      %v3790 = vunpack.c.l.b16 %v3495
      %v3791 = vunpack.c.l.b16 %v3496
      %v3792 = vunpack.c.l.b16 %v3497
      %v3793 = vunpack.c.l.b16 %v3498
      %v3794 = vunpack.c.l.b16 %v3499
      %v3795 = vunpack.c.l.b16 %v3500
      %v3796 = vunpack.c.l.b16 %v3501
      %v3797 = vunpack.c.l.b16 %v3502
      %v3798 = vunpack.c.l.b16 %v3503
      %v3799 = vunpack.c.l.b16 %v3504
      %v3800 = vunpack.c.l.b16 %v3505
      %v3801 = vunpack.c.l.b16 %v3506
      %v3802 = vunpack.c.l.b16 %v3507
      %v3803 = vunpack.c.l.b16 %v3508
      %v3804 = vunpack.c.l.b16 %v3509
      %v3805 = vunpack.c.l.b16 %v3510
      %v3806 = vunpack.c.l.b16 %v3511
      %v3807 = vunpack.c.l.b16 %v3512
      %v3808 = vunpack.c.l.b16 %v3513
      %v3809 = vunpack.c.l.b16 %v3514
      %v3810 = vunpack.c.l.b16 %v3515
      %v3811 = vunpack.c.l.b16 %v3516
      %v3812 = vunpack.c.l.b16 %v3517
      %v3813 = vunpack.c.l.b16 %v3518
      %v3814 = vunpack.c.l.b16 %v3519
      %v3815 = vunpack.c.l.b16 %v3520
      %v3816 = vunpack.c.l.b16 %v3521
      %v3817 = vunpack.c.l.b16 %v3522
      %v3818 = vunpack.c.l.b16 %v3523
      %v3819 = vunpack.c.l.b16 %v3524
      %v3820 = vunpack.c.l.b16 %v3525
      %v3821 = vunpack.c.l.b16 %v3526
      %v3822 = vunpack.c.l.b16 %v3527
      %v3823 = vunpack.c.l.b16 %v3528
      %v3824 = vunpack.c.l.b16 %v3529
      %v3825 = vunpack.c.l.b16 %v3530
      %v3826 = vunpack.c.l.b16 %v3531
      %v3827 = vunpack.c.l.b16 %v3532
      %v3828 = vunpack.c.l.b16 %v3533
      %v3829 = vunpack.c.l.b16 %v3534
      %v3830 = vunpack.c.l.b16 %v3535
      %v3831 = vunpack.c.l.b16 %v3536
      %v3832 = vunpack.c.l.b16 %v3537
      %v3833 = vunpack.c.l.b16 %v3538
      %v3834 = vunpack.c.l.b16 %v3539
      %v3835 = vunpack.c.l.b16 %v3540
      %v3836 = vunpack.c.l.b16 %v3541
      %v3837 = vunpack.c.l.b16 %v3542
      %v3838 = vunpack.c.l.b16 %v3543
      %v3839 = vunpack.c.l.b16 %v3544
      %v3840 = vunpack.c.l.b16 %v3545
      %v3841 = vunpack.c.l.b16 %v3546
      %v3842 = vunpack.c.l.b16 %v3547
      %v3843 = vunpack.c.l.b16 %v3548
      %v3844 = vunpack.c.l.b16 %v3549
      %v3845 = vunpack.c.l.b16 %v3550
      %v3846 = vunpack.c.l.b16 %v3551
      %v3847 = vunpack.c.l.b16 %v3552
      %v3848 = vunpack.c.l.b16 %v3553
      %v3849 = vunpack.c.l.b16 %v3554
      %v3850 = vunpack.c.l.b16 %v3555
      %v3851 = vunpack.c.l.b16 %v3556
      %v3852 = vunpack.c.l.b16 %v3557
      %v3853 = vunpack.c.l.b16 %v3558
      %v3854 = vunpack.c.l.b16 %v3559
      %v3855 = vunpack.c.l.b16 %v3560
      %v3856 = vpack.c.b16 %v3713, %v3712
      %v3857 = vpack.c.b16 %v3715, %v3714
      %v3858 = vpack.c.b16 %v3717, %v3716
      %v3859 = vpack.c.b16 %v3719, %v3718
      %v3860 = vpack.c.b16 %v3721, %v3720
      %v3861 = vpack.c.b16 %v3723, %v3722
      %v3862 = vpack.c.b16 %v3725, %v3724
      %v3863 = vpack.c.b16 %v3727, %v3726
      %v3864 = vpack.c.b16 %v3729, %v3728
      %v3865 = vpack.c.b16 %v3731, %v3730
      %v3866 = vpack.c.b16 %v3733, %v3732
      %v3867 = vpack.c.b16 %v3735, %v3734
      %v3868 = vpack.c.b16 %v3737, %v3736
      %v3869 = vpack.c.b16 %v3739, %v3738
      %v3870 = vpack.c.b16 %v3741, %v3740
      %v3871 = vpack.c.b16 %v3743, %v3742
      %v3872 = vpack.c.b16 %v3745, %v3744
      %v3873 = vpack.c.b16 %v3747, %v3746
      %v3874 = vpack.c.b16 %v3749, %v3748
      %v3875 = vpack.c.b16 %v3751, %v3750
      %v3876 = vpack.c.b16 %v3753, %v3752
      %v3877 = vpack.c.b16 %v3755, %v3754
      %v3878 = vpack.c.b16 %v3757, %v3756
      %v3879 = vpack.c.b16 %v3759, %v3758
      %v3880 = vpack.c.b16 %v3761, %v3760
      %v3881 = vpack.c.b16 %v3763, %v3762
      %v3882 = vpack.c.b16 %v3765, %v3764
      %v3883 = vpack.c.b16 %v3767, %v3766
      %v3884 = vpack.c.b16 %v3769, %v3768
      %v3885 = vpack.c.b16 %v3771, %v3770
      %v3886 = vpack.c.b16 %v3773, %v3772
      %v3887 = vpack.c.b16 %v3775, %v3774
      %v3888 = vpack.c.b16 %v3777, %v3776
      %v3889 = vpack.c.b16 %v3779, %v3778
      %v3890 = vpack.c.b16 %v3781, %v3780
      %v3891 = vpack.c.b16 %v3783, %v3782
      %v3892 = vpack.c.b16 %v3785, %v3784
      %v3893 = vpack.c.b16 %v3787, %v3786
      %v3894 = vpack.c.b16 %v3789, %v3788
      %v3895 = vpack.c.b16 %v3791, %v3790
      %v3896 = vpack.c.b16 %v3793, %v3792
      %v3897 = vpack.c.b16 %v3795, %v3794
      %v3898 = vpack.c.b16 %v3797, %v3796
      %v3899 = vpack.c.b16 %v3799, %v3798
      %v3900 = vpack.c.b16 %v3801, %v3800
      %v3901 = vpack.c.b16 %v3803, %v3802
      %v3902 = vpack.c.b16 %v3805, %v3804
      %v3903 = vpack.c.b16 %v3807, %v3806
      %v3904 = vpack.c.b16 %v3809, %v3808
      %v3905 = vpack.c.b16 %v3811, %v3810
      %v3906 = vpack.c.b16 %v3813, %v3812
      %v3907 = vpack.c.b16 %v3815, %v3814
      %v3908 = vpack.c.b16 %v3817, %v3816
      %v3909 = vpack.c.b16 %v3819, %v3818
      %v3910 = vpack.c.b16 %v3821, %v3820
      %v3911 = vpack.c.b16 %v3823, %v3822
      %v3912 = vpack.c.b16 %v3825, %v3824
      %v3913 = vpack.c.b16 %v3827, %v3826
      %v3914 = vpack.c.b16 %v3829, %v3828
      %v3915 = vpack.c.b16 %v3831, %v3830
      %v3916 = vpack.c.b16 %v3833, %v3832
      %v3917 = vpack.c.b16 %v3835, %v3834
      %v3918 = vpack.c.b16 %v3837, %v3836
      %v3919 = vpack.c.b16 %v3839, %v3838
      %v3920 = vpack.c.b16 %v3841, %v3840
      %v3921 = vpack.c.b16 %v3843, %v3842
      %v3922 = vpack.c.b16 %v3845, %v3844
      %v3923 = vpack.c.b16 %v3847, %v3846
      %v3924 = vpack.c.b16 %v3849, %v3848
      %v3925 = vpack.c.b16 %v3851, %v3850
      %v3926 = vpack.c.b16 %v3853, %v3852
      %v3927 = vpack.c.b16 %v3855, %v3854
      %4000 = vmatprep.subr.bf16.mxu0 0
      %4001 = vmatpush1.bf16.msra.mxu0 %v3856
      %4002 = vmatprep.subr.bf16.mxu0 0
      %4003 = vmatpush1.bf16.msra.mxu0 %v3857
      %4004 = vmatprep.subr.bf16.mxu0 0
      %4005 = vmatpush1.bf16.msra.mxu0 %v3858
      %4006 = vmatprep.subr.bf16.mxu0 0
      %4007 = vmatpush1.bf16.msra.mxu0 %v3859
      %4008 = vmatprep.subr.bf16.mxu0 0
      %4009 = vmatpush1.bf16.msra.mxu0 %v3860
      %4010 = vmatprep.subr.bf16.mxu0 0
      %4011 = vmatpush1.bf16.msra.mxu0 %v3861
      %4012 = vmatprep.subr.bf16.mxu0 0
      %4013 = vmatpush1.bf16.msra.mxu0 %v3862
      %4014 = vmatprep.subr.bf16.mxu0 0
      %4015 = vmatpush1.bf16.msra.mxu0 %v3863
      %4016 = vmatprep.subr.bf16.mxu0 0
      %4017 = vmatpush1.bf16.msra.mxu0 %v3864
      %4018 = vmatprep.subr.bf16.mxu0 0
      %4019 = vmatpush1.bf16.msra.mxu0 %v3865
      %4020 = vmatprep.subr.bf16.mxu0 0
      %4021 = vmatpush1.bf16.msra.mxu0 %v3866
      %4022 = vmatprep.subr.bf16.mxu0 0
      %4023 = vmatpush1.bf16.msra.mxu0 %v3867
      %4024 = vmatprep.subr.bf16.mxu0 0
      %4025 = vmatpush1.bf16.msra.mxu0 %v3868
      %4026 = vmatprep.subr.bf16.mxu0 0
      %4027 = vmatpush1.bf16.msra.mxu0 %v3869
      %4028 = vmatprep.subr.bf16.mxu0 0
      %4029 = vmatpush1.bf16.msra.mxu0 %v3870
      %4030 = vmatprep.subr.bf16.mxu0 0
      %4031 = vmatpush1.bf16.msra.mxu0 %v3871
      %4032 = vmatprep.mubr.bf16.mxu0 %v2905
      %4033 = vmatmul.mubr.bf16.gmra.mrb[0].mxu0 %v2841
      %v4034 = vpop.f32.mrb[0].mxu0
      %v4035 = vadd.f32 %v3566, %v4034
      %v4036 = vpop.f32.mrb[0].mxu0
      %v4037 = vpop.f32.mrb[0].mxu0
      %v4038 = vadd.f32 %v3566, %v4037
      %v4039 = vpop.f32.mrb[0].mxu0
      %4040 = vmatprep.mubr.bf16.mxu0 %v2906
      %4041 = vmatmul.mubr.bf16.gmra.mrb[0].mxu0 %v2842
      %v4042 = vpop.f32.mrb[0].mxu0
      %v4043 = vadd.f32 %v3566, %v4042
      %v4044 = vpop.f32.mrb[0].mxu0
      %v4045 = vpop.f32.mrb[0].mxu0
      %v4046 = vadd.f32 %v3566, %v4045
      %v4047 = vpop.f32.mrb[0].mxu0
      %4048 = vmatprep.mubr.bf16.mxu0 %v2907
      %4049 = vmatmul.mubr.bf16.gmra.mrb[0].mxu0 %v2843
      %v4050 = vpop.f32.mrb[0].mxu0
      %v4051 = vadd.f32 %v3566, %v4050
      %v4052 = vpop.f32.mrb[0].mxu0
      %v4053 = vpop.f32.mrb[0].mxu0
      %v4054 = vadd.f32 %v3566, %v4053
      %v4055 = vpop.f32.mrb[0].mxu0
      %4056 = vmatprep.mubr.bf16.mxu0 %v2908
      %4057 = vmatmul.mubr.bf16.gmra.mrb[0].mxu0 %v2844
      %v4058 = vpop.f32.mrb[0].mxu0
      %v4059 = vadd.f32 %v3566, %v4058
      %v4060 = vpop.f32.mrb[0].mxu0
      %v4061 = vpop.f32.mrb[0].mxu0
      %v4062 = vadd.f32 %v3566, %v4061
      %v4063 = vpop.f32.mrb[0].mxu0
      %4064 = vmatprep.mubr.bf16.mxu0 %v2909
      %4065 = vmatmul.mubr.bf16.gmra.mrb[0].mxu0 %v2845
      %v4066 = vpop.f32.mrb[0].mxu0
      %v4067 = vadd.f32 %v3566, %v4066
      %v4068 = vpop.f32.mrb[0].mxu0
      %v4069 = vpop.f32.mrb[0].mxu0
      %v4070 = vadd.f32 %v3566, %v4069
      %v4071 = vpop.f32.mrb[0].mxu0
      %4072 = vmatprep.mubr.bf16.mxu0 %v2910
      %4073 = vmatmul.mubr.bf16.gmra.mrb[0].mxu0 %v2846
      %v4074 = vpop.f32.mrb[0].mxu0
      %v4075 = vadd.f32 %v3566, %v4074
      %v4076 = vpop.f32.mrb[0].mxu0
      %v4077 = vpop.f32.mrb[0].mxu0
      %v4078 = vadd.f32 %v3566, %v4077
      %v4079 = vpop.f32.mrb[0].mxu0
      %4080 = vmatprep.mubr.bf16.mxu0 %v2911
      %4081 = vmatmul.mubr.bf16.gmra.mrb[0].mxu0 %v2847
      %v4082 = vpop.f32.mrb[0].mxu0
      %v4083 = vadd.f32 %v3566, %v4082
      %v4084 = vpop.f32.mrb[0].mxu0
      %v4085 = vpop.f32.mrb[0].mxu0
      %v4086 = vadd.f32 %v3566, %v4085
      %v4087 = vpop.f32.mrb[0].mxu0
      %4088 = vmatprep.mubr.bf16.mxu0 %v2912
      %4089 = vmatmul.mubr.bf16.gmra.mrb[0].mxu0 %v2848
      %v4090 = vpop.f32.mrb[0].mxu0
      %v4091 = vadd.f32 %v3566, %v4090
      %v4092 = vpop.f32.mrb[0].mxu0
      %v4093 = vpop.f32.mrb[0].mxu0
      %v4094 = vadd.f32 %v3566, %v4093
      %v4095 = vpop.f32.mrb[0].mxu0
      %4096 = vmatprep.mubr.bf16.mxu0 %v2913
      %4097 = vmatmul.mubr.bf16.gmra.mrb[0].mxu0 %v2849
      %v4098 = vpop.f32.mrb[0].mxu0
      %v4099 = vadd.f32 %v3566, %v4098
      %v4100 = vpop.f32.mrb[0].mxu0
      %v4101 = vpop.f32.mrb[0].mxu0
      %v4102 = vadd.f32 %v3566, %v4101
      %v4103 = vpop.f32.mrb[0].mxu0
      %4104 = vmatprep.mubr.bf16.mxu0 %v2914
      %4105 = vmatmul.mubr.bf16.gmra.mrb[0].mxu0 %v2850
      %v4106 = vpop.f32.mrb[0].mxu0
      %v4107 = vadd.f32 %v3566, %v4106
      %v4108 = vpop.f32.mrb[0].mxu0
      %v4109 = vpop.f32.mrb[0].mxu0
      %v4110 = vadd.f32 %v3566, %v4109
      %v4111 = vpop.f32.mrb[0].mxu0
      %4112 = vmatprep.mubr.bf16.mxu0 %v2915
      %4113 = vmatmul.mubr.bf16.gmra.mrb[0].mxu0 %v2851
      %v4114 = vpop.f32.mrb[0].mxu0
      %v4115 = vadd.f32 %v3566, %v4114
      %v4116 = vpop.f32.mrb[0].mxu0
      %v4117 = vpop.f32.mrb[0].mxu0
      %v4118 = vadd.f32 %v3566, %v4117
      %v4119 = vpop.f32.mrb[0].mxu0
      %4120 = vmatprep.mubr.bf16.mxu0 %v2916
      %4121 = vmatmul.mubr.bf16.gmra.mrb[0].mxu0 %v2852
      %v4122 = vpop.f32.mrb[0].mxu0
      %v4123 = vadd.f32 %v3566, %v4122
      %v4124 = vpop.f32.mrb[0].mxu0
      %v4125 = vpop.f32.mrb[0].mxu0
      %v4126 = vadd.f32 %v3566, %v4125
      %v4127 = vpop.f32.mrb[0].mxu0
      %4128 = vmatprep.mubr.bf16.mxu0 %v2917
      %4129 = vmatmul.mubr.bf16.gmra.mrb[0].mxu0 %v2853
      %v4130 = vpop.f32.mrb[0].mxu0
      %v4131 = vadd.f32 %v3566, %v4130
      %v4132 = vpop.f32.mrb[0].mxu0
      %v4133 = vpop.f32.mrb[0].mxu0
      %v4134 = vadd.f32 %v3566, %v4133
      %v4135 = vpop.f32.mrb[0].mxu0
      %4136 = vmatprep.mubr.bf16.mxu0 %v2918
      %4137 = vmatmul.mubr.bf16.gmra.mrb[0].mxu0 %v2854
      %v4138 = vpop.f32.mrb[0].mxu0
      %v4139 = vadd.f32 %v3566, %v4138
      %v4140 = vpop.f32.mrb[0].mxu0
      %v4141 = vpop.f32.mrb[0].mxu0
      %v4142 = vadd.f32 %v3566, %v4141
      %v4143 = vpop.f32.mrb[0].mxu0
      %4144 = vmatprep.mubr.bf16.mxu0 %v2919
      %4145 = vmatmul.mubr.bf16.gmra.mrb[0].mxu0 %v2855
      %v4146 = vpop.f32.mrb[0].mxu0
      %v4147 = vadd.f32 %v3566, %v4146
      %v4148 = vpop.f32.mrb[0].mxu0
      %v4149 = vpop.f32.mrb[0].mxu0
      %v4150 = vadd.f32 %v3566, %v4149
      %v4151 = vpop.f32.mrb[0].mxu0
      %4152 = vmatprep.mubr.bf16.mxu0 %v2920
      %4153 = vmatmul.mubr.bf16.gmra.mrb[0].mxu0 %v2856
      %v4154 = vpop.f32.mrb[0].mxu0
      %v4155 = vadd.f32 %v3566, %v4154
      %v4156 = vpop.f32.mrb[0].mxu0
      %v4157 = vpop.f32.mrb[0].mxu0
      %v4158 = vadd.f32 %v3566, %v4157
      %v4159 = vpop.f32.mrb[0].mxu0
      %4160 = vdwg.mxu0
      %4161 = vmatprep.subr.bf16.mxu0 0
      %4162 = vmatpush1.bf16.msra.mxu0 %v3872
      %4163 = vmatprep.subr.bf16.mxu0 0
      %4164 = vmatpush1.bf16.msra.mxu0 %v3873
      %4165 = vmatprep.subr.bf16.mxu0 0
      %4166 = vmatpush1.bf16.msra.mxu0 %v3874
      %4167 = vmatprep.subr.bf16.mxu0 0
      %4168 = vmatpush1.bf16.msra.mxu0 %v3875
      %4169 = vmatprep.subr.bf16.mxu0 0
      %4170 = vmatpush1.bf16.msra.mxu0 %v3876
      %4171 = vmatprep.subr.bf16.mxu0 0
      %4172 = vmatpush1.bf16.msra.mxu0 %v3877
      %4173 = vmatprep.subr.bf16.mxu0 0
      %4174 = vmatpush1.bf16.msra.mxu0 %v3878
      %4175 = vmatprep.subr.bf16.mxu0 0
      %4176 = vmatpush1.bf16.msra.mxu0 %v3879
      %4177 = vmatprep.subr.bf16.mxu0 0
      %4178 = vmatpush1.bf16.msra.mxu0 %v3880
      %4179 = vmatprep.subr.bf16.mxu0 0
      %4180 = vmatpush1.bf16.msra.mxu0 %v3881
      %4181 = vmatprep.subr.bf16.mxu0 0
      %4182 = vmatpush1.bf16.msra.mxu0 %v3882
      %4183 = vmatprep.subr.bf16.mxu0 0
      %4184 = vmatpush1.bf16.msra.mxu0 %v3883
      %4185 = vmatprep.subr.bf16.mxu0 0
      %4186 = vmatpush1.bf16.msra.mxu0 %v3884
      %4187 = vmatprep.subr.bf16.mxu0 0
      %4188 = vmatpush1.bf16.msra.mxu0 %v3885
      %4189 = vmatprep.subr.bf16.mxu0 0
      %4190 = vmatpush1.bf16.msra.mxu0 %v3886
      %4191 = vmatprep.subr.bf16.mxu0 0
      %4192 = vmatpush1.bf16.msra.mxu0 %v3887
      %4193 = vmatprep.mubr.bf16.mxu0 %v3049
      %4194 = vmatmul.mubr.bf16.gmra.mrb[0].mxu0 %v2969
      %v4195 = vpop.f32.mrb[0].mxu0
      %v4196 = vadd.f32 %v4035, %v4195
      %v4197 = vpop.f32.mrb[0].mxu0
      %v4198 = vpop.f32.mrb[0].mxu0
      %v4199 = vadd.f32 %v4038, %v4198
      %v4200 = vpop.f32.mrb[0].mxu0
      %4201 = vmatprep.mubr.bf16.mxu0 %v3050
      %4202 = vmatmul.mubr.bf16.gmra.mrb[0].mxu0 %v2970
      %v4203 = vpop.f32.mrb[0].mxu0
      %v4204 = vadd.f32 %v4043, %v4203
      %v4205 = vpop.f32.mrb[0].mxu0
      %v4206 = vpop.f32.mrb[0].mxu0
      %v4207 = vadd.f32 %v4046, %v4206
      %v4208 = vpop.f32.mrb[0].mxu0
      %4209 = vmatprep.mubr.bf16.mxu0 %v3051
      %4210 = vmatmul.mubr.bf16.gmra.mrb[0].mxu0 %v2971
      %v4211 = vpop.f32.mrb[0].mxu0
      %v4212 = vadd.f32 %v4051, %v4211
      %v4213 = vpop.f32.mrb[0].mxu0
      %v4214 = vpop.f32.mrb[0].mxu0
      %v4215 = vadd.f32 %v4054, %v4214
      %v4216 = vpop.f32.mrb[0].mxu0
      %4217 = vmatprep.mubr.bf16.mxu0 %v3052
      %4218 = vmatmul.mubr.bf16.gmra.mrb[0].mxu0 %v2972
      %v4219 = vpop.f32.mrb[0].mxu0
      %v4220 = vadd.f32 %v4059, %v4219
      %v4221 = vpop.f32.mrb[0].mxu0
      %v4222 = vpop.f32.mrb[0].mxu0
      %v4223 = vadd.f32 %v4062, %v4222
      %v4224 = vpop.f32.mrb[0].mxu0
      %4225 = vmatprep.mubr.bf16.mxu0 %v3053
      %4226 = vmatmul.mubr.bf16.gmra.mrb[0].mxu0 %v2973
      %v4227 = vpop.f32.mrb[0].mxu0
      %v4228 = vadd.f32 %v4067, %v4227
      %v4229 = vpop.f32.mrb[0].mxu0
      %v4230 = vpop.f32.mrb[0].mxu0
      %v4231 = vadd.f32 %v4070, %v4230
      %v4232 = vpop.f32.mrb[0].mxu0
      %4233 = vmatprep.mubr.bf16.mxu0 %v3054
      %4234 = vmatmul.mubr.bf16.gmra.mrb[0].mxu0 %v2974
      %v4235 = vpop.f32.mrb[0].mxu0
      %v4236 = vadd.f32 %v4075, %v4235
      %v4237 = vpop.f32.mrb[0].mxu0
      %v4238 = vpop.f32.mrb[0].mxu0
      %v4239 = vadd.f32 %v4078, %v4238
      %v4240 = vpop.f32.mrb[0].mxu0
      %4241 = vmatprep.mubr.bf16.mxu0 %v3055
      %4242 = vmatmul.mubr.bf16.gmra.mrb[0].mxu0 %v2975
      %v4243 = vpop.f32.mrb[0].mxu0
      %v4244 = vadd.f32 %v4083, %v4243
      %v4245 = vpop.f32.mrb[0].mxu0
      %v4246 = vpop.f32.mrb[0].mxu0
      %v4247 = vadd.f32 %v4086, %v4246
      %v4248 = vpop.f32.mrb[0].mxu0
      %4249 = vmatprep.mubr.bf16.mxu0 %v3056
      %4250 = vmatmul.mubr.bf16.gmra.mrb[0].mxu0 %v2976
      %v4251 = vpop.f32.mrb[0].mxu0
      %v4252 = vadd.f32 %v4091, %v4251
      %v4253 = vpop.f32.mrb[0].mxu0
      %v4254 = vpop.f32.mrb[0].mxu0
      %v4255 = vadd.f32 %v4094, %v4254
      %v4256 = vpop.f32.mrb[0].mxu0
      %4257 = vmatprep.mubr.bf16.mxu0 %v3057
      %4258 = vmatmul.mubr.bf16.gmra.mrb[0].mxu0 %v2977
      %v4259 = vpop.f32.mrb[0].mxu0
      %v4260 = vadd.f32 %v4099, %v4259
      %v4261 = vpop.f32.mrb[0].mxu0
      %v4262 = vpop.f32.mrb[0].mxu0
      %v4263 = vadd.f32 %v4102, %v4262
      %v4264 = vpop.f32.mrb[0].mxu0
      %4265 = vmatprep.mubr.bf16.mxu0 %v3058
      %4266 = vmatmul.mubr.bf16.gmra.mrb[0].mxu0 %v2978
      %v4267 = vpop.f32.mrb[0].mxu0
      %v4268 = vadd.f32 %v4107, %v4267
      %v4269 = vpop.f32.mrb[0].mxu0
      %v4270 = vpop.f32.mrb[0].mxu0
      %v4271 = vadd.f32 %v4110, %v4270
      %v4272 = vpop.f32.mrb[0].mxu0
      %4273 = vmatprep.mubr.bf16.mxu0 %v3059
      %4274 = vmatmul.mubr.bf16.gmra.mrb[0].mxu0 %v2979
      %v4275 = vpop.f32.mrb[0].mxu0
      %v4276 = vadd.f32 %v4115, %v4275
      %v4277 = vpop.f32.mrb[0].mxu0
      %v4278 = vpop.f32.mrb[0].mxu0
      %v4279 = vadd.f32 %v4118, %v4278
      %v4280 = vpop.f32.mrb[0].mxu0
      %4281 = vmatprep.mubr.bf16.mxu0 %v3060
      %4282 = vmatmul.mubr.bf16.gmra.mrb[0].mxu0 %v2980
      %v4283 = vpop.f32.mrb[0].mxu0
      %v4284 = vadd.f32 %v4123, %v4283
      %v4285 = vpop.f32.mrb[0].mxu0
      %v4286 = vpop.f32.mrb[0].mxu0
      %v4287 = vadd.f32 %v4126, %v4286
      %v4288 = vpop.f32.mrb[0].mxu0
      %4289 = vmatprep.mubr.bf16.mxu0 %v3061
      %4290 = vmatmul.mubr.bf16.gmra.mrb[0].mxu0 %v2981
      %v4291 = vpop.f32.mrb[0].mxu0
      %v4292 = vadd.f32 %v4131, %v4291
      %v4293 = vpop.f32.mrb[0].mxu0
      %v4294 = vpop.f32.mrb[0].mxu0
      %v4295 = vadd.f32 %v4134, %v4294
      %v4296 = vpop.f32.mrb[0].mxu0
      %4297 = vmatprep.mubr.bf16.mxu0 %v3062
      %4298 = vmatmul.mubr.bf16.gmra.mrb[0].mxu0 %v2982
      %v4299 = vpop.f32.mrb[0].mxu0
      %v4300 = vadd.f32 %v4139, %v4299
      %v4301 = vpop.f32.mrb[0].mxu0
      %v4302 = vpop.f32.mrb[0].mxu0
      %v4303 = vadd.f32 %v4142, %v4302
      %v4304 = vpop.f32.mrb[0].mxu0
      %4305 = vmatprep.mubr.bf16.mxu0 %v3063
      %4306 = vmatmul.mubr.bf16.gmra.mrb[0].mxu0 %v2983
      %v4307 = vpop.f32.mrb[0].mxu0
      %v4308 = vadd.f32 %v4147, %v4307
      %v4309 = vpop.f32.mrb[0].mxu0
      %v4310 = vpop.f32.mrb[0].mxu0
      %v4311 = vadd.f32 %v4150, %v4310
      %v4312 = vpop.f32.mrb[0].mxu0
      %4313 = vmatprep.mubr.bf16.mxu0 %v3064
      %4314 = vmatmul.mubr.bf16.gmra.mrb[0].mxu0 %v2984
      %v4315 = vpop.f32.mrb[0].mxu0
      %v4316 = vadd.f32 %v4155, %v4315
      %v4317 = vpop.f32.mrb[0].mxu0
      %v4318 = vpop.f32.mrb[0].mxu0
      %v4319 = vadd.f32 %v4158, %v4318
      %v4320 = vpop.f32.mrb[0].mxu0
      %4321 = vdwg.mxu0
      %4322 = vmatprep.subr.bf16.mxu0 0
      %4323 = vmatpush1.bf16.msra.mxu0 %v3888
      %4324 = vmatprep.subr.bf16.mxu0 0
      %4325 = vmatpush1.bf16.msra.mxu0 %v3889
      %4326 = vmatprep.subr.bf16.mxu0 0
      %4327 = vmatpush1.bf16.msra.mxu0 %v3890
      %4328 = vmatprep.subr.bf16.mxu0 0
      %4329 = vmatpush1.bf16.msra.mxu0 %v3891
      %4330 = vmatprep.subr.bf16.mxu0 0
      %4331 = vmatpush1.bf16.msra.mxu0 %v3892
      %4332 = vmatprep.subr.bf16.mxu0 0
      %4333 = vmatpush1.bf16.msra.mxu0 %v3893
      %4334 = vmatprep.subr.bf16.mxu0 0
      %4335 = vmatpush1.bf16.msra.mxu0 %v3894
      %4336 = vmatprep.subr.bf16.mxu0 0
      %4337 = vmatpush1.bf16.msra.mxu0 %v3895
      %4338 = vmatprep.subr.bf16.mxu0 0
      %4339 = vmatpush1.bf16.msra.mxu0 %v3896
      %4340 = vmatprep.subr.bf16.mxu0 0
      %4341 = vmatpush1.bf16.msra.mxu0 %v3897
      %4342 = vmatprep.subr.bf16.mxu0 0
      %4343 = vmatpush1.bf16.msra.mxu0 %v3898
      %4344 = vmatprep.subr.bf16.mxu0 0
      %4345 = vmatpush1.bf16.msra.mxu0 %v3899
      %4346 = vmatprep.subr.bf16.mxu0 0
      %4347 = vmatpush1.bf16.msra.mxu0 %v3900
      %4348 = vmatprep.subr.bf16.mxu0 0
      %4349 = vmatpush1.bf16.msra.mxu0 %v3901
      %4350 = vmatprep.subr.bf16.mxu0 0
      %4351 = vmatpush1.bf16.msra.mxu0 %v3902
      %4352 = vmatprep.subr.bf16.mxu0 0
      %4353 = vmatpush1.bf16.msra.mxu0 %v3903
      %4354 = vmatprep.mubr.bf16.mxu0 %v3177
      %4355 = vmatmul.mubr.bf16.gmra.mrb[0].mxu0 %v3113
      %v4356 = vpop.f32.mrb[0].mxu0
      %v4357 = vadd.f32 %v4196, %v4356
      %v4358 = vpop.f32.mrb[0].mxu0
      %v4359 = vpop.f32.mrb[0].mxu0
      %v4360 = vadd.f32 %v4199, %v4359
      %v4361 = vpop.f32.mrb[0].mxu0
      %4362 = vmatprep.mubr.bf16.mxu0 %v3178
      %4363 = vmatmul.mubr.bf16.gmra.mrb[0].mxu0 %v3114
      %v4364 = vpop.f32.mrb[0].mxu0
      %v4365 = vadd.f32 %v4204, %v4364
      %v4366 = vpop.f32.mrb[0].mxu0
      %v4367 = vpop.f32.mrb[0].mxu0
      %v4368 = vadd.f32 %v4207, %v4367
      %v4369 = vpop.f32.mrb[0].mxu0
      %4370 = vmatprep.mubr.bf16.mxu0 %v3179
      %4371 = vmatmul.mubr.bf16.gmra.mrb[0].mxu0 %v3115
      %v4372 = vpop.f32.mrb[0].mxu0
      %v4373 = vadd.f32 %v4212, %v4372
      %v4374 = vpop.f32.mrb[0].mxu0
      %v4375 = vpop.f32.mrb[0].mxu0
      %v4376 = vadd.f32 %v4215, %v4375
      %v4377 = vpop.f32.mrb[0].mxu0
      %4378 = vmatprep.mubr.bf16.mxu0 %v3180
      %4379 = vmatmul.mubr.bf16.gmra.mrb[0].mxu0 %v3116
      %v4380 = vpop.f32.mrb[0].mxu0
      %v4381 = vadd.f32 %v4220, %v4380
      %v4382 = vpop.f32.mrb[0].mxu0
      %v4383 = vpop.f32.mrb[0].mxu0
      %v4384 = vadd.f32 %v4223, %v4383
      %v4385 = vpop.f32.mrb[0].mxu0
      %4386 = vmatprep.mubr.bf16.mxu0 %v3181
      %4387 = vmatmul.mubr.bf16.gmra.mrb[0].mxu0 %v3117
      %v4388 = vpop.f32.mrb[0].mxu0
      %v4389 = vadd.f32 %v4228, %v4388
      %v4390 = vpop.f32.mrb[0].mxu0
      %v4391 = vpop.f32.mrb[0].mxu0
      %v4392 = vadd.f32 %v4231, %v4391
      %v4393 = vpop.f32.mrb[0].mxu0
      %4394 = vmatprep.mubr.bf16.mxu0 %v3182
      %4395 = vmatmul.mubr.bf16.gmra.mrb[0].mxu0 %v3118
      %v4396 = vpop.f32.mrb[0].mxu0
      %v4397 = vadd.f32 %v4236, %v4396
      %v4398 = vpop.f32.mrb[0].mxu0
      %v4399 = vpop.f32.mrb[0].mxu0
      %v4400 = vadd.f32 %v4239, %v4399
      %v4401 = vpop.f32.mrb[0].mxu0
      %4402 = vmatprep.mubr.bf16.mxu0 %v3183
      %4403 = vmatmul.mubr.bf16.gmra.mrb[0].mxu0 %v3119
      %v4404 = vpop.f32.mrb[0].mxu0
      %v4405 = vadd.f32 %v4244, %v4404
      %v4406 = vpop.f32.mrb[0].mxu0
      %v4407 = vpop.f32.mrb[0].mxu0
      %v4408 = vadd.f32 %v4247, %v4407
      %v4409 = vpop.f32.mrb[0].mxu0
      %4410 = vmatprep.mubr.bf16.mxu0 %v3184
      %4411 = vmatmul.mubr.bf16.gmra.mrb[0].mxu0 %v3120
      %v4412 = vpop.f32.mrb[0].mxu0
      %v4413 = vadd.f32 %v4252, %v4412
      %v4414 = vpop.f32.mrb[0].mxu0
      %v4415 = vpop.f32.mrb[0].mxu0
      %v4416 = vadd.f32 %v4255, %v4415
      %v4417 = vpop.f32.mrb[0].mxu0
      %4418 = vmatprep.mubr.bf16.mxu0 %v3185
      %4419 = vmatmul.mubr.bf16.gmra.mrb[0].mxu0 %v3121
      %v4420 = vpop.f32.mrb[0].mxu0
      %v4421 = vadd.f32 %v4260, %v4420
      %v4422 = vpop.f32.mrb[0].mxu0
      %v4423 = vpop.f32.mrb[0].mxu0
      %v4424 = vadd.f32 %v4263, %v4423
      %v4425 = vpop.f32.mrb[0].mxu0
      %4426 = vmatprep.mubr.bf16.mxu0 %v3186
      %4427 = vmatmul.mubr.bf16.gmra.mrb[0].mxu0 %v3122
      %v4428 = vpop.f32.mrb[0].mxu0
      %v4429 = vadd.f32 %v4268, %v4428
      %v4430 = vpop.f32.mrb[0].mxu0
      %v4431 = vpop.f32.mrb[0].mxu0
      %v4432 = vadd.f32 %v4271, %v4431
      %v4433 = vpop.f32.mrb[0].mxu0
      %4434 = vmatprep.mubr.bf16.mxu0 %v3187
      %4435 = vmatmul.mubr.bf16.gmra.mrb[0].mxu0 %v3123
      %v4436 = vpop.f32.mrb[0].mxu0
      %v4437 = vadd.f32 %v4276, %v4436
      %v4438 = vpop.f32.mrb[0].mxu0
      %v4439 = vpop.f32.mrb[0].mxu0
      %v4440 = vadd.f32 %v4279, %v4439
      %v4441 = vpop.f32.mrb[0].mxu0
      %4442 = vmatprep.mubr.bf16.mxu0 %v3188
      %4443 = vmatmul.mubr.bf16.gmra.mrb[0].mxu0 %v3124
      %v4444 = vpop.f32.mrb[0].mxu0
      %v4445 = vadd.f32 %v4284, %v4444
      %v4446 = vpop.f32.mrb[0].mxu0
      %v4447 = vpop.f32.mrb[0].mxu0
      %v4448 = vadd.f32 %v4287, %v4447
      %v4449 = vpop.f32.mrb[0].mxu0
      %4450 = vmatprep.mubr.bf16.mxu0 %v3189
      %4451 = vmatmul.mubr.bf16.gmra.mrb[0].mxu0 %v3125
      %v4452 = vpop.f32.mrb[0].mxu0
      %v4453 = vadd.f32 %v4292, %v4452
      %v4454 = vpop.f32.mrb[0].mxu0
      %v4455 = vpop.f32.mrb[0].mxu0
      %v4456 = vadd.f32 %v4295, %v4455
      %v4457 = vpop.f32.mrb[0].mxu0
      %4458 = vmatprep.mubr.bf16.mxu0 %v3190
      %4459 = vmatmul.mubr.bf16.gmra.mrb[0].mxu0 %v3126
      %v4460 = vpop.f32.mrb[0].mxu0
      %v4461 = vadd.f32 %v4300, %v4460
      %v4462 = vpop.f32.mrb[0].mxu0
      %v4463 = vpop.f32.mrb[0].mxu0
      %v4464 = vadd.f32 %v4303, %v4463
      %v4465 = vpop.f32.mrb[0].mxu0
      %4466 = vmatprep.mubr.bf16.mxu0 %v3191
      %4467 = vmatmul.mubr.bf16.gmra.mrb[0].mxu0 %v3127
      %v4468 = vpop.f32.mrb[0].mxu0
      %v4469 = vadd.f32 %v4308, %v4468
      %v4470 = vpop.f32.mrb[0].mxu0
      %v4471 = vpop.f32.mrb[0].mxu0
      %v4472 = vadd.f32 %v4311, %v4471
      %v4473 = vpop.f32.mrb[0].mxu0
      %4474 = vmatprep.mubr.bf16.mxu0 %v3192
      %4475 = vmatmul.mubr.bf16.gmra.mrb[0].mxu0 %v3128
      %v4476 = vpop.f32.mrb[0].mxu0
      %v4477 = vadd.f32 %v4316, %v4476
      %v4478 = vpop.f32.mrb[0].mxu0
      %v4479 = vpop.f32.mrb[0].mxu0
      %v4480 = vadd.f32 %v4319, %v4479
      %v4481 = vpop.f32.mrb[0].mxu0
      %4482 = vdwg.mxu0
      %4483 = vmatprep.subr.bf16.mxu0 0
      %4484 = vmatpush1.bf16.msra.mxu0 %v3904
      %4485 = vmatprep.subr.bf16.mxu0 0
      %4486 = vmatpush1.bf16.msra.mxu0 %v3905
      %4487 = vmatprep.subr.bf16.mxu0 0
      %4488 = vmatpush1.bf16.msra.mxu0 %v3906
      %4489 = vmatprep.subr.bf16.mxu0 0
      %4490 = vmatpush1.bf16.msra.mxu0 %v3907
      %4491 = vmatprep.subr.bf16.mxu0 0
      %4492 = vmatpush1.bf16.msra.mxu0 %v3908
      %4493 = vmatprep.subr.bf16.mxu0 0
      %4494 = vmatpush1.bf16.msra.mxu0 %v3909
      %4495 = vmatprep.subr.bf16.mxu0 0
      %4496 = vmatpush1.bf16.msra.mxu0 %v3910
      %4497 = vmatprep.subr.bf16.mxu0 0
      %4498 = vmatpush1.bf16.msra.mxu0 %v3911
      %4499 = vmatprep.subr.bf16.mxu0 0
      %4500 = vmatpush1.bf16.msra.mxu0 %v3912
      %4501 = vmatprep.subr.bf16.mxu0 0
      %4502 = vmatpush1.bf16.msra.mxu0 %v3913
      %4503 = vmatprep.subr.bf16.mxu0 0
      %4504 = vmatpush1.bf16.msra.mxu0 %v3914
      %4505 = vmatprep.subr.bf16.mxu0 0
      %4506 = vmatpush1.bf16.msra.mxu0 %v3915
      %4507 = vmatprep.subr.bf16.mxu0 0
      %4508 = vmatpush1.bf16.msra.mxu0 %v3916
      %4509 = vmatprep.subr.bf16.mxu0 0
      %4510 = vmatpush1.bf16.msra.mxu0 %v3917
      %4511 = vmatprep.subr.bf16.mxu0 0
      %4512 = vmatpush1.bf16.msra.mxu0 %v3918
      %4513 = vmatprep.subr.bf16.mxu0 0
      %4514 = vmatpush1.bf16.msra.mxu0 %v3919
      %4515 = vmatprep.mubr.bf16.mxu0 %v3321
      %4516 = vmatmul.mubr.bf16.gmra.mrb[0].mxu0 %v3257
      %v4517 = vpop.f32.mrb[0].mxu0
      %v4518 = vadd.f32 %v4357, %v4517
      %v4519 = vpop.f32.mrb[0].mxu0
      %v4520 = vpop.f32.mrb[0].mxu0
      %v4521 = vadd.f32 %v4360, %v4520
      %v4522 = vpop.f32.mrb[0].mxu0
      %4523 = vmatprep.mubr.bf16.mxu0 %v3322
      %4524 = vmatmul.mubr.bf16.gmra.mrb[0].mxu0 %v3258
      %v4525 = vpop.f32.mrb[0].mxu0
      %v4526 = vadd.f32 %v4365, %v4525
      %v4527 = vpop.f32.mrb[0].mxu0
      %v4528 = vpop.f32.mrb[0].mxu0
      %v4529 = vadd.f32 %v4368, %v4528
      %v4530 = vpop.f32.mrb[0].mxu0
      %4531 = vmatprep.mubr.bf16.mxu0 %v3323
      %4532 = vmatmul.mubr.bf16.gmra.mrb[0].mxu0 %v3259
      %v4533 = vpop.f32.mrb[0].mxu0
      %v4534 = vadd.f32 %v4373, %v4533
      %v4535 = vpop.f32.mrb[0].mxu0
      %v4536 = vpop.f32.mrb[0].mxu0
      %v4537 = vadd.f32 %v4376, %v4536
      %v4538 = vpop.f32.mrb[0].mxu0
      %4539 = vmatprep.mubr.bf16.mxu0 %v3324
      %4540 = vmatmul.mubr.bf16.gmra.mrb[0].mxu0 %v3260
      %v4541 = vpop.f32.mrb[0].mxu0
      %v4542 = vadd.f32 %v4381, %v4541
      %v4543 = vpop.f32.mrb[0].mxu0
      %v4544 = vpop.f32.mrb[0].mxu0
      %v4545 = vadd.f32 %v4384, %v4544
      %v4546 = vpop.f32.mrb[0].mxu0
      %4547 = vmatprep.mubr.bf16.mxu0 %v3325
      %4548 = vmatmul.mubr.bf16.gmra.mrb[0].mxu0 %v3261
      %v4549 = vpop.f32.mrb[0].mxu0
      %v4550 = vadd.f32 %v4389, %v4549
      %v4551 = vpop.f32.mrb[0].mxu0
      %v4552 = vpop.f32.mrb[0].mxu0
      %v4553 = vadd.f32 %v4392, %v4552
      %v4554 = vpop.f32.mrb[0].mxu0
      %4555 = vmatprep.mubr.bf16.mxu0 %v3326
      %4556 = vmatmul.mubr.bf16.gmra.mrb[0].mxu0 %v3262
      %v4557 = vpop.f32.mrb[0].mxu0
      %v4558 = vadd.f32 %v4397, %v4557
      %v4559 = vpop.f32.mrb[0].mxu0
      %v4560 = vpop.f32.mrb[0].mxu0
      %v4561 = vadd.f32 %v4400, %v4560
      %v4562 = vpop.f32.mrb[0].mxu0
      %4563 = vmatprep.mubr.bf16.mxu0 %v3327
      %4564 = vmatmul.mubr.bf16.gmra.mrb[0].mxu0 %v3263
      %v4565 = vpop.f32.mrb[0].mxu0
      %v4566 = vadd.f32 %v4405, %v4565
      %v4567 = vpop.f32.mrb[0].mxu0
      %v4568 = vpop.f32.mrb[0].mxu0
      %v4569 = vadd.f32 %v4408, %v4568
      %v4570 = vpop.f32.mrb[0].mxu0
      %4571 = vmatprep.mubr.bf16.mxu0 %v3328
      %4572 = vmatmul.mubr.bf16.gmra.mrb[0].mxu0 %v3264
      %v4573 = vpop.f32.mrb[0].mxu0
      %v4574 = vadd.f32 %v4413, %v4573
      %v4575 = vpop.f32.mrb[0].mxu0
      %v4576 = vpop.f32.mrb[0].mxu0
      %v4577 = vadd.f32 %v4416, %v4576
      %v4578 = vpop.f32.mrb[0].mxu0
      %4579 = vmatprep.mubr.bf16.mxu0 %v3329
      %4580 = vmatmul.mubr.bf16.gmra.mrb[0].mxu0 %v3265
      %v4581 = vpop.f32.mrb[0].mxu0
      %v4582 = vadd.f32 %v4421, %v4581
      %v4583 = vpop.f32.mrb[0].mxu0
      %v4584 = vpop.f32.mrb[0].mxu0
      %v4585 = vadd.f32 %v4424, %v4584
      %v4586 = vpop.f32.mrb[0].mxu0
      %4587 = vmatprep.mubr.bf16.mxu0 %v3330
      %4588 = vmatmul.mubr.bf16.gmra.mrb[0].mxu0 %v3266
      %v4589 = vpop.f32.mrb[0].mxu0
      %v4590 = vadd.f32 %v4429, %v4589
      %v4591 = vpop.f32.mrb[0].mxu0
      %v4592 = vpop.f32.mrb[0].mxu0
      %v4593 = vadd.f32 %v4432, %v4592
      %v4594 = vpop.f32.mrb[0].mxu0
      %4595 = vmatprep.mubr.bf16.mxu0 %v3331
      %4596 = vmatmul.mubr.bf16.gmra.mrb[0].mxu0 %v3267
      %v4597 = vpop.f32.mrb[0].mxu0
      %v4598 = vadd.f32 %v4437, %v4597
      %v4599 = vpop.f32.mrb[0].mxu0
      %v4600 = vpop.f32.mrb[0].mxu0
      %v4601 = vadd.f32 %v4440, %v4600
      %v4602 = vpop.f32.mrb[0].mxu0
      %4603 = vmatprep.mubr.bf16.mxu0 %v3332
      %4604 = vmatmul.mubr.bf16.gmra.mrb[0].mxu0 %v3268
      %v4605 = vpop.f32.mrb[0].mxu0
      %v4606 = vadd.f32 %v4445, %v4605
      %v4607 = vpop.f32.mrb[0].mxu0
      %v4608 = vpop.f32.mrb[0].mxu0
      %v4609 = vadd.f32 %v4448, %v4608
      %v4610 = vpop.f32.mrb[0].mxu0
      %4611 = vmatprep.mubr.bf16.mxu0 %v3333
      %4612 = vmatmul.mubr.bf16.gmra.mrb[0].mxu0 %v3269
      %v4613 = vpop.f32.mrb[0].mxu0
      %v4614 = vadd.f32 %v4453, %v4613
      %v4615 = vpop.f32.mrb[0].mxu0
      %v4616 = vpop.f32.mrb[0].mxu0
      %v4617 = vadd.f32 %v4456, %v4616
      %v4618 = vpop.f32.mrb[0].mxu0
      %4619 = vmatprep.mubr.bf16.mxu0 %v3334
      %4620 = vmatmul.mubr.bf16.gmra.mrb[0].mxu0 %v3270
      %v4621 = vpop.f32.mrb[0].mxu0
      %v4622 = vadd.f32 %v4461, %v4621
      %v4623 = vpop.f32.mrb[0].mxu0
      %v4624 = vpop.f32.mrb[0].mxu0
      %v4625 = vadd.f32 %v4464, %v4624
      %v4626 = vpop.f32.mrb[0].mxu0
      %4627 = vmatprep.mubr.bf16.mxu0 %v3335
      %4628 = vmatmul.mubr.bf16.gmra.mrb[0].mxu0 %v3271
      %v4629 = vpop.f32.mrb[0].mxu0
      %v4630 = vadd.f32 %v4469, %v4629
      %v4631 = vpop.f32.mrb[0].mxu0
      %v4632 = vpop.f32.mrb[0].mxu0
      %v4633 = vadd.f32 %v4472, %v4632
      %v4634 = vpop.f32.mrb[0].mxu0
      %4635 = vmatprep.mubr.bf16.mxu0 %v3336
      %4636 = vmatmul.mubr.bf16.gmra.mrb[0].mxu0 %v3272
      %v4637 = vpop.f32.mrb[0].mxu0
      %v4638 = vadd.f32 %v4477, %v4637
      %v4639 = vpop.f32.mrb[0].mxu0
      %v4640 = vpop.f32.mrb[0].mxu0
      %v4641 = vadd.f32 %v4480, %v4640
      %v4642 = vpop.f32.mrb[0].mxu0
      %4643 = vdwg.mxu0
      %4644 = vmatprep.subr.bf16.mxu0 0
      %4645 = vmatpush1.bf16.msra.mxu0 %v3920
      %4646 = vmatprep.subr.bf16.mxu0 0
      %4647 = vmatpush1.bf16.msra.mxu0 %v3921
      %4648 = vmatprep.subr.bf16.mxu0 0
      %4649 = vmatpush1.bf16.msra.mxu0 %v3922
      %4650 = vmatprep.subr.bf16.mxu0 0
      %4651 = vmatpush1.bf16.msra.mxu0 %v3923
      %4652 = vmatprep.subr.bf16.mxu0 0
      %4653 = vmatpush1.bf16.msra.mxu0 %v3924
      %4654 = vmatprep.subr.bf16.mxu0 0
      %4655 = vmatpush1.bf16.msra.mxu0 %v3925
      %4656 = vmatprep.subr.bf16.mxu0 0
      %4657 = vmatpush1.bf16.msra.mxu0 %v3926
      %4658 = vmatprep.subr.bf16.mxu0 0
      %4659 = vmatpush1.bf16.msra.mxu0 %v3927
      %4660 = vmatprep.subr.bf16.mxu0 0
      %4661 = vmatpush1.bf16.msra.mxu0 0
      %4662 = vmatprep.subr.bf16.mxu0 0
      %4663 = vmatpush1.bf16.msra.mxu0 0
      %4664 = vmatprep.subr.bf16.mxu0 0
      %4665 = vmatpush1.bf16.msra.mxu0 0
      %4666 = vmatprep.subr.bf16.mxu0 0
      %4667 = vmatpush1.bf16.msra.mxu0 0
      %4668 = vmatprep.subr.bf16.mxu0 0
      %4669 = vmatpush1.bf16.msra.mxu0 0
      %4670 = vmatprep.subr.bf16.mxu0 0
      %4671 = vmatpush1.bf16.msra.mxu0 0
      %4672 = vmatprep.subr.bf16.mxu0 0
      %4673 = vmatpush1.bf16.msra.mxu0 0
      %4674 = vmatprep.subr.bf16.mxu0 0
      %4675 = vmatpush1.bf16.msra.mxu0 0
      %4676 = vmatprep.mubr.bf16.mxu0 0
      %4677 = vmatmul.mubr.bf16.gmra.mrb[0].mxu0 %v3385
      %v4678 = vpop.f32.mrb[0].mxu0
      %v4679 = vadd.f32 %v4518, %v4678
      %v4680 = vpop.f32.mrb[0].mxu0
      %v4681 = vpop.f32.mrb[0].mxu0
      %v4682 = vadd.f32 %v4521, %v4681
      %v4683 = vpop.f32.mrb[0].mxu0
      %4684 = vmatprep.mubr.bf16.mxu0 0
      %4685 = vmatmul.mubr.bf16.gmra.mrb[0].mxu0 %v3386
      %v4686 = vpop.f32.mrb[0].mxu0
      %v4687 = vadd.f32 %v4526, %v4686
      %v4688 = vpop.f32.mrb[0].mxu0
      %v4689 = vpop.f32.mrb[0].mxu0
      %v4690 = vadd.f32 %v4529, %v4689
      %v4691 = vpop.f32.mrb[0].mxu0
      %4692 = vmatprep.mubr.bf16.mxu0 0
      %4693 = vmatmul.mubr.bf16.gmra.mrb[0].mxu0 %v3387
      %v4694 = vpop.f32.mrb[0].mxu0
      %v4695 = vadd.f32 %v4534, %v4694
      %v4696 = vpop.f32.mrb[0].mxu0
      %v4697 = vpop.f32.mrb[0].mxu0
      %v4698 = vadd.f32 %v4537, %v4697
      %v4699 = vpop.f32.mrb[0].mxu0
      %4700 = vmatprep.mubr.bf16.mxu0 0
      %4701 = vmatmul.mubr.bf16.gmra.mrb[0].mxu0 %v3388
      %v4702 = vpop.f32.mrb[0].mxu0
      %v4703 = vadd.f32 %v4542, %v4702
      %v4704 = vpop.f32.mrb[0].mxu0
      %v4705 = vpop.f32.mrb[0].mxu0
      %v4706 = vadd.f32 %v4545, %v4705
      %v4707 = vpop.f32.mrb[0].mxu0
      %4708 = vmatprep.mubr.bf16.mxu0 0
      %4709 = vmatmul.mubr.bf16.gmra.mrb[0].mxu0 %v3389
      %v4710 = vpop.f32.mrb[0].mxu0
      %v4711 = vadd.f32 %v4550, %v4710
      %v4712 = vpop.f32.mrb[0].mxu0
      %v4713 = vpop.f32.mrb[0].mxu0
      %v4714 = vadd.f32 %v4553, %v4713
      %v4715 = vpop.f32.mrb[0].mxu0
      %4716 = vmatprep.mubr.bf16.mxu0 0
      %4717 = vmatmul.mubr.bf16.gmra.mrb[0].mxu0 %v3390
      %v4718 = vpop.f32.mrb[0].mxu0
      %v4719 = vadd.f32 %v4558, %v4718
      %v4720 = vpop.f32.mrb[0].mxu0
      %v4721 = vpop.f32.mrb[0].mxu0
      %v4722 = vadd.f32 %v4561, %v4721
      %v4723 = vpop.f32.mrb[0].mxu0
      %4724 = vmatprep.mubr.bf16.mxu0 0
      %4725 = vmatmul.mubr.bf16.gmra.mrb[0].mxu0 %v3391
      %v4726 = vpop.f32.mrb[0].mxu0
      %v4727 = vadd.f32 %v4566, %v4726
      %v4728 = vpop.f32.mrb[0].mxu0
      %v4729 = vpop.f32.mrb[0].mxu0
      %v4730 = vadd.f32 %v4569, %v4729
      %v4731 = vpop.f32.mrb[0].mxu0
      %4732 = vmatprep.mubr.bf16.mxu0 0
      %4733 = vmatmul.mubr.bf16.gmra.mrb[0].mxu0 %v3392
      %v4734 = vpop.f32.mrb[0].mxu0
      %v4735 = vadd.f32 %v4574, %v4734
      %v4736 = vpop.f32.mrb[0].mxu0
      %v4737 = vpop.f32.mrb[0].mxu0
      %v4738 = vadd.f32 %v4577, %v4737
      %v4739 = vpop.f32.mrb[0].mxu0
      %4740 = vmatprep.mubr.bf16.mxu0 0
      %4741 = vmatmul.mubr.bf16.gmra.mrb[0].mxu0 %v3393
      %v4742 = vpop.f32.mrb[0].mxu0
      %v4743 = vadd.f32 %v4582, %v4742
      %v4744 = vpop.f32.mrb[0].mxu0
      %v4745 = vpop.f32.mrb[0].mxu0
      %v4746 = vadd.f32 %v4585, %v4745
      %v4747 = vpop.f32.mrb[0].mxu0
      %4748 = vmatprep.mubr.bf16.mxu0 0
      %4749 = vmatmul.mubr.bf16.gmra.mrb[0].mxu0 %v3394
      %v4750 = vpop.f32.mrb[0].mxu0
      %v4751 = vadd.f32 %v4590, %v4750
      %v4752 = vpop.f32.mrb[0].mxu0
      %v4753 = vpop.f32.mrb[0].mxu0
      %v4754 = vadd.f32 %v4593, %v4753
      %v4755 = vpop.f32.mrb[0].mxu0
      %4756 = vmatprep.mubr.bf16.mxu0 0
      %4757 = vmatmul.mubr.bf16.gmra.mrb[0].mxu0 %v3395
      %v4758 = vpop.f32.mrb[0].mxu0
      %v4759 = vadd.f32 %v4598, %v4758
      %v4760 = vpop.f32.mrb[0].mxu0
      %v4761 = vpop.f32.mrb[0].mxu0
      %v4762 = vadd.f32 %v4601, %v4761
      %v4763 = vpop.f32.mrb[0].mxu0
      %4764 = vmatprep.mubr.bf16.mxu0 0
      %4765 = vmatmul.mubr.bf16.gmra.mrb[0].mxu0 %v3396
      %v4766 = vpop.f32.mrb[0].mxu0
      %v4767 = vadd.f32 %v4606, %v4766
      %v4768 = vpop.f32.mrb[0].mxu0
      %v4769 = vpop.f32.mrb[0].mxu0
      %v4770 = vadd.f32 %v4609, %v4769
      %v4771 = vpop.f32.mrb[0].mxu0
      %4772 = vmatprep.mubr.bf16.mxu0 0
      %4773 = vmatmul.mubr.bf16.gmra.mrb[0].mxu0 %v3397
      %v4774 = vpop.f32.mrb[0].mxu0
      %v4775 = vadd.f32 %v4614, %v4774
      %v4776 = vpop.f32.mrb[0].mxu0
      %v4777 = vpop.f32.mrb[0].mxu0
      %v4778 = vadd.f32 %v4617, %v4777
      %v4779 = vpop.f32.mrb[0].mxu0
      %4780 = vmatprep.mubr.bf16.mxu0 0
      %4781 = vmatmul.mubr.bf16.gmra.mrb[0].mxu0 %v3398
      %v4782 = vpop.f32.mrb[0].mxu0
      %v4783 = vadd.f32 %v4622, %v4782
      %v4784 = vpop.f32.mrb[0].mxu0
      %v4785 = vpop.f32.mrb[0].mxu0
      %v4786 = vadd.f32 %v4625, %v4785
      %v4787 = vpop.f32.mrb[0].mxu0
      %4788 = vmatprep.mubr.bf16.mxu0 0
      %4789 = vmatmul.mubr.bf16.gmra.mrb[0].mxu0 %v3399
      %v4790 = vpop.f32.mrb[0].mxu0
      %v4791 = vadd.f32 %v4630, %v4790
      %v4792 = vpop.f32.mrb[0].mxu0
      %v4793 = vpop.f32.mrb[0].mxu0
      %v4794 = vadd.f32 %v4633, %v4793
      %v4795 = vpop.f32.mrb[0].mxu0
      %4796 = vmatprep.mubr.bf16.mxu0 0
      %4797 = vmatmul.mubr.bf16.gmra.mrb[0].mxu0 %v3400
      %v4798 = vpop.f32.mrb[0].mxu0
      %v4799 = vadd.f32 %v4638, %v4798
      %v4800 = vpop.f32.mrb[0].mxu0
      %v4801 = vpop.f32.mrb[0].mxu0
      %v4802 = vadd.f32 %v4641, %v4801
      %v4803 = vpop.f32.mrb[0].mxu0
      %4804 = vdwg.mxu0
      %v4805 = vmax.f32 %v4679, 0.0
      %v4806 = vmax.f32 %v4682, 0.0
      %v4807 = vmax.f32 %v4687, 0.0
      %v4808 = vmax.f32 %v4690, 0.0
      %v4809 = vmax.f32 %v4695, 0.0
      %v4810 = vmax.f32 %v4698, 0.0
      %v4811 = vmax.f32 %v4703, 0.0
      %v4812 = vmax.f32 %v4706, 0.0
      %v4813 = vmax.f32 %v4711, 0.0
      %v4814 = vmax.f32 %v4714, 0.0
      %v4815 = vmax.f32 %v4719, 0.0
      %v4816 = vmax.f32 %v4722, 0.0
      %v4817 = vmax.f32 %v4727, 0.0
      %v4818 = vmax.f32 %v4730, 0.0
      %v4819 = vmax.f32 %v4735, 0.0
      %v4820 = vmax.f32 %v4738, 0.0
      %v4821 = vmax.f32 %v4743, 0.0
      %v4822 = vmax.f32 %v4746, 0.0
      %v4823 = vmax.f32 %v4751, 0.0
      %v4824 = vmax.f32 %v4754, 0.0
      %v4825 = vmax.f32 %v4759, 0.0
      %v4826 = vmax.f32 %v4762, 0.0
      %v4827 = vmax.f32 %v4767, 0.0
      %v4828 = vmax.f32 %v4770, 0.0
      %v4829 = vmax.f32 %v4775, 0.0
      %v4830 = vmax.f32 %v4778, 0.0
      %v4831 = vmax.f32 %v4783, 0.0
      %v4832 = vmax.f32 %v4786, 0.0
      %v4833 = vmax.f32 %v4791, 0.0
      %v4834 = vmax.f32 %v4794, 0.0
      %v4835 = vmax.f32 %v4799, 0.0
      %v4836 = vmax.f32 %v4802, 0.0
      %v4837 = vpack.c.bf16 %v4806, %v4805
      %v4838 = vpack.c.bf16 %v4808, %v4807
      %v4839 = vpack.c.bf16 %v4810, %v4809
      %v4840 = vpack.c.bf16 %v4812, %v4811
      %v4841 = vpack.c.bf16 %v4814, %v4813
      %v4842 = vpack.c.bf16 %v4816, %v4815
      %v4843 = vpack.c.bf16 %v4818, %v4817
      %v4844 = vpack.c.bf16 %v4820, %v4819
      %v4845 = vpack.c.bf16 %v4822, %v4821
      %v4846 = vpack.c.bf16 %v4824, %v4823
      %v4847 = vpack.c.bf16 %v4826, %v4825
      %v4848 = vpack.c.bf16 %v4828, %v4827
      %v4849 = vpack.c.bf16 %v4830, %v4829
      %v4850 = vpack.c.bf16 %v4832, %v4831
      %v4851 = vpack.c.bf16 %v4834, %v4833
      %v4852 = vpack.c.bf16 %v4836, %v4835
      %v4869 = vunpack.c.l.b16 %v4837
      %v4870 = vunpack.c.h.b16 %v4837
      %v4871 = vunpack.c.l.b16 %v4838
      %v4872 = vunpack.c.h.b16 %v4838
      %v4873 = vunpack.c.l.b16 %v4839
      %v4874 = vunpack.c.h.b16 %v4839
      %v4875 = vunpack.c.l.b16 %v4840
      %v4876 = vunpack.c.h.b16 %v4840
      %v4877 = vunpack.c.l.b16 %v4841
      %v4878 = vunpack.c.h.b16 %v4841
      %v4879 = vunpack.c.l.b16 %v4842
      %v4880 = vunpack.c.h.b16 %v4842
      %v4881 = vunpack.c.l.b16 %v4843
      %v4882 = vunpack.c.h.b16 %v4843
      %v4883 = vunpack.c.l.b16 %v4844
      %v4884 = vunpack.c.h.b16 %v4844
      %v4885 = vunpack.c.l.b16 %v4845
      %v4886 = vunpack.c.h.b16 %v4845
      %v4887 = vunpack.c.l.b16 %v4846
      %v4888 = vunpack.c.h.b16 %v4846
      %v4889 = vunpack.c.l.b16 %v4847
      %v4890 = vunpack.c.h.b16 %v4847
      %v4891 = vunpack.c.l.b16 %v4848
      %v4892 = vunpack.c.h.b16 %v4848
      %v4893 = vunpack.c.l.b16 %v4849
      %v4894 = vunpack.c.h.b16 %v4849
      %v4895 = vunpack.c.l.b16 %v4850
      %v4896 = vunpack.c.h.b16 %v4850
      %v4897 = vunpack.c.l.b16 %v4851
      %v4898 = vunpack.c.h.b16 %v4851
      %v4899 = vunpack.c.l.b16 %v4852
      %v4900 = vunpack.c.h.b16 %v4852
      %v4901 = vpack.c.b16 %v4869, %v4869
      %v4902 = vpack.c.b16 %v4870, %v4870
      %v4903 = vpack.c.b16 %v4871, %v4871
      %v4904 = vpack.c.b16 %v4872, %v4872
      %v4905 = vpack.c.b16 %v4873, %v4873
      %v4906 = vpack.c.b16 %v4874, %v4874
      %v4907 = vpack.c.b16 %v4875, %v4875
      %v4908 = vpack.c.b16 %v4876, %v4876
      %v4909 = vpack.c.b16 %v4877, %v4877
      %v4910 = vpack.c.b16 %v4878, %v4878
      %v4911 = vpack.c.b16 %v4879, %v4879
      %v4912 = vpack.c.b16 %v4880, %v4880
      %v4913 = vpack.c.b16 %v4881, %v4881
      %v4914 = vpack.c.b16 %v4882, %v4882
      %v4915 = vpack.c.b16 %v4883, %v4883
      %v4916 = vpack.c.b16 %v4884, %v4884
      %v4917 = vpack.c.b16 %v4885, %v4885
      %v4918 = vpack.c.b16 %v4886, %v4886
      %v4919 = vpack.c.b16 %v4887, %v4887
      %v4920 = vpack.c.b16 %v4888, %v4888
      %v4921 = vpack.c.b16 %v4889, %v4889
      %v4922 = vpack.c.b16 %v4890, %v4890
      %v4923 = vpack.c.b16 %v4891, %v4891
      %v4924 = vpack.c.b16 %v4892, %v4892
      %v4925 = vpack.c.b16 %v4893, %v4893
      %v4926 = vpack.c.b16 %v4894, %v4894
      %v4927 = vpack.c.b16 %v4895, %v4895
      %v4928 = vpack.c.b16 %v4896, %v4896
      %v4929 = vpack.c.b16 %v4897, %v4897
      %v4930 = vpack.c.b16 %v4898, %v4898
      %v4931 = vpack.c.b16 %v4899, %v4899
      %v4932 = vpack.c.b16 %v4900, %v4900
      %v4934 = vshrl.u32 %v4901, 16
      %v4936 = vrot.slane %v4934, 7
      %v4937 = vshll.u32 %v4901, 16
      %v4939 = vor.u32 %v4936, %v4937
      %v4940 = vrot.slane %v4936, 4
      %v4942 = vshrl.u32 %v4902, 16
      %v4944 = vrot.slane %v4942, 7
      %v4945 = vshll.u32 %v4902, 16
      %v4947 = vor.u32 %v4944, %v4945
      %v4948 = vsel %vm526, %v4940, %v4947
      %v4949 = vrot.slane %v4944, 4
      %v4951 = vshrl.u32 %v4903, 16
      %v4953 = vrot.slane %v4951, 7
      %v4954 = vshll.u32 %v4903, 16
      %v4956 = vor.u32 %v4953, %v4954
      %v4957 = vrot.slane %v4953, 4
      %v4959 = vshrl.u32 %v4904, 16
      %v4961 = vrot.slane %v4959, 7
      %v4962 = vshll.u32 %v4904, 16
      %v4964 = vor.u32 %v4961, %v4962
      %v4965 = vsel %vm526, %v4957, %v4964
      %v4966 = vrot.slane %v4961, 4
      %v4968 = vshrl.u32 %v4905, 16
      %v4970 = vrot.slane %v4968, 7
      %v4971 = vshll.u32 %v4905, 16
      %v4973 = vor.u32 %v4970, %v4971
      %v4974 = vrot.slane %v4970, 4
      %v4976 = vshrl.u32 %v4906, 16
      %v4978 = vrot.slane %v4976, 7
      %v4979 = vshll.u32 %v4906, 16
      %v4981 = vor.u32 %v4978, %v4979
      %v4982 = vsel %vm526, %v4974, %v4981
      %v4983 = vrot.slane %v4978, 4
      %v4985 = vshrl.u32 %v4907, 16
      %v4987 = vrot.slane %v4985, 7
      %v4988 = vshll.u32 %v4907, 16
      %v4990 = vor.u32 %v4987, %v4988
      %v4991 = vrot.slane %v4987, 4
      %v4993 = vshrl.u32 %v4908, 16
      %v4995 = vrot.slane %v4993, 7
      %v4996 = vshll.u32 %v4908, 16
      %v4998 = vor.u32 %v4995, %v4996
      %v4999 = vsel %vm526, %v4991, %v4998
      %v5000 = vrot.slane %v4995, 4
      %v5002 = vshrl.u32 %v4909, 16
      %v5004 = vrot.slane %v5002, 7
      %v5005 = vshll.u32 %v4909, 16
      %v5007 = vor.u32 %v5004, %v5005
      %v5008 = vrot.slane %v5004, 4
      %v5010 = vshrl.u32 %v4910, 16
      %v5012 = vrot.slane %v5010, 7
      %v5013 = vshll.u32 %v4910, 16
      %v5015 = vor.u32 %v5012, %v5013
      %v5016 = vsel %vm526, %v5008, %v5015
      %v5017 = vrot.slane %v5012, 4
      %v5019 = vshrl.u32 %v4911, 16
      %v5021 = vrot.slane %v5019, 7
      %v5022 = vshll.u32 %v4911, 16
      %v5024 = vor.u32 %v5021, %v5022
      %v5025 = vrot.slane %v5021, 4
      %v5027 = vshrl.u32 %v4912, 16
      %v5029 = vrot.slane %v5027, 7
      %v5030 = vshll.u32 %v4912, 16
      %v5032 = vor.u32 %v5029, %v5030
      %v5033 = vsel %vm526, %v5025, %v5032
      %v5034 = vrot.slane %v5029, 4
      %v5036 = vshrl.u32 %v4913, 16
      %v5038 = vrot.slane %v5036, 7
      %v5039 = vshll.u32 %v4913, 16
      %v5041 = vor.u32 %v5038, %v5039
      %v5042 = vrot.slane %v5038, 4
      %v5044 = vshrl.u32 %v4914, 16
      %v5046 = vrot.slane %v5044, 7
      %v5047 = vshll.u32 %v4914, 16
      %v5049 = vor.u32 %v5046, %v5047
      %v5050 = vsel %vm526, %v5042, %v5049
      %v5051 = vrot.slane %v5046, 4
      %v5053 = vshrl.u32 %v4915, 16
      %v5055 = vrot.slane %v5053, 7
      %v5056 = vshll.u32 %v4915, 16
      %v5058 = vor.u32 %v5055, %v5056
      %v5059 = vrot.slane %v5055, 4
      %v5061 = vshrl.u32 %v4916, 16
      %v5063 = vrot.slane %v5061, 7
      %v5064 = vshll.u32 %v4916, 16
      %v5066 = vor.u32 %v5063, %v5064
      %v5067 = vsel %vm526, %v5059, %v5066
      %v5068 = vrot.slane %v5063, 4
      %v5070 = vshrl.u32 %v4917, 16
      %v5072 = vrot.slane %v5070, 7
      %v5073 = vshll.u32 %v4917, 16
      %v5075 = vor.u32 %v5072, %v5073
      %v5076 = vrot.slane %v5072, 4
      %v5078 = vshrl.u32 %v4918, 16
      %v5080 = vrot.slane %v5078, 7
      %v5081 = vshll.u32 %v4918, 16
      %v5083 = vor.u32 %v5080, %v5081
      %v5084 = vsel %vm526, %v5076, %v5083
      %v5085 = vrot.slane %v5080, 4
      %v5087 = vshrl.u32 %v4919, 16
      %v5089 = vrot.slane %v5087, 7
      %v5090 = vshll.u32 %v4919, 16
      %v5092 = vor.u32 %v5089, %v5090
      %v5093 = vrot.slane %v5089, 4
      %v5095 = vshrl.u32 %v4920, 16
      %v5097 = vrot.slane %v5095, 7
      %v5098 = vshll.u32 %v4920, 16
      %v5100 = vor.u32 %v5097, %v5098
      %v5101 = vsel %vm526, %v5093, %v5100
      %v5102 = vrot.slane %v5097, 4
      %v5104 = vshrl.u32 %v4921, 16
      %v5106 = vrot.slane %v5104, 7
      %v5107 = vshll.u32 %v4921, 16
      %v5109 = vor.u32 %v5106, %v5107
      %v5110 = vrot.slane %v5106, 4
      %v5112 = vshrl.u32 %v4922, 16
      %v5114 = vrot.slane %v5112, 7
      %v5115 = vshll.u32 %v4922, 16
      %v5117 = vor.u32 %v5114, %v5115
      %v5118 = vsel %vm526, %v5110, %v5117
      %v5119 = vrot.slane %v5114, 4
      %v5121 = vshrl.u32 %v4923, 16
      %v5123 = vrot.slane %v5121, 7
      %v5124 = vshll.u32 %v4923, 16
      %v5126 = vor.u32 %v5123, %v5124
      %v5127 = vrot.slane %v5123, 4
      %v5129 = vshrl.u32 %v4924, 16
      %v5131 = vrot.slane %v5129, 7
      %v5132 = vshll.u32 %v4924, 16
      %v5134 = vor.u32 %v5131, %v5132
      %v5135 = vsel %vm526, %v5127, %v5134
      %v5136 = vrot.slane %v5131, 4
      %v5138 = vshrl.u32 %v4925, 16
      %v5140 = vrot.slane %v5138, 7
      %v5141 = vshll.u32 %v4925, 16
      %v5143 = vor.u32 %v5140, %v5141
      %v5144 = vrot.slane %v5140, 4
      %v5146 = vshrl.u32 %v4926, 16
      %v5148 = vrot.slane %v5146, 7
      %v5149 = vshll.u32 %v4926, 16
      %v5151 = vor.u32 %v5148, %v5149
      %v5152 = vsel %vm526, %v5144, %v5151
      %v5153 = vrot.slane %v5148, 4
      %v5155 = vshrl.u32 %v4927, 16
      %v5157 = vrot.slane %v5155, 7
      %v5158 = vshll.u32 %v4927, 16
      %v5160 = vor.u32 %v5157, %v5158
      %v5161 = vrot.slane %v5157, 4
      %v5163 = vshrl.u32 %v4928, 16
      %v5165 = vrot.slane %v5163, 7
      %v5166 = vshll.u32 %v4928, 16
      %v5168 = vor.u32 %v5165, %v5166
      %v5169 = vsel %vm526, %v5161, %v5168
      %v5170 = vrot.slane %v5165, 4
      %v5172 = vshrl.u32 %v4929, 16
      %v5174 = vrot.slane %v5172, 7
      %v5175 = vshll.u32 %v4929, 16
      %v5177 = vor.u32 %v5174, %v5175
      %v5178 = vrot.slane %v5174, 4
      %v5180 = vshrl.u32 %v4930, 16
      %v5182 = vrot.slane %v5180, 7
      %v5183 = vshll.u32 %v4930, 16
      %v5185 = vor.u32 %v5182, %v5183
      %v5186 = vsel %vm526, %v5178, %v5185
      %v5187 = vrot.slane %v5182, 4
      %v5189 = vshrl.u32 %v4931, 16
      %v5191 = vrot.slane %v5189, 7
      %v5192 = vshll.u32 %v4931, 16
      %v5194 = vor.u32 %v5191, %v5192
      %v5195 = vrot.slane %v5191, 4
      %v5197 = vshrl.u32 %v4932, 16
      %v5199 = vrot.slane %v5197, 7
      %v5200 = vshll.u32 %v4932, 16
      %v5202 = vor.u32 %v5199, %v5200
      %v5203 = vsel %vm526, %v5195, %v5202
      %v5204 = vrot.slane %v5199, 4
      %s5253 = scalar_lea.vmem [#allocation3], 12
      %v5254 = vld [vmem:[%s5253] sm:$0xf]
      %v5255 = vsel %vm849, %v4939, %v5254
      %5256 = vst [vmem:[%s5253] sm:$0xf] %v5255
      %5257 = vst [vmem:[%s5253 + $0x4] sm:$0xf] %v4948
      %v5258 = vld [vmem:[%s5253 + $0x8] sm:$0x1]
      %v5259 = vsel %vm235, %v4949, %v5258
      %5260 = vst [vmem:[%s5253 + $0x8] sm:$0x1] %v5259
      %v5261 = vld [vmem:[%s5253 + $0xc] sm:$0xf]
      %v5262 = vsel %vm849, %v4956, %v5261
      %5263 = vst [vmem:[%s5253 + $0xc] sm:$0xf] %v5262
      %5264 = vst [vmem:[%s5253 + $0x10] sm:$0xf] %v4965
      %v5265 = vld [vmem:[%s5253 + $0x14] sm:$0x1]
      %v5266 = vsel %vm235, %v4966, %v5265
      %5267 = vst [vmem:[%s5253 + $0x14] sm:$0x1] %v5266
      %v5268 = vld [vmem:[%s5253 + $0x18] sm:$0xf]
      %v5269 = vsel %vm849, %v4973, %v5268
      %5270 = vst [vmem:[%s5253 + $0x18] sm:$0xf] %v5269
      %5271 = vst [vmem:[%s5253 + $0x1c] sm:$0xf] %v4982
      %v5272 = vld [vmem:[%s5253 + $0x20] sm:$0x1]
      %v5273 = vsel %vm235, %v4983, %v5272
      %5274 = vst [vmem:[%s5253 + $0x20] sm:$0x1] %v5273
      %v5275 = vld [vmem:[%s5253 + $0x24] sm:$0xf]
      %v5276 = vsel %vm849, %v4990, %v5275
      %5277 = vst [vmem:[%s5253 + $0x24] sm:$0xf] %v5276
      %5278 = vst [vmem:[%s5253 + $0x28] sm:$0xf] %v4999
      %v5279 = vld [vmem:[%s5253 + $0x2c] sm:$0x1]
      %v5280 = vsel %vm235, %v5000, %v5279
      %5281 = vst [vmem:[%s5253 + $0x2c] sm:$0x1] %v5280
      %v5282 = vld [vmem:[%s5253 + $0x30] sm:$0xf]
      %v5283 = vsel %vm849, %v5007, %v5282
      %5284 = vst [vmem:[%s5253 + $0x30] sm:$0xf] %v5283
      %5285 = vst [vmem:[%s5253 + $0x34] sm:$0xf] %v5016
      %v5286 = vld [vmem:[%s5253 + $0x38] sm:$0x1]
      %v5287 = vsel %vm235, %v5017, %v5286
      %5288 = vst [vmem:[%s5253 + $0x38] sm:$0x1] %v5287
      %v5289 = vld [vmem:[%s5253 + $0x3c] sm:$0xf]
      %v5290 = vsel %vm849, %v5024, %v5289
      %5291 = vst [vmem:[%s5253 + $0x3c] sm:$0xf] %v5290
      %5292 = vst [vmem:[%s5253 + $0x40] sm:$0xf] %v5033
      %v5293 = vld [vmem:[%s5253 + $0x44] sm:$0x1]
      %v5294 = vsel %vm235, %v5034, %v5293
      %5295 = vst [vmem:[%s5253 + $0x44] sm:$0x1] %v5294
      %v5296 = vld [vmem:[%s5253 + $0x48] sm:$0xf]
      %v5297 = vsel %vm849, %v5041, %v5296
      %5298 = vst [vmem:[%s5253 + $0x48] sm:$0xf] %v5297
      %5299 = vst [vmem:[%s5253 + $0x4c] sm:$0xf] %v5050
      %v5300 = vld [vmem:[%s5253 + $0x50] sm:$0x1]
      %v5301 = vsel %vm235, %v5051, %v5300
      %5302 = vst [vmem:[%s5253 + $0x50] sm:$0x1] %v5301
      %v5303 = vld [vmem:[%s5253 + $0x54] sm:$0xf]
      %v5304 = vsel %vm849, %v5058, %v5303
      %5305 = vst [vmem:[%s5253 + $0x54] sm:$0xf] %v5304
      %5306 = vst [vmem:[%s5253 + $0x58] sm:$0xf] %v5067
      %v5307 = vld [vmem:[%s5253 + $0x5c] sm:$0x1]
      %v5308 = vsel %vm235, %v5068, %v5307
      %5309 = vst [vmem:[%s5253 + $0x5c] sm:$0x1] %v5308
      %v5310 = vld [vmem:[%s5253 + $0x60] sm:$0xf]
      %v5311 = vsel %vm849, %v5075, %v5310
      %5312 = vst [vmem:[%s5253 + $0x60] sm:$0xf] %v5311
      %5313 = vst [vmem:[%s5253 + $0x64] sm:$0xf] %v5084
      %v5314 = vld [vmem:[%s5253 + $0x68] sm:$0x1]
      %v5315 = vsel %vm235, %v5085, %v5314
      %5316 = vst [vmem:[%s5253 + $0x68] sm:$0x1] %v5315
      %v5317 = vld [vmem:[%s5253 + $0x6c] sm:$0xf]
      %v5318 = vsel %vm849, %v5092, %v5317
      %5319 = vst [vmem:[%s5253 + $0x6c] sm:$0xf] %v5318
      %5320 = vst [vmem:[%s5253 + $0x70] sm:$0xf] %v5101
      %v5321 = vld [vmem:[%s5253 + $0x74] sm:$0x1]
      %v5322 = vsel %vm235, %v5102, %v5321
      %5323 = vst [vmem:[%s5253 + $0x74] sm:$0x1] %v5322
      %v5324 = vld [vmem:[%s5253 + $0x78] sm:$0xf]
      %v5325 = vsel %vm849, %v5109, %v5324
      %5326 = vst [vmem:[%s5253 + $0x78] sm:$0xf] %v5325
      %5327 = vst [vmem:[%s5253 + $0x7c] sm:$0xf] %v5118
      %v5328 = vld [vmem:[%s5253 + $0x80] sm:$0x1]
      %v5329 = vsel %vm235, %v5119, %v5328
      %5330 = vst [vmem:[%s5253 + $0x80] sm:$0x1] %v5329
      %v5331 = vld [vmem:[%s5253 + $0x84] sm:$0xf]
      %v5332 = vsel %vm849, %v5126, %v5331
      %5333 = vst [vmem:[%s5253 + $0x84] sm:$0xf] %v5332
      %5334 = vst [vmem:[%s5253 + $0x88] sm:$0xf] %v5135
      %v5335 = vld [vmem:[%s5253 + $0x8c] sm:$0x1]
      %v5336 = vsel %vm235, %v5136, %v5335
      %5337 = vst [vmem:[%s5253 + $0x8c] sm:$0x1] %v5336
      %v5338 = vld [vmem:[%s5253 + $0x90] sm:$0xf]
      %v5339 = vsel %vm849, %v5143, %v5338
      %5340 = vst [vmem:[%s5253 + $0x90] sm:$0xf] %v5339
      %5341 = vst [vmem:[%s5253 + $0x94] sm:$0xf] %v5152
      %v5342 = vld [vmem:[%s5253 + $0x98] sm:$0x1]
      %v5343 = vsel %vm235, %v5153, %v5342
      %5344 = vst [vmem:[%s5253 + $0x98] sm:$0x1] %v5343
      %v5345 = vld [vmem:[%s5253 + $0x9c] sm:$0xf]
      %v5346 = vsel %vm849, %v5160, %v5345
      %5347 = vst [vmem:[%s5253 + $0x9c] sm:$0xf] %v5346
      %5348 = vst [vmem:[%s5253 + $0xa0] sm:$0xf] %v5169
      %v5349 = vld [vmem:[%s5253 + $0xa4] sm:$0x1]
      %v5350 = vsel %vm235, %v5170, %v5349
      %5351 = vst [vmem:[%s5253 + $0xa4] sm:$0x1] %v5350
      %v5352 = vld [vmem:[%s5253 + $0xa8] sm:$0xf]
      %v5353 = vsel %vm849, %v5177, %v5352
      %5354 = vst [vmem:[%s5253 + $0xa8] sm:$0xf] %v5353
      %5355 = vst [vmem:[%s5253 + $0xac] sm:$0xf] %v5186
      %v5356 = vld [vmem:[%s5253 + $0xb0] sm:$0x1]
      %v5357 = vsel %vm235, %v5187, %v5356
      %5358 = vst [vmem:[%s5253 + $0xb0] sm:$0x1] %v5357
      %v5359 = vld [vmem:[%s5253 + $0xb4] sm:$0xf]
      %v5360 = vsel %vm849, %v5194, %v5359
      %5361 = vst [vmem:[%s5253 + $0xb4] sm:$0xf] %v5360
      %5362 = vst [vmem:[%s5253 + $0xb8] sm:$0xf] %v5203
      %v5363 = vld [vmem:[%s5253 + $0xbc] sm:$0x1]
      %v5364 = vsel %vm235, %v5204, %v5363
      %5365 = vst [vmem:[%s5253 + $0xbc] sm:$0x1] %v5364
      %v5366 = vld [vmem:[#allocation3] sm:$0xf]
      %v5367 = vld [vmem:[#allocation3 + $0x4] sm:$0xf]
      %v5368 = vld [vmem:[#allocation3 + $0xc] sm:$0xf]
      %v5369 = vld [vmem:[#allocation3 + $0x10] sm:$0xf]
      %v5370 = vld [vmem:[#allocation3 + $0x18] sm:$0xf]
      %v5371 = vld [vmem:[#allocation3 + $0x1c] sm:$0xf]
      %v5372 = vld [vmem:[#allocation3 + $0x24] sm:$0xf]
      %v5373 = vld [vmem:[#allocation3 + $0x28] sm:$0xf]
      %v5374 = vld [vmem:[#allocation3 + $0x30] sm:$0xf]
      %v5375 = vld [vmem:[#allocation3 + $0x34] sm:$0xf]
      %v5376 = vld [vmem:[#allocation3 + $0x3c] sm:$0xf]
      %v5377 = vld [vmem:[#allocation3 + $0x40] sm:$0xf]
      %v5378 = vld [vmem:[#allocation3 + $0x48] sm:$0xf]
      %v5379 = vld [vmem:[#allocation3 + $0x4c] sm:$0xf]
      %v5380 = vld [vmem:[#allocation3 + $0x54] sm:$0xf]
      %v5381 = vld [vmem:[#allocation3 + $0x58] sm:$0xf]
      %v5382 = vld [vmem:[#allocation3 + $0x60] sm:$0xf]
      %v5383 = vld [vmem:[#allocation3 + $0x64] sm:$0xf]
      %v5384 = vld [vmem:[#allocation3 + $0x6c] sm:$0xf]
      %v5385 = vld [vmem:[#allocation3 + $0x70] sm:$0xf]
      %v5386 = vld [vmem:[#allocation3 + $0x78] sm:$0xf]
      %v5387 = vld [vmem:[#allocation3 + $0x7c] sm:$0xf]
      %v5388 = vld [vmem:[#allocation3 + $0x84] sm:$0xf]
      %v5389 = vld [vmem:[#allocation3 + $0x88] sm:$0xf]
      %v5390 = vld [vmem:[#allocation3 + $0x90] sm:$0xf]
      %v5391 = vld [vmem:[#allocation3 + $0x94] sm:$0xf]
      %v5392 = vld [vmem:[#allocation3 + $0x9c] sm:$0xf]
      %v5393 = vld [vmem:[#allocation3 + $0xa0] sm:$0xf]
      %v5394 = vld [vmem:[#allocation3 + $0xa8] sm:$0xf]
      %v5395 = vld [vmem:[#allocation3 + $0xac] sm:$0xf]
      %v5396 = vld [vmem:[#allocation3 + $0xb4] sm:$0xf]
      %v5397 = vld [vmem:[#allocation3 + $0xb8] sm:$0xf]
      %v5398 = vld [vmem:[#allocation3 + $0x8] sm:$0x1]
      %v5399 = vld [vmem:[#allocation3 + $0x14] sm:$0x1]
      %v5400 = vld [vmem:[#allocation3 + $0x20] sm:$0x1]
      %v5401 = vld [vmem:[#allocation3 + $0x2c] sm:$0x1]
      %v5402 = vld [vmem:[#allocation3 + $0x38] sm:$0x1]
      %v5403 = vld [vmem:[#allocation3 + $0x44] sm:$0x1]
      %v5404 = vld [vmem:[#allocation3 + $0x50] sm:$0x1]
      %v5405 = vld [vmem:[#allocation3 + $0x5c] sm:$0x1]
      %v5406 = vld [vmem:[#allocation3 + $0x68] sm:$0x1]
      %v5407 = vld [vmem:[#allocation3 + $0x74] sm:$0x1]
      %v5408 = vld [vmem:[#allocation3 + $0x80] sm:$0x1]
      %v5409 = vld [vmem:[#allocation3 + $0x8c] sm:$0x1]
      %v5410 = vld [vmem:[#allocation3 + $0x98] sm:$0x1]
      %v5411 = vld [vmem:[#allocation3 + $0xa4] sm:$0x1]
      %v5412 = vld [vmem:[#allocation3 + $0xb0] sm:$0x1]
      %v5413 = vld [vmem:[#allocation3 + $0xbc] sm:$0x1]
      %v5415 = vshrl.u32 %v5366, 16
      %v5417 = vrot.slane %v5415, 4
      %v5418 = vshll.u32 %v5366, 16
      %v5420 = vrot.slane %v5418, 5
      %v5421 = vor.u32 %v5417, %v5420
      %v5422 = vrot.slane %v5421, 4
      %v5424 = vshll.u32 %v5367, 16
      %v5426 = vrot.slane %v5424, 5
      %v5427 = vsel %vm1012, %v5422, %v5426
      %v5428 = vshrl.u32 %v5367, 16
      %v5430 = vrot.slane %v5428, 4
      %v5431 = vor.u32 %v5430, %v5426
      %v5432 = vrot.slane %v5431, 4
      %v5434 = vshll.u32 %v5398, 16
      %v5436 = vrot.slane %v5434, 5
      %v5437 = vsel %vm1012, %v5432, %v5436
      %v5439 = vshrl.u32 %v5368, 16
      %v5441 = vrot.slane %v5439, 4
      %v5442 = vshll.u32 %v5368, 16
      %v5444 = vrot.slane %v5442, 5
      %v5445 = vor.u32 %v5441, %v5444
      %v5446 = vrot.slane %v5445, 4
      %v5448 = vshll.u32 %v5369, 16
      %v5450 = vrot.slane %v5448, 5
      %v5451 = vsel %vm1012, %v5446, %v5450
      %v5452 = vshrl.u32 %v5369, 16
      %v5454 = vrot.slane %v5452, 4
      %v5455 = vor.u32 %v5454, %v5450
      %v5456 = vrot.slane %v5455, 4
      %v5458 = vshll.u32 %v5399, 16
      %v5460 = vrot.slane %v5458, 5
      %v5461 = vsel %vm1012, %v5456, %v5460
      %v5463 = vshrl.u32 %v5370, 16
      %v5465 = vrot.slane %v5463, 4
      %v5466 = vshll.u32 %v5370, 16
      %v5468 = vrot.slane %v5466, 5
      %v5469 = vor.u32 %v5465, %v5468
      %v5470 = vrot.slane %v5469, 4
      %v5472 = vshll.u32 %v5371, 16
      %v5474 = vrot.slane %v5472, 5
      %v5475 = vsel %vm1012, %v5470, %v5474
      %v5476 = vshrl.u32 %v5371, 16
      %v5478 = vrot.slane %v5476, 4
      %v5479 = vor.u32 %v5478, %v5474
      %v5480 = vrot.slane %v5479, 4
      %v5482 = vshll.u32 %v5400, 16
      %v5484 = vrot.slane %v5482, 5
      %v5485 = vsel %vm1012, %v5480, %v5484
      %v5487 = vshrl.u32 %v5372, 16
      %v5489 = vrot.slane %v5487, 4
      %v5490 = vshll.u32 %v5372, 16
      %v5492 = vrot.slane %v5490, 5
      %v5493 = vor.u32 %v5489, %v5492
      %v5494 = vrot.slane %v5493, 4
      %v5496 = vshll.u32 %v5373, 16
      %v5498 = vrot.slane %v5496, 5
      %v5499 = vsel %vm1012, %v5494, %v5498
      %v5500 = vshrl.u32 %v5373, 16
      %v5502 = vrot.slane %v5500, 4
      %v5503 = vor.u32 %v5502, %v5498
      %v5504 = vrot.slane %v5503, 4
      %v5506 = vshll.u32 %v5401, 16
      %v5508 = vrot.slane %v5506, 5
      %v5509 = vsel %vm1012, %v5504, %v5508
      %v5511 = vshrl.u32 %v5374, 16
      %v5513 = vrot.slane %v5511, 4
      %v5514 = vshll.u32 %v5374, 16
      %v5516 = vrot.slane %v5514, 5
      %v5517 = vor.u32 %v5513, %v5516
      %v5518 = vrot.slane %v5517, 4
      %v5520 = vshll.u32 %v5375, 16
      %v5522 = vrot.slane %v5520, 5
      %v5523 = vsel %vm1012, %v5518, %v5522
      %v5524 = vshrl.u32 %v5375, 16
      %v5526 = vrot.slane %v5524, 4
      %v5527 = vor.u32 %v5526, %v5522
      %v5528 = vrot.slane %v5527, 4
      %v5530 = vshll.u32 %v5402, 16
      %v5532 = vrot.slane %v5530, 5
      %v5533 = vsel %vm1012, %v5528, %v5532
      %v5535 = vshrl.u32 %v5376, 16
      %v5537 = vrot.slane %v5535, 4
      %v5538 = vshll.u32 %v5376, 16
      %v5540 = vrot.slane %v5538, 5
      %v5541 = vor.u32 %v5537, %v5540
      %v5542 = vrot.slane %v5541, 4
      %v5544 = vshll.u32 %v5377, 16
      %v5546 = vrot.slane %v5544, 5
      %v5547 = vsel %vm1012, %v5542, %v5546
      %v5548 = vshrl.u32 %v5377, 16
      %v5550 = vrot.slane %v5548, 4
      %v5551 = vor.u32 %v5550, %v5546
      %v5552 = vrot.slane %v5551, 4
      %v5554 = vshll.u32 %v5403, 16
      %v5556 = vrot.slane %v5554, 5
      %v5557 = vsel %vm1012, %v5552, %v5556
      %v5559 = vshrl.u32 %v5378, 16
      %v5561 = vrot.slane %v5559, 4
      %v5562 = vshll.u32 %v5378, 16
      %v5564 = vrot.slane %v5562, 5
      %v5565 = vor.u32 %v5561, %v5564
      %v5566 = vrot.slane %v5565, 4
      %v5568 = vshll.u32 %v5379, 16
      %v5570 = vrot.slane %v5568, 5
      %v5571 = vsel %vm1012, %v5566, %v5570
      %v5572 = vshrl.u32 %v5379, 16
      %v5574 = vrot.slane %v5572, 4
      %v5575 = vor.u32 %v5574, %v5570
      %v5576 = vrot.slane %v5575, 4
      %v5578 = vshll.u32 %v5404, 16
      %v5580 = vrot.slane %v5578, 5
      %v5581 = vsel %vm1012, %v5576, %v5580
      %v5583 = vshrl.u32 %v5380, 16
      %v5585 = vrot.slane %v5583, 4
      %v5586 = vshll.u32 %v5380, 16
      %v5588 = vrot.slane %v5586, 5
      %v5589 = vor.u32 %v5585, %v5588
      %v5590 = vrot.slane %v5589, 4
      %v5592 = vshll.u32 %v5381, 16
      %v5594 = vrot.slane %v5592, 5
      %v5595 = vsel %vm1012, %v5590, %v5594
      %v5596 = vshrl.u32 %v5381, 16
      %v5598 = vrot.slane %v5596, 4
      %v5599 = vor.u32 %v5598, %v5594
      %v5600 = vrot.slane %v5599, 4
      %v5602 = vshll.u32 %v5405, 16
      %v5604 = vrot.slane %v5602, 5
      %v5605 = vsel %vm1012, %v5600, %v5604
      %v5607 = vshrl.u32 %v5382, 16
      %v5609 = vrot.slane %v5607, 4
      %v5610 = vshll.u32 %v5382, 16
      %v5612 = vrot.slane %v5610, 5
      %v5613 = vor.u32 %v5609, %v5612
      %v5614 = vrot.slane %v5613, 4
      %v5616 = vshll.u32 %v5383, 16
      %v5618 = vrot.slane %v5616, 5
      %v5619 = vsel %vm1012, %v5614, %v5618
      %v5620 = vshrl.u32 %v5383, 16
      %v5622 = vrot.slane %v5620, 4
      %v5623 = vor.u32 %v5622, %v5618
      %v5624 = vrot.slane %v5623, 4
      %v5626 = vshll.u32 %v5406, 16
      %v5628 = vrot.slane %v5626, 5
      %v5629 = vsel %vm1012, %v5624, %v5628
      %v5631 = vshrl.u32 %v5384, 16
      %v5633 = vrot.slane %v5631, 4
      %v5634 = vshll.u32 %v5384, 16
      %v5636 = vrot.slane %v5634, 5
      %v5637 = vor.u32 %v5633, %v5636
      %v5638 = vrot.slane %v5637, 4
      %v5640 = vshll.u32 %v5385, 16
      %v5642 = vrot.slane %v5640, 5
      %v5643 = vsel %vm1012, %v5638, %v5642
      %v5644 = vshrl.u32 %v5385, 16
      %v5646 = vrot.slane %v5644, 4
      %v5647 = vor.u32 %v5646, %v5642
      %v5648 = vrot.slane %v5647, 4
      %v5650 = vshll.u32 %v5407, 16
      %v5652 = vrot.slane %v5650, 5
      %v5653 = vsel %vm1012, %v5648, %v5652
      %v5655 = vshrl.u32 %v5386, 16
      %v5657 = vrot.slane %v5655, 4
      %v5658 = vshll.u32 %v5386, 16
      %v5660 = vrot.slane %v5658, 5
      %v5661 = vor.u32 %v5657, %v5660
      %v5662 = vrot.slane %v5661, 4
      %v5664 = vshll.u32 %v5387, 16
      %v5666 = vrot.slane %v5664, 5
      %v5667 = vsel %vm1012, %v5662, %v5666
      %v5668 = vshrl.u32 %v5387, 16
      %v5670 = vrot.slane %v5668, 4
      %v5671 = vor.u32 %v5670, %v5666
      %v5672 = vrot.slane %v5671, 4
      %v5674 = vshll.u32 %v5408, 16
      %v5676 = vrot.slane %v5674, 5
      %v5677 = vsel %vm1012, %v5672, %v5676
      %v5679 = vshrl.u32 %v5388, 16
      %v5681 = vrot.slane %v5679, 4
      %v5682 = vshll.u32 %v5388, 16
      %v5684 = vrot.slane %v5682, 5
      %v5685 = vor.u32 %v5681, %v5684
      %v5686 = vrot.slane %v5685, 4
      %v5688 = vshll.u32 %v5389, 16
      %v5690 = vrot.slane %v5688, 5
      %v5691 = vsel %vm1012, %v5686, %v5690
      %v5692 = vshrl.u32 %v5389, 16
      %v5694 = vrot.slane %v5692, 4
      %v5695 = vor.u32 %v5694, %v5690
      %v5696 = vrot.slane %v5695, 4
      %v5698 = vshll.u32 %v5409, 16
      %v5700 = vrot.slane %v5698, 5
      %v5701 = vsel %vm1012, %v5696, %v5700
      %v5703 = vshrl.u32 %v5390, 16
      %v5705 = vrot.slane %v5703, 4
      %v5706 = vshll.u32 %v5390, 16
      %v5708 = vrot.slane %v5706, 5
      %v5709 = vor.u32 %v5705, %v5708
      %v5710 = vrot.slane %v5709, 4
      %v5712 = vshll.u32 %v5391, 16
      %v5714 = vrot.slane %v5712, 5
      %v5715 = vsel %vm1012, %v5710, %v5714
      %v5716 = vshrl.u32 %v5391, 16
      %v5718 = vrot.slane %v5716, 4
      %v5719 = vor.u32 %v5718, %v5714
      %v5720 = vrot.slane %v5719, 4
      %v5722 = vshll.u32 %v5410, 16
      %v5724 = vrot.slane %v5722, 5
      %v5725 = vsel %vm1012, %v5720, %v5724
      %v5727 = vshrl.u32 %v5392, 16
      %v5729 = vrot.slane %v5727, 4
      %v5730 = vshll.u32 %v5392, 16
      %v5732 = vrot.slane %v5730, 5
      %v5733 = vor.u32 %v5729, %v5732
      %v5734 = vrot.slane %v5733, 4
      %v5736 = vshll.u32 %v5393, 16
      %v5738 = vrot.slane %v5736, 5
      %v5739 = vsel %vm1012, %v5734, %v5738
      %v5740 = vshrl.u32 %v5393, 16
      %v5742 = vrot.slane %v5740, 4
      %v5743 = vor.u32 %v5742, %v5738
      %v5744 = vrot.slane %v5743, 4
      %v5746 = vshll.u32 %v5411, 16
      %v5748 = vrot.slane %v5746, 5
      %v5749 = vsel %vm1012, %v5744, %v5748
      %v5751 = vshrl.u32 %v5394, 16
      %v5753 = vrot.slane %v5751, 4
      %v5754 = vshll.u32 %v5394, 16
      %v5756 = vrot.slane %v5754, 5
      %v5757 = vor.u32 %v5753, %v5756
      %v5758 = vrot.slane %v5757, 4
      %v5760 = vshll.u32 %v5395, 16
      %v5762 = vrot.slane %v5760, 5
      %v5763 = vsel %vm1012, %v5758, %v5762
      %v5764 = vshrl.u32 %v5395, 16
      %v5766 = vrot.slane %v5764, 4
      %v5767 = vor.u32 %v5766, %v5762
      %v5768 = vrot.slane %v5767, 4
      %v5770 = vshll.u32 %v5412, 16
      %v5772 = vrot.slane %v5770, 5
      %v5773 = vsel %vm1012, %v5768, %v5772
      %v5775 = vshrl.u32 %v5396, 16
      %v5777 = vrot.slane %v5775, 4
      %v5778 = vshll.u32 %v5396, 16
      %v5780 = vrot.slane %v5778, 5
      %v5781 = vor.u32 %v5777, %v5780
      %v5782 = vrot.slane %v5781, 4
      %v5784 = vshll.u32 %v5397, 16
      %v5786 = vrot.slane %v5784, 5
      %v5787 = vsel %vm1012, %v5782, %v5786
      %v5788 = vshrl.u32 %v5397, 16
      %v5790 = vrot.slane %v5788, 4
      %v5791 = vor.u32 %v5790, %v5786
      %v5792 = vrot.slane %v5791, 4
      %v5794 = vshll.u32 %v5413, 16
      %v5796 = vrot.slane %v5794, 5
      %v5797 = vsel %vm1012, %v5792, %v5796
      %v5798 = vld [vmem:[#allocation3] sm:$0xe]
      %v5799 = vld [vmem:[#allocation3 + $0xc] sm:$0xe]
      %v5800 = vld [vmem:[#allocation3 + $0x18] sm:$0xe]
      %v5801 = vld [vmem:[#allocation3 + $0x24] sm:$0xe]
      %v5802 = vld [vmem:[#allocation3 + $0x30] sm:$0xe]
      %v5803 = vld [vmem:[#allocation3 + $0x3c] sm:$0xe]
      %v5804 = vld [vmem:[#allocation3 + $0x48] sm:$0xe]
      %v5805 = vld [vmem:[#allocation3 + $0x54] sm:$0xe]
      %v5806 = vld [vmem:[#allocation3 + $0x60] sm:$0xe]
      %v5807 = vld [vmem:[#allocation3 + $0x6c] sm:$0xe]
      %v5808 = vld [vmem:[#allocation3 + $0x78] sm:$0xe]
      %v5809 = vld [vmem:[#allocation3 + $0x84] sm:$0xe]
      %v5810 = vld [vmem:[#allocation3 + $0x90] sm:$0xe]
      %v5811 = vld [vmem:[#allocation3 + $0x9c] sm:$0xe]
      %v5812 = vld [vmem:[#allocation3 + $0xa8] sm:$0xe]
      %v5813 = vld [vmem:[#allocation3 + $0xb4] sm:$0xe]
      %v5862 = vrot.slane %v5798, 5
      %v5863 = vrot.slane %v5862, 4
      %v5864 = vrot.slane %v5367, 5
      %v5865 = vsel %vm1463, %v5863, %v5864
      %v5866 = vrot.slane %v5864, 4
      %v5867 = vrot.slane %v5398, 5
      %v5868 = vsel %vm1463, %v5866, %v5867
      %v5869 = vrot.slane %v5799, 5
      %v5870 = vrot.slane %v5869, 4
      %v5871 = vrot.slane %v5369, 5
      %v5872 = vsel %vm1463, %v5870, %v5871
      %v5873 = vrot.slane %v5871, 4
      %v5874 = vrot.slane %v5399, 5
      %v5875 = vsel %vm1463, %v5873, %v5874
      %v5876 = vrot.slane %v5800, 5
      %v5877 = vrot.slane %v5876, 4
      %v5878 = vrot.slane %v5371, 5
      %v5879 = vsel %vm1463, %v5877, %v5878
      %v5880 = vrot.slane %v5878, 4
      %v5881 = vrot.slane %v5400, 5
      %v5882 = vsel %vm1463, %v5880, %v5881
      %v5883 = vrot.slane %v5801, 5
      %v5884 = vrot.slane %v5883, 4
      %v5885 = vrot.slane %v5373, 5
      %v5886 = vsel %vm1463, %v5884, %v5885
      %v5887 = vrot.slane %v5885, 4
      %v5888 = vrot.slane %v5401, 5
      %v5889 = vsel %vm1463, %v5887, %v5888
      %v5890 = vrot.slane %v5802, 5
      %v5891 = vrot.slane %v5890, 4
      %v5892 = vrot.slane %v5375, 5
      %v5893 = vsel %vm1463, %v5891, %v5892
      %v5894 = vrot.slane %v5892, 4
      %v5895 = vrot.slane %v5402, 5
      %v5896 = vsel %vm1463, %v5894, %v5895
      %v5897 = vrot.slane %v5803, 5
      %v5898 = vrot.slane %v5897, 4
      %v5899 = vrot.slane %v5377, 5
      %v5900 = vsel %vm1463, %v5898, %v5899
      %v5901 = vrot.slane %v5899, 4
      %v5902 = vrot.slane %v5403, 5
      %v5903 = vsel %vm1463, %v5901, %v5902
      %v5904 = vrot.slane %v5804, 5
      %v5905 = vrot.slane %v5904, 4
      %v5906 = vrot.slane %v5379, 5
      %v5907 = vsel %vm1463, %v5905, %v5906
      %v5908 = vrot.slane %v5906, 4
      %v5909 = vrot.slane %v5404, 5
      %v5910 = vsel %vm1463, %v5908, %v5909
      %v5911 = vrot.slane %v5805, 5
      %v5912 = vrot.slane %v5911, 4
      %v5913 = vrot.slane %v5381, 5
      %v5914 = vsel %vm1463, %v5912, %v5913
      %v5915 = vrot.slane %v5913, 4
      %v5916 = vrot.slane %v5405, 5
      %v5917 = vsel %vm1463, %v5915, %v5916
      %v5918 = vrot.slane %v5806, 5
      %v5919 = vrot.slane %v5918, 4
      %v5920 = vrot.slane %v5383, 5
      %v5921 = vsel %vm1463, %v5919, %v5920
      %v5922 = vrot.slane %v5920, 4
      %v5923 = vrot.slane %v5406, 5
      %v5924 = vsel %vm1463, %v5922, %v5923
      %v5925 = vrot.slane %v5807, 5
      %v5926 = vrot.slane %v5925, 4
      %v5927 = vrot.slane %v5385, 5
      %v5928 = vsel %vm1463, %v5926, %v5927
      %v5929 = vrot.slane %v5927, 4
      %v5930 = vrot.slane %v5407, 5
      %v5931 = vsel %vm1463, %v5929, %v5930
      %v5932 = vrot.slane %v5808, 5
      %v5933 = vrot.slane %v5932, 4
      %v5934 = vrot.slane %v5387, 5
      %v5935 = vsel %vm1463, %v5933, %v5934
      %v5936 = vrot.slane %v5934, 4
      %v5937 = vrot.slane %v5408, 5
      %v5938 = vsel %vm1463, %v5936, %v5937
      %v5939 = vrot.slane %v5809, 5
      %v5940 = vrot.slane %v5939, 4
      %v5941 = vrot.slane %v5389, 5
      %v5942 = vsel %vm1463, %v5940, %v5941
      %v5943 = vrot.slane %v5941, 4
      %v5944 = vrot.slane %v5409, 5
      %v5945 = vsel %vm1463, %v5943, %v5944
      %v5946 = vrot.slane %v5810, 5
      %v5947 = vrot.slane %v5946, 4
      %v5948 = vrot.slane %v5391, 5
      %v5949 = vsel %vm1463, %v5947, %v5948
      %v5950 = vrot.slane %v5948, 4
      %v5951 = vrot.slane %v5410, 5
      %v5952 = vsel %vm1463, %v5950, %v5951
      %v5953 = vrot.slane %v5811, 5
      %v5954 = vrot.slane %v5953, 4
      %v5955 = vrot.slane %v5393, 5
      %v5956 = vsel %vm1463, %v5954, %v5955
      %v5957 = vrot.slane %v5955, 4
      %v5958 = vrot.slane %v5411, 5
      %v5959 = vsel %vm1463, %v5957, %v5958
      %v5960 = vrot.slane %v5812, 5
      %v5961 = vrot.slane %v5960, 4
      %v5962 = vrot.slane %v5395, 5
      %v5963 = vsel %vm1463, %v5961, %v5962
      %v5964 = vrot.slane %v5962, 4
      %v5965 = vrot.slane %v5412, 5
      %v5966 = vsel %vm1463, %v5964, %v5965
      %v5967 = vrot.slane %v5813, 5
      %v5968 = vrot.slane %v5967, 4
      %v5969 = vrot.slane %v5397, 5
      %v5970 = vsel %vm1463, %v5968, %v5969
      %v5971 = vrot.slane %v5969, 4
      %v5972 = vrot.slane %v5413, 5
      %v5973 = vsel %vm1463, %v5971, %v5972
      %v5974 = vld [vmem:[%s5253] sm:$0xf]
      %v5975 = vld [vmem:[%s5253 + $0x4] sm:$0xf]
      %v5976 = vld [vmem:[%s5253 + $0xc] sm:$0xf]
      %v5977 = vld [vmem:[%s5253 + $0x10] sm:$0xf]
      %v5978 = vld [vmem:[%s5253 + $0x18] sm:$0xf]
      %v5979 = vld [vmem:[%s5253 + $0x1c] sm:$0xf]
      %v5980 = vld [vmem:[%s5253 + $0x24] sm:$0xf]
      %v5981 = vld [vmem:[%s5253 + $0x28] sm:$0xf]
      %v5982 = vld [vmem:[%s5253 + $0x30] sm:$0xf]
      %v5983 = vld [vmem:[%s5253 + $0x34] sm:$0xf]
      %v5984 = vld [vmem:[%s5253 + $0x3c] sm:$0xf]
      %v5985 = vld [vmem:[%s5253 + $0x40] sm:$0xf]
      %v5986 = vld [vmem:[%s5253 + $0x48] sm:$0xf]
      %v5987 = vld [vmem:[%s5253 + $0x4c] sm:$0xf]
      %v5988 = vld [vmem:[%s5253 + $0x54] sm:$0xf]
      %v5989 = vld [vmem:[%s5253 + $0x58] sm:$0xf]
      %v5990 = vld [vmem:[%s5253 + $0x60] sm:$0xf]
      %v5991 = vld [vmem:[%s5253 + $0x64] sm:$0xf]
      %v5992 = vld [vmem:[%s5253 + $0x6c] sm:$0xf]
      %v5993 = vld [vmem:[%s5253 + $0x70] sm:$0xf]
      %v5994 = vld [vmem:[%s5253 + $0x78] sm:$0xf]
      %v5995 = vld [vmem:[%s5253 + $0x7c] sm:$0xf]
      %v5996 = vld [vmem:[%s5253 + $0x84] sm:$0xf]
      %v5997 = vld [vmem:[%s5253 + $0x88] sm:$0xf]
      %v5998 = vld [vmem:[%s5253 + $0x90] sm:$0xf]
      %v5999 = vld [vmem:[%s5253 + $0x94] sm:$0xf]
      %v6000 = vld [vmem:[%s5253 + $0x9c] sm:$0xf]
      %v6001 = vld [vmem:[%s5253 + $0xa0] sm:$0xf]
      %v6002 = vld [vmem:[%s5253 + $0xa8] sm:$0xf]
      %v6003 = vld [vmem:[%s5253 + $0xac] sm:$0xf]
      %v6004 = vld [vmem:[%s5253 + $0xb4] sm:$0xf]
      %v6005 = vld [vmem:[%s5253 + $0xb8] sm:$0xf]
      %v6006 = vld [vmem:[%s5253 + $0x8] sm:$0x1]
      %v6007 = vld [vmem:[%s5253 + $0x14] sm:$0x1]
      %v6008 = vld [vmem:[%s5253 + $0x20] sm:$0x1]
      %v6009 = vld [vmem:[%s5253 + $0x2c] sm:$0x1]
      %v6010 = vld [vmem:[%s5253 + $0x38] sm:$0x1]
      %v6011 = vld [vmem:[%s5253 + $0x44] sm:$0x1]
      %v6012 = vld [vmem:[%s5253 + $0x50] sm:$0x1]
      %v6013 = vld [vmem:[%s5253 + $0x5c] sm:$0x1]
      %v6014 = vld [vmem:[%s5253 + $0x68] sm:$0x1]
      %v6015 = vld [vmem:[%s5253 + $0x74] sm:$0x1]
      %v6016 = vld [vmem:[%s5253 + $0x80] sm:$0x1]
      %v6017 = vld [vmem:[%s5253 + $0x8c] sm:$0x1]
      %v6018 = vld [vmem:[%s5253 + $0x98] sm:$0x1]
      %v6019 = vld [vmem:[%s5253 + $0xa4] sm:$0x1]
      %v6020 = vld [vmem:[%s5253 + $0xb0] sm:$0x1]
      %v6021 = vld [vmem:[%s5253 + $0xbc] sm:$0x1]
      %v6023 = vshrl.u32 %v5974, 16
      %v6025 = vrot.slane %v6023, 4
      %v6026 = vshll.u32 %v5974, 16
      %v6028 = vrot.slane %v6026, 5
      %v6029 = vor.u32 %v6025, %v6028
      %v6030 = vrot.slane %v6029, 4
      %v6032 = vshll.u32 %v5975, 16
      %v6034 = vrot.slane %v6032, 5
      %v6035 = vsel %vm1012, %v6030, %v6034
      %v6036 = vshrl.u32 %v5975, 16
      %v6038 = vrot.slane %v6036, 4
      %v6039 = vor.u32 %v6038, %v6034
      %v6040 = vrot.slane %v6039, 4
      %v6042 = vshll.u32 %v6006, 16
      %v6044 = vrot.slane %v6042, 5
      %v6045 = vsel %vm1012, %v6040, %v6044
      %v6047 = vshrl.u32 %v5976, 16
      %v6049 = vrot.slane %v6047, 4
      %v6050 = vshll.u32 %v5976, 16
      %v6052 = vrot.slane %v6050, 5
      %v6053 = vor.u32 %v6049, %v6052
      %v6054 = vrot.slane %v6053, 4
      %v6056 = vshll.u32 %v5977, 16
      %v6058 = vrot.slane %v6056, 5
      %v6059 = vsel %vm1012, %v6054, %v6058
      %v6060 = vshrl.u32 %v5977, 16
      %v6062 = vrot.slane %v6060, 4
      %v6063 = vor.u32 %v6062, %v6058
      %v6064 = vrot.slane %v6063, 4
      %v6066 = vshll.u32 %v6007, 16
      %v6068 = vrot.slane %v6066, 5
      %v6069 = vsel %vm1012, %v6064, %v6068
      %v6071 = vshrl.u32 %v5978, 16
      %v6073 = vrot.slane %v6071, 4
      %v6074 = vshll.u32 %v5978, 16
      %v6076 = vrot.slane %v6074, 5
      %v6077 = vor.u32 %v6073, %v6076
      %v6078 = vrot.slane %v6077, 4
      %v6080 = vshll.u32 %v5979, 16
      %v6082 = vrot.slane %v6080, 5
      %v6083 = vsel %vm1012, %v6078, %v6082
      %v6084 = vshrl.u32 %v5979, 16
      %v6086 = vrot.slane %v6084, 4
      %v6087 = vor.u32 %v6086, %v6082
      %v6088 = vrot.slane %v6087, 4
      %v6090 = vshll.u32 %v6008, 16
      %v6092 = vrot.slane %v6090, 5
      %v6093 = vsel %vm1012, %v6088, %v6092
      %v6095 = vshrl.u32 %v5980, 16
      %v6097 = vrot.slane %v6095, 4
      %v6098 = vshll.u32 %v5980, 16
      %v6100 = vrot.slane %v6098, 5
      %v6101 = vor.u32 %v6097, %v6100
      %v6102 = vrot.slane %v6101, 4
      %v6104 = vshll.u32 %v5981, 16
      %v6106 = vrot.slane %v6104, 5
      %v6107 = vsel %vm1012, %v6102, %v6106
      %v6108 = vshrl.u32 %v5981, 16
      %v6110 = vrot.slane %v6108, 4
      %v6111 = vor.u32 %v6110, %v6106
      %v6112 = vrot.slane %v6111, 4
      %v6114 = vshll.u32 %v6009, 16
      %v6116 = vrot.slane %v6114, 5
      %v6117 = vsel %vm1012, %v6112, %v6116
      %v6119 = vshrl.u32 %v5982, 16
      %v6121 = vrot.slane %v6119, 4
      %v6122 = vshll.u32 %v5982, 16
      %v6124 = vrot.slane %v6122, 5
      %v6125 = vor.u32 %v6121, %v6124
      %v6126 = vrot.slane %v6125, 4
      %v6128 = vshll.u32 %v5983, 16
      %v6130 = vrot.slane %v6128, 5
      %v6131 = vsel %vm1012, %v6126, %v6130
      %v6132 = vshrl.u32 %v5983, 16
      %v6134 = vrot.slane %v6132, 4
      %v6135 = vor.u32 %v6134, %v6130
      %v6136 = vrot.slane %v6135, 4
      %v6138 = vshll.u32 %v6010, 16
      %v6140 = vrot.slane %v6138, 5
      %v6141 = vsel %vm1012, %v6136, %v6140
      %v6143 = vshrl.u32 %v5984, 16
      %v6145 = vrot.slane %v6143, 4
      %v6146 = vshll.u32 %v5984, 16
      %v6148 = vrot.slane %v6146, 5
      %v6149 = vor.u32 %v6145, %v6148
      %v6150 = vrot.slane %v6149, 4
      %v6152 = vshll.u32 %v5985, 16
      %v6154 = vrot.slane %v6152, 5
      %v6155 = vsel %vm1012, %v6150, %v6154
      %v6156 = vshrl.u32 %v5985, 16
      %v6158 = vrot.slane %v6156, 4
      %v6159 = vor.u32 %v6158, %v6154
      %v6160 = vrot.slane %v6159, 4
      %v6162 = vshll.u32 %v6011, 16
      %v6164 = vrot.slane %v6162, 5
      %v6165 = vsel %vm1012, %v6160, %v6164
      %v6167 = vshrl.u32 %v5986, 16
      %v6169 = vrot.slane %v6167, 4
      %v6170 = vshll.u32 %v5986, 16
      %v6172 = vrot.slane %v6170, 5
      %v6173 = vor.u32 %v6169, %v6172
      %v6174 = vrot.slane %v6173, 4
      %v6176 = vshll.u32 %v5987, 16
      %v6178 = vrot.slane %v6176, 5
      %v6179 = vsel %vm1012, %v6174, %v6178
      %v6180 = vshrl.u32 %v5987, 16
      %v6182 = vrot.slane %v6180, 4
      %v6183 = vor.u32 %v6182, %v6178
      %v6184 = vrot.slane %v6183, 4
      %v6186 = vshll.u32 %v6012, 16
      %v6188 = vrot.slane %v6186, 5
      %v6189 = vsel %vm1012, %v6184, %v6188
      %v6191 = vshrl.u32 %v5988, 16
      %v6193 = vrot.slane %v6191, 4
      %v6194 = vshll.u32 %v5988, 16
      %v6196 = vrot.slane %v6194, 5
      %v6197 = vor.u32 %v6193, %v6196
      %v6198 = vrot.slane %v6197, 4
      %v6200 = vshll.u32 %v5989, 16
      %v6202 = vrot.slane %v6200, 5
      %v6203 = vsel %vm1012, %v6198, %v6202
      %v6204 = vshrl.u32 %v5989, 16
      %v6206 = vrot.slane %v6204, 4
      %v6207 = vor.u32 %v6206, %v6202
      %v6208 = vrot.slane %v6207, 4
      %v6210 = vshll.u32 %v6013, 16
      %v6212 = vrot.slane %v6210, 5
      %v6213 = vsel %vm1012, %v6208, %v6212
      %v6215 = vshrl.u32 %v5990, 16
      %v6217 = vrot.slane %v6215, 4
      %v6218 = vshll.u32 %v5990, 16
      %v6220 = vrot.slane %v6218, 5
      %v6221 = vor.u32 %v6217, %v6220
      %v6222 = vrot.slane %v6221, 4
      %v6224 = vshll.u32 %v5991, 16
      %v6226 = vrot.slane %v6224, 5
      %v6227 = vsel %vm1012, %v6222, %v6226
      %v6228 = vshrl.u32 %v5991, 16
      %v6230 = vrot.slane %v6228, 4
      %v6231 = vor.u32 %v6230, %v6226
      %v6232 = vrot.slane %v6231, 4
      %v6234 = vshll.u32 %v6014, 16
      %v6236 = vrot.slane %v6234, 5
      %v6237 = vsel %vm1012, %v6232, %v6236
      %v6239 = vshrl.u32 %v5992, 16
      %v6241 = vrot.slane %v6239, 4
      %v6242 = vshll.u32 %v5992, 16
      %v6244 = vrot.slane %v6242, 5
      %v6245 = vor.u32 %v6241, %v6244
      %v6246 = vrot.slane %v6245, 4
      %v6248 = vshll.u32 %v5993, 16
      %v6250 = vrot.slane %v6248, 5
      %v6251 = vsel %vm1012, %v6246, %v6250
      %v6252 = vshrl.u32 %v5993, 16
      %v6254 = vrot.slane %v6252, 4
      %v6255 = vor.u32 %v6254, %v6250
      %v6256 = vrot.slane %v6255, 4
      %v6258 = vshll.u32 %v6015, 16
      %v6260 = vrot.slane %v6258, 5
      %v6261 = vsel %vm1012, %v6256, %v6260
      %v6263 = vshrl.u32 %v5994, 16
      %v6265 = vrot.slane %v6263, 4
      %v6266 = vshll.u32 %v5994, 16
      %v6268 = vrot.slane %v6266, 5
      %v6269 = vor.u32 %v6265, %v6268
      %v6270 = vrot.slane %v6269, 4
      %v6272 = vshll.u32 %v5995, 16
      %v6274 = vrot.slane %v6272, 5
      %v6275 = vsel %vm1012, %v6270, %v6274
      %v6276 = vshrl.u32 %v5995, 16
      %v6278 = vrot.slane %v6276, 4
      %v6279 = vor.u32 %v6278, %v6274
      %v6280 = vrot.slane %v6279, 4
      %v6282 = vshll.u32 %v6016, 16
      %v6284 = vrot.slane %v6282, 5
      %v6285 = vsel %vm1012, %v6280, %v6284
      %v6287 = vshrl.u32 %v5996, 16
      %v6289 = vrot.slane %v6287, 4
      %v6290 = vshll.u32 %v5996, 16
      %v6292 = vrot.slane %v6290, 5
      %v6293 = vor.u32 %v6289, %v6292
      %v6294 = vrot.slane %v6293, 4
      %v6296 = vshll.u32 %v5997, 16
      %v6298 = vrot.slane %v6296, 5
      %v6299 = vsel %vm1012, %v6294, %v6298
      %v6300 = vshrl.u32 %v5997, 16
      %v6302 = vrot.slane %v6300, 4
      %v6303 = vor.u32 %v6302, %v6298
      %v6304 = vrot.slane %v6303, 4
      %v6306 = vshll.u32 %v6017, 16
      %v6308 = vrot.slane %v6306, 5
      %v6309 = vsel %vm1012, %v6304, %v6308
      %v6311 = vshrl.u32 %v5998, 16
      %v6313 = vrot.slane %v6311, 4
      %v6314 = vshll.u32 %v5998, 16
      %v6316 = vrot.slane %v6314, 5
      %v6317 = vor.u32 %v6313, %v6316
      %v6318 = vrot.slane %v6317, 4
      %v6320 = vshll.u32 %v5999, 16
      %v6322 = vrot.slane %v6320, 5
      %v6323 = vsel %vm1012, %v6318, %v6322
      %v6324 = vshrl.u32 %v5999, 16
      %v6326 = vrot.slane %v6324, 4
      %v6327 = vor.u32 %v6326, %v6322
      %v6328 = vrot.slane %v6327, 4
      %v6330 = vshll.u32 %v6018, 16
      %v6332 = vrot.slane %v6330, 5
      %v6333 = vsel %vm1012, %v6328, %v6332
      %v6335 = vshrl.u32 %v6000, 16
      %v6337 = vrot.slane %v6335, 4
      %v6338 = vshll.u32 %v6000, 16
      %v6340 = vrot.slane %v6338, 5
      %v6341 = vor.u32 %v6337, %v6340
      %v6342 = vrot.slane %v6341, 4
      %v6344 = vshll.u32 %v6001, 16
      %v6346 = vrot.slane %v6344, 5
      %v6347 = vsel %vm1012, %v6342, %v6346
      %v6348 = vshrl.u32 %v6001, 16
      %v6350 = vrot.slane %v6348, 4
      %v6351 = vor.u32 %v6350, %v6346
      %v6352 = vrot.slane %v6351, 4
      %v6354 = vshll.u32 %v6019, 16
      %v6356 = vrot.slane %v6354, 5
      %v6357 = vsel %vm1012, %v6352, %v6356
      %v6359 = vshrl.u32 %v6002, 16
      %v6361 = vrot.slane %v6359, 4
      %v6362 = vshll.u32 %v6002, 16
      %v6364 = vrot.slane %v6362, 5
      %v6365 = vor.u32 %v6361, %v6364
      %v6366 = vrot.slane %v6365, 4
      %v6368 = vshll.u32 %v6003, 16
      %v6370 = vrot.slane %v6368, 5
      %v6371 = vsel %vm1012, %v6366, %v6370
      %v6372 = vshrl.u32 %v6003, 16
      %v6374 = vrot.slane %v6372, 4
      %v6375 = vor.u32 %v6374, %v6370
      %v6376 = vrot.slane %v6375, 4
      %v6378 = vshll.u32 %v6020, 16
      %v6380 = vrot.slane %v6378, 5
      %v6381 = vsel %vm1012, %v6376, %v6380
      %v6383 = vshrl.u32 %v6004, 16
      %v6385 = vrot.slane %v6383, 4
      %v6386 = vshll.u32 %v6004, 16
      %v6388 = vrot.slane %v6386, 5
      %v6389 = vor.u32 %v6385, %v6388
      %v6390 = vrot.slane %v6389, 4
      %v6392 = vshll.u32 %v6005, 16
      %v6394 = vrot.slane %v6392, 5
      %v6395 = vsel %vm1012, %v6390, %v6394
      %v6396 = vshrl.u32 %v6005, 16
      %v6398 = vrot.slane %v6396, 4
      %v6399 = vor.u32 %v6398, %v6394
      %v6400 = vrot.slane %v6399, 4
      %v6402 = vshll.u32 %v6021, 16
      %v6404 = vrot.slane %v6402, 5
      %v6405 = vsel %vm1012, %v6400, %v6404
      %v6406 = vld [vmem:[%s5253] sm:$0xe]
      %v6407 = vld [vmem:[%s5253 + $0xc] sm:$0xe]
      %v6408 = vld [vmem:[%s5253 + $0x18] sm:$0xe]
      %v6409 = vld [vmem:[%s5253 + $0x24] sm:$0xe]
      %v6410 = vld [vmem:[%s5253 + $0x30] sm:$0xe]
      %v6411 = vld [vmem:[%s5253 + $0x3c] sm:$0xe]
      %v6412 = vld [vmem:[%s5253 + $0x48] sm:$0xe]
      %v6413 = vld [vmem:[%s5253 + $0x54] sm:$0xe]
      %v6414 = vld [vmem:[%s5253 + $0x60] sm:$0xe]
      %v6415 = vld [vmem:[%s5253 + $0x6c] sm:$0xe]
      %v6416 = vld [vmem:[%s5253 + $0x78] sm:$0xe]
      %v6417 = vld [vmem:[%s5253 + $0x84] sm:$0xe]
      %v6418 = vld [vmem:[%s5253 + $0x90] sm:$0xe]
      %v6419 = vld [vmem:[%s5253 + $0x9c] sm:$0xe]
      %v6420 = vld [vmem:[%s5253 + $0xa8] sm:$0xe]
      %v6421 = vld [vmem:[%s5253 + $0xb4] sm:$0xe]
      %v6470 = vrot.slane %v6406, 5
      %v6471 = vrot.slane %v6470, 4
      %v6472 = vrot.slane %v5975, 5
      %v6473 = vsel %vm1463, %v6471, %v6472
      %v6474 = vrot.slane %v6472, 4
      %v6475 = vrot.slane %v6006, 5
      %v6476 = vsel %vm1463, %v6474, %v6475
      %v6477 = vrot.slane %v6407, 5
      %v6478 = vrot.slane %v6477, 4
      %v6479 = vrot.slane %v5977, 5
      %v6480 = vsel %vm1463, %v6478, %v6479
      %v6481 = vrot.slane %v6479, 4
      %v6482 = vrot.slane %v6007, 5
      %v6483 = vsel %vm1463, %v6481, %v6482
      %v6484 = vrot.slane %v6408, 5
      %v6485 = vrot.slane %v6484, 4
      %v6486 = vrot.slane %v5979, 5
      %v6487 = vsel %vm1463, %v6485, %v6486
      %v6488 = vrot.slane %v6486, 4
      %v6489 = vrot.slane %v6008, 5
      %v6490 = vsel %vm1463, %v6488, %v6489
      %v6491 = vrot.slane %v6409, 5
      %v6492 = vrot.slane %v6491, 4
      %v6493 = vrot.slane %v5981, 5
      %v6494 = vsel %vm1463, %v6492, %v6493
      %v6495 = vrot.slane %v6493, 4
      %v6496 = vrot.slane %v6009, 5
      %v6497 = vsel %vm1463, %v6495, %v6496
      %v6498 = vrot.slane %v6410, 5
      %v6499 = vrot.slane %v6498, 4
      %v6500 = vrot.slane %v5983, 5
      %v6501 = vsel %vm1463, %v6499, %v6500
      %v6502 = vrot.slane %v6500, 4
      %v6503 = vrot.slane %v6010, 5
      %v6504 = vsel %vm1463, %v6502, %v6503
      %v6505 = vrot.slane %v6411, 5
      %v6506 = vrot.slane %v6505, 4
      %v6507 = vrot.slane %v5985, 5
      %v6508 = vsel %vm1463, %v6506, %v6507
      %v6509 = vrot.slane %v6507, 4
      %v6510 = vrot.slane %v6011, 5
      %v6511 = vsel %vm1463, %v6509, %v6510
      %v6512 = vrot.slane %v6412, 5
      %v6513 = vrot.slane %v6512, 4
      %v6514 = vrot.slane %v5987, 5
      %v6515 = vsel %vm1463, %v6513, %v6514
      %v6516 = vrot.slane %v6514, 4
      %v6517 = vrot.slane %v6012, 5
      %v6518 = vsel %vm1463, %v6516, %v6517
      %v6519 = vrot.slane %v6413, 5
      %v6520 = vrot.slane %v6519, 4
      %v6521 = vrot.slane %v5989, 5
      %v6522 = vsel %vm1463, %v6520, %v6521
      %v6523 = vrot.slane %v6521, 4
      %v6524 = vrot.slane %v6013, 5
      %v6525 = vsel %vm1463, %v6523, %v6524
      %v6526 = vrot.slane %v6414, 5
      %v6527 = vrot.slane %v6526, 4
      %v6528 = vrot.slane %v5991, 5
      %v6529 = vsel %vm1463, %v6527, %v6528
      %v6530 = vrot.slane %v6528, 4
      %v6531 = vrot.slane %v6014, 5
      %v6532 = vsel %vm1463, %v6530, %v6531
      %v6533 = vrot.slane %v6415, 5
      %v6534 = vrot.slane %v6533, 4
      %v6535 = vrot.slane %v5993, 5
      %v6536 = vsel %vm1463, %v6534, %v6535
      %v6537 = vrot.slane %v6535, 4
      %v6538 = vrot.slane %v6015, 5
      %v6539 = vsel %vm1463, %v6537, %v6538
      %v6540 = vrot.slane %v6416, 5
      %v6541 = vrot.slane %v6540, 4
      %v6542 = vrot.slane %v5995, 5
      %v6543 = vsel %vm1463, %v6541, %v6542
      %v6544 = vrot.slane %v6542, 4
      %v6545 = vrot.slane %v6016, 5
      %v6546 = vsel %vm1463, %v6544, %v6545
      %v6547 = vrot.slane %v6417, 5
      %v6548 = vrot.slane %v6547, 4
      %v6549 = vrot.slane %v5997, 5
      %v6550 = vsel %vm1463, %v6548, %v6549
      %v6551 = vrot.slane %v6549, 4
      %v6552 = vrot.slane %v6017, 5
      %v6553 = vsel %vm1463, %v6551, %v6552
      %v6554 = vrot.slane %v6418, 5
      %v6555 = vrot.slane %v6554, 4
      %v6556 = vrot.slane %v5999, 5
      %v6557 = vsel %vm1463, %v6555, %v6556
      %v6558 = vrot.slane %v6556, 4
      %v6559 = vrot.slane %v6018, 5
      %v6560 = vsel %vm1463, %v6558, %v6559
      %v6561 = vrot.slane %v6419, 5
      %v6562 = vrot.slane %v6561, 4
      %v6563 = vrot.slane %v6001, 5
      %v6564 = vsel %vm1463, %v6562, %v6563
      %v6565 = vrot.slane %v6563, 4
      %v6566 = vrot.slane %v6019, 5
      %v6567 = vsel %vm1463, %v6565, %v6566
      %v6568 = vrot.slane %v6420, 5
      %v6569 = vrot.slane %v6568, 4
      %v6570 = vrot.slane %v6003, 5
      %v6571 = vsel %vm1463, %v6569, %v6570
      %v6572 = vrot.slane %v6570, 4
      %v6573 = vrot.slane %v6020, 5
      %v6574 = vsel %vm1463, %v6572, %v6573
      %v6575 = vrot.slane %v6421, 5
      %v6576 = vrot.slane %v6575, 4
      %v6577 = vrot.slane %v6005, 5
      %v6578 = vsel %vm1463, %v6576, %v6577
      %v6579 = vrot.slane %v6577, 4
      %v6580 = vrot.slane %v6021, 5
      %v6581 = vsel %vm1463, %v6579, %v6580
      %s6582 = scalar_lea.vmem [#allocation3], 24
      %v6583 = vld [vmem:[%s6582] sm:$0xf]
      %v6584 = vld [vmem:[%s6582 + $0x4] sm:$0xf]
      %v6585 = vld [vmem:[%s6582 + $0xc] sm:$0xf]
      %v6586 = vld [vmem:[%s6582 + $0x10] sm:$0xf]
      %v6587 = vld [vmem:[%s6582 + $0x18] sm:$0xf]
      %v6588 = vld [vmem:[%s6582 + $0x1c] sm:$0xf]
      %v6589 = vld [vmem:[%s6582 + $0x24] sm:$0xf]
      %v6590 = vld [vmem:[%s6582 + $0x28] sm:$0xf]
      %v6591 = vld [vmem:[%s6582 + $0x30] sm:$0xf]
      %v6592 = vld [vmem:[%s6582 + $0x34] sm:$0xf]
      %v6593 = vld [vmem:[%s6582 + $0x3c] sm:$0xf]
      %v6594 = vld [vmem:[%s6582 + $0x40] sm:$0xf]
      %v6595 = vld [vmem:[%s6582 + $0x48] sm:$0xf]
      %v6596 = vld [vmem:[%s6582 + $0x4c] sm:$0xf]
      %v6597 = vld [vmem:[%s6582 + $0x54] sm:$0xf]
      %v6598 = vld [vmem:[%s6582 + $0x58] sm:$0xf]
      %v6599 = vld [vmem:[%s6582 + $0x60] sm:$0xf]
      %v6600 = vld [vmem:[%s6582 + $0x64] sm:$0xf]
      %v6601 = vld [vmem:[%s6582 + $0x6c] sm:$0xf]
      %v6602 = vld [vmem:[%s6582 + $0x70] sm:$0xf]
      %v6603 = vld [vmem:[%s6582 + $0x78] sm:$0xf]
      %v6604 = vld [vmem:[%s6582 + $0x7c] sm:$0xf]
      %v6605 = vld [vmem:[%s6582 + $0x84] sm:$0xf]
      %v6606 = vld [vmem:[%s6582 + $0x88] sm:$0xf]
      %v6607 = vld [vmem:[%s6582 + $0x90] sm:$0xf]
      %v6608 = vld [vmem:[%s6582 + $0x94] sm:$0xf]
      %v6609 = vld [vmem:[%s6582 + $0x9c] sm:$0xf]
      %v6610 = vld [vmem:[%s6582 + $0xa0] sm:$0xf]
      %v6611 = vld [vmem:[%s6582 + $0xa8] sm:$0xf]
      %v6612 = vld [vmem:[%s6582 + $0xac] sm:$0xf]
      %v6613 = vld [vmem:[%s6582 + $0xb4] sm:$0xf]
      %v6614 = vld [vmem:[%s6582 + $0xb8] sm:$0xf]
      %v6615 = vld [vmem:[%s6582 + $0x8] sm:$0x1]
      %v6616 = vld [vmem:[%s6582 + $0x14] sm:$0x1]
      %v6617 = vld [vmem:[%s6582 + $0x20] sm:$0x1]
      %v6618 = vld [vmem:[%s6582 + $0x2c] sm:$0x1]
      %v6619 = vld [vmem:[%s6582 + $0x38] sm:$0x1]
      %v6620 = vld [vmem:[%s6582 + $0x44] sm:$0x1]
      %v6621 = vld [vmem:[%s6582 + $0x50] sm:$0x1]
      %v6622 = vld [vmem:[%s6582 + $0x5c] sm:$0x1]
      %v6623 = vld [vmem:[%s6582 + $0x68] sm:$0x1]
      %v6624 = vld [vmem:[%s6582 + $0x74] sm:$0x1]
      %v6625 = vld [vmem:[%s6582 + $0x80] sm:$0x1]
      %v6626 = vld [vmem:[%s6582 + $0x8c] sm:$0x1]
      %v6627 = vld [vmem:[%s6582 + $0x98] sm:$0x1]
      %v6628 = vld [vmem:[%s6582 + $0xa4] sm:$0x1]
      %v6629 = vld [vmem:[%s6582 + $0xb0] sm:$0x1]
      %v6630 = vld [vmem:[%s6582 + $0xbc] sm:$0x1]
      %v6632 = vshrl.u32 %v6583, 16
      %v6634 = vrot.slane %v6632, 4
      %v6635 = vshll.u32 %v6583, 16
      %v6637 = vrot.slane %v6635, 5
      %v6638 = vor.u32 %v6634, %v6637
      %v6639 = vrot.slane %v6638, 4
      %v6641 = vshll.u32 %v6584, 16
      %v6643 = vrot.slane %v6641, 5
      %v6644 = vsel %vm1012, %v6639, %v6643
      %v6645 = vshrl.u32 %v6584, 16
      %v6647 = vrot.slane %v6645, 4
      %v6648 = vor.u32 %v6647, %v6643
      %v6649 = vrot.slane %v6648, 4
      %v6651 = vshll.u32 %v6615, 16
      %v6653 = vrot.slane %v6651, 5
      %v6654 = vsel %vm1012, %v6649, %v6653
      %v6656 = vshrl.u32 %v6585, 16
      %v6658 = vrot.slane %v6656, 4
      %v6659 = vshll.u32 %v6585, 16
      %v6661 = vrot.slane %v6659, 5
      %v6662 = vor.u32 %v6658, %v6661
      %v6663 = vrot.slane %v6662, 4
      %v6665 = vshll.u32 %v6586, 16
      %v6667 = vrot.slane %v6665, 5
      %v6668 = vsel %vm1012, %v6663, %v6667
      %v6669 = vshrl.u32 %v6586, 16
      %v6671 = vrot.slane %v6669, 4
      %v6672 = vor.u32 %v6671, %v6667
      %v6673 = vrot.slane %v6672, 4
      %v6675 = vshll.u32 %v6616, 16
      %v6677 = vrot.slane %v6675, 5
      %v6678 = vsel %vm1012, %v6673, %v6677
      %v6680 = vshrl.u32 %v6587, 16
      %v6682 = vrot.slane %v6680, 4
      %v6683 = vshll.u32 %v6587, 16
      %v6685 = vrot.slane %v6683, 5
      %v6686 = vor.u32 %v6682, %v6685
      %v6687 = vrot.slane %v6686, 4
      %v6689 = vshll.u32 %v6588, 16
      %v6691 = vrot.slane %v6689, 5
      %v6692 = vsel %vm1012, %v6687, %v6691
      %v6693 = vshrl.u32 %v6588, 16
      %v6695 = vrot.slane %v6693, 4
      %v6696 = vor.u32 %v6695, %v6691
      %v6697 = vrot.slane %v6696, 4
      %v6699 = vshll.u32 %v6617, 16
      %v6701 = vrot.slane %v6699, 5
      %v6702 = vsel %vm1012, %v6697, %v6701
      %v6704 = vshrl.u32 %v6589, 16
      %v6706 = vrot.slane %v6704, 4
      %v6707 = vshll.u32 %v6589, 16
      %v6709 = vrot.slane %v6707, 5
      %v6710 = vor.u32 %v6706, %v6709
      %v6711 = vrot.slane %v6710, 4
      %v6713 = vshll.u32 %v6590, 16
      %v6715 = vrot.slane %v6713, 5
      %v6716 = vsel %vm1012, %v6711, %v6715
      %v6717 = vshrl.u32 %v6590, 16
      %v6719 = vrot.slane %v6717, 4
      %v6720 = vor.u32 %v6719, %v6715
      %v6721 = vrot.slane %v6720, 4
      %v6723 = vshll.u32 %v6618, 16
      %v6725 = vrot.slane %v6723, 5
      %v6726 = vsel %vm1012, %v6721, %v6725
      %v6728 = vshrl.u32 %v6591, 16
      %v6730 = vrot.slane %v6728, 4
      %v6731 = vshll.u32 %v6591, 16
      %v6733 = vrot.slane %v6731, 5
      %v6734 = vor.u32 %v6730, %v6733
      %v6735 = vrot.slane %v6734, 4
      %v6737 = vshll.u32 %v6592, 16
      %v6739 = vrot.slane %v6737, 5
      %v6740 = vsel %vm1012, %v6735, %v6739
      %v6741 = vshrl.u32 %v6592, 16
      %v6743 = vrot.slane %v6741, 4
      %v6744 = vor.u32 %v6743, %v6739
      %v6745 = vrot.slane %v6744, 4
      %v6747 = vshll.u32 %v6619, 16
      %v6749 = vrot.slane %v6747, 5
      %v6750 = vsel %vm1012, %v6745, %v6749
      %v6752 = vshrl.u32 %v6593, 16
      %v6754 = vrot.slane %v6752, 4
      %v6755 = vshll.u32 %v6593, 16
      %v6757 = vrot.slane %v6755, 5
      %v6758 = vor.u32 %v6754, %v6757
      %v6759 = vrot.slane %v6758, 4
      %v6761 = vshll.u32 %v6594, 16
      %v6763 = vrot.slane %v6761, 5
      %v6764 = vsel %vm1012, %v6759, %v6763
      %v6765 = vshrl.u32 %v6594, 16
      %v6767 = vrot.slane %v6765, 4
      %v6768 = vor.u32 %v6767, %v6763
      %v6769 = vrot.slane %v6768, 4
      %v6771 = vshll.u32 %v6620, 16
      %v6773 = vrot.slane %v6771, 5
      %v6774 = vsel %vm1012, %v6769, %v6773
      %v6776 = vshrl.u32 %v6595, 16
      %v6778 = vrot.slane %v6776, 4
      %v6779 = vshll.u32 %v6595, 16
      %v6781 = vrot.slane %v6779, 5
      %v6782 = vor.u32 %v6778, %v6781
      %v6783 = vrot.slane %v6782, 4
      %v6785 = vshll.u32 %v6596, 16
      %v6787 = vrot.slane %v6785, 5
      %v6788 = vsel %vm1012, %v6783, %v6787
      %v6789 = vshrl.u32 %v6596, 16
      %v6791 = vrot.slane %v6789, 4
      %v6792 = vor.u32 %v6791, %v6787
      %v6793 = vrot.slane %v6792, 4
      %v6795 = vshll.u32 %v6621, 16
      %v6797 = vrot.slane %v6795, 5
      %v6798 = vsel %vm1012, %v6793, %v6797
      %v6800 = vshrl.u32 %v6597, 16
      %v6802 = vrot.slane %v6800, 4
      %v6803 = vshll.u32 %v6597, 16
      %v6805 = vrot.slane %v6803, 5
      %v6806 = vor.u32 %v6802, %v6805
      %v6807 = vrot.slane %v6806, 4
      %v6809 = vshll.u32 %v6598, 16
      %v6811 = vrot.slane %v6809, 5
      %v6812 = vsel %vm1012, %v6807, %v6811
      %v6813 = vshrl.u32 %v6598, 16
      %v6815 = vrot.slane %v6813, 4
      %v6816 = vor.u32 %v6815, %v6811
      %v6817 = vrot.slane %v6816, 4
      %v6819 = vshll.u32 %v6622, 16
      %v6821 = vrot.slane %v6819, 5
      %v6822 = vsel %vm1012, %v6817, %v6821
      %v6824 = vshrl.u32 %v6599, 16
      %v6826 = vrot.slane %v6824, 4
      %v6827 = vshll.u32 %v6599, 16
      %v6829 = vrot.slane %v6827, 5
      %v6830 = vor.u32 %v6826, %v6829
      %v6831 = vrot.slane %v6830, 4
      %v6833 = vshll.u32 %v6600, 16
      %v6835 = vrot.slane %v6833, 5
      %v6836 = vsel %vm1012, %v6831, %v6835
      %v6837 = vshrl.u32 %v6600, 16
      %v6839 = vrot.slane %v6837, 4
      %v6840 = vor.u32 %v6839, %v6835
      %v6841 = vrot.slane %v6840, 4
      %v6843 = vshll.u32 %v6623, 16
      %v6845 = vrot.slane %v6843, 5
      %v6846 = vsel %vm1012, %v6841, %v6845
      %v6848 = vshrl.u32 %v6601, 16
      %v6850 = vrot.slane %v6848, 4
      %v6851 = vshll.u32 %v6601, 16
      %v6853 = vrot.slane %v6851, 5
      %v6854 = vor.u32 %v6850, %v6853
      %v6855 = vrot.slane %v6854, 4
      %v6857 = vshll.u32 %v6602, 16
      %v6859 = vrot.slane %v6857, 5
      %v6860 = vsel %vm1012, %v6855, %v6859
      %v6861 = vshrl.u32 %v6602, 16
      %v6863 = vrot.slane %v6861, 4
      %v6864 = vor.u32 %v6863, %v6859
      %v6865 = vrot.slane %v6864, 4
      %v6867 = vshll.u32 %v6624, 16
      %v6869 = vrot.slane %v6867, 5
      %v6870 = vsel %vm1012, %v6865, %v6869
      %v6872 = vshrl.u32 %v6603, 16
      %v6874 = vrot.slane %v6872, 4
      %v6875 = vshll.u32 %v6603, 16
      %v6877 = vrot.slane %v6875, 5
      %v6878 = vor.u32 %v6874, %v6877
      %v6879 = vrot.slane %v6878, 4
      %v6881 = vshll.u32 %v6604, 16
      %v6883 = vrot.slane %v6881, 5
      %v6884 = vsel %vm1012, %v6879, %v6883
      %v6885 = vshrl.u32 %v6604, 16
      %v6887 = vrot.slane %v6885, 4
      %v6888 = vor.u32 %v6887, %v6883
      %v6889 = vrot.slane %v6888, 4
      %v6891 = vshll.u32 %v6625, 16
      %v6893 = vrot.slane %v6891, 5
      %v6894 = vsel %vm1012, %v6889, %v6893
      %v6896 = vshrl.u32 %v6605, 16
      %v6898 = vrot.slane %v6896, 4
      %v6899 = vshll.u32 %v6605, 16
      %v6901 = vrot.slane %v6899, 5
      %v6902 = vor.u32 %v6898, %v6901
      %v6903 = vrot.slane %v6902, 4
      %v6905 = vshll.u32 %v6606, 16
      %v6907 = vrot.slane %v6905, 5
      %v6908 = vsel %vm1012, %v6903, %v6907
      %v6909 = vshrl.u32 %v6606, 16
      %v6911 = vrot.slane %v6909, 4
      %v6912 = vor.u32 %v6911, %v6907
      %v6913 = vrot.slane %v6912, 4
      %v6915 = vshll.u32 %v6626, 16
      %v6917 = vrot.slane %v6915, 5
      %v6918 = vsel %vm1012, %v6913, %v6917
      %v6920 = vshrl.u32 %v6607, 16
      %v6922 = vrot.slane %v6920, 4
      %v6923 = vshll.u32 %v6607, 16
      %v6925 = vrot.slane %v6923, 5
      %v6926 = vor.u32 %v6922, %v6925
      %v6927 = vrot.slane %v6926, 4
      %v6929 = vshll.u32 %v6608, 16
      %v6931 = vrot.slane %v6929, 5
      %v6932 = vsel %vm1012, %v6927, %v6931
      %v6933 = vshrl.u32 %v6608, 16
      %v6935 = vrot.slane %v6933, 4
      %v6936 = vor.u32 %v6935, %v6931
      %v6937 = vrot.slane %v6936, 4
      %v6939 = vshll.u32 %v6627, 16
      %v6941 = vrot.slane %v6939, 5
      %v6942 = vsel %vm1012, %v6937, %v6941
      %v6944 = vshrl.u32 %v6609, 16
      %v6946 = vrot.slane %v6944, 4
      %v6947 = vshll.u32 %v6609, 16
      %v6949 = vrot.slane %v6947, 5
      %v6950 = vor.u32 %v6946, %v6949
      %v6951 = vrot.slane %v6950, 4
      %v6953 = vshll.u32 %v6610, 16
      %v6955 = vrot.slane %v6953, 5
      %v6956 = vsel %vm1012, %v6951, %v6955
      %v6957 = vshrl.u32 %v6610, 16
      %v6959 = vrot.slane %v6957, 4
      %v6960 = vor.u32 %v6959, %v6955
      %v6961 = vrot.slane %v6960, 4
      %v6963 = vshll.u32 %v6628, 16
      %v6965 = vrot.slane %v6963, 5
      %v6966 = vsel %vm1012, %v6961, %v6965
      %v6968 = vshrl.u32 %v6611, 16
      %v6970 = vrot.slane %v6968, 4
      %v6971 = vshll.u32 %v6611, 16
      %v6973 = vrot.slane %v6971, 5
      %v6974 = vor.u32 %v6970, %v6973
      %v6975 = vrot.slane %v6974, 4
      %v6977 = vshll.u32 %v6612, 16
      %v6979 = vrot.slane %v6977, 5
      %v6980 = vsel %vm1012, %v6975, %v6979
      %v6981 = vshrl.u32 %v6612, 16
      %v6983 = vrot.slane %v6981, 4
      %v6984 = vor.u32 %v6983, %v6979
      %v6985 = vrot.slane %v6984, 4
      %v6987 = vshll.u32 %v6629, 16
      %v6989 = vrot.slane %v6987, 5
      %v6990 = vsel %vm1012, %v6985, %v6989
      %v6992 = vshrl.u32 %v6613, 16
      %v6994 = vrot.slane %v6992, 4
      %v6995 = vshll.u32 %v6613, 16
      %v6997 = vrot.slane %v6995, 5
      %v6998 = vor.u32 %v6994, %v6997
      %v6999 = vrot.slane %v6998, 4
      %v7001 = vshll.u32 %v6614, 16
      %v7003 = vrot.slane %v7001, 5
      %v7004 = vsel %vm1012, %v6999, %v7003
      %v7005 = vshrl.u32 %v6614, 16
      %v7007 = vrot.slane %v7005, 4
      %v7008 = vor.u32 %v7007, %v7003
      %v7009 = vrot.slane %v7008, 4
      %v7011 = vshll.u32 %v6630, 16
      %v7013 = vrot.slane %v7011, 5
      %v7014 = vsel %vm1012, %v7009, %v7013
      %v7015 = vld [vmem:[%s6582] sm:$0xe]
      %v7016 = vld [vmem:[%s6582 + $0xc] sm:$0xe]
      %v7017 = vld [vmem:[%s6582 + $0x18] sm:$0xe]
      %v7018 = vld [vmem:[%s6582 + $0x24] sm:$0xe]
      %v7019 = vld [vmem:[%s6582 + $0x30] sm:$0xe]
      %v7020 = vld [vmem:[%s6582 + $0x3c] sm:$0xe]
      %v7021 = vld [vmem:[%s6582 + $0x48] sm:$0xe]
      %v7022 = vld [vmem:[%s6582 + $0x54] sm:$0xe]
      %v7023 = vld [vmem:[%s6582 + $0x60] sm:$0xe]
      %v7024 = vld [vmem:[%s6582 + $0x6c] sm:$0xe]
      %v7025 = vld [vmem:[%s6582 + $0x78] sm:$0xe]
      %v7026 = vld [vmem:[%s6582 + $0x84] sm:$0xe]
      %v7027 = vld [vmem:[%s6582 + $0x90] sm:$0xe]
      %v7028 = vld [vmem:[%s6582 + $0x9c] sm:$0xe]
      %v7029 = vld [vmem:[%s6582 + $0xa8] sm:$0xe]
      %v7030 = vld [vmem:[%s6582 + $0xb4] sm:$0xe]
      %v7079 = vrot.slane %v7015, 5
      %v7080 = vrot.slane %v7079, 4
      %v7081 = vrot.slane %v6584, 5
      %v7082 = vsel %vm1463, %v7080, %v7081
      %v7083 = vrot.slane %v7081, 4
      %v7084 = vrot.slane %v6615, 5
      %v7085 = vsel %vm1463, %v7083, %v7084
      %v7086 = vrot.slane %v7016, 5
      %v7087 = vrot.slane %v7086, 4
      %v7088 = vrot.slane %v6586, 5
      %v7089 = vsel %vm1463, %v7087, %v7088
      %v7090 = vrot.slane %v7088, 4
      %v7091 = vrot.slane %v6616, 5
      %v7092 = vsel %vm1463, %v7090, %v7091
      %v7093 = vrot.slane %v7017, 5
      %v7094 = vrot.slane %v7093, 4
      %v7095 = vrot.slane %v6588, 5
      %v7096 = vsel %vm1463, %v7094, %v7095
      %v7097 = vrot.slane %v7095, 4
      %v7098 = vrot.slane %v6617, 5
      %v7099 = vsel %vm1463, %v7097, %v7098
      %v7100 = vrot.slane %v7018, 5
      %v7101 = vrot.slane %v7100, 4
      %v7102 = vrot.slane %v6590, 5
      %v7103 = vsel %vm1463, %v7101, %v7102
      %v7104 = vrot.slane %v7102, 4
      %v7105 = vrot.slane %v6618, 5
      %v7106 = vsel %vm1463, %v7104, %v7105
      %v7107 = vrot.slane %v7019, 5
      %v7108 = vrot.slane %v7107, 4
      %v7109 = vrot.slane %v6592, 5
      %v7110 = vsel %vm1463, %v7108, %v7109
      %v7111 = vrot.slane %v7109, 4
      %v7112 = vrot.slane %v6619, 5
      %v7113 = vsel %vm1463, %v7111, %v7112
      %v7114 = vrot.slane %v7020, 5
      %v7115 = vrot.slane %v7114, 4
      %v7116 = vrot.slane %v6594, 5
      %v7117 = vsel %vm1463, %v7115, %v7116
      %v7118 = vrot.slane %v7116, 4
      %v7119 = vrot.slane %v6620, 5
      %v7120 = vsel %vm1463, %v7118, %v7119
      %v7121 = vrot.slane %v7021, 5
      %v7122 = vrot.slane %v7121, 4
      %v7123 = vrot.slane %v6596, 5
      %v7124 = vsel %vm1463, %v7122, %v7123
      %v7125 = vrot.slane %v7123, 4
      %v7126 = vrot.slane %v6621, 5
      %v7127 = vsel %vm1463, %v7125, %v7126
      %v7128 = vrot.slane %v7022, 5
      %v7129 = vrot.slane %v7128, 4
      %v7130 = vrot.slane %v6598, 5
      %v7131 = vsel %vm1463, %v7129, %v7130
      %v7132 = vrot.slane %v7130, 4
      %v7133 = vrot.slane %v6622, 5
      %v7134 = vsel %vm1463, %v7132, %v7133
      %v7135 = vrot.slane %v7023, 5
      %v7136 = vrot.slane %v7135, 4
      %v7137 = vrot.slane %v6600, 5
      %v7138 = vsel %vm1463, %v7136, %v7137
      %v7139 = vrot.slane %v7137, 4
      %v7140 = vrot.slane %v6623, 5
      %v7141 = vsel %vm1463, %v7139, %v7140
      %v7142 = vrot.slane %v7024, 5
      %v7143 = vrot.slane %v7142, 4
      %v7144 = vrot.slane %v6602, 5
      %v7145 = vsel %vm1463, %v7143, %v7144
      %v7146 = vrot.slane %v7144, 4
      %v7147 = vrot.slane %v6624, 5
      %v7148 = vsel %vm1463, %v7146, %v7147
      %v7149 = vrot.slane %v7025, 5
      %v7150 = vrot.slane %v7149, 4
      %v7151 = vrot.slane %v6604, 5
      %v7152 = vsel %vm1463, %v7150, %v7151
      %v7153 = vrot.slane %v7151, 4
      %v7154 = vrot.slane %v6625, 5
      %v7155 = vsel %vm1463, %v7153, %v7154
      %v7156 = vrot.slane %v7026, 5
      %v7157 = vrot.slane %v7156, 4
      %v7158 = vrot.slane %v6606, 5
      %v7159 = vsel %vm1463, %v7157, %v7158
      %v7160 = vrot.slane %v7158, 4
      %v7161 = vrot.slane %v6626, 5
      %v7162 = vsel %vm1463, %v7160, %v7161
      %v7163 = vrot.slane %v7027, 5
      %v7164 = vrot.slane %v7163, 4
      %v7165 = vrot.slane %v6608, 5
      %v7166 = vsel %vm1463, %v7164, %v7165
      %v7167 = vrot.slane %v7165, 4
      %v7168 = vrot.slane %v6627, 5
      %v7169 = vsel %vm1463, %v7167, %v7168
      %v7170 = vrot.slane %v7028, 5
      %v7171 = vrot.slane %v7170, 4
      %v7172 = vrot.slane %v6610, 5
      %v7173 = vsel %vm1463, %v7171, %v7172
      %v7174 = vrot.slane %v7172, 4
      %v7175 = vrot.slane %v6628, 5
      %v7176 = vsel %vm1463, %v7174, %v7175
      %v7177 = vrot.slane %v7029, 5
      %v7178 = vrot.slane %v7177, 4
      %v7179 = vrot.slane %v6612, 5
      %v7180 = vsel %vm1463, %v7178, %v7179
      %v7181 = vrot.slane %v7179, 4
      %v7182 = vrot.slane %v6629, 5
      %v7183 = vsel %vm1463, %v7181, %v7182
      %v7184 = vrot.slane %v7030, 5
      %v7185 = vrot.slane %v7184, 4
      %v7186 = vrot.slane %v6614, 5
      %v7187 = vsel %vm1463, %v7185, %v7186
      %v7188 = vrot.slane %v7186, 4
      %v7189 = vrot.slane %v6630, 5
      %v7190 = vsel %vm1463, %v7188, %v7189
      %v7207 = vunpack.c.l.b16 %v5366
      %v7208 = vunpack.c.l.b16 %v5367
      %v7209 = vunpack.c.l.b16 %v5368
      %v7210 = vunpack.c.l.b16 %v5369
      %v7211 = vunpack.c.l.b16 %v5370
      %v7212 = vunpack.c.l.b16 %v5371
      %v7213 = vunpack.c.l.b16 %v5372
      %v7214 = vunpack.c.l.b16 %v5373
      %v7215 = vunpack.c.l.b16 %v5374
      %v7216 = vunpack.c.l.b16 %v5375
      %v7217 = vunpack.c.l.b16 %v5376
      %v7218 = vunpack.c.l.b16 %v5377
      %v7219 = vunpack.c.l.b16 %v5378
      %v7220 = vunpack.c.l.b16 %v5379
      %v7221 = vunpack.c.l.b16 %v5380
      %v7222 = vunpack.c.l.b16 %v5381
      %v7223 = vunpack.c.l.b16 %v5382
      %v7224 = vunpack.c.l.b16 %v5383
      %v7225 = vunpack.c.l.b16 %v5384
      %v7226 = vunpack.c.l.b16 %v5385
      %v7227 = vunpack.c.l.b16 %v5386
      %v7228 = vunpack.c.l.b16 %v5387
      %v7229 = vunpack.c.l.b16 %v5388
      %v7230 = vunpack.c.l.b16 %v5389
      %v7231 = vunpack.c.l.b16 %v5390
      %v7232 = vunpack.c.l.b16 %v5391
      %v7233 = vunpack.c.l.b16 %v5392
      %v7234 = vunpack.c.l.b16 %v5393
      %v7235 = vunpack.c.l.b16 %v5394
      %v7236 = vunpack.c.l.b16 %v5395
      %v7237 = vunpack.c.l.b16 %v5396
      %v7238 = vunpack.c.l.b16 %v5397
      %v7239 = vpack.c.b16 %v7208, %v7207
      %v7240 = vpack.c.b16 %v7210, %v7209
      %v7241 = vpack.c.b16 %v7212, %v7211
      %v7242 = vpack.c.b16 %v7214, %v7213
      %v7243 = vpack.c.b16 %v7216, %v7215
      %v7244 = vpack.c.b16 %v7218, %v7217
      %v7245 = vpack.c.b16 %v7220, %v7219
      %v7246 = vpack.c.b16 %v7222, %v7221
      %v7247 = vpack.c.b16 %v7224, %v7223
      %v7248 = vpack.c.b16 %v7226, %v7225
      %v7249 = vpack.c.b16 %v7228, %v7227
      %v7250 = vpack.c.b16 %v7230, %v7229
      %v7251 = vpack.c.b16 %v7232, %v7231
      %v7252 = vpack.c.b16 %v7234, %v7233
      %v7253 = vpack.c.b16 %v7236, %v7235
      %v7254 = vpack.c.b16 %v7238, %v7237
      %v7271 = vunpack.c.l.b16 %v5427
      %v7272 = vunpack.c.l.b16 %v5437
      %v7273 = vunpack.c.l.b16 %v5451
      %v7274 = vunpack.c.l.b16 %v5461
      %v7275 = vunpack.c.l.b16 %v5475
      %v7276 = vunpack.c.l.b16 %v5485
      %v7277 = vunpack.c.l.b16 %v5499
      %v7278 = vunpack.c.l.b16 %v5509
      %v7279 = vunpack.c.l.b16 %v5523
      %v7280 = vunpack.c.l.b16 %v5533
      %v7281 = vunpack.c.l.b16 %v5547
      %v7282 = vunpack.c.l.b16 %v5557
      %v7283 = vunpack.c.l.b16 %v5571
      %v7284 = vunpack.c.l.b16 %v5581
      %v7285 = vunpack.c.l.b16 %v5595
      %v7286 = vunpack.c.l.b16 %v5605
      %v7287 = vunpack.c.l.b16 %v5619
      %v7288 = vunpack.c.l.b16 %v5629
      %v7289 = vunpack.c.l.b16 %v5643
      %v7290 = vunpack.c.l.b16 %v5653
      %v7291 = vunpack.c.l.b16 %v5667
      %v7292 = vunpack.c.l.b16 %v5677
      %v7293 = vunpack.c.l.b16 %v5691
      %v7294 = vunpack.c.l.b16 %v5701
      %v7295 = vunpack.c.l.b16 %v5715
      %v7296 = vunpack.c.l.b16 %v5725
      %v7297 = vunpack.c.l.b16 %v5739
      %v7298 = vunpack.c.l.b16 %v5749
      %v7299 = vunpack.c.l.b16 %v5763
      %v7300 = vunpack.c.l.b16 %v5773
      %v7301 = vunpack.c.l.b16 %v5787
      %v7302 = vunpack.c.l.b16 %v5797
      %v7303 = vpack.c.b16 %v7272, %v7271
      %v7304 = vpack.c.b16 %v7274, %v7273
      %v7305 = vpack.c.b16 %v7276, %v7275
      %v7306 = vpack.c.b16 %v7278, %v7277
      %v7307 = vpack.c.b16 %v7280, %v7279
      %v7308 = vpack.c.b16 %v7282, %v7281
      %v7309 = vpack.c.b16 %v7284, %v7283
      %v7310 = vpack.c.b16 %v7286, %v7285
      %v7311 = vpack.c.b16 %v7288, %v7287
      %v7312 = vpack.c.b16 %v7290, %v7289
      %v7313 = vpack.c.b16 %v7292, %v7291
      %v7314 = vpack.c.b16 %v7294, %v7293
      %v7315 = vpack.c.b16 %v7296, %v7295
      %v7316 = vpack.c.b16 %v7298, %v7297
      %v7317 = vpack.c.b16 %v7300, %v7299
      %v7318 = vpack.c.b16 %v7302, %v7301
      %v7335 = vunpack.c.l.b16 %v5865
      %v7336 = vunpack.c.l.b16 %v5868
      %v7337 = vunpack.c.l.b16 %v5872
      %v7338 = vunpack.c.l.b16 %v5875
      %v7339 = vunpack.c.l.b16 %v5879
      %v7340 = vunpack.c.l.b16 %v5882
      %v7341 = vunpack.c.l.b16 %v5886
      %v7342 = vunpack.c.l.b16 %v5889
      %v7343 = vunpack.c.l.b16 %v5893
      %v7344 = vunpack.c.l.b16 %v5896
      %v7345 = vunpack.c.l.b16 %v5900
      %v7346 = vunpack.c.l.b16 %v5903
      %v7347 = vunpack.c.l.b16 %v5907
      %v7348 = vunpack.c.l.b16 %v5910
      %v7349 = vunpack.c.l.b16 %v5914
      %v7350 = vunpack.c.l.b16 %v5917
      %v7351 = vunpack.c.l.b16 %v5921
      %v7352 = vunpack.c.l.b16 %v5924
      %v7353 = vunpack.c.l.b16 %v5928
      %v7354 = vunpack.c.l.b16 %v5931
      %v7355 = vunpack.c.l.b16 %v5935
      %v7356 = vunpack.c.l.b16 %v5938
      %v7357 = vunpack.c.l.b16 %v5942
      %v7358 = vunpack.c.l.b16 %v5945
      %v7359 = vunpack.c.l.b16 %v5949
      %v7360 = vunpack.c.l.b16 %v5952
      %v7361 = vunpack.c.l.b16 %v5956
      %v7362 = vunpack.c.l.b16 %v5959
      %v7363 = vunpack.c.l.b16 %v5963
      %v7364 = vunpack.c.l.b16 %v5966
      %v7365 = vunpack.c.l.b16 %v5970
      %v7366 = vunpack.c.l.b16 %v5973
      %v7367 = vpack.c.b16 %v7336, %v7335
      %v7368 = vpack.c.b16 %v7338, %v7337
      %v7369 = vpack.c.b16 %v7340, %v7339
      %v7370 = vpack.c.b16 %v7342, %v7341
      %v7371 = vpack.c.b16 %v7344, %v7343
      %v7372 = vpack.c.b16 %v7346, %v7345
      %v7373 = vpack.c.b16 %v7348, %v7347
      %v7374 = vpack.c.b16 %v7350, %v7349
      %v7375 = vpack.c.b16 %v7352, %v7351
      %v7376 = vpack.c.b16 %v7354, %v7353
      %v7377 = vpack.c.b16 %v7356, %v7355
      %v7378 = vpack.c.b16 %v7358, %v7357
      %v7379 = vpack.c.b16 %v7360, %v7359
      %v7380 = vpack.c.b16 %v7362, %v7361
      %v7381 = vpack.c.b16 %v7364, %v7363
      %v7382 = vpack.c.b16 %v7366, %v7365
      %v7415 = vunpack.c.l.b16 %v5974
      %v7416 = vunpack.c.l.b16 %v5975
      %v7417 = vunpack.c.l.b16 %v5976
      %v7418 = vunpack.c.l.b16 %v5977
      %v7419 = vunpack.c.l.b16 %v5978
      %v7420 = vunpack.c.l.b16 %v5979
      %v7421 = vunpack.c.l.b16 %v5980
      %v7422 = vunpack.c.l.b16 %v5981
      %v7423 = vunpack.c.l.b16 %v5982
      %v7424 = vunpack.c.l.b16 %v5983
      %v7425 = vunpack.c.l.b16 %v5984
      %v7426 = vunpack.c.l.b16 %v5985
      %v7427 = vunpack.c.l.b16 %v5986
      %v7428 = vunpack.c.l.b16 %v5987
      %v7429 = vunpack.c.l.b16 %v5988
      %v7430 = vunpack.c.l.b16 %v5989
      %v7431 = vunpack.c.l.b16 %v5990
      %v7432 = vunpack.c.l.b16 %v5991
      %v7433 = vunpack.c.l.b16 %v5992
      %v7434 = vunpack.c.l.b16 %v5993
      %v7435 = vunpack.c.l.b16 %v5994
      %v7436 = vunpack.c.l.b16 %v5995
      %v7437 = vunpack.c.l.b16 %v5996
      %v7438 = vunpack.c.l.b16 %v5997
      %v7439 = vunpack.c.l.b16 %v5998
      %v7440 = vunpack.c.l.b16 %v5999
      %v7441 = vunpack.c.l.b16 %v6000
      %v7442 = vunpack.c.l.b16 %v6001
      %v7443 = vunpack.c.l.b16 %v6002
      %v7444 = vunpack.c.l.b16 %v6003
      %v7445 = vunpack.c.l.b16 %v6004
      %v7446 = vunpack.c.l.b16 %v6005
      %v7447 = vpack.c.b16 %v7416, %v7415
      %v7448 = vpack.c.b16 %v7418, %v7417
      %v7449 = vpack.c.b16 %v7420, %v7419
      %v7450 = vpack.c.b16 %v7422, %v7421
      %v7451 = vpack.c.b16 %v7424, %v7423
      %v7452 = vpack.c.b16 %v7426, %v7425
      %v7453 = vpack.c.b16 %v7428, %v7427
      %v7454 = vpack.c.b16 %v7430, %v7429
      %v7455 = vpack.c.b16 %v7432, %v7431
      %v7456 = vpack.c.b16 %v7434, %v7433
      %v7457 = vpack.c.b16 %v7436, %v7435
      %v7458 = vpack.c.b16 %v7438, %v7437
      %v7459 = vpack.c.b16 %v7440, %v7439
      %v7460 = vpack.c.b16 %v7442, %v7441
      %v7461 = vpack.c.b16 %v7444, %v7443
      %v7462 = vpack.c.b16 %v7446, %v7445
      %v7479 = vunpack.c.l.b16 %v6035
      %v7480 = vunpack.c.l.b16 %v6045
      %v7481 = vunpack.c.l.b16 %v6059
      %v7482 = vunpack.c.l.b16 %v6069
      %v7483 = vunpack.c.l.b16 %v6083
      %v7484 = vunpack.c.l.b16 %v6093
      %v7485 = vunpack.c.l.b16 %v6107
      %v7486 = vunpack.c.l.b16 %v6117
      %v7487 = vunpack.c.l.b16 %v6131
      %v7488 = vunpack.c.l.b16 %v6141
      %v7489 = vunpack.c.l.b16 %v6155
      %v7490 = vunpack.c.l.b16 %v6165
      %v7491 = vunpack.c.l.b16 %v6179
      %v7492 = vunpack.c.l.b16 %v6189
      %v7493 = vunpack.c.l.b16 %v6203
      %v7494 = vunpack.c.l.b16 %v6213
      %v7495 = vunpack.c.l.b16 %v6227
      %v7496 = vunpack.c.l.b16 %v6237
      %v7497 = vunpack.c.l.b16 %v6251
      %v7498 = vunpack.c.l.b16 %v6261
      %v7499 = vunpack.c.l.b16 %v6275
      %v7500 = vunpack.c.l.b16 %v6285
      %v7501 = vunpack.c.l.b16 %v6299
      %v7502 = vunpack.c.l.b16 %v6309
      %v7503 = vunpack.c.l.b16 %v6323
      %v7504 = vunpack.c.l.b16 %v6333
      %v7505 = vunpack.c.l.b16 %v6347
      %v7506 = vunpack.c.l.b16 %v6357
      %v7507 = vunpack.c.l.b16 %v6371
      %v7508 = vunpack.c.l.b16 %v6381
      %v7509 = vunpack.c.l.b16 %v6395
      %v7510 = vunpack.c.l.b16 %v6405
      %v7511 = vpack.c.b16 %v7480, %v7479
      %v7512 = vpack.c.b16 %v7482, %v7481
      %v7513 = vpack.c.b16 %v7484, %v7483
      %v7514 = vpack.c.b16 %v7486, %v7485
      %v7515 = vpack.c.b16 %v7488, %v7487
      %v7516 = vpack.c.b16 %v7490, %v7489
      %v7517 = vpack.c.b16 %v7492, %v7491
      %v7518 = vpack.c.b16 %v7494, %v7493
      %v7519 = vpack.c.b16 %v7496, %v7495
      %v7520 = vpack.c.b16 %v7498, %v7497
      %v7521 = vpack.c.b16 %v7500, %v7499
      %v7522 = vpack.c.b16 %v7502, %v7501
      %v7523 = vpack.c.b16 %v7504, %v7503
      %v7524 = vpack.c.b16 %v7506, %v7505
      %v7525 = vpack.c.b16 %v7508, %v7507
      %v7526 = vpack.c.b16 %v7510, %v7509
      %v7543 = vunpack.c.l.b16 %v6473
      %v7544 = vunpack.c.l.b16 %v6476
      %v7545 = vunpack.c.l.b16 %v6480
      %v7546 = vunpack.c.l.b16 %v6483
      %v7547 = vunpack.c.l.b16 %v6487
      %v7548 = vunpack.c.l.b16 %v6490
      %v7549 = vunpack.c.l.b16 %v6494
      %v7550 = vunpack.c.l.b16 %v6497
      %v7551 = vunpack.c.l.b16 %v6501
      %v7552 = vunpack.c.l.b16 %v6504
      %v7553 = vunpack.c.l.b16 %v6508
      %v7554 = vunpack.c.l.b16 %v6511
      %v7555 = vunpack.c.l.b16 %v6515
      %v7556 = vunpack.c.l.b16 %v6518
      %v7557 = vunpack.c.l.b16 %v6522
      %v7558 = vunpack.c.l.b16 %v6525
      %v7559 = vunpack.c.l.b16 %v6529
      %v7560 = vunpack.c.l.b16 %v6532
      %v7561 = vunpack.c.l.b16 %v6536
      %v7562 = vunpack.c.l.b16 %v6539
      %v7563 = vunpack.c.l.b16 %v6543
      %v7564 = vunpack.c.l.b16 %v6546
      %v7565 = vunpack.c.l.b16 %v6550
      %v7566 = vunpack.c.l.b16 %v6553
      %v7567 = vunpack.c.l.b16 %v6557
      %v7568 = vunpack.c.l.b16 %v6560
      %v7569 = vunpack.c.l.b16 %v6564
      %v7570 = vunpack.c.l.b16 %v6567
      %v7571 = vunpack.c.l.b16 %v6571
      %v7572 = vunpack.c.l.b16 %v6574
      %v7573 = vunpack.c.l.b16 %v6578
      %v7574 = vunpack.c.l.b16 %v6581
      %v7575 = vpack.c.b16 %v7544, %v7543
      %v7576 = vpack.c.b16 %v7546, %v7545
      %v7577 = vpack.c.b16 %v7548, %v7547
      %v7578 = vpack.c.b16 %v7550, %v7549
      %v7579 = vpack.c.b16 %v7552, %v7551
      %v7580 = vpack.c.b16 %v7554, %v7553
      %v7581 = vpack.c.b16 %v7556, %v7555
      %v7582 = vpack.c.b16 %v7558, %v7557
      %v7583 = vpack.c.b16 %v7560, %v7559
      %v7584 = vpack.c.b16 %v7562, %v7561
      %v7585 = vpack.c.b16 %v7564, %v7563
      %v7586 = vpack.c.b16 %v7566, %v7565
      %v7587 = vpack.c.b16 %v7568, %v7567
      %v7588 = vpack.c.b16 %v7570, %v7569
      %v7589 = vpack.c.b16 %v7572, %v7571
      %v7590 = vpack.c.b16 %v7574, %v7573
      %v7623 = vunpack.c.l.b16 %v6583
      %v7624 = vunpack.c.l.b16 %v6584
      %v7625 = vunpack.c.l.b16 %v6585
      %v7626 = vunpack.c.l.b16 %v6586
      %v7627 = vunpack.c.l.b16 %v6587
      %v7628 = vunpack.c.l.b16 %v6588
      %v7629 = vunpack.c.l.b16 %v6589
      %v7630 = vunpack.c.l.b16 %v6590
      %v7631 = vunpack.c.l.b16 %v6591
      %v7632 = vunpack.c.l.b16 %v6592
      %v7633 = vunpack.c.l.b16 %v6593
      %v7634 = vunpack.c.l.b16 %v6594
      %v7635 = vunpack.c.l.b16 %v6595
      %v7636 = vunpack.c.l.b16 %v6596
      %v7637 = vunpack.c.l.b16 %v6597
      %v7638 = vunpack.c.l.b16 %v6598
      %v7639 = vunpack.c.l.b16 %v6599
      %v7640 = vunpack.c.l.b16 %v6600
      %v7641 = vunpack.c.l.b16 %v6601
      %v7642 = vunpack.c.l.b16 %v6602
      %v7643 = vunpack.c.l.b16 %v6603
      %v7644 = vunpack.c.l.b16 %v6604
      %v7645 = vunpack.c.l.b16 %v6605
      %v7646 = vunpack.c.l.b16 %v6606
      %v7647 = vunpack.c.l.b16 %v6607
      %v7648 = vunpack.c.l.b16 %v6608
      %v7649 = vunpack.c.l.b16 %v6609
      %v7650 = vunpack.c.l.b16 %v6610
      %v7651 = vunpack.c.l.b16 %v6611
      %v7652 = vunpack.c.l.b16 %v6612
      %v7653 = vunpack.c.l.b16 %v6613
      %v7654 = vunpack.c.l.b16 %v6614
      %v7655 = vpack.c.b16 %v7624, %v7623
      %v7656 = vpack.c.b16 %v7626, %v7625
      %v7657 = vpack.c.b16 %v7628, %v7627
      %v7658 = vpack.c.b16 %v7630, %v7629
      %v7659 = vpack.c.b16 %v7632, %v7631
      %v7660 = vpack.c.b16 %v7634, %v7633
      %v7661 = vpack.c.b16 %v7636, %v7635
      %v7662 = vpack.c.b16 %v7638, %v7637
      %v7663 = vpack.c.b16 %v7640, %v7639
      %v7664 = vpack.c.b16 %v7642, %v7641
      %v7665 = vpack.c.b16 %v7644, %v7643
      %v7666 = vpack.c.b16 %v7646, %v7645
      %v7667 = vpack.c.b16 %v7648, %v7647
      %v7668 = vpack.c.b16 %v7650, %v7649
      %v7669 = vpack.c.b16 %v7652, %v7651
      %v7670 = vpack.c.b16 %v7654, %v7653
      %v7687 = vunpack.c.l.b16 %v6644
      %v7688 = vunpack.c.l.b16 %v6654
      %v7689 = vunpack.c.l.b16 %v6668
      %v7690 = vunpack.c.l.b16 %v6678
      %v7691 = vunpack.c.l.b16 %v6692
      %v7692 = vunpack.c.l.b16 %v6702
      %v7693 = vunpack.c.l.b16 %v6716
      %v7694 = vunpack.c.l.b16 %v6726
      %v7695 = vunpack.c.l.b16 %v6740
      %v7696 = vunpack.c.l.b16 %v6750
      %v7697 = vunpack.c.l.b16 %v6764
      %v7698 = vunpack.c.l.b16 %v6774
      %v7699 = vunpack.c.l.b16 %v6788
      %v7700 = vunpack.c.l.b16 %v6798
      %v7701 = vunpack.c.l.b16 %v6812
      %v7702 = vunpack.c.l.b16 %v6822
      %v7703 = vunpack.c.l.b16 %v6836
      %v7704 = vunpack.c.l.b16 %v6846
      %v7705 = vunpack.c.l.b16 %v6860
      %v7706 = vunpack.c.l.b16 %v6870
      %v7707 = vunpack.c.l.b16 %v6884
      %v7708 = vunpack.c.l.b16 %v6894
      %v7709 = vunpack.c.l.b16 %v6908
      %v7710 = vunpack.c.l.b16 %v6918
      %v7711 = vunpack.c.l.b16 %v6932
      %v7712 = vunpack.c.l.b16 %v6942
      %v7713 = vunpack.c.l.b16 %v6956
      %v7714 = vunpack.c.l.b16 %v6966
      %v7715 = vunpack.c.l.b16 %v6980
      %v7716 = vunpack.c.l.b16 %v6990
      %v7717 = vunpack.c.l.b16 %v7004
      %v7718 = vunpack.c.l.b16 %v7014
      %v7719 = vpack.c.b16 %v7688, %v7687
      %v7720 = vpack.c.b16 %v7690, %v7689
      %v7721 = vpack.c.b16 %v7692, %v7691
      %v7722 = vpack.c.b16 %v7694, %v7693
      %v7723 = vpack.c.b16 %v7696, %v7695
      %v7724 = vpack.c.b16 %v7698, %v7697
      %v7725 = vpack.c.b16 %v7700, %v7699
      %v7726 = vpack.c.b16 %v7702, %v7701
      %v7727 = vpack.c.b16 %v7704, %v7703
      %v7728 = vpack.c.b16 %v7706, %v7705
      %v7729 = vpack.c.b16 %v7708, %v7707
      %v7730 = vpack.c.b16 %v7710, %v7709
      %v7731 = vpack.c.b16 %v7712, %v7711
      %v7732 = vpack.c.b16 %v7714, %v7713
      %v7733 = vpack.c.b16 %v7716, %v7715
      %v7734 = vpack.c.b16 %v7718, %v7717
      %v7751 = vunpack.c.l.b16 %v7082
      %v7752 = vunpack.c.l.b16 %v7085
      %v7753 = vunpack.c.l.b16 %v7089
      %v7754 = vunpack.c.l.b16 %v7092
      %v7755 = vunpack.c.l.b16 %v7096
      %v7756 = vunpack.c.l.b16 %v7099
      %v7757 = vunpack.c.l.b16 %v7103
      %v7758 = vunpack.c.l.b16 %v7106
      %v7759 = vunpack.c.l.b16 %v7110
      %v7760 = vunpack.c.l.b16 %v7113
      %v7761 = vunpack.c.l.b16 %v7117
      %v7762 = vunpack.c.l.b16 %v7120
      %v7763 = vunpack.c.l.b16 %v7124
      %v7764 = vunpack.c.l.b16 %v7127
      %v7765 = vunpack.c.l.b16 %v7131
      %v7766 = vunpack.c.l.b16 %v7134
      %v7767 = vunpack.c.l.b16 %v7138
      %v7768 = vunpack.c.l.b16 %v7141
      %v7769 = vunpack.c.l.b16 %v7145
      %v7770 = vunpack.c.l.b16 %v7148
      %v7771 = vunpack.c.l.b16 %v7152
      %v7772 = vunpack.c.l.b16 %v7155
      %v7773 = vunpack.c.l.b16 %v7159
      %v7774 = vunpack.c.l.b16 %v7162
      %v7775 = vunpack.c.l.b16 %v7166
      %v7776 = vunpack.c.l.b16 %v7169
      %v7777 = vunpack.c.l.b16 %v7173
      %v7778 = vunpack.c.l.b16 %v7176
      %v7779 = vunpack.c.l.b16 %v7180
      %v7780 = vunpack.c.l.b16 %v7183
      %v7781 = vunpack.c.l.b16 %v7187
      %v7782 = vunpack.c.l.b16 %v7190
      %v7783 = vpack.c.b16 %v7752, %v7751
      %v7784 = vpack.c.b16 %v7754, %v7753
      %v7785 = vpack.c.b16 %v7756, %v7755
      %v7786 = vpack.c.b16 %v7758, %v7757
      %v7787 = vpack.c.b16 %v7760, %v7759
      %v7788 = vpack.c.b16 %v7762, %v7761
      %v7789 = vpack.c.b16 %v7764, %v7763
      %v7790 = vpack.c.b16 %v7766, %v7765
      %v7791 = vpack.c.b16 %v7768, %v7767
      %v7792 = vpack.c.b16 %v7770, %v7769
      %v7793 = vpack.c.b16 %v7772, %v7771
      %v7794 = vpack.c.b16 %v7774, %v7773
      %v7795 = vpack.c.b16 %v7776, %v7775
      %v7796 = vpack.c.b16 %v7778, %v7777
      %v7797 = vpack.c.b16 %v7780, %v7779
      %v7798 = vpack.c.b16 %v7782, %v7781
      %v7847 = vunpack.c.l.b16 %v461
      %v7848 = vunpack.c.l.b16 %v462
      %v7849 = vunpack.c.l.b16 %v463
      %v7850 = vunpack.c.l.b16 %v464
      %v7851 = vunpack.c.l.b16 %v465
      %v7852 = vunpack.c.l.b16 %v466
      %v7853 = vunpack.c.l.b16 %v467
      %v7854 = vunpack.c.l.b16 %v468
      %v7855 = vunpack.c.l.b16 %v469
      %v7856 = vunpack.c.l.b16 %v470
      %v7857 = vunpack.c.l.b16 %v471
      %v7858 = vunpack.c.l.b16 %v472
      %v7859 = vunpack.c.l.b16 %v473
      %v7860 = vunpack.c.l.b16 %v474
      %v7861 = vunpack.c.l.b16 %v475
      %v7862 = vunpack.c.l.b16 %v476
      %v7863 = vunpack.c.l.b16 %v477
      %v7864 = vunpack.c.l.b16 %v478
      %v7865 = vunpack.c.l.b16 %v479
      %v7866 = vunpack.c.l.b16 %v480
      %v7867 = vunpack.c.l.b16 %v481
      %v7868 = vunpack.c.l.b16 %v482
      %v7869 = vunpack.c.l.b16 %v483
      %v7870 = vunpack.c.l.b16 %v484
      %v7871 = vunpack.c.l.b16 %v485
      %v7872 = vunpack.c.l.b16 %v486
      %v7873 = vunpack.c.l.b16 %v487
      %v7874 = vunpack.c.l.b16 %v488
      %v7875 = vunpack.c.l.b16 %v489
      %v7876 = vunpack.c.l.b16 %v490
      %v7877 = vunpack.c.l.b16 %v491
      %v7878 = vunpack.c.l.b16 %v492
      %v7879 = vpack.c.b16 %v7848, %v7847
      %v7880 = vpack.c.b16 %v7850, %v7849
      %v7881 = vpack.c.b16 %v7852, %v7851
      %v7882 = vpack.c.b16 %v7854, %v7853
      %v7883 = vpack.c.b16 %v7856, %v7855
      %v7884 = vpack.c.b16 %v7858, %v7857
      %v7885 = vpack.c.b16 %v7860, %v7859
      %v7886 = vpack.c.b16 %v7862, %v7861
      %v7887 = vpack.c.b16 %v7864, %v7863
      %v7888 = vpack.c.b16 %v7866, %v7865
      %v7889 = vpack.c.b16 %v7868, %v7867
      %v7890 = vpack.c.b16 %v7870, %v7869
      %v7891 = vpack.c.b16 %v7872, %v7871
      %v7892 = vpack.c.b16 %v7874, %v7873
      %v7893 = vpack.c.b16 %v7876, %v7875
      %v7894 = vpack.c.b16 %v7878, %v7877
      %v7911 = vld [vmem:[%s3] sm:$0xf]
      %v7912 = vld [vmem:[%s3 + $0x4] sm:$0xf]
      %v7913 = vld [vmem:[%s3 + $0x8] sm:$0xf]
      %v7914 = vld [vmem:[%s3 + $0xc] sm:$0xf]
      %v7915 = vld [vmem:[%s3 + $0x10] sm:$0xf]
      %v7916 = vld [vmem:[%s3 + $0x14] sm:$0xf]
      %v7917 = vld [vmem:[%s3 + $0x18] sm:$0xf]
      %v7918 = vld [vmem:[%s3 + $0x1c] sm:$0xf]
      %v7919 = vld [vmem:[%s3 + $0x20] sm:$0xf]
      %v7920 = vld [vmem:[%s3 + $0x24] sm:$0xf]
      %v7921 = vld [vmem:[%s3 + $0x28] sm:$0xf]
      %v7922 = vld [vmem:[%s3 + $0x2c] sm:$0xf]
      %v7923 = vld [vmem:[%s3 + $0x30] sm:$0xf]
      %v7924 = vld [vmem:[%s3 + $0x34] sm:$0xf]
      %v7925 = vld [vmem:[%s3 + $0x38] sm:$0xf]
      %v7926 = vld [vmem:[%s3 + $0x3c] sm:$0xf]
      %v7927 = vld [vmem:[%s3 + $0x40] sm:$0xf]
      %v7928 = vld [vmem:[%s3 + $0x44] sm:$0xf]
      %v7929 = vld [vmem:[%s3 + $0x48] sm:$0xf]
      %v7930 = vld [vmem:[%s3 + $0x4c] sm:$0xf]
      %v7931 = vld [vmem:[%s3 + $0x50] sm:$0xf]
      %v7932 = vld [vmem:[%s3 + $0x54] sm:$0xf]
      %v7933 = vld [vmem:[%s3 + $0x58] sm:$0xf]
      %v7934 = vld [vmem:[%s3 + $0x5c] sm:$0xf]
      %v7935 = vld [vmem:[%s3 + $0x60] sm:$0xf]
      %v7936 = vld [vmem:[%s3 + $0x64] sm:$0xf]
      %v7937 = vld [vmem:[%s3 + $0x68] sm:$0xf]
      %v7938 = vld [vmem:[%s3 + $0x6c] sm:$0xf]
      %v7939 = vld [vmem:[%s3 + $0x70] sm:$0xf]
      %v7940 = vld [vmem:[%s3 + $0x74] sm:$0xf]
      %v7941 = vld [vmem:[%s3 + $0x78] sm:$0xf]
      %v7942 = vld [vmem:[%s3 + $0x7c] sm:$0xf]
      %v7943 = vld [vmem:[%s3 + $0x80] sm:$0xf]
      %v7944 = vld [vmem:[%s3 + $0x84] sm:$0xf]
      %v7945 = vld [vmem:[%s3 + $0x88] sm:$0xf]
      %v7946 = vld [vmem:[%s3 + $0x8c] sm:$0xf]
      %v7947 = vld [vmem:[%s3 + $0x90] sm:$0xf]
      %v7948 = vld [vmem:[%s3 + $0x94] sm:$0xf]
      %v7949 = vld [vmem:[%s3 + $0x98] sm:$0xf]
      %v7950 = vld [vmem:[%s3 + $0x9c] sm:$0xf]
      %v7951 = vld [vmem:[%s3 + $0xa0] sm:$0xf]
      %v7952 = vld [vmem:[%s3 + $0xa4] sm:$0xf]
      %v7953 = vld [vmem:[%s3 + $0xa8] sm:$0xf]
      %v7954 = vld [vmem:[%s3 + $0xac] sm:$0xf]
      %v7955 = vld [vmem:[%s3 + $0xb0] sm:$0xf]
      %v7956 = vld [vmem:[%s3 + $0xb4] sm:$0xf]
      %v7957 = vld [vmem:[%s3 + $0xb8] sm:$0xf]
      %v7958 = vld [vmem:[%s3 + $0xbc] sm:$0xf]
      %v7959 = vld [vmem:[%s3 + $0xc0] sm:$0xf]
      %v7960 = vld [vmem:[%s3 + $0xc4] sm:$0xf]
      %v7961 = vld [vmem:[%s3 + $0xc8] sm:$0xf]
      %v7962 = vld [vmem:[%s3 + $0xcc] sm:$0xf]
      %v7963 = vld [vmem:[%s3 + $0xd0] sm:$0xf]
      %v7964 = vld [vmem:[%s3 + $0xd4] sm:$0xf]
      %v7965 = vld [vmem:[%s3 + $0xd8] sm:$0xf]
      %v7966 = vld [vmem:[%s3 + $0xdc] sm:$0xf]
      %v7967 = vld [vmem:[%s3 + $0xe0] sm:$0xf]
      %v7968 = vld [vmem:[%s3 + $0xe4] sm:$0xf]
      %v7969 = vld [vmem:[%s3 + $0xe8] sm:$0xf]
      %v7970 = vld [vmem:[%s3 + $0xec] sm:$0xf]
      %v7971 = vld [vmem:[%s3 + $0xf0] sm:$0xf]
      %v7972 = vld [vmem:[%s3 + $0xf4] sm:$0xf]
      %v7973 = vld [vmem:[%s3 + $0xf8] sm:$0xf]
      %v7974 = vld [vmem:[%s3 + $0xfc] sm:$0xf]
      %v7975 = vld [vmem:[%s3 + $0x100] sm:$0xf]
      %v7976 = vld [vmem:[%s3 + $0x104] sm:$0xf]
      %v7977 = vld [vmem:[%s3 + $0x108] sm:$0xf]
      %v7978 = vld [vmem:[%s3 + $0x10c] sm:$0xf]
      %v7979 = vld [vmem:[%s3 + $0x110] sm:$0xf]
      %v7980 = vld [vmem:[%s3 + $0x114] sm:$0xf]
      %v7981 = vld [vmem:[%s3 + $0x118] sm:$0xf]
      %v7982 = vld [vmem:[%s3 + $0x11c] sm:$0xf]
      %v7983 = vld [vmem:[%s3 + $0x120] sm:$0xf]
      %v7984 = vld [vmem:[%s3 + $0x124] sm:$0xf]
      %v7985 = vld [vmem:[%s3 + $0x128] sm:$0xf]
      %v7986 = vld [vmem:[%s3 + $0x12c] sm:$0xf]
      %v7987 = vld [vmem:[%s3 + $0x130] sm:$0xf]
      %v7988 = vld [vmem:[%s3 + $0x134] sm:$0xf]
      %v7989 = vld [vmem:[%s3 + $0x138] sm:$0xf]
      %v7990 = vld [vmem:[%s3 + $0x13c] sm:$0xf]
      %v7991 = vld [vmem:[%s3 + $0x140] sm:$0xf]
      %v7992 = vld [vmem:[%s3 + $0x144] sm:$0xf]
      %v7993 = vld [vmem:[%s3 + $0x148] sm:$0xf]
      %v7994 = vld [vmem:[%s3 + $0x14c] sm:$0xf]
      %v7995 = vld [vmem:[%s3 + $0x150] sm:$0xf]
      %v7996 = vld [vmem:[%s3 + $0x154] sm:$0xf]
      %v7997 = vld [vmem:[%s3 + $0x158] sm:$0xf]
      %v7998 = vld [vmem:[%s3 + $0x15c] sm:$0xf]
      %v7999 = vld [vmem:[%s3 + $0x160] sm:$0xf]
      %v8000 = vld [vmem:[%s3 + $0x164] sm:$0xf]
      %v8001 = vld [vmem:[%s3 + $0x168] sm:$0xf]
      %v8002 = vld [vmem:[%s3 + $0x16c] sm:$0xf]
      %v8003 = vld [vmem:[%s3 + $0x170] sm:$0xf]
      %v8004 = vld [vmem:[%s3 + $0x174] sm:$0xf]
      %v8005 = vld [vmem:[%s3 + $0x178] sm:$0xf]
      %v8006 = vld [vmem:[%s3 + $0x17c] sm:$0xf]
      %v8007 = vld [vmem:[%s3 + $0x180] sm:$0xf]
      %v8008 = vld [vmem:[%s3 + $0x184] sm:$0xf]
      %v8009 = vld [vmem:[%s3 + $0x188] sm:$0xf]
      %v8010 = vld [vmem:[%s3 + $0x18c] sm:$0xf]
      %v8011 = vld [vmem:[%s3 + $0x190] sm:$0xf]
      %v8012 = vld [vmem:[%s3 + $0x194] sm:$0xf]
      %v8013 = vld [vmem:[%s3 + $0x198] sm:$0xf]
      %v8014 = vld [vmem:[%s3 + $0x19c] sm:$0xf]
      %v8015 = vld [vmem:[%s3 + $0x1a0] sm:$0xf]
      %v8016 = vld [vmem:[%s3 + $0x1a4] sm:$0xf]
      %v8017 = vld [vmem:[%s3 + $0x1a8] sm:$0xf]
      %v8018 = vld [vmem:[%s3 + $0x1ac] sm:$0xf]
      %v8019 = vld [vmem:[%s3 + $0x1b0] sm:$0xf]
      %v8020 = vld [vmem:[%s3 + $0x1b4] sm:$0xf]
      %v8021 = vld [vmem:[%s3 + $0x1b8] sm:$0xf]
      %v8022 = vld [vmem:[%s3 + $0x1bc] sm:$0xf]
      %v8023 = vld [vmem:[%s3 + $0x1c0] sm:$0xf]
      %v8024 = vld [vmem:[%s3 + $0x1c4] sm:$0xf]
      %v8025 = vld [vmem:[%s3 + $0x1c8] sm:$0xf]
      %v8026 = vld [vmem:[%s3 + $0x1cc] sm:$0xf]
      %v8027 = vld [vmem:[%s3 + $0x1d0] sm:$0xf]
      %v8028 = vld [vmem:[%s3 + $0x1d4] sm:$0xf]
      %v8029 = vld [vmem:[%s3 + $0x1d8] sm:$0xf]
      %v8030 = vld [vmem:[%s3 + $0x1dc] sm:$0xf]
      %v8031 = vld [vmem:[%s3 + $0x1e0] sm:$0xf]
      %v8032 = vld [vmem:[%s3 + $0x1e4] sm:$0xf]
      %v8033 = vld [vmem:[%s3 + $0x1e8] sm:$0xf]
      %v8034 = vld [vmem:[%s3 + $0x1ec] sm:$0xf]
      %v8035 = vld [vmem:[%s3 + $0x1f0] sm:$0xf]
      %v8036 = vld [vmem:[%s3 + $0x1f4] sm:$0xf]
      %v8037 = vld [vmem:[%s3 + $0x1f8] sm:$0xf]
      %v8038 = vld [vmem:[%s3 + $0x1fc] sm:$0xf]
      %v8039 = vld [vmem:[%s3 + $0x200] sm:$0xf]
      %v8040 = vld [vmem:[%s3 + $0x204] sm:$0xf]
      %v8041 = vld [vmem:[%s3 + $0x208] sm:$0xf]
      %v8042 = vld [vmem:[%s3 + $0x20c] sm:$0xf]
      %v8043 = vld [vmem:[%s3 + $0x210] sm:$0xf]
      %v8044 = vld [vmem:[%s3 + $0x214] sm:$0xf]
      %v8045 = vld [vmem:[%s3 + $0x218] sm:$0xf]
      %v8046 = vld [vmem:[%s3 + $0x21c] sm:$0xf]
      %v8047 = vld [vmem:[%s3 + $0x220] sm:$0xf]
      %v8048 = vld [vmem:[%s3 + $0x224] sm:$0xf]
      %v8049 = vld [vmem:[%s3 + $0x228] sm:$0xf]
      %v8050 = vld [vmem:[%s3 + $0x22c] sm:$0xf]
      %v8051 = vld [vmem:[%s3 + $0x230] sm:$0xf]
      %v8052 = vld [vmem:[%s3 + $0x234] sm:$0xf]
      %v8053 = vld [vmem:[%s3 + $0x238] sm:$0xf]
      %v8054 = vld [vmem:[%s3 + $0x23c] sm:$0xf]
      %v8055 = vld [vmem:[%s3 + $0x240] sm:$0xf]
      %v8056 = vld [vmem:[%s3 + $0x244] sm:$0xf]
      %v8057 = vld [vmem:[%s3 + $0x248] sm:$0xf]
      %v8058 = vld [vmem:[%s3 + $0x24c] sm:$0xf]
      %v8059 = vld [vmem:[%s3 + $0x250] sm:$0xf]
      %v8060 = vld [vmem:[%s3 + $0x254] sm:$0xf]
      %v8061 = vld [vmem:[%s3 + $0x258] sm:$0xf]
      %v8062 = vld [vmem:[%s3 + $0x25c] sm:$0xf]
      %v8063 = vld [vmem:[%s3 + $0x260] sm:$0xf]
      %v8064 = vld [vmem:[%s3 + $0x264] sm:$0xf]
      %v8065 = vld [vmem:[%s3 + $0x268] sm:$0xf]
      %v8066 = vld [vmem:[%s3 + $0x26c] sm:$0xf]
      %v8067 = vld [vmem:[%s3 + $0x270] sm:$0xf]
      %v8068 = vld [vmem:[%s3 + $0x274] sm:$0xf]
      %v8069 = vld [vmem:[%s3 + $0x278] sm:$0xf]
      %v8070 = vld [vmem:[%s3 + $0x27c] sm:$0xf]
      %v8231 = vunpack.c.l.b16 %v7911
      %v8232 = vunpack.c.l.b16 %v7912
      %v8233 = vunpack.c.l.b16 %v7913
      %v8234 = vunpack.c.l.b16 %v7914
      %v8235 = vunpack.c.l.b16 %v7915
      %v8236 = vunpack.c.l.b16 %v7916
      %v8237 = vunpack.c.l.b16 %v7917
      %v8238 = vunpack.c.l.b16 %v7918
      %v8239 = vunpack.c.l.b16 %v7919
      %v8240 = vunpack.c.l.b16 %v7920
      %v8241 = vunpack.c.l.b16 %v7921
      %v8242 = vunpack.c.l.b16 %v7922
      %v8243 = vunpack.c.l.b16 %v7923
      %v8244 = vunpack.c.l.b16 %v7924
      %v8245 = vunpack.c.l.b16 %v7925
      %v8246 = vunpack.c.l.b16 %v7926
      %v8247 = vunpack.c.l.b16 %v7927
      %v8248 = vunpack.c.l.b16 %v7928
      %v8249 = vunpack.c.l.b16 %v7929
      %v8250 = vunpack.c.l.b16 %v7930
      %v8251 = vunpack.c.l.b16 %v7931
      %v8252 = vunpack.c.l.b16 %v7932
      %v8253 = vunpack.c.l.b16 %v7933
      %v8254 = vunpack.c.l.b16 %v7934
      %v8255 = vunpack.c.l.b16 %v7935
      %v8256 = vunpack.c.l.b16 %v7936
      %v8257 = vunpack.c.l.b16 %v7937
      %v8258 = vunpack.c.l.b16 %v7938
      %v8259 = vunpack.c.l.b16 %v7939
      %v8260 = vunpack.c.l.b16 %v7940
      %v8261 = vunpack.c.l.b16 %v7941
      %v8262 = vunpack.c.l.b16 %v7942
      %v8263 = vunpack.c.l.b16 %v7943
      %v8264 = vunpack.c.l.b16 %v7944
      %v8265 = vunpack.c.l.b16 %v7945
      %v8266 = vunpack.c.l.b16 %v7946
      %v8267 = vunpack.c.l.b16 %v7947
      %v8268 = vunpack.c.l.b16 %v7948
      %v8269 = vunpack.c.l.b16 %v7949
      %v8270 = vunpack.c.l.b16 %v7950
      %v8271 = vunpack.c.l.b16 %v7951
      %v8272 = vunpack.c.l.b16 %v7952
      %v8273 = vunpack.c.l.b16 %v7953
      %v8274 = vunpack.c.l.b16 %v7954
      %v8275 = vunpack.c.l.b16 %v7955
      %v8276 = vunpack.c.l.b16 %v7956
      %v8277 = vunpack.c.l.b16 %v7957
      %v8278 = vunpack.c.l.b16 %v7958
      %v8279 = vunpack.c.l.b16 %v7959
      %v8280 = vunpack.c.l.b16 %v7960
      %v8281 = vunpack.c.l.b16 %v7961
      %v8282 = vunpack.c.l.b16 %v7962
      %v8283 = vunpack.c.l.b16 %v7963
      %v8284 = vunpack.c.l.b16 %v7964
      %v8285 = vunpack.c.l.b16 %v7965
      %v8286 = vunpack.c.l.b16 %v7966
      %v8287 = vunpack.c.l.b16 %v7967
      %v8288 = vunpack.c.l.b16 %v7968
      %v8289 = vunpack.c.l.b16 %v7969
      %v8290 = vunpack.c.l.b16 %v7970
      %v8291 = vunpack.c.l.b16 %v7971
      %v8292 = vunpack.c.l.b16 %v7972
      %v8293 = vunpack.c.l.b16 %v7973
      %v8294 = vunpack.c.l.b16 %v7974
      %v8295 = vunpack.c.l.b16 %v7975
      %v8296 = vunpack.c.l.b16 %v7976
      %v8297 = vunpack.c.l.b16 %v7977
      %v8298 = vunpack.c.l.b16 %v7978
      %v8299 = vunpack.c.l.b16 %v7979
      %v8300 = vunpack.c.l.b16 %v7980
      %v8301 = vunpack.c.l.b16 %v7981
      %v8302 = vunpack.c.l.b16 %v7982
      %v8303 = vunpack.c.l.b16 %v7983
      %v8304 = vunpack.c.l.b16 %v7984
      %v8305 = vunpack.c.l.b16 %v7985
      %v8306 = vunpack.c.l.b16 %v7986
      %v8307 = vunpack.c.l.b16 %v7987
      %v8308 = vunpack.c.l.b16 %v7988
      %v8309 = vunpack.c.l.b16 %v7989
      %v8310 = vunpack.c.l.b16 %v7990
      %v8311 = vunpack.c.l.b16 %v7991
      %v8312 = vunpack.c.l.b16 %v7992
      %v8313 = vunpack.c.l.b16 %v7993
      %v8314 = vunpack.c.l.b16 %v7994
      %v8315 = vunpack.c.l.b16 %v7995
      %v8316 = vunpack.c.l.b16 %v7996
      %v8317 = vunpack.c.l.b16 %v7997
      %v8318 = vunpack.c.l.b16 %v7998
      %v8319 = vunpack.c.l.b16 %v7999
      %v8320 = vunpack.c.l.b16 %v8000
      %v8321 = vunpack.c.l.b16 %v8001
      %v8322 = vunpack.c.l.b16 %v8002
      %v8323 = vunpack.c.l.b16 %v8003
      %v8324 = vunpack.c.l.b16 %v8004
      %v8325 = vunpack.c.l.b16 %v8005
      %v8326 = vunpack.c.l.b16 %v8006
      %v8327 = vunpack.c.l.b16 %v8007
      %v8328 = vunpack.c.l.b16 %v8008
      %v8329 = vunpack.c.l.b16 %v8009
      %v8330 = vunpack.c.l.b16 %v8010
      %v8331 = vunpack.c.l.b16 %v8011
      %v8332 = vunpack.c.l.b16 %v8012
      %v8333 = vunpack.c.l.b16 %v8013
      %v8334 = vunpack.c.l.b16 %v8014
      %v8335 = vunpack.c.l.b16 %v8015
      %v8336 = vunpack.c.l.b16 %v8016
      %v8337 = vunpack.c.l.b16 %v8017
      %v8338 = vunpack.c.l.b16 %v8018
      %v8339 = vunpack.c.l.b16 %v8019
      %v8340 = vunpack.c.l.b16 %v8020
      %v8341 = vunpack.c.l.b16 %v8021
      %v8342 = vunpack.c.l.b16 %v8022
      %v8343 = vunpack.c.l.b16 %v8023
      %v8344 = vunpack.c.l.b16 %v8024
      %v8345 = vunpack.c.l.b16 %v8025
      %v8346 = vunpack.c.l.b16 %v8026
      %v8347 = vunpack.c.l.b16 %v8027
      %v8348 = vunpack.c.l.b16 %v8028
      %v8349 = vunpack.c.l.b16 %v8029
      %v8350 = vunpack.c.l.b16 %v8030
      %v8351 = vunpack.c.l.b16 %v8031
      %v8352 = vunpack.c.l.b16 %v8032
      %v8353 = vunpack.c.l.b16 %v8033
      %v8354 = vunpack.c.l.b16 %v8034
      %v8355 = vunpack.c.l.b16 %v8035
      %v8356 = vunpack.c.l.b16 %v8036
      %v8357 = vunpack.c.l.b16 %v8037
      %v8358 = vunpack.c.l.b16 %v8038
      %v8359 = vunpack.c.l.b16 %v8039
      %v8360 = vunpack.c.l.b16 %v8040
      %v8361 = vunpack.c.l.b16 %v8041
      %v8362 = vunpack.c.l.b16 %v8042
      %v8363 = vunpack.c.l.b16 %v8043
      %v8364 = vunpack.c.l.b16 %v8044
      %v8365 = vunpack.c.l.b16 %v8045
      %v8366 = vunpack.c.l.b16 %v8046
      %v8367 = vunpack.c.l.b16 %v8047
      %v8368 = vunpack.c.l.b16 %v8048
      %v8369 = vunpack.c.l.b16 %v8049
      %v8370 = vunpack.c.l.b16 %v8050
      %v8371 = vunpack.c.l.b16 %v8051
      %v8372 = vunpack.c.l.b16 %v8052
      %v8373 = vunpack.c.l.b16 %v8053
      %v8374 = vunpack.c.l.b16 %v8054
      %v8375 = vunpack.c.l.b16 %v8055
      %v8376 = vunpack.c.l.b16 %v8056
      %v8377 = vunpack.c.l.b16 %v8057
      %v8378 = vunpack.c.l.b16 %v8058
      %v8379 = vunpack.c.l.b16 %v8059
      %v8380 = vunpack.c.l.b16 %v8060
      %v8381 = vunpack.c.l.b16 %v8061
      %v8382 = vunpack.c.l.b16 %v8062
      %v8383 = vunpack.c.l.b16 %v8063
      %v8384 = vunpack.c.l.b16 %v8064
      %v8385 = vunpack.c.l.b16 %v8065
      %v8386 = vunpack.c.l.b16 %v8066
      %v8387 = vunpack.c.l.b16 %v8067
      %v8388 = vunpack.c.l.b16 %v8068
      %v8389 = vunpack.c.l.b16 %v8069
      %v8390 = vunpack.c.l.b16 %v8070
      %v8391 = vpack.c.b16 %v8232, %v8231
      %v8392 = vpack.c.b16 %v8234, %v8233
      %v8393 = vpack.c.b16 %v8236, %v8235
      %v8394 = vpack.c.b16 %v8238, %v8237
      %v8395 = vpack.c.b16 %v8240, %v8239
      %v8396 = vpack.c.b16 %v8242, %v8241
      %v8397 = vpack.c.b16 %v8244, %v8243
      %v8398 = vpack.c.b16 %v8246, %v8245
      %v8399 = vpack.c.b16 %v8248, %v8247
      %v8400 = vpack.c.b16 %v8250, %v8249
      %v8401 = vpack.c.b16 %v8252, %v8251
      %v8402 = vpack.c.b16 %v8254, %v8253
      %v8403 = vpack.c.b16 %v8256, %v8255
      %v8404 = vpack.c.b16 %v8258, %v8257
      %v8405 = vpack.c.b16 %v8260, %v8259
      %v8406 = vpack.c.b16 %v8262, %v8261
      %v8407 = vpack.c.b16 %v8264, %v8263
      %v8408 = vpack.c.b16 %v8266, %v8265
      %v8409 = vpack.c.b16 %v8268, %v8267
      %v8410 = vpack.c.b16 %v8270, %v8269
      %v8411 = vpack.c.b16 %v8272, %v8271
      %v8412 = vpack.c.b16 %v8274, %v8273
      %v8413 = vpack.c.b16 %v8276, %v8275
      %v8414 = vpack.c.b16 %v8278, %v8277
      %v8415 = vpack.c.b16 %v8280, %v8279
      %v8416 = vpack.c.b16 %v8282, %v8281
      %v8417 = vpack.c.b16 %v8284, %v8283
      %v8418 = vpack.c.b16 %v8286, %v8285
      %v8419 = vpack.c.b16 %v8288, %v8287
      %v8420 = vpack.c.b16 %v8290, %v8289
      %v8421 = vpack.c.b16 %v8292, %v8291
      %v8422 = vpack.c.b16 %v8294, %v8293
      %v8423 = vpack.c.b16 %v8296, %v8295
      %v8424 = vpack.c.b16 %v8298, %v8297
      %v8425 = vpack.c.b16 %v8300, %v8299
      %v8426 = vpack.c.b16 %v8302, %v8301
      %v8427 = vpack.c.b16 %v8304, %v8303
      %v8428 = vpack.c.b16 %v8306, %v8305
      %v8429 = vpack.c.b16 %v8308, %v8307
      %v8430 = vpack.c.b16 %v8310, %v8309
      %v8431 = vpack.c.b16 %v8312, %v8311
      %v8432 = vpack.c.b16 %v8314, %v8313
      %v8433 = vpack.c.b16 %v8316, %v8315
      %v8434 = vpack.c.b16 %v8318, %v8317
      %v8435 = vpack.c.b16 %v8320, %v8319
      %v8436 = vpack.c.b16 %v8322, %v8321
      %v8437 = vpack.c.b16 %v8324, %v8323
      %v8438 = vpack.c.b16 %v8326, %v8325
      %v8439 = vpack.c.b16 %v8328, %v8327
      %v8440 = vpack.c.b16 %v8330, %v8329
      %v8441 = vpack.c.b16 %v8332, %v8331
      %v8442 = vpack.c.b16 %v8334, %v8333
      %v8443 = vpack.c.b16 %v8336, %v8335
      %v8444 = vpack.c.b16 %v8338, %v8337
      %v8445 = vpack.c.b16 %v8340, %v8339
      %v8446 = vpack.c.b16 %v8342, %v8341
      %v8447 = vpack.c.b16 %v8344, %v8343
      %v8448 = vpack.c.b16 %v8346, %v8345
      %v8449 = vpack.c.b16 %v8348, %v8347
      %v8450 = vpack.c.b16 %v8350, %v8349
      %v8451 = vpack.c.b16 %v8352, %v8351
      %v8452 = vpack.c.b16 %v8354, %v8353
      %v8453 = vpack.c.b16 %v8356, %v8355
      %v8454 = vpack.c.b16 %v8358, %v8357
      %v8455 = vpack.c.b16 %v8360, %v8359
      %v8456 = vpack.c.b16 %v8362, %v8361
      %v8457 = vpack.c.b16 %v8364, %v8363
      %v8458 = vpack.c.b16 %v8366, %v8365
      %v8459 = vpack.c.b16 %v8368, %v8367
      %v8460 = vpack.c.b16 %v8370, %v8369
      %v8461 = vpack.c.b16 %v8372, %v8371
      %v8462 = vpack.c.b16 %v8374, %v8373
      %v8463 = vpack.c.b16 %v8376, %v8375
      %v8464 = vpack.c.b16 %v8378, %v8377
      %v8465 = vpack.c.b16 %v8380, %v8379
      %v8466 = vpack.c.b16 %v8382, %v8381
      %v8467 = vpack.c.b16 %v8384, %v8383
      %v8468 = vpack.c.b16 %v8386, %v8385
      %v8469 = vpack.c.b16 %v8388, %v8387
      %v8470 = vpack.c.b16 %v8390, %v8389
      %8551 = vmatprep.subr.bf16.mxu0 0
      %8552 = vmatpush1.bf16.msra.mxu0 %v8391
      %8553 = vmatprep.subr.bf16.mxu0 0
      %8554 = vmatpush1.bf16.msra.mxu0 %v8392
      %8555 = vmatprep.subr.bf16.mxu0 0
      %8556 = vmatpush1.bf16.msra.mxu0 %v8393
      %8557 = vmatprep.subr.bf16.mxu0 0
      %8558 = vmatpush1.bf16.msra.mxu0 %v8394
      %8559 = vmatprep.subr.bf16.mxu0 0
      %8560 = vmatpush1.bf16.msra.mxu0 %v8395
      %8561 = vmatprep.subr.bf16.mxu0 0
      %8562 = vmatpush1.bf16.msra.mxu0 %v8396
      %8563 = vmatprep.subr.bf16.mxu0 0
      %8564 = vmatpush1.bf16.msra.mxu0 %v8397
      %8565 = vmatprep.subr.bf16.mxu0 0
      %8566 = vmatpush1.bf16.msra.mxu0 %v8398
      %8567 = vmatprep.subr.bf16.mxu0 0
      %8568 = vmatpush1.bf16.msra.mxu0 %v8399
      %8569 = vmatprep.subr.bf16.mxu0 0
      %8570 = vmatpush1.bf16.msra.mxu0 %v8400
      %8571 = vmatprep.subr.bf16.mxu0 0
      %8572 = vmatpush1.bf16.msra.mxu0 %v8401
      %8573 = vmatprep.subr.bf16.mxu0 0
      %8574 = vmatpush1.bf16.msra.mxu0 %v8402
      %8575 = vmatprep.subr.bf16.mxu0 0
      %8576 = vmatpush1.bf16.msra.mxu0 %v8403
      %8577 = vmatprep.subr.bf16.mxu0 0
      %8578 = vmatpush1.bf16.msra.mxu0 %v8404
      %8579 = vmatprep.subr.bf16.mxu0 0
      %8580 = vmatpush1.bf16.msra.mxu0 %v8405
      %8581 = vmatprep.subr.bf16.mxu0 0
      %8582 = vmatpush1.bf16.msra.mxu0 %v8406
      %8583 = vmatprep.mubr.bf16.mxu0 %v7303
      %8584 = vmatmul.mubr.bf16.gmra.mrb[0].mxu0 %v7239
      %v8585 = vpop.f32.mrb[0].mxu0
      %v8586 = vadd.f32 0.0, %v8585
      %v8587 = vpop.f32.mrb[0].mxu0
      %v8588 = vpop.f32.mrb[0].mxu0
      %v8589 = vadd.f32 0.0, %v8588
      %v8590 = vpop.f32.mrb[0].mxu0
      %8591 = vmatprep.mubr.bf16.mxu0 %v7304
      %8592 = vmatmul.mubr.bf16.gmra.mrb[0].mxu0 %v7240
      %v8593 = vpop.f32.mrb[0].mxu0
      %v8594 = vadd.f32 0.0, %v8593
      %v8595 = vpop.f32.mrb[0].mxu0
      %v8596 = vpop.f32.mrb[0].mxu0
      %v8597 = vadd.f32 0.0, %v8596
      %v8598 = vpop.f32.mrb[0].mxu0
      %8599 = vmatprep.mubr.bf16.mxu0 %v7305
      %8600 = vmatmul.mubr.bf16.gmra.mrb[0].mxu0 %v7241
      %v8601 = vpop.f32.mrb[0].mxu0
      %v8602 = vadd.f32 0.0, %v8601
      %v8603 = vpop.f32.mrb[0].mxu0
      %v8604 = vpop.f32.mrb[0].mxu0
      %v8605 = vadd.f32 0.0, %v8604
      %v8606 = vpop.f32.mrb[0].mxu0
      %8607 = vmatprep.mubr.bf16.mxu0 %v7306
      %8608 = vmatmul.mubr.bf16.gmra.mrb[0].mxu0 %v7242
      %v8609 = vpop.f32.mrb[0].mxu0
      %v8610 = vadd.f32 0.0, %v8609
      %v8611 = vpop.f32.mrb[0].mxu0
      %v8612 = vpop.f32.mrb[0].mxu0
      %v8613 = vadd.f32 0.0, %v8612
      %v8614 = vpop.f32.mrb[0].mxu0
      %8615 = vmatprep.mubr.bf16.mxu0 %v7307
      %8616 = vmatmul.mubr.bf16.gmra.mrb[0].mxu0 %v7243
      %v8617 = vpop.f32.mrb[0].mxu0
      %v8618 = vadd.f32 0.0, %v8617
      %v8619 = vpop.f32.mrb[0].mxu0
      %v8620 = vpop.f32.mrb[0].mxu0
      %v8621 = vadd.f32 0.0, %v8620
      %v8622 = vpop.f32.mrb[0].mxu0
      %8623 = vmatprep.mubr.bf16.mxu0 %v7308
      %8624 = vmatmul.mubr.bf16.gmra.mrb[0].mxu0 %v7244
      %v8625 = vpop.f32.mrb[0].mxu0
      %v8626 = vadd.f32 0.0, %v8625
      %v8627 = vpop.f32.mrb[0].mxu0
      %v8628 = vpop.f32.mrb[0].mxu0
      %v8629 = vadd.f32 0.0, %v8628
      %v8630 = vpop.f32.mrb[0].mxu0
      %8631 = vmatprep.mubr.bf16.mxu0 %v7309
      %8632 = vmatmul.mubr.bf16.gmra.mrb[0].mxu0 %v7245
      %v8633 = vpop.f32.mrb[0].mxu0
      %v8634 = vadd.f32 0.0, %v8633
      %v8635 = vpop.f32.mrb[0].mxu0
      %v8636 = vpop.f32.mrb[0].mxu0
      %v8637 = vadd.f32 0.0, %v8636
      %v8638 = vpop.f32.mrb[0].mxu0
      %8639 = vmatprep.mubr.bf16.mxu0 %v7310
      %8640 = vmatmul.mubr.bf16.gmra.mrb[0].mxu0 %v7246
      %v8641 = vpop.f32.mrb[0].mxu0
      %v8642 = vadd.f32 0.0, %v8641
      %v8643 = vpop.f32.mrb[0].mxu0
      %v8644 = vpop.f32.mrb[0].mxu0
      %v8645 = vadd.f32 0.0, %v8644
      %v8646 = vpop.f32.mrb[0].mxu0
      %8647 = vmatprep.mubr.bf16.mxu0 %v7311
      %8648 = vmatmul.mubr.bf16.gmra.mrb[0].mxu0 %v7247
      %v8649 = vpop.f32.mrb[0].mxu0
      %v8650 = vadd.f32 0.0, %v8649
      %v8651 = vpop.f32.mrb[0].mxu0
      %v8652 = vpop.f32.mrb[0].mxu0
      %v8653 = vadd.f32 0.0, %v8652
      %v8654 = vpop.f32.mrb[0].mxu0
      %8655 = vmatprep.mubr.bf16.mxu0 %v7312
      %8656 = vmatmul.mubr.bf16.gmra.mrb[0].mxu0 %v7248
      %v8657 = vpop.f32.mrb[0].mxu0
      %v8658 = vadd.f32 0.0, %v8657
      %v8659 = vpop.f32.mrb[0].mxu0
      %v8660 = vpop.f32.mrb[0].mxu0
      %v8661 = vadd.f32 0.0, %v8660
      %v8662 = vpop.f32.mrb[0].mxu0
      %8663 = vmatprep.mubr.bf16.mxu0 %v7313
      %8664 = vmatmul.mubr.bf16.gmra.mrb[0].mxu0 %v7249
      %v8665 = vpop.f32.mrb[0].mxu0
      %v8666 = vadd.f32 0.0, %v8665
      %v8667 = vpop.f32.mrb[0].mxu0
      %v8668 = vpop.f32.mrb[0].mxu0
      %v8669 = vadd.f32 0.0, %v8668
      %v8670 = vpop.f32.mrb[0].mxu0
      %8671 = vmatprep.mubr.bf16.mxu0 %v7314
      %8672 = vmatmul.mubr.bf16.gmra.mrb[0].mxu0 %v7250
      %v8673 = vpop.f32.mrb[0].mxu0
      %v8674 = vadd.f32 0.0, %v8673
      %v8675 = vpop.f32.mrb[0].mxu0
      %v8676 = vpop.f32.mrb[0].mxu0
      %v8677 = vadd.f32 0.0, %v8676
      %v8678 = vpop.f32.mrb[0].mxu0
      %8679 = vmatprep.mubr.bf16.mxu0 %v7315
      %8680 = vmatmul.mubr.bf16.gmra.mrb[0].mxu0 %v7251
      %v8681 = vpop.f32.mrb[0].mxu0
      %v8682 = vadd.f32 0.0, %v8681
      %v8683 = vpop.f32.mrb[0].mxu0
      %v8684 = vpop.f32.mrb[0].mxu0
      %v8685 = vadd.f32 0.0, %v8684
      %v8686 = vpop.f32.mrb[0].mxu0
      %8687 = vmatprep.mubr.bf16.mxu0 %v7316
      %8688 = vmatmul.mubr.bf16.gmra.mrb[0].mxu0 %v7252
      %v8689 = vpop.f32.mrb[0].mxu0
      %v8690 = vadd.f32 0.0, %v8689
      %v8691 = vpop.f32.mrb[0].mxu0
      %v8692 = vpop.f32.mrb[0].mxu0
      %v8693 = vadd.f32 0.0, %v8692
      %v8694 = vpop.f32.mrb[0].mxu0
      %8695 = vmatprep.mubr.bf16.mxu0 %v7317
      %8696 = vmatmul.mubr.bf16.gmra.mrb[0].mxu0 %v7253
      %v8697 = vpop.f32.mrb[0].mxu0
      %v8698 = vadd.f32 0.0, %v8697
      %v8699 = vpop.f32.mrb[0].mxu0
      %v8700 = vpop.f32.mrb[0].mxu0
      %v8701 = vadd.f32 0.0, %v8700
      %v8702 = vpop.f32.mrb[0].mxu0
      %8703 = vmatprep.mubr.bf16.mxu0 %v7318
      %8704 = vmatmul.mubr.bf16.gmra.mrb[0].mxu0 %v7254
      %v8705 = vpop.f32.mrb[0].mxu0
      %v8706 = vadd.f32 0.0, %v8705
      %v8707 = vpop.f32.mrb[0].mxu0
      %v8708 = vpop.f32.mrb[0].mxu0
      %v8709 = vadd.f32 0.0, %v8708
      %v8710 = vpop.f32.mrb[0].mxu0
      %8711 = vdwg.mxu0
      %8712 = vmatprep.subr.bf16.mxu0 0
      %8713 = vmatpush1.bf16.msra.mxu0 %v8407
      %8714 = vmatprep.subr.bf16.mxu0 0
      %8715 = vmatpush1.bf16.msra.mxu0 %v8408
      %8716 = vmatprep.subr.bf16.mxu0 0
      %8717 = vmatpush1.bf16.msra.mxu0 %v8409
      %8718 = vmatprep.subr.bf16.mxu0 0
      %8719 = vmatpush1.bf16.msra.mxu0 %v8410
      %8720 = vmatprep.subr.bf16.mxu0 0
      %8721 = vmatpush1.bf16.msra.mxu0 %v8411
      %8722 = vmatprep.subr.bf16.mxu0 0
      %8723 = vmatpush1.bf16.msra.mxu0 %v8412
      %8724 = vmatprep.subr.bf16.mxu0 0
      %8725 = vmatpush1.bf16.msra.mxu0 %v8413
      %8726 = vmatprep.subr.bf16.mxu0 0
      %8727 = vmatpush1.bf16.msra.mxu0 %v8414
      %8728 = vmatprep.subr.bf16.mxu0 0
      %8729 = vmatpush1.bf16.msra.mxu0 %v8415
      %8730 = vmatprep.subr.bf16.mxu0 0
      %8731 = vmatpush1.bf16.msra.mxu0 %v8416
      %8732 = vmatprep.subr.bf16.mxu0 0
      %8733 = vmatpush1.bf16.msra.mxu0 %v8417
      %8734 = vmatprep.subr.bf16.mxu0 0
      %8735 = vmatpush1.bf16.msra.mxu0 %v8418
      %8736 = vmatprep.subr.bf16.mxu0 0
      %8737 = vmatpush1.bf16.msra.mxu0 %v8419
      %8738 = vmatprep.subr.bf16.mxu0 0
      %8739 = vmatpush1.bf16.msra.mxu0 %v8420
      %8740 = vmatprep.subr.bf16.mxu0 0
      %8741 = vmatpush1.bf16.msra.mxu0 %v8421
      %8742 = vmatprep.subr.bf16.mxu0 0
      %8743 = vmatpush1.bf16.msra.mxu0 %v8422
      %8744 = vmatprep.mubr.bf16.mxu0 %v7447
      %8745 = vmatmul.mubr.bf16.gmra.mrb[0].mxu0 %v7367
      %v8746 = vpop.f32.mrb[0].mxu0
      %v8747 = vadd.f32 %v8586, %v8746
      %v8748 = vpop.f32.mrb[0].mxu0
      %v8749 = vpop.f32.mrb[0].mxu0
      %v8750 = vadd.f32 %v8589, %v8749
      %v8751 = vpop.f32.mrb[0].mxu0
      %8752 = vmatprep.mubr.bf16.mxu0 %v7448
      %8753 = vmatmul.mubr.bf16.gmra.mrb[0].mxu0 %v7368
      %v8754 = vpop.f32.mrb[0].mxu0
      %v8755 = vadd.f32 %v8594, %v8754
      %v8756 = vpop.f32.mrb[0].mxu0
      %v8757 = vpop.f32.mrb[0].mxu0
      %v8758 = vadd.f32 %v8597, %v8757
      %v8759 = vpop.f32.mrb[0].mxu0
      %8760 = vmatprep.mubr.bf16.mxu0 %v7449
      %8761 = vmatmul.mubr.bf16.gmra.mrb[0].mxu0 %v7369
      %v8762 = vpop.f32.mrb[0].mxu0
      %v8763 = vadd.f32 %v8602, %v8762
      %v8764 = vpop.f32.mrb[0].mxu0
      %v8765 = vpop.f32.mrb[0].mxu0
      %v8766 = vadd.f32 %v8605, %v8765
      %v8767 = vpop.f32.mrb[0].mxu0
      %8768 = vmatprep.mubr.bf16.mxu0 %v7450
      %8769 = vmatmul.mubr.bf16.gmra.mrb[0].mxu0 %v7370
      %v8770 = vpop.f32.mrb[0].mxu0
      %v8771 = vadd.f32 %v8610, %v8770
      %v8772 = vpop.f32.mrb[0].mxu0
      %v8773 = vpop.f32.mrb[0].mxu0
      %v8774 = vadd.f32 %v8613, %v8773
      %v8775 = vpop.f32.mrb[0].mxu0
      %8776 = vmatprep.mubr.bf16.mxu0 %v7451
      %8777 = vmatmul.mubr.bf16.gmra.mrb[0].mxu0 %v7371
      %v8778 = vpop.f32.mrb[0].mxu0
      %v8779 = vadd.f32 %v8618, %v8778
      %v8780 = vpop.f32.mrb[0].mxu0
      %v8781 = vpop.f32.mrb[0].mxu0
      %v8782 = vadd.f32 %v8621, %v8781
      %v8783 = vpop.f32.mrb[0].mxu0
      %8784 = vmatprep.mubr.bf16.mxu0 %v7452
      %8785 = vmatmul.mubr.bf16.gmra.mrb[0].mxu0 %v7372
      %v8786 = vpop.f32.mrb[0].mxu0
      %v8787 = vadd.f32 %v8626, %v8786
      %v8788 = vpop.f32.mrb[0].mxu0
      %v8789 = vpop.f32.mrb[0].mxu0
      %v8790 = vadd.f32 %v8629, %v8789
      %v8791 = vpop.f32.mrb[0].mxu0
      %8792 = vmatprep.mubr.bf16.mxu0 %v7453
      %8793 = vmatmul.mubr.bf16.gmra.mrb[0].mxu0 %v7373
      %v8794 = vpop.f32.mrb[0].mxu0
      %v8795 = vadd.f32 %v8634, %v8794
      %v8796 = vpop.f32.mrb[0].mxu0
      %v8797 = vpop.f32.mrb[0].mxu0
      %v8798 = vadd.f32 %v8637, %v8797
      %v8799 = vpop.f32.mrb[0].mxu0
      %8800 = vmatprep.mubr.bf16.mxu0 %v7454
      %8801 = vmatmul.mubr.bf16.gmra.mrb[0].mxu0 %v7374
      %v8802 = vpop.f32.mrb[0].mxu0
      %v8803 = vadd.f32 %v8642, %v8802
      %v8804 = vpop.f32.mrb[0].mxu0
      %v8805 = vpop.f32.mrb[0].mxu0
      %v8806 = vadd.f32 %v8645, %v8805
      %v8807 = vpop.f32.mrb[0].mxu0
      %8808 = vmatprep.mubr.bf16.mxu0 %v7455
      %8809 = vmatmul.mubr.bf16.gmra.mrb[0].mxu0 %v7375
      %v8810 = vpop.f32.mrb[0].mxu0
      %v8811 = vadd.f32 %v8650, %v8810
      %v8812 = vpop.f32.mrb[0].mxu0
      %v8813 = vpop.f32.mrb[0].mxu0
      %v8814 = vadd.f32 %v8653, %v8813
      %v8815 = vpop.f32.mrb[0].mxu0
      %8816 = vmatprep.mubr.bf16.mxu0 %v7456
      %8817 = vmatmul.mubr.bf16.gmra.mrb[0].mxu0 %v7376
      %v8818 = vpop.f32.mrb[0].mxu0
      %v8819 = vadd.f32 %v8658, %v8818
      %v8820 = vpop.f32.mrb[0].mxu0
      %v8821 = vpop.f32.mrb[0].mxu0
      %v8822 = vadd.f32 %v8661, %v8821
      %v8823 = vpop.f32.mrb[0].mxu0
      %8824 = vmatprep.mubr.bf16.mxu0 %v7457
      %8825 = vmatmul.mubr.bf16.gmra.mrb[0].mxu0 %v7377
      %v8826 = vpop.f32.mrb[0].mxu0
      %v8827 = vadd.f32 %v8666, %v8826
      %v8828 = vpop.f32.mrb[0].mxu0
      %v8829 = vpop.f32.mrb[0].mxu0
      %v8830 = vadd.f32 %v8669, %v8829
      %v8831 = vpop.f32.mrb[0].mxu0
      %8832 = vmatprep.mubr.bf16.mxu0 %v7458
      %8833 = vmatmul.mubr.bf16.gmra.mrb[0].mxu0 %v7378
      %v8834 = vpop.f32.mrb[0].mxu0
      %v8835 = vadd.f32 %v8674, %v8834
      %v8836 = vpop.f32.mrb[0].mxu0
      %v8837 = vpop.f32.mrb[0].mxu0
      %v8838 = vadd.f32 %v8677, %v8837
      %v8839 = vpop.f32.mrb[0].mxu0
      %8840 = vmatprep.mubr.bf16.mxu0 %v7459
      %8841 = vmatmul.mubr.bf16.gmra.mrb[0].mxu0 %v7379
      %v8842 = vpop.f32.mrb[0].mxu0
      %v8843 = vadd.f32 %v8682, %v8842
      %v8844 = vpop.f32.mrb[0].mxu0
      %v8845 = vpop.f32.mrb[0].mxu0
      %v8846 = vadd.f32 %v8685, %v8845
      %v8847 = vpop.f32.mrb[0].mxu0
      %8848 = vmatprep.mubr.bf16.mxu0 %v7460
      %8849 = vmatmul.mubr.bf16.gmra.mrb[0].mxu0 %v7380
      %v8850 = vpop.f32.mrb[0].mxu0
      %v8851 = vadd.f32 %v8690, %v8850
      %v8852 = vpop.f32.mrb[0].mxu0
      %v8853 = vpop.f32.mrb[0].mxu0
      %v8854 = vadd.f32 %v8693, %v8853
      %v8855 = vpop.f32.mrb[0].mxu0
      %8856 = vmatprep.mubr.bf16.mxu0 %v7461
      %8857 = vmatmul.mubr.bf16.gmra.mrb[0].mxu0 %v7381
      %v8858 = vpop.f32.mrb[0].mxu0
      %v8859 = vadd.f32 %v8698, %v8858
      %v8860 = vpop.f32.mrb[0].mxu0
      %v8861 = vpop.f32.mrb[0].mxu0
      %v8862 = vadd.f32 %v8701, %v8861
      %v8863 = vpop.f32.mrb[0].mxu0
      %8864 = vmatprep.mubr.bf16.mxu0 %v7462
      %8865 = vmatmul.mubr.bf16.gmra.mrb[0].mxu0 %v7382
      %v8866 = vpop.f32.mrb[0].mxu0
      %v8867 = vadd.f32 %v8706, %v8866
      %v8868 = vpop.f32.mrb[0].mxu0
      %v8869 = vpop.f32.mrb[0].mxu0
      %v8870 = vadd.f32 %v8709, %v8869
      %v8871 = vpop.f32.mrb[0].mxu0
      %8872 = vdwg.mxu0
      %8873 = vmatprep.subr.bf16.mxu0 0
      %8874 = vmatpush1.bf16.msra.mxu0 %v8423
      %8875 = vmatprep.subr.bf16.mxu0 0
      %8876 = vmatpush1.bf16.msra.mxu0 %v8424
      %8877 = vmatprep.subr.bf16.mxu0 0
      %8878 = vmatpush1.bf16.msra.mxu0 %v8425
      %8879 = vmatprep.subr.bf16.mxu0 0
      %8880 = vmatpush1.bf16.msra.mxu0 %v8426
      %8881 = vmatprep.subr.bf16.mxu0 0
      %8882 = vmatpush1.bf16.msra.mxu0 %v8427
      %8883 = vmatprep.subr.bf16.mxu0 0
      %8884 = vmatpush1.bf16.msra.mxu0 %v8428
      %8885 = vmatprep.subr.bf16.mxu0 0
      %8886 = vmatpush1.bf16.msra.mxu0 %v8429
      %8887 = vmatprep.subr.bf16.mxu0 0
      %8888 = vmatpush1.bf16.msra.mxu0 %v8430
      %8889 = vmatprep.subr.bf16.mxu0 0
      %8890 = vmatpush1.bf16.msra.mxu0 %v8431
      %8891 = vmatprep.subr.bf16.mxu0 0
      %8892 = vmatpush1.bf16.msra.mxu0 %v8432
      %8893 = vmatprep.subr.bf16.mxu0 0
      %8894 = vmatpush1.bf16.msra.mxu0 %v8433
      %8895 = vmatprep.subr.bf16.mxu0 0
      %8896 = vmatpush1.bf16.msra.mxu0 %v8434
      %8897 = vmatprep.subr.bf16.mxu0 0
      %8898 = vmatpush1.bf16.msra.mxu0 %v8435
      %8899 = vmatprep.subr.bf16.mxu0 0
      %8900 = vmatpush1.bf16.msra.mxu0 %v8436
      %8901 = vmatprep.subr.bf16.mxu0 0
      %8902 = vmatpush1.bf16.msra.mxu0 %v8437
      %8903 = vmatprep.subr.bf16.mxu0 0
      %8904 = vmatpush1.bf16.msra.mxu0 %v8438
      %8905 = vmatprep.mubr.bf16.mxu0 %v7575
      %8906 = vmatmul.mubr.bf16.gmra.mrb[0].mxu0 %v7511
      %v8907 = vpop.f32.mrb[0].mxu0
      %v8908 = vadd.f32 %v8747, %v8907
      %v8909 = vpop.f32.mrb[0].mxu0
      %v8910 = vpop.f32.mrb[0].mxu0
      %v8911 = vadd.f32 %v8750, %v8910
      %v8912 = vpop.f32.mrb[0].mxu0
      %8913 = vmatprep.mubr.bf16.mxu0 %v7576
      %8914 = vmatmul.mubr.bf16.gmra.mrb[0].mxu0 %v7512
      %v8915 = vpop.f32.mrb[0].mxu0
      %v8916 = vadd.f32 %v8755, %v8915
      %v8917 = vpop.f32.mrb[0].mxu0
      %v8918 = vpop.f32.mrb[0].mxu0
      %v8919 = vadd.f32 %v8758, %v8918
      %v8920 = vpop.f32.mrb[0].mxu0
      %8921 = vmatprep.mubr.bf16.mxu0 %v7577
      %8922 = vmatmul.mubr.bf16.gmra.mrb[0].mxu0 %v7513
      %v8923 = vpop.f32.mrb[0].mxu0
      %v8924 = vadd.f32 %v8763, %v8923
      %v8925 = vpop.f32.mrb[0].mxu0
      %v8926 = vpop.f32.mrb[0].mxu0
      %v8927 = vadd.f32 %v8766, %v8926
      %v8928 = vpop.f32.mrb[0].mxu0
      %8929 = vmatprep.mubr.bf16.mxu0 %v7578
      %8930 = vmatmul.mubr.bf16.gmra.mrb[0].mxu0 %v7514
      %v8931 = vpop.f32.mrb[0].mxu0
      %v8932 = vadd.f32 %v8771, %v8931
      %v8933 = vpop.f32.mrb[0].mxu0
      %v8934 = vpop.f32.mrb[0].mxu0
      %v8935 = vadd.f32 %v8774, %v8934
      %v8936 = vpop.f32.mrb[0].mxu0
      %8937 = vmatprep.mubr.bf16.mxu0 %v7579
      %8938 = vmatmul.mubr.bf16.gmra.mrb[0].mxu0 %v7515
      %v8939 = vpop.f32.mrb[0].mxu0
      %v8940 = vadd.f32 %v8779, %v8939
      %v8941 = vpop.f32.mrb[0].mxu0
      %v8942 = vpop.f32.mrb[0].mxu0
      %v8943 = vadd.f32 %v8782, %v8942
      %v8944 = vpop.f32.mrb[0].mxu0
      %8945 = vmatprep.mubr.bf16.mxu0 %v7580
      %8946 = vmatmul.mubr.bf16.gmra.mrb[0].mxu0 %v7516
      %v8947 = vpop.f32.mrb[0].mxu0
      %v8948 = vadd.f32 %v8787, %v8947
      %v8949 = vpop.f32.mrb[0].mxu0
      %v8950 = vpop.f32.mrb[0].mxu0
      %v8951 = vadd.f32 %v8790, %v8950
      %v8952 = vpop.f32.mrb[0].mxu0
      %8953 = vmatprep.mubr.bf16.mxu0 %v7581
      %8954 = vmatmul.mubr.bf16.gmra.mrb[0].mxu0 %v7517
      %v8955 = vpop.f32.mrb[0].mxu0
      %v8956 = vadd.f32 %v8795, %v8955
      %v8957 = vpop.f32.mrb[0].mxu0
      %v8958 = vpop.f32.mrb[0].mxu0
      %v8959 = vadd.f32 %v8798, %v8958
      %v8960 = vpop.f32.mrb[0].mxu0
      %8961 = vmatprep.mubr.bf16.mxu0 %v7582
      %8962 = vmatmul.mubr.bf16.gmra.mrb[0].mxu0 %v7518
      %v8963 = vpop.f32.mrb[0].mxu0
      %v8964 = vadd.f32 %v8803, %v8963
      %v8965 = vpop.f32.mrb[0].mxu0
      %v8966 = vpop.f32.mrb[0].mxu0
      %v8967 = vadd.f32 %v8806, %v8966
      %v8968 = vpop.f32.mrb[0].mxu0
      %8969 = vmatprep.mubr.bf16.mxu0 %v7583
      %8970 = vmatmul.mubr.bf16.gmra.mrb[0].mxu0 %v7519
      %v8971 = vpop.f32.mrb[0].mxu0
      %v8972 = vadd.f32 %v8811, %v8971
      %v8973 = vpop.f32.mrb[0].mxu0
      %v8974 = vpop.f32.mrb[0].mxu0
      %v8975 = vadd.f32 %v8814, %v8974
      %v8976 = vpop.f32.mrb[0].mxu0
      %8977 = vmatprep.mubr.bf16.mxu0 %v7584
      %8978 = vmatmul.mubr.bf16.gmra.mrb[0].mxu0 %v7520
      %v8979 = vpop.f32.mrb[0].mxu0
      %v8980 = vadd.f32 %v8819, %v8979
      %v8981 = vpop.f32.mrb[0].mxu0
      %v8982 = vpop.f32.mrb[0].mxu0
      %v8983 = vadd.f32 %v8822, %v8982
      %v8984 = vpop.f32.mrb[0].mxu0
      %8985 = vmatprep.mubr.bf16.mxu0 %v7585
      %8986 = vmatmul.mubr.bf16.gmra.mrb[0].mxu0 %v7521
      %v8987 = vpop.f32.mrb[0].mxu0
      %v8988 = vadd.f32 %v8827, %v8987
      %v8989 = vpop.f32.mrb[0].mxu0
      %v8990 = vpop.f32.mrb[0].mxu0
      %v8991 = vadd.f32 %v8830, %v8990
      %v8992 = vpop.f32.mrb[0].mxu0
      %8993 = vmatprep.mubr.bf16.mxu0 %v7586
      %8994 = vmatmul.mubr.bf16.gmra.mrb[0].mxu0 %v7522
      %v8995 = vpop.f32.mrb[0].mxu0
      %v8996 = vadd.f32 %v8835, %v8995
      %v8997 = vpop.f32.mrb[0].mxu0
      %v8998 = vpop.f32.mrb[0].mxu0
      %v8999 = vadd.f32 %v8838, %v8998
      %v9000 = vpop.f32.mrb[0].mxu0
      %9001 = vmatprep.mubr.bf16.mxu0 %v7587
      %9002 = vmatmul.mubr.bf16.gmra.mrb[0].mxu0 %v7523
      %v9003 = vpop.f32.mrb[0].mxu0
      %v9004 = vadd.f32 %v8843, %v9003
      %v9005 = vpop.f32.mrb[0].mxu0
      %v9006 = vpop.f32.mrb[0].mxu0
      %v9007 = vadd.f32 %v8846, %v9006
      %v9008 = vpop.f32.mrb[0].mxu0
      %9009 = vmatprep.mubr.bf16.mxu0 %v7588
      %9010 = vmatmul.mubr.bf16.gmra.mrb[0].mxu0 %v7524
      %v9011 = vpop.f32.mrb[0].mxu0
      %v9012 = vadd.f32 %v8851, %v9011
      %v9013 = vpop.f32.mrb[0].mxu0
      %v9014 = vpop.f32.mrb[0].mxu0
      %v9015 = vadd.f32 %v8854, %v9014
      %v9016 = vpop.f32.mrb[0].mxu0
      %9017 = vmatprep.mubr.bf16.mxu0 %v7589
      %9018 = vmatmul.mubr.bf16.gmra.mrb[0].mxu0 %v7525
      %v9019 = vpop.f32.mrb[0].mxu0
      %v9020 = vadd.f32 %v8859, %v9019
      %v9021 = vpop.f32.mrb[0].mxu0
      %v9022 = vpop.f32.mrb[0].mxu0
      %v9023 = vadd.f32 %v8862, %v9022
      %v9024 = vpop.f32.mrb[0].mxu0
      %9025 = vmatprep.mubr.bf16.mxu0 %v7590
      %9026 = vmatmul.mubr.bf16.gmra.mrb[0].mxu0 %v7526
      %v9027 = vpop.f32.mrb[0].mxu0
      %v9028 = vadd.f32 %v8867, %v9027
      %v9029 = vpop.f32.mrb[0].mxu0
      %v9030 = vpop.f32.mrb[0].mxu0
      %v9031 = vadd.f32 %v8870, %v9030
      %v9032 = vpop.f32.mrb[0].mxu0
      %9033 = vdwg.mxu0
      %9034 = vmatprep.subr.bf16.mxu0 0
      %9035 = vmatpush1.bf16.msra.mxu0 %v8439
      %9036 = vmatprep.subr.bf16.mxu0 0
      %9037 = vmatpush1.bf16.msra.mxu0 %v8440
      %9038 = vmatprep.subr.bf16.mxu0 0
      %9039 = vmatpush1.bf16.msra.mxu0 %v8441
      %9040 = vmatprep.subr.bf16.mxu0 0
      %9041 = vmatpush1.bf16.msra.mxu0 %v8442
      %9042 = vmatprep.subr.bf16.mxu0 0
      %9043 = vmatpush1.bf16.msra.mxu0 %v8443
      %9044 = vmatprep.subr.bf16.mxu0 0
      %9045 = vmatpush1.bf16.msra.mxu0 %v8444
      %9046 = vmatprep.subr.bf16.mxu0 0
      %9047 = vmatpush1.bf16.msra.mxu0 %v8445
      %9048 = vmatprep.subr.bf16.mxu0 0
      %9049 = vmatpush1.bf16.msra.mxu0 %v8446
      %9050 = vmatprep.subr.bf16.mxu0 0
      %9051 = vmatpush1.bf16.msra.mxu0 %v8447
      %9052 = vmatprep.subr.bf16.mxu0 0
      %9053 = vmatpush1.bf16.msra.mxu0 %v8448
      %9054 = vmatprep.subr.bf16.mxu0 0
      %9055 = vmatpush1.bf16.msra.mxu0 %v8449
      %9056 = vmatprep.subr.bf16.mxu0 0
      %9057 = vmatpush1.bf16.msra.mxu0 %v8450
      %9058 = vmatprep.subr.bf16.mxu0 0
      %9059 = vmatpush1.bf16.msra.mxu0 %v8451
      %9060 = vmatprep.subr.bf16.mxu0 0
      %9061 = vmatpush1.bf16.msra.mxu0 %v8452
      %9062 = vmatprep.subr.bf16.mxu0 0
      %9063 = vmatpush1.bf16.msra.mxu0 %v8453
      %9064 = vmatprep.subr.bf16.mxu0 0
      %9065 = vmatpush1.bf16.msra.mxu0 %v8454
      %9066 = vmatprep.mubr.bf16.mxu0 %v7719
      %9067 = vmatmul.mubr.bf16.gmra.mrb[0].mxu0 %v7655
      %v9068 = vpop.f32.mrb[0].mxu0
      %v9069 = vadd.f32 %v8908, %v9068
      %v9070 = vpop.f32.mrb[0].mxu0
      %v9071 = vpop.f32.mrb[0].mxu0
      %v9072 = vadd.f32 %v8911, %v9071
      %v9073 = vpop.f32.mrb[0].mxu0
      %9074 = vmatprep.mubr.bf16.mxu0 %v7720
      %9075 = vmatmul.mubr.bf16.gmra.mrb[0].mxu0 %v7656
      %v9076 = vpop.f32.mrb[0].mxu0
      %v9077 = vadd.f32 %v8916, %v9076
      %v9078 = vpop.f32.mrb[0].mxu0
      %v9079 = vpop.f32.mrb[0].mxu0
      %v9080 = vadd.f32 %v8919, %v9079
      %v9081 = vpop.f32.mrb[0].mxu0
      %9082 = vmatprep.mubr.bf16.mxu0 %v7721
      %9083 = vmatmul.mubr.bf16.gmra.mrb[0].mxu0 %v7657
      %v9084 = vpop.f32.mrb[0].mxu0
      %v9085 = vadd.f32 %v8924, %v9084
      %v9086 = vpop.f32.mrb[0].mxu0
      %v9087 = vpop.f32.mrb[0].mxu0
      %v9088 = vadd.f32 %v8927, %v9087
      %v9089 = vpop.f32.mrb[0].mxu0
      %9090 = vmatprep.mubr.bf16.mxu0 %v7722
      %9091 = vmatmul.mubr.bf16.gmra.mrb[0].mxu0 %v7658
      %v9092 = vpop.f32.mrb[0].mxu0
      %v9093 = vadd.f32 %v8932, %v9092
      %v9094 = vpop.f32.mrb[0].mxu0
      %v9095 = vpop.f32.mrb[0].mxu0
      %v9096 = vadd.f32 %v8935, %v9095
      %v9097 = vpop.f32.mrb[0].mxu0
      %9098 = vmatprep.mubr.bf16.mxu0 %v7723
      %9099 = vmatmul.mubr.bf16.gmra.mrb[0].mxu0 %v7659
      %v9100 = vpop.f32.mrb[0].mxu0
      %v9101 = vadd.f32 %v8940, %v9100
      %v9102 = vpop.f32.mrb[0].mxu0
      %v9103 = vpop.f32.mrb[0].mxu0
      %v9104 = vadd.f32 %v8943, %v9103
      %v9105 = vpop.f32.mrb[0].mxu0
      %9106 = vmatprep.mubr.bf16.mxu0 %v7724
      %9107 = vmatmul.mubr.bf16.gmra.mrb[0].mxu0 %v7660
      %v9108 = vpop.f32.mrb[0].mxu0
      %v9109 = vadd.f32 %v8948, %v9108
      %v9110 = vpop.f32.mrb[0].mxu0
      %v9111 = vpop.f32.mrb[0].mxu0
      %v9112 = vadd.f32 %v8951, %v9111
      %v9113 = vpop.f32.mrb[0].mxu0
      %9114 = vmatprep.mubr.bf16.mxu0 %v7725
      %9115 = vmatmul.mubr.bf16.gmra.mrb[0].mxu0 %v7661
      %v9116 = vpop.f32.mrb[0].mxu0
      %v9117 = vadd.f32 %v8956, %v9116
      %v9118 = vpop.f32.mrb[0].mxu0
      %v9119 = vpop.f32.mrb[0].mxu0
      %v9120 = vadd.f32 %v8959, %v9119
      %v9121 = vpop.f32.mrb[0].mxu0
      %9122 = vmatprep.mubr.bf16.mxu0 %v7726
      %9123 = vmatmul.mubr.bf16.gmra.mrb[0].mxu0 %v7662
      %v9124 = vpop.f32.mrb[0].mxu0
      %v9125 = vadd.f32 %v8964, %v9124
      %v9126 = vpop.f32.mrb[0].mxu0
      %v9127 = vpop.f32.mrb[0].mxu0
      %v9128 = vadd.f32 %v8967, %v9127
      %v9129 = vpop.f32.mrb[0].mxu0
      %9130 = vmatprep.mubr.bf16.mxu0 %v7727
      %9131 = vmatmul.mubr.bf16.gmra.mrb[0].mxu0 %v7663
      %v9132 = vpop.f32.mrb[0].mxu0
      %v9133 = vadd.f32 %v8972, %v9132
      %v9134 = vpop.f32.mrb[0].mxu0
      %v9135 = vpop.f32.mrb[0].mxu0
      %v9136 = vadd.f32 %v8975, %v9135
      %v9137 = vpop.f32.mrb[0].mxu0
      %9138 = vmatprep.mubr.bf16.mxu0 %v7728
      %9139 = vmatmul.mubr.bf16.gmra.mrb[0].mxu0 %v7664
      %v9140 = vpop.f32.mrb[0].mxu0
      %v9141 = vadd.f32 %v8980, %v9140
      %v9142 = vpop.f32.mrb[0].mxu0
      %v9143 = vpop.f32.mrb[0].mxu0
      %v9144 = vadd.f32 %v8983, %v9143
      %v9145 = vpop.f32.mrb[0].mxu0
      %9146 = vmatprep.mubr.bf16.mxu0 %v7729
      %9147 = vmatmul.mubr.bf16.gmra.mrb[0].mxu0 %v7665
      %v9148 = vpop.f32.mrb[0].mxu0
      %v9149 = vadd.f32 %v8988, %v9148
      %v9150 = vpop.f32.mrb[0].mxu0
      %v9151 = vpop.f32.mrb[0].mxu0
      %v9152 = vadd.f32 %v8991, %v9151
      %v9153 = vpop.f32.mrb[0].mxu0
      %9154 = vmatprep.mubr.bf16.mxu0 %v7730
      %9155 = vmatmul.mubr.bf16.gmra.mrb[0].mxu0 %v7666
      %v9156 = vpop.f32.mrb[0].mxu0
      %v9157 = vadd.f32 %v8996, %v9156
      %v9158 = vpop.f32.mrb[0].mxu0
      %v9159 = vpop.f32.mrb[0].mxu0
      %v9160 = vadd.f32 %v8999, %v9159
      %v9161 = vpop.f32.mrb[0].mxu0
      %9162 = vmatprep.mubr.bf16.mxu0 %v7731
      %9163 = vmatmul.mubr.bf16.gmra.mrb[0].mxu0 %v7667
      %v9164 = vpop.f32.mrb[0].mxu0
      %v9165 = vadd.f32 %v9004, %v9164
      %v9166 = vpop.f32.mrb[0].mxu0
      %v9167 = vpop.f32.mrb[0].mxu0
      %v9168 = vadd.f32 %v9007, %v9167
      %v9169 = vpop.f32.mrb[0].mxu0
      %9170 = vmatprep.mubr.bf16.mxu0 %v7732
      %9171 = vmatmul.mubr.bf16.gmra.mrb[0].mxu0 %v7668
      %v9172 = vpop.f32.mrb[0].mxu0
      %v9173 = vadd.f32 %v9012, %v9172
      %v9174 = vpop.f32.mrb[0].mxu0
      %v9175 = vpop.f32.mrb[0].mxu0
      %v9176 = vadd.f32 %v9015, %v9175
      %v9177 = vpop.f32.mrb[0].mxu0
      %9178 = vmatprep.mubr.bf16.mxu0 %v7733
      %9179 = vmatmul.mubr.bf16.gmra.mrb[0].mxu0 %v7669
      %v9180 = vpop.f32.mrb[0].mxu0
      %v9181 = vadd.f32 %v9020, %v9180
      %v9182 = vpop.f32.mrb[0].mxu0
      %v9183 = vpop.f32.mrb[0].mxu0
      %v9184 = vadd.f32 %v9023, %v9183
      %v9185 = vpop.f32.mrb[0].mxu0
      %9186 = vmatprep.mubr.bf16.mxu0 %v7734
      %9187 = vmatmul.mubr.bf16.gmra.mrb[0].mxu0 %v7670
      %v9188 = vpop.f32.mrb[0].mxu0
      %v9189 = vadd.f32 %v9028, %v9188
      %v9190 = vpop.f32.mrb[0].mxu0
      %v9191 = vpop.f32.mrb[0].mxu0
      %v9192 = vadd.f32 %v9031, %v9191
      %v9193 = vpop.f32.mrb[0].mxu0
      %9194 = vdwg.mxu0
      %9195 = vmatprep.subr.bf16.mxu0 0
      %9196 = vmatpush1.bf16.msra.mxu0 %v8455
      %9197 = vmatprep.subr.bf16.mxu0 0
      %9198 = vmatpush1.bf16.msra.mxu0 %v8456
      %9199 = vmatprep.subr.bf16.mxu0 0
      %9200 = vmatpush1.bf16.msra.mxu0 %v8457
      %9201 = vmatprep.subr.bf16.mxu0 0
      %9202 = vmatpush1.bf16.msra.mxu0 %v8458
      %9203 = vmatprep.subr.bf16.mxu0 0
      %9204 = vmatpush1.bf16.msra.mxu0 %v8459
      %9205 = vmatprep.subr.bf16.mxu0 0
      %9206 = vmatpush1.bf16.msra.mxu0 %v8460
      %9207 = vmatprep.subr.bf16.mxu0 0
      %9208 = vmatpush1.bf16.msra.mxu0 %v8461
      %9209 = vmatprep.subr.bf16.mxu0 0
      %9210 = vmatpush1.bf16.msra.mxu0 %v8462
      %9211 = vmatprep.subr.bf16.mxu0 0
      %9212 = vmatpush1.bf16.msra.mxu0 %v8463
      %9213 = vmatprep.subr.bf16.mxu0 0
      %9214 = vmatpush1.bf16.msra.mxu0 %v8464
      %9215 = vmatprep.subr.bf16.mxu0 0
      %9216 = vmatpush1.bf16.msra.mxu0 %v8465
      %9217 = vmatprep.subr.bf16.mxu0 0
      %9218 = vmatpush1.bf16.msra.mxu0 %v8466
      %9219 = vmatprep.subr.bf16.mxu0 0
      %9220 = vmatpush1.bf16.msra.mxu0 %v8467
      %9221 = vmatprep.subr.bf16.mxu0 0
      %9222 = vmatpush1.bf16.msra.mxu0 %v8468
      %9223 = vmatprep.subr.bf16.mxu0 0
      %9224 = vmatpush1.bf16.msra.mxu0 %v8469
      %9225 = vmatprep.subr.bf16.mxu0 0
      %9226 = vmatpush1.bf16.msra.mxu0 %v8470
      %9227 = vmatprep.mubr.bf16.mxu0 %v7879
      %9228 = vmatmul.mubr.bf16.gmra.mrb[0].mxu0 %v7783
      %v9229 = vpop.f32.mrb[0].mxu0
      %v9230 = vadd.f32 %v9069, %v9229
      %v9231 = vpop.f32.mrb[0].mxu0
      %v9232 = vpop.f32.mrb[0].mxu0
      %v9233 = vadd.f32 %v9072, %v9232
      %v9234 = vpop.f32.mrb[0].mxu0
      %9235 = vmatprep.mubr.bf16.mxu0 %v7880
      %9236 = vmatmul.mubr.bf16.gmra.mrb[0].mxu0 %v7784
      %v9237 = vpop.f32.mrb[0].mxu0
      %v9238 = vadd.f32 %v9077, %v9237
      %v9239 = vpop.f32.mrb[0].mxu0
      %v9240 = vpop.f32.mrb[0].mxu0
      %v9241 = vadd.f32 %v9080, %v9240
      %v9242 = vpop.f32.mrb[0].mxu0
      %9243 = vmatprep.mubr.bf16.mxu0 %v7881
      %9244 = vmatmul.mubr.bf16.gmra.mrb[0].mxu0 %v7785
      %v9245 = vpop.f32.mrb[0].mxu0
      %v9246 = vadd.f32 %v9085, %v9245
      %v9247 = vpop.f32.mrb[0].mxu0
      %v9248 = vpop.f32.mrb[0].mxu0
      %v9249 = vadd.f32 %v9088, %v9248
      %v9250 = vpop.f32.mrb[0].mxu0
      %9251 = vmatprep.mubr.bf16.mxu0 %v7882
      %9252 = vmatmul.mubr.bf16.gmra.mrb[0].mxu0 %v7786
      %v9253 = vpop.f32.mrb[0].mxu0
      %v9254 = vadd.f32 %v9093, %v9253
      %v9255 = vpop.f32.mrb[0].mxu0
      %v9256 = vpop.f32.mrb[0].mxu0
      %v9257 = vadd.f32 %v9096, %v9256
      %v9258 = vpop.f32.mrb[0].mxu0
      %9259 = vmatprep.mubr.bf16.mxu0 %v7883
      %9260 = vmatmul.mubr.bf16.gmra.mrb[0].mxu0 %v7787
      %v9261 = vpop.f32.mrb[0].mxu0
      %v9262 = vadd.f32 %v9101, %v9261
      %v9263 = vpop.f32.mrb[0].mxu0
      %v9264 = vpop.f32.mrb[0].mxu0
      %v9265 = vadd.f32 %v9104, %v9264
      %v9266 = vpop.f32.mrb[0].mxu0
      %9267 = vmatprep.mubr.bf16.mxu0 %v7884
      %9268 = vmatmul.mubr.bf16.gmra.mrb[0].mxu0 %v7788
      %v9269 = vpop.f32.mrb[0].mxu0
      %v9270 = vadd.f32 %v9109, %v9269
      %v9271 = vpop.f32.mrb[0].mxu0
      %v9272 = vpop.f32.mrb[0].mxu0
      %v9273 = vadd.f32 %v9112, %v9272
      %v9274 = vpop.f32.mrb[0].mxu0
      %9275 = vmatprep.mubr.bf16.mxu0 %v7885
      %9276 = vmatmul.mubr.bf16.gmra.mrb[0].mxu0 %v7789
      %v9277 = vpop.f32.mrb[0].mxu0
      %v9278 = vadd.f32 %v9117, %v9277
      %v9279 = vpop.f32.mrb[0].mxu0
      %v9280 = vpop.f32.mrb[0].mxu0
      %v9281 = vadd.f32 %v9120, %v9280
      %v9282 = vpop.f32.mrb[0].mxu0
      %9283 = vmatprep.mubr.bf16.mxu0 %v7886
      %9284 = vmatmul.mubr.bf16.gmra.mrb[0].mxu0 %v7790
      %v9285 = vpop.f32.mrb[0].mxu0
      %v9286 = vadd.f32 %v9125, %v9285
      %v9287 = vpop.f32.mrb[0].mxu0
      %v9288 = vpop.f32.mrb[0].mxu0
      %v9289 = vadd.f32 %v9128, %v9288
      %v9290 = vpop.f32.mrb[0].mxu0
      %9291 = vmatprep.mubr.bf16.mxu0 %v7887
      %9292 = vmatmul.mubr.bf16.gmra.mrb[0].mxu0 %v7791
      %v9293 = vpop.f32.mrb[0].mxu0
      %v9294 = vadd.f32 %v9133, %v9293
      %v9295 = vpop.f32.mrb[0].mxu0
      %v9296 = vpop.f32.mrb[0].mxu0
      %v9297 = vadd.f32 %v9136, %v9296
      %v9298 = vpop.f32.mrb[0].mxu0
      %9299 = vmatprep.mubr.bf16.mxu0 %v7888
      %9300 = vmatmul.mubr.bf16.gmra.mrb[0].mxu0 %v7792
      %v9301 = vpop.f32.mrb[0].mxu0
      %v9302 = vadd.f32 %v9141, %v9301
      %v9303 = vpop.f32.mrb[0].mxu0
      %v9304 = vpop.f32.mrb[0].mxu0
      %v9305 = vadd.f32 %v9144, %v9304
      %v9306 = vpop.f32.mrb[0].mxu0
      %9307 = vmatprep.mubr.bf16.mxu0 %v7889
      %9308 = vmatmul.mubr.bf16.gmra.mrb[0].mxu0 %v7793
      %v9309 = vpop.f32.mrb[0].mxu0
      %v9310 = vadd.f32 %v9149, %v9309
      %v9311 = vpop.f32.mrb[0].mxu0
      %v9312 = vpop.f32.mrb[0].mxu0
      %v9313 = vadd.f32 %v9152, %v9312
      %v9314 = vpop.f32.mrb[0].mxu0
      %9315 = vmatprep.mubr.bf16.mxu0 %v7890
      %9316 = vmatmul.mubr.bf16.gmra.mrb[0].mxu0 %v7794
      %v9317 = vpop.f32.mrb[0].mxu0
      %v9318 = vadd.f32 %v9157, %v9317
      %v9319 = vpop.f32.mrb[0].mxu0
      %v9320 = vpop.f32.mrb[0].mxu0
      %v9321 = vadd.f32 %v9160, %v9320
      %v9322 = vpop.f32.mrb[0].mxu0
      %9323 = vmatprep.mubr.bf16.mxu0 %v7891
      %9324 = vmatmul.mubr.bf16.gmra.mrb[0].mxu0 %v7795
      %v9325 = vpop.f32.mrb[0].mxu0
      %v9326 = vadd.f32 %v9165, %v9325
      %v9327 = vpop.f32.mrb[0].mxu0
      %v9328 = vpop.f32.mrb[0].mxu0
      %v9329 = vadd.f32 %v9168, %v9328
      %v9330 = vpop.f32.mrb[0].mxu0
      %9331 = vmatprep.mubr.bf16.mxu0 %v7892
      %9332 = vmatmul.mubr.bf16.gmra.mrb[0].mxu0 %v7796
      %v9333 = vpop.f32.mrb[0].mxu0
      %v9334 = vadd.f32 %v9173, %v9333
      %v9335 = vpop.f32.mrb[0].mxu0
      %v9336 = vpop.f32.mrb[0].mxu0
      %v9337 = vadd.f32 %v9176, %v9336
      %v9338 = vpop.f32.mrb[0].mxu0
      %9339 = vmatprep.mubr.bf16.mxu0 %v7893
      %9340 = vmatmul.mubr.bf16.gmra.mrb[0].mxu0 %v7797
      %v9341 = vpop.f32.mrb[0].mxu0
      %v9342 = vadd.f32 %v9181, %v9341
      %v9343 = vpop.f32.mrb[0].mxu0
      %v9344 = vpop.f32.mrb[0].mxu0
      %v9345 = vadd.f32 %v9184, %v9344
      %v9346 = vpop.f32.mrb[0].mxu0
      %9347 = vmatprep.mubr.bf16.mxu0 %v7894
      %9348 = vmatmul.mubr.bf16.gmra.mrb[0].mxu0 %v7798
      %v9349 = vpop.f32.mrb[0].mxu0
      %v9350 = vadd.f32 %v9189, %v9349
      %v9351 = vpop.f32.mrb[0].mxu0
      %v9352 = vpop.f32.mrb[0].mxu0
      %v9353 = vadd.f32 %v9192, %v9352
      %v9354 = vpop.f32.mrb[0].mxu0
      %9355 = vdwg.mxu0
      %v9356 = vadd.f32 %v9230, %v9238
      %v9357 = vadd.f32 %v9233, %v9241
      %v9358 = vadd.f32 %v9246, %v9254
      %v9359 = vadd.f32 %v9249, %v9257
      %v9360 = vadd.f32 %v9262, %v9270
      %v9361 = vadd.f32 %v9265, %v9273
      %v9362 = vadd.f32 %v9278, %v9286
      %v9363 = vadd.f32 %v9281, %v9289
      %v9364 = vadd.f32 %v9294, %v9302
      %v9365 = vadd.f32 %v9297, %v9305
      %v9366 = vadd.f32 %v9310, %v9318
      %v9367 = vadd.f32 %v9313, %v9321
      %v9368 = vadd.f32 %v9326, %v9334
      %v9369 = vadd.f32 %v9329, %v9337
      %v9370 = vadd.f32 %v9342, %v9350
      %v9371 = vadd.f32 %v9345, %v9353
      %9372 = vst [vmem:[#allocation4] sm:$0xff] %v9356
      %9373 = vst [vmem:[#allocation4 + $0x8] sm:$0xff] %v9357
      %9374 = vst [vmem:[#allocation4 + $0x10] sm:$0xff] %v9358
      %9375 = vst [vmem:[#allocation4 + $0x18] sm:$0xff] %v9359
      %9376 = vst [vmem:[#allocation4 + $0x20] sm:$0xff] %v9360
      %9377 = vst [vmem:[#allocation4 + $0x28] sm:$0xff] %v9361
      %9378 = vst [vmem:[#allocation4 + $0x30] sm:$0xff] %v9362
      %9379 = vst [vmem:[#allocation4 + $0x38] sm:$0xff] %v9363
      %9380 = vst [vmem:[#allocation4 + $0x40] sm:$0xff] %v9364
      %9381 = vst [vmem:[#allocation4 + $0x48] sm:$0xff] %v9365
      %9382 = vst [vmem:[#allocation4 + $0x50] sm:$0xff] %v9366
      %9383 = vst [vmem:[#allocation4 + $0x58] sm:$0xff] %v9367
      %9384 = vst [vmem:[#allocation4 + $0x60] sm:$0xff] %v9368
      %9385 = vst [vmem:[#allocation4 + $0x68] sm:$0xff] %v9369
      %9386 = vst [vmem:[#allocation4 + $0x70] sm:$0xff] %v9370
      %9387 = vst [vmem:[#allocation4 + $0x78] sm:$0xff] %v9371
      %v9388 = vld [vmem:[#allocation4] ss:$2 sm:$0xff]
      %s9389 = scalar_lea.vmem [#allocation4], 16
      %v9390 = vld [vmem:[%s9389] ss:$2 sm:$0xff]
      %s9391 = scalar_lea.vmem [#allocation4], 32
      %v9392 = vld [vmem:[%s9391] ss:$2 sm:$0xff]
      %s9393 = scalar_lea.vmem [#allocation4], 48
      %v9394 = vld [vmem:[%s9393] ss:$2 sm:$0xff]
      %s9395 = scalar_lea.vmem [#allocation4], 64
      %v9396 = vld [vmem:[%s9395] ss:$2 sm:$0xff]
      %s9397 = scalar_lea.vmem [#allocation4], 80
      %v9398 = vld [vmem:[%s9397] ss:$2 sm:$0xff]
      %s9399 = scalar_lea.vmem [#allocation4], 96
      %v9400 = vld [vmem:[%s9399] ss:$2 sm:$0xff]
      %s9401 = scalar_lea.vmem [#allocation4], 112
      %v9402 = vld [vmem:[%s9401] ss:$2 sm:$0xff]
      %s9403 = scalar_lea.vmem [#allocation4], 1
      %v9404 = vld [vmem:[%s9403] ss:$2 sm:$0xff]
      %s9405 = scalar_lea.vmem [#allocation4], 17
      %v9406 = vld [vmem:[%s9405] ss:$2 sm:$0xff]
      %s9407 = scalar_lea.vmem [#allocation4], 33
      %v9408 = vld [vmem:[%s9407] ss:$2 sm:$0xff]
      %s9409 = scalar_lea.vmem [#allocation4], 49
      %v9410 = vld [vmem:[%s9409] ss:$2 sm:$0xff]
      %s9411 = scalar_lea.vmem [#allocation4], 65
      %v9412 = vld [vmem:[%s9411] ss:$2 sm:$0xff]
      %s9413 = scalar_lea.vmem [#allocation4], 81
      %v9414 = vld [vmem:[%s9413] ss:$2 sm:$0xff]
      %s9415 = scalar_lea.vmem [#allocation4], 97
      %v9416 = vld [vmem:[%s9415] ss:$2 sm:$0xff]
      %s9417 = scalar_lea.vmem [#allocation4], 113
      %v9418 = vld [vmem:[%s9417] ss:$2 sm:$0xff]
      %v9419 = vadd.f32 %v9388, %v9404
      %v9420 = vadd.f32 %v9390, %v9406
      %v9421 = vadd.f32 %v9392, %v9408
      %v9422 = vadd.f32 %v9394, %v9410
      %v9423 = vadd.f32 %v9396, %v9412
      %v9424 = vadd.f32 %v9398, %v9414
      %v9425 = vadd.f32 %v9400, %v9416
      %v9426 = vadd.f32 %v9402, %v9418
      %v9427 = vmul.f32 %v9419, 0.25
      %v9428 = vmul.f32 %v9420, 0.25
      %v9429 = vmul.f32 %v9421, 0.25
      %v9430 = vmul.f32 %v9422, 0.25
      %v9431 = vmul.f32 %v9423, 0.25
      %v9432 = vmul.f32 %v9424, 0.25
      %v9433 = vmul.f32 %v9425, 0.25
      %v9434 = vmul.f32 %v9426, 0.25
      %v9435 = vld [vmem:[%s4] sm:$0x1]
      %v9437 = vlaneseq
      %v9438 = vshrl.u32 %v9437, 7
      %v9439 = vsub.s32 0, %v9438
      %v9440 = vrot.slane %v9435, %v9439
      %v9442 = vadd.f32 %v9427, %v9440
      %v9443 = vadd.f32 %v9428, %v9440
      %v9444 = vadd.f32 %v9429, %v9440
      %v9445 = vadd.f32 %v9430, %v9440
      %v9446 = vadd.f32 %v9431, %v9440
      %v9447 = vadd.f32 %v9432, %v9440
      %v9448 = vadd.f32 %v9433, %v9440
      %v9449 = vadd.f32 %v9434, %v9440
      %9450 = vst [vmem:[%s224] sm:$0xff] %v9442
      %9451 = vst [vmem:[%s224 + $0x8] sm:$0xff] %v9443
      %9452 = vst [vmem:[%s224 + $0x10] sm:$0xff] %v9444
      %9453 = vst [vmem:[%s224 + $0x18] sm:$0xff] %v9445
      %9454 = vst [vmem:[%s224 + $0x20] sm:$0xff] %v9446
      %9455 = vst [vmem:[%s224 + $0x28] sm:$0xff] %v9447
      %9456 = vst [vmem:[%s224 + $0x30] sm:$0xff] %v9448
      %9457 = vst [vmem:[%s224 + $0x38] sm:$0xff] %v9449
      %p9458 = scmp.lt.s32.totalorder %s16, 1
      %s9459 = scalar_select %p9458, %s16, 1
      %s9460 = smul.addr %s9459, 8
      %s9461 = smul.addr %s9460, 8
      %s9462 = scalar_lea.vmem %s5, %s9461
      // Predicated region
      $region41: #{disc_block_forward.1} parent=39 // pred_check
        %p9463 = pneg %p144
      $region42: #{disc_block_forward.1} parent=39 // pred_check_branch
        %9465 = sbr.rel (%p9463) target = $region44
      $region43: #{disc_block_forward.1} parent=39 // pred_region
        _
      $region44: #{disc_block_forward.1} parent=39 // pred_fallthru
        _
    $region40: #{disc_block_forward.1} parent=5 // pred_fallthru
      _
    %p9466 = scmp.le.s32.totalorder 2, %s11
    // Predicated region
    $region45: #{disc_block_forward.1} parent=5 // pred_check
      %p9467 = pneg %p9466
    $region46: #{disc_block_forward.1} parent=5 // pred_check_branch
      %9469 = sbr.rel (%p9467) target = $region48
    $region47: #{disc_block_forward.1} parent=5 // pred_region
      %s9470 = ssub.s32 %s11, 2
      // Predicated region
      $region49: #{disc_block_forward.1} parent=47 // pred_check
        %p9471 = pneg %p150
      $region50: #{disc_block_forward.1} parent=47 // pred_check_branch
        %9473 = sbr.rel (%p9471) target = $region52
      $region51: #{disc_block_forward.1} parent=47 // pred_region
        %p9474 = scmp.lt.s32.totalorder %s17, 1
        %s9475 = scalar_select %p9474, %s17, 1
        %s9476 = smul.addr %s9475, 8
        %s9477 = smul.addr %s9476, 8
        %s9478 = scalar_lea.vmem %s5, %s9477
      $region52: #{disc_block_forward.1} parent=47 // pred_fallthru
        _
    $region48: #{disc_block_forward.1} parent=5 // pred_fallthru
      _
  $region6: #{disc_block_forward.1} parent=0 // loop_footer
    %s15 = sadd.s32 1, %s11
  $region7: #{disc_block_forward.1} parent=0 // loop_footer_branch
    %10 = sbr.rel target = $region3
  $region8: #{disc_block_forward.1} parent=0 // loop_exit
    _

</llo_original>
